<compile_context>
chip_gen: v5e
topology: v5e:2x2
jax: 0.10.0
libtpu: 0.0.40
codegen_flags: <defaults>
</compile_context>

<pallas_src>
import jax
import jax.numpy as jnp
from jax.experimental import pallas as pl
from jax.experimental.pallas import tpu as pltpu


IN_FEATURES = 784
H1 = 1024
H2 = 2048
NUM_CLASSES = 10
N_PAD = 128      # 10 -> 128: lane-dense output tile (unmasked vst); sliced off outside
TB_MAX = 512     # max batch tile; keeps VMEM footprint well under 32 MiB on all gens


def _round_up(x, m):
    return ((x + m - 1) // m) * m


def _resident_spec(block_shape):
    """VMEM-resident operand: constant index_map, single-buffered when supported."""
    index_map = lambda i: (0,) * len(block_shape)
    try:
        # Constant index_map + never re-fetched after step 0 -> no need to double-buffer.
        return pl.BlockSpec(block_shape, index_map, pipeline_mode=pl.Buffered(1))
    except Exception:
        # Older JAX without pipeline_mode / Buffered(1): fall back to default (correct,
        # just double-buffers ~6.25 MiB of weights).
        return pl.BlockSpec(block_shape, index_map)


def _mlp_kernel(x_ref, w1_ref, b1_ref, w2_ref, b2_ref, w3_ref, b3_ref,
                o_ref, h1_ref, h2_ref):
    """Full 3-layer MLP on one batch tile. Weights stay resident in VMEM across the grid."""
    # bf16 cast of the streamed f32 input happens here (VPU work hidden under the MXU),
    # so the wrapper never materializes a padded / cast copy of x in HBM.
    x = x_ref[...].astype(jnp.bfloat16)

    # layer 1: relu(x @ W1 + b1), f32 accumulation on the MXU (K = 784, Mosaic-masked).
    h1 = jnp.dot(x, w1_ref[...], preferred_element_type=jnp.float32)
    h1 = jnp.maximum(h1 + b1_ref[...], 0.0)
    # (tb, 1024)/(tb, 2048) intermediates far exceed the 256 KiB vreg file at these tile
    # sizes, so an explicit bf16 scratch is the bounded-footprint form of the spill.
    h1_ref[...] = h1.astype(h1_ref.dtype)

    # layer 2: relu(h1 @ W2 + b2)
    h2 = jnp.dot(h1_ref[...], w2_ref[...], preferred_element_type=jnp.float32)
    h2 = jnp.maximum(h2 + b2_ref[...], 0.0)
    h2_ref[...] = h2.astype(h2_ref.dtype)

    # layer 3: h2 @ W3 + b3 (no relu); N padded 10 -> 128 so stores are lane-dense.
    y = jnp.dot(h2_ref[...], w3_ref[...], preferred_element_type=jnp.float32)
    o_ref[...] = (y + b3_ref[...]).astype(o_ref.dtype)


def prepare_params(params):
    """One-time prep: bf16 weights ((in, out) layout), f32 (1, N) biases, layer-3 lane pad."""
    (w1, b1), (w2, b2), (w3, b3) = params
    w1p = w1.astype(jnp.bfloat16)                               # (784, 1024)
    w2p = w2.astype(jnp.bfloat16)                               # (1024, 2048)
    w3p = jnp.zeros((H2, N_PAD), jnp.bfloat16).at[:, :NUM_CLASSES].set(w3.astype(jnp.bfloat16))
    b1r = b1.astype(jnp.float32).reshape(1, H1)
    b2r = b2.astype(jnp.float32).reshape(1, H2)
    b3r = jnp.zeros((1, N_PAD), jnp.float32).at[0, :NUM_CLASSES].set(b3.astype(jnp.float32))
    # TODO(synk): int8 (v5e/v6e) / fp8 (v7x) weight quantization would ~2x the small-batch
    # weight-read-bound regime but changes numerics; not applied without validation.
    return (w1p, b1r, w2p, b2r, w3p, b3r)


def mnist_mlp_fused(x2d, prepared):
    """x2d: (B, 784) f32; prepared: output of prepare_params() -> (B, 10) f32 logits."""
    w1p, b1r, w2p, b2r, w3p, b3r = prepared
    B = x2d.shape[0]

    # Batch tile: minimize padding waste, multiple of 16 (bf16 sublane packing of the
    # hidden scratch), capped at TB_MAX.
    n_tiles = -(-B // TB_MAX)
    tb = _round_up(max(-(-B // n_tiles), 1), 16)
    Bp = n_tiles * tb
    if Bp != B:  # pad only when needed (exact zeros; padded rows sliced off below)
        x2d = jnp.pad(x2d, ((0, Bp - B), (0, 0)))

    flops = 2 * Bp * (IN_FEATURES * H1 + H1 * H2 + H2 * N_PAD)
    bytes_accessed = (
        Bp * IN_FEATURES * 4                          # f32 input (read once)
        + (w1p.size + w2p.size + w3p.size) * 2        # bf16 weights (read once)
        + (b1r.size + b2r.size + b3r.size) * 4        # f32 biases
        + Bp * N_PAD * 4                              # f32 logits writeback
    )

    out = pl.pallas_call(
        _mlp_kernel,
        out_shape=jax.ShapeDtypeStruct((Bp, N_PAD), jnp.float32),
        grid_spec=pltpu.PrefetchScalarGridSpec(
            num_scalar_prefetch=0,
            grid=(n_tiles,),
            in_specs=[
                pl.BlockSpec((tb, IN_FEATURES), lambda i: (i, 0)),  # x streams over batch
                _resident_spec((IN_FEATURES, H1)),                  # w1 (resident)
                _resident_spec((1, H1)),                            # b1 (resident)
                _resident_spec((H1, H2)),                           # w2 (resident)
                _resident_spec((1, H2)),                            # b2 (resident)
                _resident_spec((H2, N_PAD)),                        # w3 (resident)
                _resident_spec((1, N_PAD)),                         # b3 (resident)
            ],
            out_specs=pl.BlockSpec((tb, N_PAD), lambda i: (i, 0)),
            scratch_shapes=[
                pltpu.VMEM((tb, H1), jnp.bfloat16),                 # hidden activation 1
                pltpu.VMEM((tb, H2), jnp.bfloat16),                 # hidden activation 2
            ],
        ),
        compiler_params=pltpu.CompilerParams(
            # Megacore-shard batch tiles only when each core gets real work; for 1-3
            # tiles "parallel" would merely duplicate the weight DMA on v7x.
            dimension_semantics=("parallel",) if n_tiles >= 4 else ("arbitrary",),
            vmem_limit_bytes=48 << 20,   # ~17-20 MiB needed; safe headroom incl. v7x 64 MiB/TC
        ),
        cost_estimate=pl.CostEstimate(
            flops=flops, transcendentals=0, bytes_accessed=bytes_accessed),
    )(x2d, w1p, b1r, w2p, b2r, w3p, b3r)

    return out[:B, :NUM_CLASSES]


def init_params(key, hidden1=H1, hidden2=H2, num_classes=NUM_CLASSES, in_features=IN_FEATURES):
    """Deterministic init mimicking PyTorch nn.Linear default (U(-1/sqrt(fan_in), +))."""
    dims = [(in_features, hidden1), (hidden1, hidden2), (hidden2, num_classes)]
    params = []
    for i, (fan_in, fan_out) in enumerate(dims):
        kw, kb = jax.random.split(jax.random.fold_in(key, i))
        bound = 1.0 / jnp.sqrt(jnp.float32(fan_in))
        w = jax.random.uniform(kw, (fan_in, fan_out), jnp.float32, -bound, bound)
        b = jax.random.uniform(kb, (fan_out,), jnp.float32, -bound, bound)
        params.append((w, b))
    return params


@jax.jit
def mnist_classifier_forward(x, prepared_params):
    """Forward matching MNIST_Classifer.forward: view(-1, 784) -> 3 linears, relu x2."""
    x2d = x.reshape(-1, IN_FEATURES).astype(jnp.float32)
    return mnist_mlp_fused(x2d, prepared_params)


if __name__ == "__main__":
    key = jax.random.PRNGKey(0)
    k_in, k_par = jax.random.split(key)

    # Small batch of MNIST-shaped inputs (NCHW), deterministic.
    x = jax.random.normal(k_in, (2, 1, 28, 28), jnp.float32)
    params = init_params(k_par)
    prepared = prepare_params(params)           # one-time weight cast / lane padding

    out = mnist_classifier_forward(x, prepared)
    out = jax.block_until_ready(out)

    # Reference mirroring the kernel's numerics (bf16 operands, f32 accumulation,
    # f32 bias add / relu) so tolerances stay tight. All padding is exact zeros.
    xr = x.reshape(-1, IN_FEATURES).astype(jnp.float32)
    ref = xr
    for i, (w, b) in enumerate(params):
        ref = jnp.dot(ref.astype(jnp.bfloat16), w.astype(jnp.bfloat16),
                      preferred_element_type=jnp.float32) + b
        if i < 2:
            ref = jnp.maximum(ref, 0.0)

    assert out.shape == (2, NUM_CLASSES)
    err = float(jnp.max(jnp.abs(out - ref)))
    assert jnp.allclose(out, ref, atol=1e-2, rtol=1e-2), f"max abs err = {err}"

    print("KERNEL_OK")
</pallas_src>

<mosaic_0001>
module attributes {stable_mosaic.version = 11 : i64} {
  func.func @_mlp_kernel(%arg0: i32, %arg1: memref<16x784xf32, #tpu.memory_space<vmem>>, %arg2: memref<784x1024xbf16, #tpu.memory_space<vmem>>, %arg3: memref<1x1024xf32, #tpu.memory_space<vmem>>, %arg4: memref<1024x2048xbf16, #tpu.memory_space<vmem>>, %arg5: memref<1x2048xf32, #tpu.memory_space<vmem>>, %arg6: memref<2048x128xbf16, #tpu.memory_space<vmem>>, %arg7: memref<1x128xf32, #tpu.memory_space<vmem>>, %arg8: memref<16x128xf32, #tpu.memory_space<vmem>>, %arg9: memref<16x1024xbf16, #tpu.memory_space<vmem>>, %arg10: memref<16x2048xbf16, #tpu.memory_space<vmem>>) attributes {dimension_semantics = [#tpu.dimension_semantics<arbitrary>], iteration_bounds = array<i64: 1>, scalar_prefetch = 0 : i64, scratch_operands = 2 : i64, tpu.core_type = #tpu.core_type<tc>, window_params = [{transform_indices = @transform_0, window_bounds = array<i64: 16, 784>}, {pipeline_mode = #tpu.pipeline_mode<synchronous>, transform_indices = @transform_1, window_bounds = array<i64: 784, 1024>}, {pipeline_mode = #tpu.pipeline_mode<synchronous>, transform_indices = @transform_2, window_bounds = array<i64: 1, 1024>}, {pipeline_mode = #tpu.pipeline_mode<synchronous>, transform_indices = @transform_3, window_bounds = array<i64: 1024, 2048>}, {pipeline_mode = #tpu.pipeline_mode<synchronous>, transform_indices = @transform_4, window_bounds = array<i64: 1, 2048>}, {pipeline_mode = #tpu.pipeline_mode<synchronous>, transform_indices = @transform_5, window_bounds = array<i64: 2048, 128>}, {pipeline_mode = #tpu.pipeline_mode<synchronous>, transform_indices = @transform_6, window_bounds = array<i64: 1, 128>}, {transform_indices = @transform_7, window_bounds = array<i64: 16, 128>}]} {
    %c0 = arith.constant 0 : index
    %c0_0 = arith.constant 0 : index
    %0 = vector.load %arg1[%c0, %c0_0] : memref<16x784xf32, #tpu.memory_space<vmem>>, vector<16x784xf32>
    %1 = arith.truncf %0 : vector<16x784xf32> to vector<16x784xbf16>
    %c0_1 = arith.constant 0 : index
    %c0_2 = arith.constant 0 : index
    %2 = vector.load %arg2[%c0_1, %c0_2] : memref<784x1024xbf16, #tpu.memory_space<vmem>>, vector<784x1024xbf16>
    %cst = arith.constant dense<0.000000e+00> : vector<16x1024xf32>
    %3 = tpu.matmul %1, %2, %cst {dimension_numbers = #tpu.dot_dimension_numbers<[1], [0], [0], [1], [0, 0, 1, 1], [], []>} : vector<16x784xbf16>, vector<784x1024xbf16>, vector<16x1024xf32> -> vector<16x1024xf32>
    %c0_3 = arith.constant 0 : index
    %c0_4 = arith.constant 0 : index
    %4 = vector.load %arg3[%c0_3, %c0_4] : memref<1x1024xf32, #tpu.memory_space<vmem>>, vector<1x1024xf32>
    %5 = vector.broadcast %4 : vector<1x1024xf32> to vector<16x1024xf32>
    %6 = arith.addf %3, %5 : vector<16x1024xf32>
    %cst_5 = arith.constant 0.000000e+00 : f32
    %7 = vector.broadcast %cst_5 : f32 to vector<16x1024xf32>
    %8 = arith.maximumf %6, %7 : vector<16x1024xf32>
    %9 = arith.truncf %8 : vector<16x1024xf32> to vector<16x1024xbf16>
    %c0_6 = arith.constant 0 : index
    %c0_7 = arith.constant 0 : index
    %10 = vector.load %arg9[%c0_6, %c0_7] : memref<16x1024xbf16, #tpu.memory_space<vmem>>, vector<16x1024xbf16>
    tpu.vector_store %arg9[%c0_6, %c0_7], %9 {strides = array<i32>} : memref<16x1024xbf16, #tpu.memory_space<vmem>>, vector<16x1024xbf16>,
    %c0_8 = arith.constant 0 : index
    %c0_9 = arith.constant 0 : index
    %11 = vector.load %arg9[%c0_8, %c0_9] : memref<16x1024xbf16, #tpu.memory_space<vmem>>, vector<16x1024xbf16>
    %c0_10 = arith.constant 0 : index
    %c0_11 = arith.constant 0 : index
    %12 = vector.load %arg4[%c0_10, %c0_11] : memref<1024x2048xbf16, #tpu.memory_space<vmem>>, vector<1024x2048xbf16>
    %cst_12 = arith.constant dense<0.000000e+00> : vector<16x2048xf32>
    %13 = tpu.matmul %11, %12, %cst_12 {dimension_numbers = #tpu.dot_dimension_numbers<[1], [0], [0], [1], [0, 0, 1, 1], [], []>} : vector<16x1024xbf16>, vector<1024x2048xbf16>, vector<16x2048xf32> -> vector<16x2048xf32>
    %c0_13 = arith.constant 0 : index
    %c0_14 = arith.constant 0 : index
    %14 = vector.load %arg5[%c0_13, %c0_14] : memref<1x2048xf32, #tpu.memory_space<vmem>>, vector<1x2048xf32>
    %15 = vector.broadcast %14 : vector<1x2048xf32> to vector<16x2048xf32>
    %16 = arith.addf %13, %15 : vector<16x2048xf32>
    %cst_15 = arith.constant 0.000000e+00 : f32
    %17 = vector.broadcast %cst_15 : f32 to vector<16x2048xf32>
    %18 = arith.maximumf %16, %17 : vector<16x2048xf32>
    %19 = arith.truncf %18 : vector<16x2048xf32> to vector<16x2048xbf16>
    %c0_16 = arith.constant 0 : index
    %c0_17 = arith.constant 0 : index
    %20 = vector.load %arg10[%c0_16, %c0_17] : memref<16x2048xbf16, #tpu.memory_space<vmem>>, vector<16x2048xbf16>
    tpu.vector_store %arg10[%c0_16, %c0_17], %19 {strides = array<i32>} : memref<16x2048xbf16, #tpu.memory_space<vmem>>, vector<16x2048xbf16>,
    %c0_18 = arith.constant 0 : index
    %c0_19 = arith.constant 0 : index
    %21 = vector.load %arg10[%c0_18, %c0_19] : memref<16x2048xbf16, #tpu.memory_space<vmem>>, vector<16x2048xbf16>
    %c0_20 = arith.constant 0 : index
    %c0_21 = arith.constant 0 : index
    %22 = vector.load %arg6[%c0_20, %c0_21] : memref<2048x128xbf16, #tpu.memory_space<vmem>>, vector<2048x128xbf16>
    %cst_22 = arith.constant dense<0.000000e+00> : vector<16x128xf32>
    %23 = tpu.matmul %21, %22, %cst_22 {dimension_numbers = #tpu.dot_dimension_numbers<[1], [0], [0], [1], [0, 0, 1, 1], [], []>} : vector<16x2048xbf16>, vector<2048x128xbf16>, vector<16x128xf32> -> vector<16x128xf32>
    %c0_23 = arith.constant 0 : index
    %c0_24 = arith.constant 0 : index
    %24 = vector.load %arg7[%c0_23, %c0_24] : memref<1x128xf32, #tpu.memory_space<vmem>>, vector<1x128xf32>
    %25 = vector.broadcast %24 : vector<1x128xf32> to vector<16x128xf32>
    %26 = arith.addf %23, %25 : vector<16x128xf32>
    %c0_25 = arith.constant 0 : index
    %c0_26 = arith.constant 0 : index
    %27 = vector.load %arg8[%c0_25, %c0_26] : memref<16x128xf32, #tpu.memory_space<vmem>>, vector<16x128xf32>
    tpu.vector_store %arg8[%c0_25, %c0_26], %26 {strides = array<i32>} : memref<16x128xf32, #tpu.memory_space<vmem>>, vector<16x128xf32>,
    return
  }
  func.func @transform_0(%arg0: i32) -> (i32, i32) {
    %c0_i32 = arith.constant 0 : i32
    %c0_i32_0 = arith.constant 0 : i32
    return %arg0, %c0_i32 : i32, i32
  }
  func.func @transform_1(%arg0: i32) -> (i32, i32) {
    %c0_i32 = arith.constant 0 : i32
    %c0_i32_0 = arith.constant 0 : i32
    %c0_i32_1 = arith.constant 0 : i32
    return %c0_i32, %c0_i32_0 : i32, i32
  }
  func.func @transform_2(%arg0: i32) -> (i32, i32) {
    %c0_i32 = arith.constant 0 : i32
    %c0_i32_0 = arith.constant 0 : i32
    %c0_i32_1 = arith.constant 0 : i32
    return %c0_i32, %c0_i32_0 : i32, i32
  }
  func.func @transform_3(%arg0: i32) -> (i32, i32) {
    %c0_i32 = arith.constant 0 : i32
    %c0_i32_0 = arith.constant 0 : i32
    %c0_i32_1 = arith.constant 0 : i32
    return %c0_i32, %c0_i32_0 : i32, i32
  }
  func.func @transform_4(%arg0: i32) -> (i32, i32) {
    %c0_i32 = arith.constant 0 : i32
    %c0_i32_0 = arith.constant 0 : i32
    %c0_i32_1 = arith.constant 0 : i32
    return %c0_i32, %c0_i32_0 : i32, i32
  }
  func.func @transform_5(%arg0: i32) -> (i32, i32) {
    %c0_i32 = arith.constant 0 : i32
    %c0_i32_0 = arith.constant 0 : i32
    %c0_i32_1 = arith.constant 0 : i32
    return %c0_i32, %c0_i32_0 : i32, i32
  }
  func.func @transform_6(%arg0: i32) -> (i32, i32) {
    %c0_i32 = arith.constant 0 : i32
    %c0_i32_0 = arith.constant 0 : i32
    %c0_i32_1 = arith.constant 0 : i32
    return %c0_i32, %c0_i32_0 : i32, i32
  }
  func.func @transform_7(%arg0: i32) -> (i32, i32) {
    %c0_i32 = arith.constant 0 : i32
    %c0_i32_0 = arith.constant 0 : i32
    return %arg0, %c0_i32 : i32, i32
  }
}

</mosaic_0001>

<llo_original>
// kernel: mnist_classifier_forward.1
$region0: #{mnist_classifier_forward.1}
  #allocation0 [shape = 'u32[]', space=smem, size = 0x4, offset = 0x4, fixed_abs, tag = 'smem constant byte address 0x4 - core index']
  #allocation1 [shape = 'u32[72,128]{1,0:T(1,128)}', space=vmem, size = 0x9000, scoped, tag = 'internal scratch']
  #allocation2 [shape = 'bf16[16,1024]{1,0:T(8,128)(2,1)}', space=vmem, size = 0x8000, scoped, tag = 'scratch operand']
  #allocation3 [shape = 'bf16[16,2048]{1,0:T(8,128)(2,1)}', space=vmem, size = 0x10000, scoped, tag = 'scratch operand']
  %s0 = inlined_call_operand.vmem [shape: f32[16,784], index: 0, kind: input, shape index: {}]
  %s1 = inlined_call_operand.hbm [shape: bf16[784,1024], index: 1, kind: input, shape index: {}]
  %s2 = inlined_call_operand.hbm [shape: f32[1,1024], index: 2, kind: input, shape index: {}]
  %s3 = inlined_call_operand.hbm [shape: bf16[1024,2048], index: 3, kind: input, shape index: {}]
  %s4 = inlined_call_operand.hbm [shape: f32[1,2048], index: 4, kind: input, shape index: {}]
  %s5 = inlined_call_operand.hbm [shape: bf16[2048,128], index: 5, kind: input, shape index: {}]
  %s6 = inlined_call_operand.hbm [shape: f32[1,128], index: 6, kind: input, shape index: {}]
  %s7 = inlined_call_operand.vmem [shape: f32[16,128], index: 7, kind: output, shape index: {}]
  %s8 = sld [smem:[#allocation0]]
  $region62: #{mnist_classifier_forward.1} parent=0
    _
  %s10 = ssub.s32 1, %s8
  %s11 = scalar_select 0, %s10, %s8
  $region1: #{mnist_classifier_forward.1} parent=0
    #allocation4 [shape = 'u8[1605632]{0}', space=vmem, size = 0x188000, scoped, tag = 'input window, operand 1, single buffered']
    #allocation5 [shape = 's32[1]{0}', space=sflag, size = 0x4, scoped, tag = 'scoped memory for mnist_classifier_forward.1']
    #allocation6 [shape = 'u8[4096]{0}', space=vmem, size = 0x1000, scoped, tag = 'input window, operand 2, single buffered']
    #allocation7 [shape = 's32[1]{0}', space=sflag, size = 0x4, scoped, tag = 'scoped memory for mnist_classifier_forward.1']
    #allocation8 [shape = 'u8[4194304]{0}', space=vmem, size = 0x400000, scoped, tag = 'input window, operand 3, single buffered']
    #allocation9 [shape = 'u8[8192]{0}', space=vmem, size = 0x2000, scoped, tag = 'input window, operand 4, single buffered']
    #allocation10 [shape = 's32[1]{0}', space=sflag, size = 0x4, scoped, tag = 'scoped memory for mnist_classifier_forward.1']
    #allocation11 [shape = 'u8[524288]{0}', space=vmem, size = 0x80000, scoped, tag = 'input window, operand 5, single buffered']
    #allocation12 [shape = 'u8[512]{0}', space=vmem, size = 0x400, scoped, tag = 'input window, operand 6, single buffered']
    #allocation13 [shape = 's32[1]{0}', space=sflag, size = 0x4, scoped, tag = 'scoped memory for mnist_classifier_forward.1']
    %12 = vsyncpa [#allocation5], 0
    %13 = vsyncpa [#allocation7], 0
    %14 = vsyncpa [#allocation10], 0
    %15 = vsyncpa [#allocation13], 0
    // Predicated region
    $region2: #{mnist_classifier_forward.1} parent=1 // pred_check
      _
    $region3: #{mnist_classifier_forward.1} parent=1 // pred_check_branch
      %17 = sbr.rel (0) target = $region5
    $region4: #{mnist_classifier_forward.1} parent=1 // pred_region
      _
    $region5: #{mnist_classifier_forward.1} parent=1 // pred_fallthru
      _
    // Predicated region
    $region6: #{mnist_classifier_forward.1} parent=1 // pred_check
      _
    $region7: #{mnist_classifier_forward.1} parent=1 // pred_check_branch
      %19 = sbr.rel (0) target = $region9
    $region8: #{mnist_classifier_forward.1} parent=1 // pred_region
      %21 = vsyncadd [#allocation5], 0
      %s22 = sshll.u32 %s1, 4
      %s23 = int_to_ptr.hbm [resolvable:$true] %s22
      %s24 = sshll.u32 [#allocation4], 4
      %s25 = int_to_ptr.vmem [resolvable:$true] %s24
      %30 = dma.hbm_to_vmem [thread:$0]  %s23, 50176, %s25, [#allocation5], 512, 512, 32
    $region9: #{mnist_classifier_forward.1} parent=1 // pred_fallthru
      _
    // Predicated region
    $region10: #{mnist_classifier_forward.1} parent=1 // pred_check
      _
    $region11: #{mnist_classifier_forward.1} parent=1 // pred_check_branch
      %32 = sbr.rel (0) target = $region13
    $region12: #{mnist_classifier_forward.1} parent=1 // pred_region
      %34 = vsyncadd [#allocation7], 0
      %s36 = sshll.u32 %s2, 4
      %s37 = int_to_ptr.hbm [resolvable:$true] %s36
      %s38 = sshll.u32 [#allocation6], 4
      %s39 = int_to_ptr.vmem [resolvable:$true] %s38
      %41 = dma.hbm_to_vmem [thread:$0]  %s37, 128, %s39, [#allocation7]
    $region13: #{mnist_classifier_forward.1} parent=1 // pred_fallthru
      _
    // Predicated region
    $region14: #{mnist_classifier_forward.1} parent=1 // pred_check
      _
    $region15: #{mnist_classifier_forward.1} parent=1 // pred_check_branch
      %43 = sbr.rel (0) target = $region17
    $region16: #{mnist_classifier_forward.1} parent=1 // pred_region
      %45 = vsyncadd [#allocation7], 0
      %s46 = sshll.u32 %s3, 4
      %s47 = int_to_ptr.hbm [resolvable:$true] %s46
      %s48 = sshll.u32 [#allocation8], 4
      %s49 = int_to_ptr.vmem [resolvable:$true] %s48
      %54 = dma.hbm_to_vmem [thread:$0]  %s47, 131072, %s49, [#allocation7], 1024, 1024, 64
    $region17: #{mnist_classifier_forward.1} parent=1 // pred_fallthru
      _
    // Predicated region
    $region18: #{mnist_classifier_forward.1} parent=1 // pred_check
      _
    $region19: #{mnist_classifier_forward.1} parent=1 // pred_check_branch
      %56 = sbr.rel (0) target = $region21
    $region20: #{mnist_classifier_forward.1} parent=1 // pred_region
      %58 = vsyncadd [#allocation10], 0
      %s60 = sshll.u32 %s4, 4
      %s61 = int_to_ptr.hbm [resolvable:$true] %s60
      %s62 = sshll.u32 [#allocation9], 4
      %s63 = int_to_ptr.vmem [resolvable:$true] %s62
      %65 = dma.hbm_to_vmem [thread:$0]  %s61, 256, %s63, [#allocation10]
    $region21: #{mnist_classifier_forward.1} parent=1 // pred_fallthru
      _
    // Predicated region
    $region22: #{mnist_classifier_forward.1} parent=1 // pred_check
      _
    $region23: #{mnist_classifier_forward.1} parent=1 // pred_check_branch
      %67 = sbr.rel (0) target = $region25
    $region24: #{mnist_classifier_forward.1} parent=1 // pred_region
      %69 = vsyncadd [#allocation10], 0
      %s70 = sshll.u32 %s5, 4
      %s71 = int_to_ptr.hbm [resolvable:$true] %s70
      %s72 = sshll.u32 [#allocation11], 4
      %s73 = int_to_ptr.vmem [resolvable:$true] %s72
      %78 = dma.hbm_to_vmem [thread:$0]  %s71, 16384, %s73, [#allocation10], 64, 64, 4
    $region25: #{mnist_classifier_forward.1} parent=1 // pred_fallthru
      _
    // Predicated region
    $region26: #{mnist_classifier_forward.1} parent=1 // pred_check
      _
    $region27: #{mnist_classifier_forward.1} parent=1 // pred_check_branch
      %80 = sbr.rel (0) target = $region29
    $region28: #{mnist_classifier_forward.1} parent=1 // pred_region
      %82 = vsyncadd [#allocation13], 0
      %s84 = sshll.u32 %s6, 4
      %s85 = int_to_ptr.hbm [resolvable:$true] %s84
      %s86 = sshll.u32 [#allocation12], 4
      %s87 = int_to_ptr.vmem [resolvable:$true] %s86
      %89 = dma.hbm_to_vmem [thread:$0]  %s85, 16, %s87, [#allocation13]
    $region29: #{mnist_classifier_forward.1} parent=1 // pred_fallthru
      _
    // Predicated region
    $region30: #{mnist_classifier_forward.1} parent=1 // pred_check
      _
    $region31: #{mnist_classifier_forward.1} parent=1 // pred_check_branch
      %91 = sbr.rel (0) target = $region33
    $region32: #{mnist_classifier_forward.1} parent=1 // pred_region
      %93 = dma.done [#allocation5], 50176
    $region33: #{mnist_classifier_forward.1} parent=1 // pred_fallthru
      _
    // Predicated region
    $region34: #{mnist_classifier_forward.1} parent=1 // pred_check
      _
    $region35: #{mnist_classifier_forward.1} parent=1 // pred_check_branch
      %95 = sbr.rel (0) target = $region37
    $region36: #{mnist_classifier_forward.1} parent=1 // pred_region
      %97 = dma.done [#allocation7], 128
    $region37: #{mnist_classifier_forward.1} parent=1 // pred_fallthru
      _
    // Predicated region
    $region38: #{mnist_classifier_forward.1} parent=1 // pred_check
      _
    $region39: #{mnist_classifier_forward.1} parent=1 // pred_check_branch
      %99 = sbr.rel (0) target = $region41
    $region40: #{mnist_classifier_forward.1} parent=1 // pred_region
      %101 = dma.done [#allocation7], 131072
    $region41: #{mnist_classifier_forward.1} parent=1 // pred_fallthru
      _
    // Predicated region
    $region42: #{mnist_classifier_forward.1} parent=1 // pred_check
      _
    $region43: #{mnist_classifier_forward.1} parent=1 // pred_check_branch
      %103 = sbr.rel (0) target = $region45
    $region44: #{mnist_classifier_forward.1} parent=1 // pred_region
      %105 = dma.done [#allocation10], 256
    $region45: #{mnist_classifier_forward.1} parent=1 // pred_fallthru
      _
    // Predicated region
    $region46: #{mnist_classifier_forward.1} parent=1 // pred_check
      _
    $region47: #{mnist_classifier_forward.1} parent=1 // pred_check_branch
      %107 = sbr.rel (0) target = $region49
    $region48: #{mnist_classifier_forward.1} parent=1 // pred_region
      %109 = dma.done [#allocation10], 16384
    $region49: #{mnist_classifier_forward.1} parent=1 // pred_fallthru
      _
    // Predicated region
    $region50: #{mnist_classifier_forward.1} parent=1 // pred_check
      _
    $region51: #{mnist_classifier_forward.1} parent=1 // pred_check_branch
      %111 = sbr.rel (0) target = $region53
    $region52: #{mnist_classifier_forward.1} parent=1 // pred_region
      %113 = dma.done [#allocation13], 16
    $region53: #{mnist_classifier_forward.1} parent=1 // pred_fallthru
      _
    %v115 = vld [vmem:[%s0] sm:$0xff]
    %v116 = vld [vmem:[%s0 + $0x8] sm:$0xff]
    %v117 = vld [vmem:[%s0 + $0x10] sm:$0xff]
    %v118 = vld [vmem:[%s0 + $0x18] sm:$0xff]
    %v119 = vld [vmem:[%s0 + $0x20] sm:$0xff]
    %v120 = vld [vmem:[%s0 + $0x28] sm:$0xff]
    %v121 = vld [vmem:[%s0 + $0x30] sm:$0xff]
    %v122 = vld [vmem:[%s0 + $0x38] sm:$0xff]
    %v123 = vld [vmem:[%s0 + $0x40] sm:$0xff]
    %v124 = vld [vmem:[%s0 + $0x48] sm:$0xff]
    %v125 = vld [vmem:[%s0 + $0x50] sm:$0xff]
    %v126 = vld [vmem:[%s0 + $0x58] sm:$0xff]
    %v127 = vld [vmem:[%s0 + $0x60] sm:$0xff]
    %v128 = vld [vmem:[%s0 + $0x68] sm:$0xff]
    %v129 = vpack.c.bf16 %v122, %v115
    %v130 = vpack.c.bf16 %v123, %v116
    %v131 = vpack.c.bf16 %v124, %v117
    %v132 = vpack.c.bf16 %v125, %v118
    %v133 = vpack.c.bf16 %v126, %v119
    %v134 = vpack.c.bf16 %v127, %v120
    %v135 = vpack.c.bf16 %v128, %v121
    %v136 = vld [vmem:[#allocation4] sm:$0xff]
    %v137 = vld [vmem:[#allocation4 + $0x8] sm:$0xff]
    %v138 = vld [vmem:[#allocation4 + $0x10] sm:$0xff]
    %v139 = vld [vmem:[#allocation4 + $0x18] sm:$0xff]
    %v140 = vld [vmem:[#allocation4 + $0x20] sm:$0xff]
    %v141 = vld [vmem:[#allocation4 + $0x28] sm:$0xff]
    %v142 = vld [vmem:[#allocation4 + $0x30] sm:$0xff]
    %v143 = vld [vmem:[#allocation4 + $0x38] sm:$0xff]
    %v144 = vld [vmem:[#allocation4 + $0x40] sm:$0xff]
    %v145 = vld [vmem:[#allocation4 + $0x48] sm:$0xff]
    %v146 = vld [vmem:[#allocation4 + $0x50] sm:$0xff]
    %v147 = vld [vmem:[#allocation4 + $0x58] sm:$0xff]
    %v148 = vld [vmem:[#allocation4 + $0x60] sm:$0xff]
    %v149 = vld [vmem:[#allocation4 + $0x68] sm:$0xff]
    %v150 = vld [vmem:[#allocation4 + $0x70] sm:$0xff]
    %v151 = vld [vmem:[#allocation4 + $0x78] sm:$0xff]
    %v152 = vld [vmem:[#allocation4 + $0x80] sm:$0xff]
    %v153 = vld [vmem:[#allocation4 + $0x88] sm:$0xff]
    %v154 = vld [vmem:[#allocation4 + $0x90] sm:$0xff]
    %v155 = vld [vmem:[#allocation4 + $0x98] sm:$0xff]
    %v156 = vld [vmem:[#allocation4 + $0xa0] sm:$0xff]
    %v157 = vld [vmem:[#allocation4 + $0xa8] sm:$0xff]
    %v158 = vld [vmem:[#allocation4 + $0xb0] sm:$0xff]
    %v159 = vld [vmem:[#allocation4 + $0xb8] sm:$0xff]
    %v160 = vld [vmem:[#allocation4 + $0xc0] sm:$0xff]
    %v161 = vld [vmem:[#allocation4 + $0xc8] sm:$0xff]
    %v162 = vld [vmem:[#allocation4 + $0xd0] sm:$0xff]
    %v163 = vld [vmem:[#allocation4 + $0xd8] sm:$0xff]
    %v164 = vld [vmem:[#allocation4 + $0xe0] sm:$0xff]
    %v165 = vld [vmem:[#allocation4 + $0xe8] sm:$0xff]
    %v166 = vld [vmem:[#allocation4 + $0xf0] sm:$0xff]
    %v167 = vld [vmem:[#allocation4 + $0xf8] sm:$0xff]
    %v168 = vld [vmem:[#allocation4 + $0x100] sm:$0xff]
    %v169 = vld [vmem:[#allocation4 + $0x108] sm:$0xff]
    %v170 = vld [vmem:[#allocation4 + $0x110] sm:$0xff]
    %v171 = vld [vmem:[#allocation4 + $0x118] sm:$0xff]
    %v172 = vld [vmem:[#allocation4 + $0x120] sm:$0xff]
    %v173 = vld [vmem:[#allocation4 + $0x128] sm:$0xff]
    %v174 = vld [vmem:[#allocation4 + $0x130] sm:$0xff]
    %v175 = vld [vmem:[#allocation4 + $0x138] sm:$0xff]
    %v176 = vld [vmem:[#allocation4 + $0x140] sm:$0xff]
    %v177 = vld [vmem:[#allocation4 + $0x148] sm:$0xff]
    %v178 = vld [vmem:[#allocation4 + $0x150] sm:$0xff]
    %v179 = vld [vmem:[#allocation4 + $0x158] sm:$0xff]
    %v180 = vld [vmem:[#allocation4 + $0x160] sm:$0xff]
    %v181 = vld [vmem:[#allocation4 + $0x168] sm:$0xff]
    %v182 = vld [vmem:[#allocation4 + $0x170] sm:$0xff]
    %v183 = vld [vmem:[#allocation4 + $0x178] sm:$0xff]
    %v184 = vld [vmem:[#allocation4 + $0x180] sm:$0xff]
    %v185 = vld [vmem:[#allocation4 + $0x188] sm:$0xff]
    %v186 = vld [vmem:[#allocation4 + $0x190] sm:$0xff]
    %v187 = vld [vmem:[#allocation4 + $0x198] sm:$0xff]
    %v188 = vld [vmem:[#allocation4 + $0x1a0] sm:$0xff]
    %v189 = vld [vmem:[#allocation4 + $0x1a8] sm:$0xff]
    %v190 = vld [vmem:[#allocation4 + $0x1b0] sm:$0xff]
    %v191 = vld [vmem:[#allocation4 + $0x1b8] sm:$0xff]
    %v192 = vld [vmem:[#allocation4 + $0x1c0] sm:$0xff]
    %v193 = vld [vmem:[#allocation4 + $0x1c8] sm:$0xff]
    %v194 = vld [vmem:[#allocation4 + $0x1d0] sm:$0xff]
    %v195 = vld [vmem:[#allocation4 + $0x1d8] sm:$0xff]
    %v196 = vld [vmem:[#allocation4 + $0x1e0] sm:$0xff]
    %v197 = vld [vmem:[#allocation4 + $0x1e8] sm:$0xff]
    %v198 = vld [vmem:[#allocation4 + $0x1f0] sm:$0xff]
    %v199 = vld [vmem:[#allocation4 + $0x1f8] sm:$0xff]
    %v200 = vld [vmem:[#allocation4 + $0x200] sm:$0xff]
    %v201 = vld [vmem:[#allocation4 + $0x208] sm:$0xff]
    %v202 = vld [vmem:[#allocation4 + $0x210] sm:$0xff]
    %v203 = vld [vmem:[#allocation4 + $0x218] sm:$0xff]
    %v204 = vld [vmem:[#allocation4 + $0x220] sm:$0xff]
    %v205 = vld [vmem:[#allocation4 + $0x228] sm:$0xff]
    %v206 = vld [vmem:[#allocation4 + $0x230] sm:$0xff]
    %v207 = vld [vmem:[#allocation4 + $0x238] sm:$0xff]
    %v208 = vld [vmem:[#allocation4 + $0x240] sm:$0xff]
    %v209 = vld [vmem:[#allocation4 + $0x248] sm:$0xff]
    %v210 = vld [vmem:[#allocation4 + $0x250] sm:$0xff]
    %v211 = vld [vmem:[#allocation4 + $0x258] sm:$0xff]
    %v212 = vld [vmem:[#allocation4 + $0x260] sm:$0xff]
    %v213 = vld [vmem:[#allocation4 + $0x268] sm:$0xff]
    %v214 = vld [vmem:[#allocation4 + $0x270] sm:$0xff]
    %v215 = vld [vmem:[#allocation4 + $0x278] sm:$0xff]
    %v216 = vld [vmem:[#allocation4 + $0x280] sm:$0xff]
    %v217 = vld [vmem:[#allocation4 + $0x288] sm:$0xff]
    %v218 = vld [vmem:[#allocation4 + $0x290] sm:$0xff]
    %v219 = vld [vmem:[#allocation4 + $0x298] sm:$0xff]
    %v220 = vld [vmem:[#allocation4 + $0x2a0] sm:$0xff]
    %v221 = vld [vmem:[#allocation4 + $0x2a8] sm:$0xff]
    %v222 = vld [vmem:[#allocation4 + $0x2b0] sm:$0xff]
    %v223 = vld [vmem:[#allocation4 + $0x2b8] sm:$0xff]
    %v224 = vld [vmem:[#allocation4 + $0x2c0] sm:$0xff]
    %v225 = vld [vmem:[#allocation4 + $0x2c8] sm:$0xff]
    %v226 = vld [vmem:[#allocation4 + $0x2d0] sm:$0xff]
    %v227 = vld [vmem:[#allocation4 + $0x2d8] sm:$0xff]
    %v228 = vld [vmem:[#allocation4 + $0x2e0] sm:$0xff]
    %v229 = vld [vmem:[#allocation4 + $0x2e8] sm:$0xff]
    %v230 = vld [vmem:[#allocation4 + $0x2f0] sm:$0xff]
    %v231 = vld [vmem:[#allocation4 + $0x2f8] sm:$0xff]
    %v232 = vld [vmem:[#allocation4 + $0x300] sm:$0xff]
    %v233 = vld [vmem:[#allocation4 + $0x308] sm:$0xff]
    %v234 = vld [vmem:[#allocation4 + $0x310] sm:$0xff]
    %v235 = vld [vmem:[#allocation4 + $0x318] sm:$0xff]
    %v236 = vld [vmem:[#allocation4 + $0x320] sm:$0xff]
    %v237 = vld [vmem:[#allocation4 + $0x328] sm:$0xff]
    %v238 = vld [vmem:[#allocation4 + $0x330] sm:$0xff]
    %v239 = vld [vmem:[#allocation4 + $0x338] sm:$0xff]
    %v240 = vld [vmem:[#allocation4 + $0x340] sm:$0xff]
    %v241 = vld [vmem:[#allocation4 + $0x348] sm:$0xff]
    %v242 = vld [vmem:[#allocation4 + $0x350] sm:$0xff]
    %v243 = vld [vmem:[#allocation4 + $0x358] sm:$0xff]
    %v244 = vld [vmem:[#allocation4 + $0x360] sm:$0xff]
    %v245 = vld [vmem:[#allocation4 + $0x368] sm:$0xff]
    %v246 = vld [vmem:[#allocation4 + $0x370] sm:$0xff]
    %v247 = vld [vmem:[#allocation4 + $0x378] sm:$0xff]
    %v248 = vld [vmem:[#allocation4 + $0x380] sm:$0xff]
    %v249 = vld [vmem:[#allocation4 + $0x388] sm:$0xff]
    %v250 = vld [vmem:[#allocation4 + $0x390] sm:$0xff]
    %v251 = vld [vmem:[#allocation4 + $0x398] sm:$0xff]
    %v252 = vld [vmem:[#allocation4 + $0x3a0] sm:$0xff]
    %v253 = vld [vmem:[#allocation4 + $0x3a8] sm:$0xff]
    %v254 = vld [vmem:[#allocation4 + $0x3b0] sm:$0xff]
    %v255 = vld [vmem:[#allocation4 + $0x3b8] sm:$0xff]
    %v256 = vld [vmem:[#allocation4 + $0x3c0] sm:$0xff]
    %v257 = vld [vmem:[#allocation4 + $0x3c8] sm:$0xff]
    %v258 = vld [vmem:[#allocation4 + $0x3d0] sm:$0xff]
    %v259 = vld [vmem:[#allocation4 + $0x3d8] sm:$0xff]
    %v260 = vld [vmem:[#allocation4 + $0x3e0] sm:$0xff]
    %v261 = vld [vmem:[#allocation4 + $0x3e8] sm:$0xff]
    %v262 = vld [vmem:[#allocation4 + $0x3f0] sm:$0xff]
    %v263 = vld [vmem:[#allocation4 + $0x3f8] sm:$0xff]
    %v264 = vld [vmem:[#allocation4 + $0x400] sm:$0xff]
    %v265 = vld [vmem:[#allocation4 + $0x408] sm:$0xff]
    %v266 = vld [vmem:[#allocation4 + $0x410] sm:$0xff]
    %v267 = vld [vmem:[#allocation4 + $0x418] sm:$0xff]
    %v268 = vld [vmem:[#allocation4 + $0x420] sm:$0xff]
    %v269 = vld [vmem:[#allocation4 + $0x428] sm:$0xff]
    %v270 = vld [vmem:[#allocation4 + $0x430] sm:$0xff]
    %v271 = vld [vmem:[#allocation4 + $0x438] sm:$0xff]
    %v272 = vld [vmem:[#allocation4 + $0x440] sm:$0xff]
    %v273 = vld [vmem:[#allocation4 + $0x448] sm:$0xff]
    %v274 = vld [vmem:[#allocation4 + $0x450] sm:$0xff]
    %v275 = vld [vmem:[#allocation4 + $0x458] sm:$0xff]
    %v276 = vld [vmem:[#allocation4 + $0x460] sm:$0xff]
    %v277 = vld [vmem:[#allocation4 + $0x468] sm:$0xff]
    %v278 = vld [vmem:[#allocation4 + $0x470] sm:$0xff]
    %v279 = vld [vmem:[#allocation4 + $0x478] sm:$0xff]
    %v280 = vld [vmem:[#allocation4 + $0x480] sm:$0xff]
    %v281 = vld [vmem:[#allocation4 + $0x488] sm:$0xff]
    %v282 = vld [vmem:[#allocation4 + $0x490] sm:$0xff]
    %v283 = vld [vmem:[#allocation4 + $0x498] sm:$0xff]
    %v284 = vld [vmem:[#allocation4 + $0x4a0] sm:$0xff]
    %v285 = vld [vmem:[#allocation4 + $0x4a8] sm:$0xff]
    %v286 = vld [vmem:[#allocation4 + $0x4b0] sm:$0xff]
    %v287 = vld [vmem:[#allocation4 + $0x4b8] sm:$0xff]
    %v288 = vld [vmem:[#allocation4 + $0x4c0] sm:$0xff]
    %v289 = vld [vmem:[#allocation4 + $0x4c8] sm:$0xff]
    %v290 = vld [vmem:[#allocation4 + $0x4d0] sm:$0xff]
    %v291 = vld [vmem:[#allocation4 + $0x4d8] sm:$0xff]
    %v292 = vld [vmem:[#allocation4 + $0x4e0] sm:$0xff]
    %v293 = vld [vmem:[#allocation4 + $0x4e8] sm:$0xff]
    %v294 = vld [vmem:[#allocation4 + $0x4f0] sm:$0xff]
    %v295 = vld [vmem:[#allocation4 + $0x4f8] sm:$0xff]
    %v296 = vld [vmem:[#allocation4 + $0x500] sm:$0xff]
    %v297 = vld [vmem:[#allocation4 + $0x508] sm:$0xff]
    %v298 = vld [vmem:[#allocation4 + $0x510] sm:$0xff]
    %v299 = vld [vmem:[#allocation4 + $0x518] sm:$0xff]
    %v300 = vld [vmem:[#allocation4 + $0x520] sm:$0xff]
    %v301 = vld [vmem:[#allocation4 + $0x528] sm:$0xff]
    %v302 = vld [vmem:[#allocation4 + $0x530] sm:$0xff]
    %v303 = vld [vmem:[#allocation4 + $0x538] sm:$0xff]
    %v304 = vld [vmem:[#allocation4 + $0x540] sm:$0xff]
    %v305 = vld [vmem:[#allocation4 + $0x548] sm:$0xff]
    %v306 = vld [vmem:[#allocation4 + $0x550] sm:$0xff]
    %v307 = vld [vmem:[#allocation4 + $0x558] sm:$0xff]
    %v308 = vld [vmem:[#allocation4 + $0x560] sm:$0xff]
    %v309 = vld [vmem:[#allocation4 + $0x568] sm:$0xff]
    %v310 = vld [vmem:[#allocation4 + $0x570] sm:$0xff]
    %v311 = vld [vmem:[#allocation4 + $0x578] sm:$0xff]
    %v312 = vld [vmem:[#allocation4 + $0x580] sm:$0xff]
    %v313 = vld [vmem:[#allocation4 + $0x588] sm:$0xff]
    %v314 = vld [vmem:[#allocation4 + $0x590] sm:$0xff]
    %v315 = vld [vmem:[#allocation4 + $0x598] sm:$0xff]
    %v316 = vld [vmem:[#allocation4 + $0x5a0] sm:$0xff]
    %v317 = vld [vmem:[#allocation4 + $0x5a8] sm:$0xff]
    %v318 = vld [vmem:[#allocation4 + $0x5b0] sm:$0xff]
    %v319 = vld [vmem:[#allocation4 + $0x5b8] sm:$0xff]
    %v320 = vld [vmem:[#allocation4 + $0x5c0] sm:$0xff]
    %v321 = vld [vmem:[#allocation4 + $0x5c8] sm:$0xff]
    %v322 = vld [vmem:[#allocation4 + $0x5d0] sm:$0xff]
    %v323 = vld [vmem:[#allocation4 + $0x5d8] sm:$0xff]
    %v324 = vld [vmem:[#allocation4 + $0x5e0] sm:$0xff]
    %v325 = vld [vmem:[#allocation4 + $0x5e8] sm:$0xff]
    %v326 = vld [vmem:[#allocation4 + $0x5f0] sm:$0xff]
    %v327 = vld [vmem:[#allocation4 + $0x5f8] sm:$0xff]
    %v328 = vld [vmem:[#allocation4 + $0x600] sm:$0xff]
    %v329 = vld [vmem:[#allocation4 + $0x608] sm:$0xff]
    %v330 = vld [vmem:[#allocation4 + $0x610] sm:$0xff]
    %v331 = vld [vmem:[#allocation4 + $0x618] sm:$0xff]
    %v332 = vld [vmem:[#allocation4 + $0x620] sm:$0xff]
    %v333 = vld [vmem:[#allocation4 + $0x628] sm:$0xff]
    %v334 = vld [vmem:[#allocation4 + $0x630] sm:$0xff]
    %v335 = vld [vmem:[#allocation4 + $0x638] sm:$0xff]
    %v336 = vld [vmem:[#allocation4 + $0x640] sm:$0xff]
    %v337 = vld [vmem:[#allocation4 + $0x648] sm:$0xff]
    %v338 = vld [vmem:[#allocation4 + $0x650] sm:$0xff]
    %v339 = vld [vmem:[#allocation4 + $0x658] sm:$0xff]
    %v340 = vld [vmem:[#allocation4 + $0x660] sm:$0xff]
    %v341 = vld [vmem:[#allocation4 + $0x668] sm:$0xff]
    %v342 = vld [vmem:[#allocation4 + $0x670] sm:$0xff]
    %v343 = vld [vmem:[#allocation4 + $0x678] sm:$0xff]
    %v344 = vld [vmem:[#allocation4 + $0x680] sm:$0xff]
    %v345 = vld [vmem:[#allocation4 + $0x688] sm:$0xff]
    %v346 = vld [vmem:[#allocation4 + $0x690] sm:$0xff]
    %v347 = vld [vmem:[#allocation4 + $0x698] sm:$0xff]
    %v348 = vld [vmem:[#allocation4 + $0x6a0] sm:$0xff]
    %v349 = vld [vmem:[#allocation4 + $0x6a8] sm:$0xff]
    %v350 = vld [vmem:[#allocation4 + $0x6b0] sm:$0xff]
    %v351 = vld [vmem:[#allocation4 + $0x6b8] sm:$0xff]
    %v352 = vld [vmem:[#allocation4 + $0x6c0] sm:$0xff]
    %v353 = vld [vmem:[#allocation4 + $0x6c8] sm:$0xff]
    %v354 = vld [vmem:[#allocation4 + $0x6d0] sm:$0xff]
    %v355 = vld [vmem:[#allocation4 + $0x6d8] sm:$0xff]
    %v356 = vld [vmem:[#allocation4 + $0x6e0] sm:$0xff]
    %v357 = vld [vmem:[#allocation4 + $0x6e8] sm:$0xff]
    %v358 = vld [vmem:[#allocation4 + $0x6f0] sm:$0xff]
    %v359 = vld [vmem:[#allocation4 + $0x6f8] sm:$0xff]
    %v360 = vld [vmem:[#allocation4 + $0x700] sm:$0xff]
    %v361 = vld [vmem:[#allocation4 + $0x708] sm:$0xff]
    %v362 = vld [vmem:[#allocation4 + $0x710] sm:$0xff]
    %v363 = vld [vmem:[#allocation4 + $0x718] sm:$0xff]
    %v364 = vld [vmem:[#allocation4 + $0x720] sm:$0xff]
    %v365 = vld [vmem:[#allocation4 + $0x728] sm:$0xff]
    %v366 = vld [vmem:[#allocation4 + $0x730] sm:$0xff]
    %v367 = vld [vmem:[#allocation4 + $0x738] sm:$0xff]
    %v368 = vld [vmem:[#allocation4 + $0x740] sm:$0xff]
    %v369 = vld [vmem:[#allocation4 + $0x748] sm:$0xff]
    %v370 = vld [vmem:[#allocation4 + $0x750] sm:$0xff]
    %v371 = vld [vmem:[#allocation4 + $0x758] sm:$0xff]
    %v372 = vld [vmem:[#allocation4 + $0x760] sm:$0xff]
    %v373 = vld [vmem:[#allocation4 + $0x768] sm:$0xff]
    %v374 = vld [vmem:[#allocation4 + $0x770] sm:$0xff]
    %v375 = vld [vmem:[#allocation4 + $0x778] sm:$0xff]
    %v376 = vld [vmem:[#allocation4 + $0x780] sm:$0xff]
    %v377 = vld [vmem:[#allocation4 + $0x788] sm:$0xff]
    %v378 = vld [vmem:[#allocation4 + $0x790] sm:$0xff]
    %v379 = vld [vmem:[#allocation4 + $0x798] sm:$0xff]
    %v380 = vld [vmem:[#allocation4 + $0x7a0] sm:$0xff]
    %v381 = vld [vmem:[#allocation4 + $0x7a8] sm:$0xff]
    %v382 = vld [vmem:[#allocation4 + $0x7b0] sm:$0xff]
    %v383 = vld [vmem:[#allocation4 + $0x7b8] sm:$0xff]
    %v384 = vld [vmem:[#allocation4 + $0x7c0] sm:$0xff]
    %v385 = vld [vmem:[#allocation4 + $0x7c8] sm:$0xff]
    %v386 = vld [vmem:[#allocation4 + $0x7d0] sm:$0xff]
    %v387 = vld [vmem:[#allocation4 + $0x7d8] sm:$0xff]
    %v388 = vld [vmem:[#allocation4 + $0x7e0] sm:$0xff]
    %v389 = vld [vmem:[#allocation4 + $0x7e8] sm:$0xff]
    %v390 = vld [vmem:[#allocation4 + $0x7f0] sm:$0xff]
    %v391 = vld [vmem:[#allocation4 + $0x7f8] sm:$0xff]
    %v392 = vld [vmem:[#allocation4 + $0x800] sm:$0xff]
    %v393 = vld [vmem:[#allocation4 + $0x808] sm:$0xff]
    %v394 = vld [vmem:[#allocation4 + $0x810] sm:$0xff]
    %v395 = vld [vmem:[#allocation4 + $0x818] sm:$0xff]
    %v396 = vld [vmem:[#allocation4 + $0x820] sm:$0xff]
    %v397 = vld [vmem:[#allocation4 + $0x828] sm:$0xff]
    %v398 = vld [vmem:[#allocation4 + $0x830] sm:$0xff]
    %v399 = vld [vmem:[#allocation4 + $0x838] sm:$0xff]
    %v400 = vld [vmem:[#allocation4 + $0x840] sm:$0xff]
    %v401 = vld [vmem:[#allocation4 + $0x848] sm:$0xff]
    %v402 = vld [vmem:[#allocation4 + $0x850] sm:$0xff]
    %v403 = vld [vmem:[#allocation4 + $0x858] sm:$0xff]
    %v404 = vld [vmem:[#allocation4 + $0x860] sm:$0xff]
    %v405 = vld [vmem:[#allocation4 + $0x868] sm:$0xff]
    %v406 = vld [vmem:[#allocation4 + $0x870] sm:$0xff]
    %v407 = vld [vmem:[#allocation4 + $0x878] sm:$0xff]
    %v408 = vld [vmem:[#allocation4 + $0x880] sm:$0xff]
    %v409 = vld [vmem:[#allocation4 + $0x888] sm:$0xff]
    %v410 = vld [vmem:[#allocation4 + $0x890] sm:$0xff]
    %v411 = vld [vmem:[#allocation4 + $0x898] sm:$0xff]
    %v412 = vld [vmem:[#allocation4 + $0x8a0] sm:$0xff]
    %v413 = vld [vmem:[#allocation4 + $0x8a8] sm:$0xff]
    %v414 = vld [vmem:[#allocation4 + $0x8b0] sm:$0xff]
    %v415 = vld [vmem:[#allocation4 + $0x8b8] sm:$0xff]
    %v416 = vld [vmem:[#allocation4 + $0x8c0] sm:$0xff]
    %v417 = vld [vmem:[#allocation4 + $0x8c8] sm:$0xff]
    %v418 = vld [vmem:[#allocation4 + $0x8d0] sm:$0xff]
    %v419 = vld [vmem:[#allocation4 + $0x8d8] sm:$0xff]
    %v420 = vld [vmem:[#allocation4 + $0x8e0] sm:$0xff]
    %v421 = vld [vmem:[#allocation4 + $0x8e8] sm:$0xff]
    %v422 = vld [vmem:[#allocation4 + $0x8f0] sm:$0xff]
    %v423 = vld [vmem:[#allocation4 + $0x8f8] sm:$0xff]
    %v424 = vld [vmem:[#allocation4 + $0x900] sm:$0xff]
    %v425 = vld [vmem:[#allocation4 + $0x908] sm:$0xff]
    %v426 = vld [vmem:[#allocation4 + $0x910] sm:$0xff]
    %v427 = vld [vmem:[#allocation4 + $0x918] sm:$0xff]
    %v428 = vld [vmem:[#allocation4 + $0x920] sm:$0xff]
    %v429 = vld [vmem:[#allocation4 + $0x928] sm:$0xff]
    %v430 = vld [vmem:[#allocation4 + $0x930] sm:$0xff]
    %v431 = vld [vmem:[#allocation4 + $0x938] sm:$0xff]
    %v432 = vld [vmem:[#allocation4 + $0x940] sm:$0xff]
    %v433 = vld [vmem:[#allocation4 + $0x948] sm:$0xff]
    %v434 = vld [vmem:[#allocation4 + $0x950] sm:$0xff]
    %v435 = vld [vmem:[#allocation4 + $0x958] sm:$0xff]
    %v436 = vld [vmem:[#allocation4 + $0x960] sm:$0xff]
    %v437 = vld [vmem:[#allocation4 + $0x968] sm:$0xff]
    %v438 = vld [vmem:[#allocation4 + $0x970] sm:$0xff]
    %v439 = vld [vmem:[#allocation4 + $0x978] sm:$0xff]
    %v440 = vld [vmem:[#allocation4 + $0x980] sm:$0xff]
    %v441 = vld [vmem:[#allocation4 + $0x988] sm:$0xff]
    %v442 = vld [vmem:[#allocation4 + $0x990] sm:$0xff]
    %v443 = vld [vmem:[#allocation4 + $0x998] sm:$0xff]
    %v444 = vld [vmem:[#allocation4 + $0x9a0] sm:$0xff]
    %v445 = vld [vmem:[#allocation4 + $0x9a8] sm:$0xff]
    %v446 = vld [vmem:[#allocation4 + $0x9b0] sm:$0xff]
    %v447 = vld [vmem:[#allocation4 + $0x9b8] sm:$0xff]
    %v448 = vld [vmem:[#allocation4 + $0x9c0] sm:$0xff]
    %v449 = vld [vmem:[#allocation4 + $0x9c8] sm:$0xff]
    %v450 = vld [vmem:[#allocation4 + $0x9d0] sm:$0xff]
    %v451 = vld [vmem:[#allocation4 + $0x9d8] sm:$0xff]
    %v452 = vld [vmem:[#allocation4 + $0x9e0] sm:$0xff]
    %v453 = vld [vmem:[#allocation4 + $0x9e8] sm:$0xff]
    %v454 = vld [vmem:[#allocation4 + $0x9f0] sm:$0xff]
    %v455 = vld [vmem:[#allocation4 + $0x9f8] sm:$0xff]
    %v456 = vld [vmem:[#allocation4 + $0xa00] sm:$0xff]
    %v457 = vld [vmem:[#allocation4 + $0xa08] sm:$0xff]
    %v458 = vld [vmem:[#allocation4 + $0xa10] sm:$0xff]
    %v459 = vld [vmem:[#allocation4 + $0xa18] sm:$0xff]
    %v460 = vld [vmem:[#allocation4 + $0xa20] sm:$0xff]
    %v461 = vld [vmem:[#allocation4 + $0xa28] sm:$0xff]
    %v462 = vld [vmem:[#allocation4 + $0xa30] sm:$0xff]
    %v463 = vld [vmem:[#allocation4 + $0xa38] sm:$0xff]
    %v464 = vld [vmem:[#allocation4 + $0xa40] sm:$0xff]
    %v465 = vld [vmem:[#allocation4 + $0xa48] sm:$0xff]
    %v466 = vld [vmem:[#allocation4 + $0xa50] sm:$0xff]
    %v467 = vld [vmem:[#allocation4 + $0xa58] sm:$0xff]
    %v468 = vld [vmem:[#allocation4 + $0xa60] sm:$0xff]
    %v469 = vld [vmem:[#allocation4 + $0xa68] sm:$0xff]
    %v470 = vld [vmem:[#allocation4 + $0xa70] sm:$0xff]
    %v471 = vld [vmem:[#allocation4 + $0xa78] sm:$0xff]
    %v472 = vld [vmem:[#allocation4 + $0xa80] sm:$0xff]
    %v473 = vld [vmem:[#allocation4 + $0xa88] sm:$0xff]
    %v474 = vld [vmem:[#allocation4 + $0xa90] sm:$0xff]
    %v475 = vld [vmem:[#allocation4 + $0xa98] sm:$0xff]
    %v476 = vld [vmem:[#allocation4 + $0xaa0] sm:$0xff]
    %v477 = vld [vmem:[#allocation4 + $0xaa8] sm:$0xff]
    %v478 = vld [vmem:[#allocation4 + $0xab0] sm:$0xff]
    %v479 = vld [vmem:[#allocation4 + $0xab8] sm:$0xff]
    %v480 = vld [vmem:[#allocation4 + $0xac0] sm:$0xff]
    %v481 = vld [vmem:[#allocation4 + $0xac8] sm:$0xff]
    %v482 = vld [vmem:[#allocation4 + $0xad0] sm:$0xff]
    %v483 = vld [vmem:[#allocation4 + $0xad8] sm:$0xff]
    %v484 = vld [vmem:[#allocation4 + $0xae0] sm:$0xff]
    %v485 = vld [vmem:[#allocation4 + $0xae8] sm:$0xff]
    %v486 = vld [vmem:[#allocation4 + $0xaf0] sm:$0xff]
    %v487 = vld [vmem:[#allocation4 + $0xaf8] sm:$0xff]
    %v488 = vld [vmem:[#allocation4 + $0xb00] sm:$0xff]
    %v489 = vld [vmem:[#allocation4 + $0xb08] sm:$0xff]
    %v490 = vld [vmem:[#allocation4 + $0xb10] sm:$0xff]
    %v491 = vld [vmem:[#allocation4 + $0xb18] sm:$0xff]
    %v492 = vld [vmem:[#allocation4 + $0xb20] sm:$0xff]
    %v493 = vld [vmem:[#allocation4 + $0xb28] sm:$0xff]
    %v494 = vld [vmem:[#allocation4 + $0xb30] sm:$0xff]
    %v495 = vld [vmem:[#allocation4 + $0xb38] sm:$0xff]
    %v496 = vld [vmem:[#allocation4 + $0xb40] sm:$0xff]
    %v497 = vld [vmem:[#allocation4 + $0xb48] sm:$0xff]
    %v498 = vld [vmem:[#allocation4 + $0xb50] sm:$0xff]
    %v499 = vld [vmem:[#allocation4 + $0xb58] sm:$0xff]
    %v500 = vld [vmem:[#allocation4 + $0xb60] sm:$0xff]
    %v501 = vld [vmem:[#allocation4 + $0xb68] sm:$0xff]
    %v502 = vld [vmem:[#allocation4 + $0xb70] sm:$0xff]
    %v503 = vld [vmem:[#allocation4 + $0xb78] sm:$0xff]
    %v504 = vld [vmem:[#allocation4 + $0xb80] sm:$0xff]
    %v505 = vld [vmem:[#allocation4 + $0xb88] sm:$0xff]
    %v506 = vld [vmem:[#allocation4 + $0xb90] sm:$0xff]
    %v507 = vld [vmem:[#allocation4 + $0xb98] sm:$0xff]
    %v508 = vld [vmem:[#allocation4 + $0xba0] sm:$0xff]
    %v509 = vld [vmem:[#allocation4 + $0xba8] sm:$0xff]
    %v510 = vld [vmem:[#allocation4 + $0xbb0] sm:$0xff]
    %v511 = vld [vmem:[#allocation4 + $0xbb8] sm:$0xff]
    %v512 = vld [vmem:[#allocation4 + $0xbc0] sm:$0xff]
    %v513 = vld [vmem:[#allocation4 + $0xbc8] sm:$0xff]
    %v514 = vld [vmem:[#allocation4 + $0xbd0] sm:$0xff]
    %v515 = vld [vmem:[#allocation4 + $0xbd8] sm:$0xff]
    %v516 = vld [vmem:[#allocation4 + $0xbe0] sm:$0xff]
    %v517 = vld [vmem:[#allocation4 + $0xbe8] sm:$0xff]
    %v518 = vld [vmem:[#allocation4 + $0xbf0] sm:$0xff]
    %v519 = vld [vmem:[#allocation4 + $0xbf8] sm:$0xff]
    %v520 = vld [vmem:[#allocation4 + $0xc00] sm:$0xff]
    %v521 = vld [vmem:[#allocation4 + $0xc08] sm:$0xff]
    %v522 = vld [vmem:[#allocation4 + $0xc10] sm:$0xff]
    %v523 = vld [vmem:[#allocation4 + $0xc18] sm:$0xff]
    %v524 = vld [vmem:[#allocation4 + $0xc20] sm:$0xff]
    %v525 = vld [vmem:[#allocation4 + $0xc28] sm:$0xff]
    %v526 = vld [vmem:[#allocation4 + $0xc30] sm:$0xff]
    %v527 = vld [vmem:[#allocation4 + $0xc38] sm:$0xff]
    %v528 = vld [vmem:[#allocation6] sm:$0xff]
    %v530 = vperm.slane %v528, 0
    %v531 = vperm.slane %v528, 1
    %v532 = vperm.slane %v528, 2
    %v533 = vperm.slane %v528, 3
    %v534 = vperm.slane %v528, 4
    %v535 = vperm.slane %v528, 5
    %v536 = vperm.slane %v528, 6
    %v537 = vperm.slane %v528, 7
    %v938 = vunpack.c.l.b16 %v136
    %v939 = vunpack.c.h.b16 %v136
    %v940 = vunpack.c.l.b16 %v137
    %v941 = vunpack.c.h.b16 %v137
    %v942 = vunpack.c.l.b16 %v138
    %v943 = vunpack.c.h.b16 %v138
    %v944 = vunpack.c.l.b16 %v139
    %v945 = vunpack.c.h.b16 %v139
    %v946 = vunpack.c.l.b16 %v140
    %v947 = vunpack.c.h.b16 %v140
    %v948 = vunpack.c.l.b16 %v141
    %v949 = vunpack.c.h.b16 %v141
    %v950 = vunpack.c.l.b16 %v142
    %v951 = vunpack.c.h.b16 %v142
    %v952 = vunpack.c.l.b16 %v143
    %v953 = vunpack.c.h.b16 %v143
    %v954 = vunpack.c.l.b16 %v144
    %v955 = vunpack.c.h.b16 %v144
    %v956 = vunpack.c.l.b16 %v145
    %v957 = vunpack.c.h.b16 %v145
    %v958 = vunpack.c.l.b16 %v146
    %v959 = vunpack.c.h.b16 %v146
    %v960 = vunpack.c.l.b16 %v147
    %v961 = vunpack.c.h.b16 %v147
    %v962 = vunpack.c.l.b16 %v148
    %v963 = vunpack.c.h.b16 %v148
    %v964 = vunpack.c.l.b16 %v149
    %v965 = vunpack.c.h.b16 %v149
    %v966 = vunpack.c.l.b16 %v150
    %v967 = vunpack.c.h.b16 %v150
    %v968 = vunpack.c.l.b16 %v151
    %v969 = vunpack.c.h.b16 %v151
    %v970 = vunpack.c.l.b16 %v152
    %v971 = vunpack.c.h.b16 %v152
    %v972 = vunpack.c.l.b16 %v153
    %v973 = vunpack.c.h.b16 %v153
    %v974 = vunpack.c.l.b16 %v154
    %v975 = vunpack.c.h.b16 %v154
    %v976 = vunpack.c.l.b16 %v155
    %v977 = vunpack.c.h.b16 %v155
    %v978 = vunpack.c.l.b16 %v156
    %v979 = vunpack.c.h.b16 %v156
    %v980 = vunpack.c.l.b16 %v157
    %v981 = vunpack.c.h.b16 %v157
    %v982 = vunpack.c.l.b16 %v158
    %v983 = vunpack.c.h.b16 %v158
    %v984 = vunpack.c.l.b16 %v159
    %v985 = vunpack.c.h.b16 %v159
    %v986 = vunpack.c.l.b16 %v160
    %v987 = vunpack.c.h.b16 %v160
    %v988 = vunpack.c.l.b16 %v161
    %v989 = vunpack.c.h.b16 %v161
    %v990 = vunpack.c.l.b16 %v162
    %v991 = vunpack.c.h.b16 %v162
    %v992 = vunpack.c.l.b16 %v163
    %v993 = vunpack.c.h.b16 %v163
    %v994 = vunpack.c.l.b16 %v164
    %v995 = vunpack.c.h.b16 %v164
    %v996 = vunpack.c.l.b16 %v165
    %v997 = vunpack.c.h.b16 %v165
    %v998 = vunpack.c.l.b16 %v166
    %v999 = vunpack.c.h.b16 %v166
    %v1000 = vunpack.c.l.b16 %v167
    %v1001 = vunpack.c.h.b16 %v167
    %v1002 = vunpack.c.l.b16 %v168
    %v1003 = vunpack.c.h.b16 %v168
    %v1004 = vunpack.c.l.b16 %v169
    %v1005 = vunpack.c.h.b16 %v169
    %v1006 = vunpack.c.l.b16 %v170
    %v1007 = vunpack.c.h.b16 %v170
    %v1008 = vunpack.c.l.b16 %v171
    %v1009 = vunpack.c.h.b16 %v171
    %v1010 = vunpack.c.l.b16 %v172
    %v1011 = vunpack.c.h.b16 %v172
    %v1012 = vunpack.c.l.b16 %v173
    %v1013 = vunpack.c.h.b16 %v173
    %v1014 = vunpack.c.l.b16 %v174
    %v1015 = vunpack.c.h.b16 %v174
    %v1016 = vunpack.c.l.b16 %v175
    %v1017 = vunpack.c.h.b16 %v175
    %v1018 = vunpack.c.l.b16 %v176
    %v1019 = vunpack.c.h.b16 %v176
    %v1020 = vunpack.c.l.b16 %v177
    %v1021 = vunpack.c.h.b16 %v177
    %v1022 = vunpack.c.l.b16 %v178
    %v1023 = vunpack.c.h.b16 %v178
    %v1024 = vunpack.c.l.b16 %v179
    %v1025 = vunpack.c.h.b16 %v179
    %v1026 = vunpack.c.l.b16 %v180
    %v1027 = vunpack.c.h.b16 %v180
    %v1028 = vunpack.c.l.b16 %v181
    %v1029 = vunpack.c.h.b16 %v181
    %v1030 = vunpack.c.l.b16 %v182
    %v1031 = vunpack.c.h.b16 %v182
    %v1032 = vunpack.c.l.b16 %v183
    %v1033 = vunpack.c.h.b16 %v183
    %v1034 = vunpack.c.l.b16 %v184
    %v1035 = vunpack.c.h.b16 %v184
    %v1036 = vunpack.c.l.b16 %v185
    %v1037 = vunpack.c.h.b16 %v185
    %v1038 = vunpack.c.l.b16 %v186
    %v1039 = vunpack.c.h.b16 %v186
    %v1040 = vunpack.c.l.b16 %v187
    %v1041 = vunpack.c.h.b16 %v187
    %v1042 = vunpack.c.l.b16 %v188
    %v1043 = vunpack.c.h.b16 %v188
    %v1044 = vunpack.c.l.b16 %v189
    %v1045 = vunpack.c.h.b16 %v189
    %v1046 = vunpack.c.l.b16 %v190
    %v1047 = vunpack.c.h.b16 %v190
    %v1048 = vunpack.c.l.b16 %v191
    %v1049 = vunpack.c.h.b16 %v191
    %v1050 = vunpack.c.l.b16 %v192
    %v1051 = vunpack.c.h.b16 %v192
    %v1052 = vunpack.c.l.b16 %v193
    %v1053 = vunpack.c.h.b16 %v193
    %v1054 = vunpack.c.l.b16 %v194
    %v1055 = vunpack.c.h.b16 %v194
    %v1056 = vunpack.c.l.b16 %v195
    %v1057 = vunpack.c.h.b16 %v195
    %v1058 = vunpack.c.l.b16 %v196
    %v1059 = vunpack.c.h.b16 %v196
    %v1060 = vunpack.c.l.b16 %v197
    %v1061 = vunpack.c.h.b16 %v197
    %v1062 = vunpack.c.l.b16 %v198
    %v1063 = vunpack.c.h.b16 %v198
    %v1064 = vunpack.c.l.b16 %v199
    %v1065 = vunpack.c.h.b16 %v199
    %v1066 = vunpack.c.l.b16 %v200
    %v1067 = vunpack.c.h.b16 %v200
    %v1068 = vunpack.c.l.b16 %v201
    %v1069 = vunpack.c.h.b16 %v201
    %v1070 = vunpack.c.l.b16 %v202
    %v1071 = vunpack.c.h.b16 %v202
    %v1072 = vunpack.c.l.b16 %v203
    %v1073 = vunpack.c.h.b16 %v203
    %v1074 = vunpack.c.l.b16 %v204
    %v1075 = vunpack.c.h.b16 %v204
    %v1076 = vunpack.c.l.b16 %v205
    %v1077 = vunpack.c.h.b16 %v205
    %v1078 = vunpack.c.l.b16 %v206
    %v1079 = vunpack.c.h.b16 %v206
    %v1080 = vunpack.c.l.b16 %v207
    %v1081 = vunpack.c.h.b16 %v207
    %v1082 = vunpack.c.l.b16 %v208
    %v1083 = vunpack.c.h.b16 %v208
    %v1084 = vunpack.c.l.b16 %v209
    %v1085 = vunpack.c.h.b16 %v209
    %v1086 = vunpack.c.l.b16 %v210
    %v1087 = vunpack.c.h.b16 %v210
    %v1088 = vunpack.c.l.b16 %v211
    %v1089 = vunpack.c.h.b16 %v211
    %v1090 = vunpack.c.l.b16 %v212
    %v1091 = vunpack.c.h.b16 %v212
    %v1092 = vunpack.c.l.b16 %v213
    %v1093 = vunpack.c.h.b16 %v213
    %v1094 = vunpack.c.l.b16 %v214
    %v1095 = vunpack.c.h.b16 %v214
    %v1096 = vunpack.c.l.b16 %v215
    %v1097 = vunpack.c.h.b16 %v215
    %v1098 = vunpack.c.l.b16 %v216
    %v1099 = vunpack.c.h.b16 %v216
    %v1100 = vunpack.c.l.b16 %v217
    %v1101 = vunpack.c.h.b16 %v217
    %v1102 = vunpack.c.l.b16 %v218
    %v1103 = vunpack.c.h.b16 %v218
    %v1104 = vunpack.c.l.b16 %v219
    %v1105 = vunpack.c.h.b16 %v219
    %v1106 = vunpack.c.l.b16 %v220
    %v1107 = vunpack.c.h.b16 %v220
    %v1108 = vunpack.c.l.b16 %v221
    %v1109 = vunpack.c.h.b16 %v221
    %v1110 = vunpack.c.l.b16 %v222
    %v1111 = vunpack.c.h.b16 %v222
    %v1112 = vunpack.c.l.b16 %v223
    %v1113 = vunpack.c.h.b16 %v223
    %v1114 = vunpack.c.l.b16 %v224
    %v1115 = vunpack.c.h.b16 %v224
    %v1116 = vunpack.c.l.b16 %v225
    %v1117 = vunpack.c.h.b16 %v225
    %v1118 = vunpack.c.l.b16 %v226
    %v1119 = vunpack.c.h.b16 %v226
    %v1120 = vunpack.c.l.b16 %v227
    %v1121 = vunpack.c.h.b16 %v227
    %v1122 = vunpack.c.l.b16 %v228
    %v1123 = vunpack.c.h.b16 %v228
    %v1124 = vunpack.c.l.b16 %v229
    %v1125 = vunpack.c.h.b16 %v229
    %v1126 = vunpack.c.l.b16 %v230
    %v1127 = vunpack.c.h.b16 %v230
    %v1128 = vunpack.c.l.b16 %v231
    %v1129 = vunpack.c.h.b16 %v231
    %v1130 = vunpack.c.l.b16 %v232
    %v1131 = vunpack.c.h.b16 %v232
    %v1132 = vunpack.c.l.b16 %v233
    %v1133 = vunpack.c.h.b16 %v233
    %v1134 = vunpack.c.l.b16 %v234
    %v1135 = vunpack.c.h.b16 %v234
    %v1136 = vunpack.c.l.b16 %v235
    %v1137 = vunpack.c.h.b16 %v235
    %v1138 = vunpack.c.l.b16 %v236
    %v1139 = vunpack.c.h.b16 %v236
    %v1140 = vunpack.c.l.b16 %v237
    %v1141 = vunpack.c.h.b16 %v237
    %v1142 = vunpack.c.l.b16 %v238
    %v1143 = vunpack.c.h.b16 %v238
    %v1144 = vunpack.c.l.b16 %v239
    %v1145 = vunpack.c.h.b16 %v239
    %v1146 = vunpack.c.l.b16 %v240
    %v1147 = vunpack.c.h.b16 %v240
    %v1148 = vunpack.c.l.b16 %v241
    %v1149 = vunpack.c.h.b16 %v241
    %v1150 = vunpack.c.l.b16 %v242
    %v1151 = vunpack.c.h.b16 %v242
    %v1152 = vunpack.c.l.b16 %v243
    %v1153 = vunpack.c.h.b16 %v243
    %v1154 = vunpack.c.l.b16 %v244
    %v1155 = vunpack.c.h.b16 %v244
    %v1156 = vunpack.c.l.b16 %v245
    %v1157 = vunpack.c.h.b16 %v245
    %v1158 = vunpack.c.l.b16 %v246
    %v1159 = vunpack.c.h.b16 %v246
    %v1160 = vunpack.c.l.b16 %v247
    %v1161 = vunpack.c.h.b16 %v247
    %v1162 = vunpack.c.l.b16 %v248
    %v1163 = vunpack.c.h.b16 %v248
    %v1164 = vunpack.c.l.b16 %v249
    %v1165 = vunpack.c.h.b16 %v249
    %v1166 = vunpack.c.l.b16 %v250
    %v1167 = vunpack.c.h.b16 %v250
    %v1168 = vunpack.c.l.b16 %v251
    %v1169 = vunpack.c.h.b16 %v251
    %v1170 = vunpack.c.l.b16 %v252
    %v1171 = vunpack.c.h.b16 %v252
    %v1172 = vunpack.c.l.b16 %v253
    %v1173 = vunpack.c.h.b16 %v253
    %v1174 = vunpack.c.l.b16 %v254
    %v1175 = vunpack.c.h.b16 %v254
    %v1176 = vunpack.c.l.b16 %v255
    %v1177 = vunpack.c.h.b16 %v255
    %v1178 = vunpack.c.l.b16 %v256
    %v1179 = vunpack.c.h.b16 %v256
    %v1180 = vunpack.c.l.b16 %v257
    %v1181 = vunpack.c.h.b16 %v257
    %v1182 = vunpack.c.l.b16 %v258
    %v1183 = vunpack.c.h.b16 %v258
    %v1184 = vunpack.c.l.b16 %v259
    %v1185 = vunpack.c.h.b16 %v259
    %v1186 = vunpack.c.l.b16 %v260
    %v1187 = vunpack.c.h.b16 %v260
    %v1188 = vunpack.c.l.b16 %v261
    %v1189 = vunpack.c.h.b16 %v261
    %v1190 = vunpack.c.l.b16 %v262
    %v1191 = vunpack.c.h.b16 %v262
    %v1192 = vunpack.c.l.b16 %v263
    %v1193 = vunpack.c.h.b16 %v263
    %v1194 = vunpack.c.l.b16 %v264
    %v1195 = vunpack.c.h.b16 %v264
    %v1196 = vunpack.c.l.b16 %v265
    %v1197 = vunpack.c.h.b16 %v265
    %v1198 = vunpack.c.l.b16 %v266
    %v1199 = vunpack.c.h.b16 %v266
    %v1200 = vunpack.c.l.b16 %v267
    %v1201 = vunpack.c.h.b16 %v267
    %v1202 = vunpack.c.l.b16 %v268
    %v1203 = vunpack.c.h.b16 %v268
    %v1204 = vunpack.c.l.b16 %v269
    %v1205 = vunpack.c.h.b16 %v269
    %v1206 = vunpack.c.l.b16 %v270
    %v1207 = vunpack.c.h.b16 %v270
    %v1208 = vunpack.c.l.b16 %v271
    %v1209 = vunpack.c.h.b16 %v271
    %v1210 = vunpack.c.l.b16 %v272
    %v1211 = vunpack.c.h.b16 %v272
    %v1212 = vunpack.c.l.b16 %v273
    %v1213 = vunpack.c.h.b16 %v273
    %v1214 = vunpack.c.l.b16 %v274
    %v1215 = vunpack.c.h.b16 %v274
    %v1216 = vunpack.c.l.b16 %v275
    %v1217 = vunpack.c.h.b16 %v275
    %v1218 = vunpack.c.l.b16 %v276
    %v1219 = vunpack.c.h.b16 %v276
    %v1220 = vunpack.c.l.b16 %v277
    %v1221 = vunpack.c.h.b16 %v277
    %v1222 = vunpack.c.l.b16 %v278
    %v1223 = vunpack.c.h.b16 %v278
    %v1224 = vunpack.c.l.b16 %v279
    %v1225 = vunpack.c.h.b16 %v279
    %v1226 = vunpack.c.l.b16 %v280
    %v1227 = vunpack.c.h.b16 %v280
    %v1228 = vunpack.c.l.b16 %v281
    %v1229 = vunpack.c.h.b16 %v281
    %v1230 = vunpack.c.l.b16 %v282
    %v1231 = vunpack.c.h.b16 %v282
    %v1232 = vunpack.c.l.b16 %v283
    %v1233 = vunpack.c.h.b16 %v283
    %v1234 = vunpack.c.l.b16 %v284
    %v1235 = vunpack.c.h.b16 %v284
    %v1236 = vunpack.c.l.b16 %v285
    %v1237 = vunpack.c.h.b16 %v285
    %v1238 = vunpack.c.l.b16 %v286
    %v1239 = vunpack.c.h.b16 %v286
    %v1240 = vunpack.c.l.b16 %v287
    %v1241 = vunpack.c.h.b16 %v287
    %v1242 = vunpack.c.l.b16 %v288
    %v1243 = vunpack.c.h.b16 %v288
    %v1244 = vunpack.c.l.b16 %v289
    %v1245 = vunpack.c.h.b16 %v289
    %v1246 = vunpack.c.l.b16 %v290
    %v1247 = vunpack.c.h.b16 %v290
    %v1248 = vunpack.c.l.b16 %v291
    %v1249 = vunpack.c.h.b16 %v291
    %v1250 = vunpack.c.l.b16 %v292
    %v1251 = vunpack.c.h.b16 %v292
    %v1252 = vunpack.c.l.b16 %v293
    %v1253 = vunpack.c.h.b16 %v293
    %v1254 = vunpack.c.l.b16 %v294
    %v1255 = vunpack.c.h.b16 %v294
    %v1256 = vunpack.c.l.b16 %v295
    %v1257 = vunpack.c.h.b16 %v295
    %v1258 = vunpack.c.l.b16 %v296
    %v1259 = vunpack.c.h.b16 %v296
    %v1260 = vunpack.c.l.b16 %v297
    %v1261 = vunpack.c.h.b16 %v297
    %v1262 = vunpack.c.l.b16 %v298
    %v1263 = vunpack.c.h.b16 %v298
    %v1264 = vunpack.c.l.b16 %v299
    %v1265 = vunpack.c.h.b16 %v299
    %v1266 = vunpack.c.l.b16 %v300
    %v1267 = vunpack.c.h.b16 %v300
    %v1268 = vunpack.c.l.b16 %v301
    %v1269 = vunpack.c.h.b16 %v301
    %v1270 = vunpack.c.l.b16 %v302
    %v1271 = vunpack.c.h.b16 %v302
    %v1272 = vunpack.c.l.b16 %v303
    %v1273 = vunpack.c.h.b16 %v303
    %v1274 = vunpack.c.l.b16 %v304
    %v1275 = vunpack.c.h.b16 %v304
    %v1276 = vunpack.c.l.b16 %v305
    %v1277 = vunpack.c.h.b16 %v305
    %v1278 = vunpack.c.l.b16 %v306
    %v1279 = vunpack.c.h.b16 %v306
    %v1280 = vunpack.c.l.b16 %v307
    %v1281 = vunpack.c.h.b16 %v307
    %v1282 = vunpack.c.l.b16 %v308
    %v1283 = vunpack.c.h.b16 %v308
    %v1284 = vunpack.c.l.b16 %v309
    %v1285 = vunpack.c.h.b16 %v309
    %v1286 = vunpack.c.l.b16 %v310
    %v1287 = vunpack.c.h.b16 %v310
    %v1288 = vunpack.c.l.b16 %v311
    %v1289 = vunpack.c.h.b16 %v311
    %v1290 = vunpack.c.l.b16 %v312
    %v1291 = vunpack.c.h.b16 %v312
    %v1292 = vunpack.c.l.b16 %v313
    %v1293 = vunpack.c.h.b16 %v313
    %v1294 = vunpack.c.l.b16 %v314
    %v1295 = vunpack.c.h.b16 %v314
    %v1296 = vunpack.c.l.b16 %v315
    %v1297 = vunpack.c.h.b16 %v315
    %v1298 = vunpack.c.l.b16 %v316
    %v1299 = vunpack.c.h.b16 %v316
    %v1300 = vunpack.c.l.b16 %v317
    %v1301 = vunpack.c.h.b16 %v317
    %v1302 = vunpack.c.l.b16 %v318
    %v1303 = vunpack.c.h.b16 %v318
    %v1304 = vunpack.c.l.b16 %v319
    %v1305 = vunpack.c.h.b16 %v319
    %v1306 = vunpack.c.l.b16 %v320
    %v1307 = vunpack.c.h.b16 %v320
    %v1308 = vunpack.c.l.b16 %v321
    %v1309 = vunpack.c.h.b16 %v321
    %v1310 = vunpack.c.l.b16 %v322
    %v1311 = vunpack.c.h.b16 %v322
    %v1312 = vunpack.c.l.b16 %v323
    %v1313 = vunpack.c.h.b16 %v323
    %v1314 = vunpack.c.l.b16 %v324
    %v1315 = vunpack.c.h.b16 %v324
    %v1316 = vunpack.c.l.b16 %v325
    %v1317 = vunpack.c.h.b16 %v325
    %v1318 = vunpack.c.l.b16 %v326
    %v1319 = vunpack.c.h.b16 %v326
    %v1320 = vunpack.c.l.b16 %v327
    %v1321 = vunpack.c.h.b16 %v327
    %v1322 = vunpack.c.l.b16 %v328
    %v1323 = vunpack.c.h.b16 %v328
    %v1324 = vunpack.c.l.b16 %v329
    %v1325 = vunpack.c.h.b16 %v329
    %v1326 = vunpack.c.l.b16 %v330
    %v1327 = vunpack.c.h.b16 %v330
    %v1328 = vunpack.c.l.b16 %v331
    %v1329 = vunpack.c.h.b16 %v331
    %v1330 = vunpack.c.l.b16 %v332
    %v1331 = vunpack.c.h.b16 %v332
    %v1332 = vunpack.c.l.b16 %v333
    %v1333 = vunpack.c.h.b16 %v333
    %v1334 = vunpack.c.l.b16 %v334
    %v1335 = vunpack.c.h.b16 %v334
    %v1336 = vunpack.c.l.b16 %v335
    %v1337 = vunpack.c.h.b16 %v335
    %v1338 = vunpack.c.l.b16 %v336
    %v1339 = vunpack.c.h.b16 %v336
    %v1340 = vunpack.c.l.b16 %v337
    %v1341 = vunpack.c.h.b16 %v337
    %v1342 = vunpack.c.l.b16 %v338
    %v1343 = vunpack.c.h.b16 %v338
    %v1344 = vunpack.c.l.b16 %v339
    %v1345 = vunpack.c.h.b16 %v339
    %v1346 = vunpack.c.l.b16 %v340
    %v1347 = vunpack.c.h.b16 %v340
    %v1348 = vunpack.c.l.b16 %v341
    %v1349 = vunpack.c.h.b16 %v341
    %v1350 = vunpack.c.l.b16 %v342
    %v1351 = vunpack.c.h.b16 %v342
    %v1352 = vunpack.c.l.b16 %v343
    %v1353 = vunpack.c.h.b16 %v343
    %v1354 = vunpack.c.l.b16 %v344
    %v1355 = vunpack.c.h.b16 %v344
    %v1356 = vunpack.c.l.b16 %v345
    %v1357 = vunpack.c.h.b16 %v345
    %v1358 = vunpack.c.l.b16 %v346
    %v1359 = vunpack.c.h.b16 %v346
    %v1360 = vunpack.c.l.b16 %v347
    %v1361 = vunpack.c.h.b16 %v347
    %v1362 = vunpack.c.l.b16 %v348
    %v1363 = vunpack.c.h.b16 %v348
    %v1364 = vunpack.c.l.b16 %v349
    %v1365 = vunpack.c.h.b16 %v349
    %v1366 = vunpack.c.l.b16 %v350
    %v1367 = vunpack.c.h.b16 %v350
    %v1368 = vunpack.c.l.b16 %v351
    %v1369 = vunpack.c.h.b16 %v351
    %v1370 = vunpack.c.l.b16 %v352
    %v1371 = vunpack.c.h.b16 %v352
    %v1372 = vunpack.c.l.b16 %v353
    %v1373 = vunpack.c.h.b16 %v353
    %v1374 = vunpack.c.l.b16 %v354
    %v1375 = vunpack.c.h.b16 %v354
    %v1376 = vunpack.c.l.b16 %v355
    %v1377 = vunpack.c.h.b16 %v355
    %v1378 = vunpack.c.l.b16 %v356
    %v1379 = vunpack.c.h.b16 %v356
    %v1380 = vunpack.c.l.b16 %v357
    %v1381 = vunpack.c.h.b16 %v357
    %v1382 = vunpack.c.l.b16 %v358
    %v1383 = vunpack.c.h.b16 %v358
    %v1384 = vunpack.c.l.b16 %v359
    %v1385 = vunpack.c.h.b16 %v359
    %v1386 = vunpack.c.l.b16 %v360
    %v1387 = vunpack.c.h.b16 %v360
    %v1388 = vunpack.c.l.b16 %v361
    %v1389 = vunpack.c.h.b16 %v361
    %v1390 = vunpack.c.l.b16 %v362
    %v1391 = vunpack.c.h.b16 %v362
    %v1392 = vunpack.c.l.b16 %v363
    %v1393 = vunpack.c.h.b16 %v363
    %v1394 = vunpack.c.l.b16 %v364
    %v1395 = vunpack.c.h.b16 %v364
    %v1396 = vunpack.c.l.b16 %v365
    %v1397 = vunpack.c.h.b16 %v365
    %v1398 = vunpack.c.l.b16 %v366
    %v1399 = vunpack.c.h.b16 %v366
    %v1400 = vunpack.c.l.b16 %v367
    %v1401 = vunpack.c.h.b16 %v367
    %v1402 = vunpack.c.l.b16 %v368
    %v1403 = vunpack.c.h.b16 %v368
    %v1404 = vunpack.c.l.b16 %v369
    %v1405 = vunpack.c.h.b16 %v369
    %v1406 = vunpack.c.l.b16 %v370
    %v1407 = vunpack.c.h.b16 %v370
    %v1408 = vunpack.c.l.b16 %v371
    %v1409 = vunpack.c.h.b16 %v371
    %v1410 = vunpack.c.l.b16 %v372
    %v1411 = vunpack.c.h.b16 %v372
    %v1412 = vunpack.c.l.b16 %v373
    %v1413 = vunpack.c.h.b16 %v373
    %v1414 = vunpack.c.l.b16 %v374
    %v1415 = vunpack.c.h.b16 %v374
    %v1416 = vunpack.c.l.b16 %v375
    %v1417 = vunpack.c.h.b16 %v375
    %v1418 = vunpack.c.l.b16 %v376
    %v1419 = vunpack.c.h.b16 %v376
    %v1420 = vunpack.c.l.b16 %v377
    %v1421 = vunpack.c.h.b16 %v377
    %v1422 = vunpack.c.l.b16 %v378
    %v1423 = vunpack.c.h.b16 %v378
    %v1424 = vunpack.c.l.b16 %v379
    %v1425 = vunpack.c.h.b16 %v379
    %v1426 = vunpack.c.l.b16 %v380
    %v1427 = vunpack.c.h.b16 %v380
    %v1428 = vunpack.c.l.b16 %v381
    %v1429 = vunpack.c.h.b16 %v381
    %v1430 = vunpack.c.l.b16 %v382
    %v1431 = vunpack.c.h.b16 %v382
    %v1432 = vunpack.c.l.b16 %v383
    %v1433 = vunpack.c.h.b16 %v383
    %v1434 = vunpack.c.l.b16 %v384
    %v1435 = vunpack.c.h.b16 %v384
    %v1436 = vunpack.c.l.b16 %v385
    %v1437 = vunpack.c.h.b16 %v385
    %v1438 = vunpack.c.l.b16 %v386
    %v1439 = vunpack.c.h.b16 %v386
    %v1440 = vunpack.c.l.b16 %v387
    %v1441 = vunpack.c.h.b16 %v387
    %v1442 = vunpack.c.l.b16 %v388
    %v1443 = vunpack.c.h.b16 %v388
    %v1444 = vunpack.c.l.b16 %v389
    %v1445 = vunpack.c.h.b16 %v389
    %v1446 = vunpack.c.l.b16 %v390
    %v1447 = vunpack.c.h.b16 %v390
    %v1448 = vunpack.c.l.b16 %v391
    %v1449 = vunpack.c.h.b16 %v391
    %v1450 = vunpack.c.l.b16 %v392
    %v1451 = vunpack.c.h.b16 %v392
    %v1452 = vunpack.c.l.b16 %v393
    %v1453 = vunpack.c.h.b16 %v393
    %v1454 = vunpack.c.l.b16 %v394
    %v1455 = vunpack.c.h.b16 %v394
    %v1456 = vunpack.c.l.b16 %v395
    %v1457 = vunpack.c.h.b16 %v395
    %v1458 = vunpack.c.l.b16 %v396
    %v1459 = vunpack.c.h.b16 %v396
    %v1460 = vunpack.c.l.b16 %v397
    %v1461 = vunpack.c.h.b16 %v397
    %v1462 = vunpack.c.l.b16 %v398
    %v1463 = vunpack.c.h.b16 %v398
    %v1464 = vunpack.c.l.b16 %v399
    %v1465 = vunpack.c.h.b16 %v399
    %v1466 = vunpack.c.l.b16 %v400
    %v1467 = vunpack.c.h.b16 %v400
    %v1468 = vunpack.c.l.b16 %v401
    %v1469 = vunpack.c.h.b16 %v401
    %v1470 = vunpack.c.l.b16 %v402
    %v1471 = vunpack.c.h.b16 %v402
    %v1472 = vunpack.c.l.b16 %v403
    %v1473 = vunpack.c.h.b16 %v403
    %v1474 = vunpack.c.l.b16 %v404
    %v1475 = vunpack.c.h.b16 %v404
    %v1476 = vunpack.c.l.b16 %v405
    %v1477 = vunpack.c.h.b16 %v405
    %v1478 = vunpack.c.l.b16 %v406
    %v1479 = vunpack.c.h.b16 %v406
    %v1480 = vunpack.c.l.b16 %v407
    %v1481 = vunpack.c.h.b16 %v407
    %v1482 = vunpack.c.l.b16 %v408
    %v1483 = vunpack.c.h.b16 %v408
    %v1484 = vunpack.c.l.b16 %v409
    %v1485 = vunpack.c.h.b16 %v409
    %v1486 = vunpack.c.l.b16 %v410
    %v1487 = vunpack.c.h.b16 %v410
    %v1488 = vunpack.c.l.b16 %v411
    %v1489 = vunpack.c.h.b16 %v411
    %v1490 = vunpack.c.l.b16 %v412
    %v1491 = vunpack.c.h.b16 %v412
    %v1492 = vunpack.c.l.b16 %v413
    %v1493 = vunpack.c.h.b16 %v413
    %v1494 = vunpack.c.l.b16 %v414
    %v1495 = vunpack.c.h.b16 %v414
    %v1496 = vunpack.c.l.b16 %v415
    %v1497 = vunpack.c.h.b16 %v415
    %v1498 = vunpack.c.l.b16 %v416
    %v1499 = vunpack.c.h.b16 %v416
    %v1500 = vunpack.c.l.b16 %v417
    %v1501 = vunpack.c.h.b16 %v417
    %v1502 = vunpack.c.l.b16 %v418
    %v1503 = vunpack.c.h.b16 %v418
    %v1504 = vunpack.c.l.b16 %v419
    %v1505 = vunpack.c.h.b16 %v419
    %v1506 = vunpack.c.l.b16 %v420
    %v1507 = vunpack.c.h.b16 %v420
    %v1508 = vunpack.c.l.b16 %v421
    %v1509 = vunpack.c.h.b16 %v421
    %v1510 = vunpack.c.l.b16 %v422
    %v1511 = vunpack.c.h.b16 %v422
    %v1512 = vunpack.c.l.b16 %v423
    %v1513 = vunpack.c.h.b16 %v423
    %v1514 = vunpack.c.l.b16 %v424
    %v1515 = vunpack.c.h.b16 %v424
    %v1516 = vunpack.c.l.b16 %v425
    %v1517 = vunpack.c.h.b16 %v425
    %v1518 = vunpack.c.l.b16 %v426
    %v1519 = vunpack.c.h.b16 %v426
    %v1520 = vunpack.c.l.b16 %v427
    %v1521 = vunpack.c.h.b16 %v427
    %v1522 = vunpack.c.l.b16 %v428
    %v1523 = vunpack.c.h.b16 %v428
    %v1524 = vunpack.c.l.b16 %v429
    %v1525 = vunpack.c.h.b16 %v429
    %v1526 = vunpack.c.l.b16 %v430
    %v1527 = vunpack.c.h.b16 %v430
    %v1528 = vunpack.c.l.b16 %v431
    %v1529 = vunpack.c.h.b16 %v431
    %v1530 = vunpack.c.l.b16 %v432
    %v1531 = vunpack.c.h.b16 %v432
    %v1532 = vunpack.c.l.b16 %v433
    %v1533 = vunpack.c.h.b16 %v433
    %v1534 = vunpack.c.l.b16 %v434
    %v1535 = vunpack.c.h.b16 %v434
    %v1536 = vunpack.c.l.b16 %v435
    %v1537 = vunpack.c.h.b16 %v435
    %v1538 = vunpack.c.l.b16 %v436
    %v1539 = vunpack.c.h.b16 %v436
    %v1540 = vunpack.c.l.b16 %v437
    %v1541 = vunpack.c.h.b16 %v437
    %v1542 = vunpack.c.l.b16 %v438
    %v1543 = vunpack.c.h.b16 %v438
    %v1544 = vunpack.c.l.b16 %v439
    %v1545 = vunpack.c.h.b16 %v439
    %v1546 = vunpack.c.l.b16 %v440
    %v1547 = vunpack.c.h.b16 %v440
    %v1548 = vunpack.c.l.b16 %v441
    %v1549 = vunpack.c.h.b16 %v441
    %v1550 = vunpack.c.l.b16 %v442
    %v1551 = vunpack.c.h.b16 %v442
    %v1552 = vunpack.c.l.b16 %v443
    %v1553 = vunpack.c.h.b16 %v443
    %v1554 = vunpack.c.l.b16 %v444
    %v1555 = vunpack.c.h.b16 %v444
    %v1556 = vunpack.c.l.b16 %v445
    %v1557 = vunpack.c.h.b16 %v445
    %v1558 = vunpack.c.l.b16 %v446
    %v1559 = vunpack.c.h.b16 %v446
    %v1560 = vunpack.c.l.b16 %v447
    %v1561 = vunpack.c.h.b16 %v447
    %v1562 = vunpack.c.l.b16 %v448
    %v1563 = vunpack.c.h.b16 %v448
    %v1564 = vunpack.c.l.b16 %v449
    %v1565 = vunpack.c.h.b16 %v449
    %v1566 = vunpack.c.l.b16 %v450
    %v1567 = vunpack.c.h.b16 %v450
    %v1568 = vunpack.c.l.b16 %v451
    %v1569 = vunpack.c.h.b16 %v451
    %v1570 = vunpack.c.l.b16 %v452
    %v1571 = vunpack.c.h.b16 %v452
    %v1572 = vunpack.c.l.b16 %v453
    %v1573 = vunpack.c.h.b16 %v453
    %v1574 = vunpack.c.l.b16 %v454
    %v1575 = vunpack.c.h.b16 %v454
    %v1576 = vunpack.c.l.b16 %v455
    %v1577 = vunpack.c.h.b16 %v455
    %v1578 = vunpack.c.l.b16 %v456
    %v1579 = vunpack.c.h.b16 %v456
    %v1580 = vunpack.c.l.b16 %v457
    %v1581 = vunpack.c.h.b16 %v457
    %v1582 = vunpack.c.l.b16 %v458
    %v1583 = vunpack.c.h.b16 %v458
    %v1584 = vunpack.c.l.b16 %v459
    %v1585 = vunpack.c.h.b16 %v459
    %v1586 = vunpack.c.l.b16 %v460
    %v1587 = vunpack.c.h.b16 %v460
    %v1588 = vunpack.c.l.b16 %v461
    %v1589 = vunpack.c.h.b16 %v461
    %v1590 = vunpack.c.l.b16 %v462
    %v1591 = vunpack.c.h.b16 %v462
    %v1592 = vunpack.c.l.b16 %v463
    %v1593 = vunpack.c.h.b16 %v463
    %v1594 = vunpack.c.l.b16 %v464
    %v1595 = vunpack.c.h.b16 %v464
    %v1596 = vunpack.c.l.b16 %v465
    %v1597 = vunpack.c.h.b16 %v465
    %v1598 = vunpack.c.l.b16 %v466
    %v1599 = vunpack.c.h.b16 %v466
    %v1600 = vunpack.c.l.b16 %v467
    %v1601 = vunpack.c.h.b16 %v467
    %v1602 = vunpack.c.l.b16 %v468
    %v1603 = vunpack.c.h.b16 %v468
    %v1604 = vunpack.c.l.b16 %v469
    %v1605 = vunpack.c.h.b16 %v469
    %v1606 = vunpack.c.l.b16 %v470
    %v1607 = vunpack.c.h.b16 %v470
    %v1608 = vunpack.c.l.b16 %v471
    %v1609 = vunpack.c.h.b16 %v471
    %v1610 = vunpack.c.l.b16 %v472
    %v1611 = vunpack.c.h.b16 %v472
    %v1612 = vunpack.c.l.b16 %v473
    %v1613 = vunpack.c.h.b16 %v473
    %v1614 = vunpack.c.l.b16 %v474
    %v1615 = vunpack.c.h.b16 %v474
    %v1616 = vunpack.c.l.b16 %v475
    %v1617 = vunpack.c.h.b16 %v475
    %v1618 = vunpack.c.l.b16 %v476
    %v1619 = vunpack.c.h.b16 %v476
    %v1620 = vunpack.c.l.b16 %v477
    %v1621 = vunpack.c.h.b16 %v477
    %v1622 = vunpack.c.l.b16 %v478
    %v1623 = vunpack.c.h.b16 %v478
    %v1624 = vunpack.c.l.b16 %v479
    %v1625 = vunpack.c.h.b16 %v479
    %v1626 = vunpack.c.l.b16 %v480
    %v1627 = vunpack.c.h.b16 %v480
    %v1628 = vunpack.c.l.b16 %v481
    %v1629 = vunpack.c.h.b16 %v481
    %v1630 = vunpack.c.l.b16 %v482
    %v1631 = vunpack.c.h.b16 %v482
    %v1632 = vunpack.c.l.b16 %v483
    %v1633 = vunpack.c.h.b16 %v483
    %v1634 = vunpack.c.l.b16 %v484
    %v1635 = vunpack.c.h.b16 %v484
    %v1636 = vunpack.c.l.b16 %v485
    %v1637 = vunpack.c.h.b16 %v485
    %v1638 = vunpack.c.l.b16 %v486
    %v1639 = vunpack.c.h.b16 %v486
    %v1640 = vunpack.c.l.b16 %v487
    %v1641 = vunpack.c.h.b16 %v487
    %v1642 = vunpack.c.l.b16 %v488
    %v1643 = vunpack.c.h.b16 %v488
    %v1644 = vunpack.c.l.b16 %v489
    %v1645 = vunpack.c.h.b16 %v489
    %v1646 = vunpack.c.l.b16 %v490
    %v1647 = vunpack.c.h.b16 %v490
    %v1648 = vunpack.c.l.b16 %v491
    %v1649 = vunpack.c.h.b16 %v491
    %v1650 = vunpack.c.l.b16 %v492
    %v1651 = vunpack.c.h.b16 %v492
    %v1652 = vunpack.c.l.b16 %v493
    %v1653 = vunpack.c.h.b16 %v493
    %v1654 = vunpack.c.l.b16 %v494
    %v1655 = vunpack.c.h.b16 %v494
    %v1656 = vunpack.c.l.b16 %v495
    %v1657 = vunpack.c.h.b16 %v495
    %v1658 = vunpack.c.l.b16 %v496
    %v1659 = vunpack.c.h.b16 %v496
    %v1660 = vunpack.c.l.b16 %v497
    %v1661 = vunpack.c.h.b16 %v497
    %v1662 = vunpack.c.l.b16 %v498
    %v1663 = vunpack.c.h.b16 %v498
    %v1664 = vunpack.c.l.b16 %v499
    %v1665 = vunpack.c.h.b16 %v499
    %v1666 = vunpack.c.l.b16 %v500
    %v1667 = vunpack.c.h.b16 %v500
    %v1668 = vunpack.c.l.b16 %v501
    %v1669 = vunpack.c.h.b16 %v501
    %v1670 = vunpack.c.l.b16 %v502
    %v1671 = vunpack.c.h.b16 %v502
    %v1672 = vunpack.c.l.b16 %v503
    %v1673 = vunpack.c.h.b16 %v503
    %v1674 = vunpack.c.l.b16 %v504
    %v1675 = vunpack.c.h.b16 %v504
    %v1676 = vunpack.c.l.b16 %v505
    %v1677 = vunpack.c.h.b16 %v505
    %v1678 = vunpack.c.l.b16 %v506
    %v1679 = vunpack.c.h.b16 %v506
    %v1680 = vunpack.c.l.b16 %v507
    %v1681 = vunpack.c.h.b16 %v507
    %v1682 = vunpack.c.l.b16 %v508
    %v1683 = vunpack.c.h.b16 %v508
    %v1684 = vunpack.c.l.b16 %v509
    %v1685 = vunpack.c.h.b16 %v509
    %v1686 = vunpack.c.l.b16 %v510
    %v1687 = vunpack.c.h.b16 %v510
    %v1688 = vunpack.c.l.b16 %v511
    %v1689 = vunpack.c.h.b16 %v511
    %v1690 = vunpack.c.l.b16 %v512
    %v1691 = vunpack.c.h.b16 %v512
    %v1692 = vunpack.c.l.b16 %v513
    %v1693 = vunpack.c.h.b16 %v513
    %v1694 = vunpack.c.l.b16 %v514
    %v1695 = vunpack.c.h.b16 %v514
    %v1696 = vunpack.c.l.b16 %v515
    %v1697 = vunpack.c.h.b16 %v515
    %v1698 = vunpack.c.l.b16 %v516
    %v1699 = vunpack.c.h.b16 %v516
    %v1700 = vunpack.c.l.b16 %v517
    %v1701 = vunpack.c.h.b16 %v517
    %v1702 = vunpack.c.l.b16 %v518
    %v1703 = vunpack.c.h.b16 %v518
    %v1704 = vunpack.c.l.b16 %v519
    %v1705 = vunpack.c.h.b16 %v519
    %v1706 = vunpack.c.l.b16 %v520
    %v1707 = vunpack.c.h.b16 %v520
    %v1708 = vunpack.c.l.b16 %v521
    %v1709 = vunpack.c.h.b16 %v521
    %v1710 = vunpack.c.l.b16 %v522
    %v1711 = vunpack.c.h.b16 %v522
    %v1712 = vunpack.c.l.b16 %v523
    %v1713 = vunpack.c.h.b16 %v523
    %v1714 = vunpack.c.l.b16 %v524
    %v1715 = vunpack.c.h.b16 %v524
    %v1716 = vunpack.c.l.b16 %v525
    %v1717 = vunpack.c.h.b16 %v525
    %v1718 = vunpack.c.l.b16 %v526
    %v1719 = vunpack.c.h.b16 %v526
    %v1720 = vunpack.c.l.b16 %v527
    %v1721 = vunpack.c.h.b16 %v527
    %v1722 = vpack.c.b16 %v946, %v938
    %v1723 = vpack.c.b16 %v947, %v939
    %v1724 = vpack.c.b16 %v948, %v940
    %v1725 = vpack.c.b16 %v949, %v941
    %v1726 = vpack.c.b16 %v950, %v942
    %v1727 = vpack.c.b16 %v951, %v943
    %v1728 = vpack.c.b16 %v952, %v944
    %v1729 = vpack.c.b16 %v953, %v945
    %v1730 = vpack.c.b16 %v962, %v954
    %v1731 = vpack.c.b16 %v963, %v955
    %v1732 = vpack.c.b16 %v964, %v956
    %v1733 = vpack.c.b16 %v965, %v957
    %v1734 = vpack.c.b16 %v966, %v958
    %v1735 = vpack.c.b16 %v967, %v959
    %v1736 = vpack.c.b16 %v968, %v960
    %v1737 = vpack.c.b16 %v969, %v961
    %v1738 = vpack.c.b16 %v978, %v970
    %v1739 = vpack.c.b16 %v979, %v971
    %v1740 = vpack.c.b16 %v980, %v972
    %v1741 = vpack.c.b16 %v981, %v973
    %v1742 = vpack.c.b16 %v982, %v974
    %v1743 = vpack.c.b16 %v983, %v975
    %v1744 = vpack.c.b16 %v984, %v976
    %v1745 = vpack.c.b16 %v985, %v977
    %v1746 = vpack.c.b16 %v994, %v986
    %v1747 = vpack.c.b16 %v995, %v987
    %v1748 = vpack.c.b16 %v996, %v988
    %v1749 = vpack.c.b16 %v997, %v989
    %v1750 = vpack.c.b16 %v998, %v990
    %v1751 = vpack.c.b16 %v999, %v991
    %v1752 = vpack.c.b16 %v1000, %v992
    %v1753 = vpack.c.b16 %v1001, %v993
    %v1754 = vpack.c.b16 %v1010, %v1002
    %v1755 = vpack.c.b16 %v1011, %v1003
    %v1756 = vpack.c.b16 %v1012, %v1004
    %v1757 = vpack.c.b16 %v1013, %v1005
    %v1758 = vpack.c.b16 %v1014, %v1006
    %v1759 = vpack.c.b16 %v1015, %v1007
    %v1760 = vpack.c.b16 %v1016, %v1008
    %v1761 = vpack.c.b16 %v1017, %v1009
    %v1762 = vpack.c.b16 %v1026, %v1018
    %v1763 = vpack.c.b16 %v1027, %v1019
    %v1764 = vpack.c.b16 %v1028, %v1020
    %v1765 = vpack.c.b16 %v1029, %v1021
    %v1766 = vpack.c.b16 %v1030, %v1022
    %v1767 = vpack.c.b16 %v1031, %v1023
    %v1768 = vpack.c.b16 %v1032, %v1024
    %v1769 = vpack.c.b16 %v1033, %v1025
    %v1770 = vpack.c.b16 %v1042, %v1034
    %v1771 = vpack.c.b16 %v1043, %v1035
    %v1772 = vpack.c.b16 %v1044, %v1036
    %v1773 = vpack.c.b16 %v1045, %v1037
    %v1774 = vpack.c.b16 %v1046, %v1038
    %v1775 = vpack.c.b16 %v1047, %v1039
    %v1776 = vpack.c.b16 %v1048, %v1040
    %v1777 = vpack.c.b16 %v1049, %v1041
    %v1778 = vpack.c.b16 %v1058, %v1050
    %v1779 = vpack.c.b16 %v1059, %v1051
    %v1780 = vpack.c.b16 %v1060, %v1052
    %v1781 = vpack.c.b16 %v1061, %v1053
    %v1782 = vpack.c.b16 %v1062, %v1054
    %v1783 = vpack.c.b16 %v1063, %v1055
    %v1784 = vpack.c.b16 %v1064, %v1056
    %v1785 = vpack.c.b16 %v1065, %v1057
    %v1786 = vpack.c.b16 %v1074, %v1066
    %v1787 = vpack.c.b16 %v1075, %v1067
    %v1788 = vpack.c.b16 %v1076, %v1068
    %v1789 = vpack.c.b16 %v1077, %v1069
    %v1790 = vpack.c.b16 %v1078, %v1070
    %v1791 = vpack.c.b16 %v1079, %v1071
    %v1792 = vpack.c.b16 %v1080, %v1072
    %v1793 = vpack.c.b16 %v1081, %v1073
    %v1794 = vpack.c.b16 %v1090, %v1082
    %v1795 = vpack.c.b16 %v1091, %v1083
    %v1796 = vpack.c.b16 %v1092, %v1084
    %v1797 = vpack.c.b16 %v1093, %v1085
    %v1798 = vpack.c.b16 %v1094, %v1086
    %v1799 = vpack.c.b16 %v1095, %v1087
    %v1800 = vpack.c.b16 %v1096, %v1088
    %v1801 = vpack.c.b16 %v1097, %v1089
    %v1802 = vpack.c.b16 %v1106, %v1098
    %v1803 = vpack.c.b16 %v1107, %v1099
    %v1804 = vpack.c.b16 %v1108, %v1100
    %v1805 = vpack.c.b16 %v1109, %v1101
    %v1806 = vpack.c.b16 %v1110, %v1102
    %v1807 = vpack.c.b16 %v1111, %v1103
    %v1808 = vpack.c.b16 %v1112, %v1104
    %v1809 = vpack.c.b16 %v1113, %v1105
    %v1810 = vpack.c.b16 %v1122, %v1114
    %v1811 = vpack.c.b16 %v1123, %v1115
    %v1812 = vpack.c.b16 %v1124, %v1116
    %v1813 = vpack.c.b16 %v1125, %v1117
    %v1814 = vpack.c.b16 %v1126, %v1118
    %v1815 = vpack.c.b16 %v1127, %v1119
    %v1816 = vpack.c.b16 %v1128, %v1120
    %v1817 = vpack.c.b16 %v1129, %v1121
    %v1818 = vpack.c.b16 %v1138, %v1130
    %v1819 = vpack.c.b16 %v1139, %v1131
    %v1820 = vpack.c.b16 %v1140, %v1132
    %v1821 = vpack.c.b16 %v1141, %v1133
    %v1822 = vpack.c.b16 %v1142, %v1134
    %v1823 = vpack.c.b16 %v1143, %v1135
    %v1824 = vpack.c.b16 %v1144, %v1136
    %v1825 = vpack.c.b16 %v1145, %v1137
    %v1826 = vpack.c.b16 %v1154, %v1146
    %v1827 = vpack.c.b16 %v1155, %v1147
    %v1828 = vpack.c.b16 %v1156, %v1148
    %v1829 = vpack.c.b16 %v1157, %v1149
    %v1830 = vpack.c.b16 %v1158, %v1150
    %v1831 = vpack.c.b16 %v1159, %v1151
    %v1832 = vpack.c.b16 %v1160, %v1152
    %v1833 = vpack.c.b16 %v1161, %v1153
    %v1834 = vpack.c.b16 %v1170, %v1162
    %v1835 = vpack.c.b16 %v1171, %v1163
    %v1836 = vpack.c.b16 %v1172, %v1164
    %v1837 = vpack.c.b16 %v1173, %v1165
    %v1838 = vpack.c.b16 %v1174, %v1166
    %v1839 = vpack.c.b16 %v1175, %v1167
    %v1840 = vpack.c.b16 %v1176, %v1168
    %v1841 = vpack.c.b16 %v1177, %v1169
    %v1842 = vpack.c.b16 %v1186, %v1178
    %v1843 = vpack.c.b16 %v1187, %v1179
    %v1844 = vpack.c.b16 %v1188, %v1180
    %v1845 = vpack.c.b16 %v1189, %v1181
    %v1846 = vpack.c.b16 %v1190, %v1182
    %v1847 = vpack.c.b16 %v1191, %v1183
    %v1848 = vpack.c.b16 %v1192, %v1184
    %v1849 = vpack.c.b16 %v1193, %v1185
    %v1850 = vpack.c.b16 %v1202, %v1194
    %v1851 = vpack.c.b16 %v1203, %v1195
    %v1852 = vpack.c.b16 %v1204, %v1196
    %v1853 = vpack.c.b16 %v1205, %v1197
    %v1854 = vpack.c.b16 %v1206, %v1198
    %v1855 = vpack.c.b16 %v1207, %v1199
    %v1856 = vpack.c.b16 %v1208, %v1200
    %v1857 = vpack.c.b16 %v1209, %v1201
    %v1858 = vpack.c.b16 %v1218, %v1210
    %v1859 = vpack.c.b16 %v1219, %v1211
    %v1860 = vpack.c.b16 %v1220, %v1212
    %v1861 = vpack.c.b16 %v1221, %v1213
    %v1862 = vpack.c.b16 %v1222, %v1214
    %v1863 = vpack.c.b16 %v1223, %v1215
    %v1864 = vpack.c.b16 %v1224, %v1216
    %v1865 = vpack.c.b16 %v1225, %v1217
    %v1866 = vpack.c.b16 %v1234, %v1226
    %v1867 = vpack.c.b16 %v1235, %v1227
    %v1868 = vpack.c.b16 %v1236, %v1228
    %v1869 = vpack.c.b16 %v1237, %v1229
    %v1870 = vpack.c.b16 %v1238, %v1230
    %v1871 = vpack.c.b16 %v1239, %v1231
    %v1872 = vpack.c.b16 %v1240, %v1232
    %v1873 = vpack.c.b16 %v1241, %v1233
    %v1874 = vpack.c.b16 %v1250, %v1242
    %v1875 = vpack.c.b16 %v1251, %v1243
    %v1876 = vpack.c.b16 %v1252, %v1244
    %v1877 = vpack.c.b16 %v1253, %v1245
    %v1878 = vpack.c.b16 %v1254, %v1246
    %v1879 = vpack.c.b16 %v1255, %v1247
    %v1880 = vpack.c.b16 %v1256, %v1248
    %v1881 = vpack.c.b16 %v1257, %v1249
    %v1882 = vpack.c.b16 %v1266, %v1258
    %v1883 = vpack.c.b16 %v1267, %v1259
    %v1884 = vpack.c.b16 %v1268, %v1260
    %v1885 = vpack.c.b16 %v1269, %v1261
    %v1886 = vpack.c.b16 %v1270, %v1262
    %v1887 = vpack.c.b16 %v1271, %v1263
    %v1888 = vpack.c.b16 %v1272, %v1264
    %v1889 = vpack.c.b16 %v1273, %v1265
    %v1890 = vpack.c.b16 %v1282, %v1274
    %v1891 = vpack.c.b16 %v1283, %v1275
    %v1892 = vpack.c.b16 %v1284, %v1276
    %v1893 = vpack.c.b16 %v1285, %v1277
    %v1894 = vpack.c.b16 %v1286, %v1278
    %v1895 = vpack.c.b16 %v1287, %v1279
    %v1896 = vpack.c.b16 %v1288, %v1280
    %v1897 = vpack.c.b16 %v1289, %v1281
    %v1898 = vpack.c.b16 %v1298, %v1290
    %v1899 = vpack.c.b16 %v1299, %v1291
    %v1900 = vpack.c.b16 %v1300, %v1292
    %v1901 = vpack.c.b16 %v1301, %v1293
    %v1902 = vpack.c.b16 %v1302, %v1294
    %v1903 = vpack.c.b16 %v1303, %v1295
    %v1904 = vpack.c.b16 %v1304, %v1296
    %v1905 = vpack.c.b16 %v1305, %v1297
    %v1906 = vpack.c.b16 %v1314, %v1306
    %v1907 = vpack.c.b16 %v1315, %v1307
    %v1908 = vpack.c.b16 %v1316, %v1308
    %v1909 = vpack.c.b16 %v1317, %v1309
    %v1910 = vpack.c.b16 %v1318, %v1310
    %v1911 = vpack.c.b16 %v1319, %v1311
    %v1912 = vpack.c.b16 %v1320, %v1312
    %v1913 = vpack.c.b16 %v1321, %v1313
    %v1914 = vpack.c.b16 %v1330, %v1322
    %v1915 = vpack.c.b16 %v1331, %v1323
    %v1916 = vpack.c.b16 %v1332, %v1324
    %v1917 = vpack.c.b16 %v1333, %v1325
    %v1918 = vpack.c.b16 %v1334, %v1326
    %v1919 = vpack.c.b16 %v1335, %v1327
    %v1920 = vpack.c.b16 %v1336, %v1328
    %v1921 = vpack.c.b16 %v1337, %v1329
    %v1922 = vpack.c.b16 %v1346, %v1338
    %v1923 = vpack.c.b16 %v1347, %v1339
    %v1924 = vpack.c.b16 %v1348, %v1340
    %v1925 = vpack.c.b16 %v1349, %v1341
    %v1926 = vpack.c.b16 %v1350, %v1342
    %v1927 = vpack.c.b16 %v1351, %v1343
    %v1928 = vpack.c.b16 %v1352, %v1344
    %v1929 = vpack.c.b16 %v1353, %v1345
    %v1930 = vpack.c.b16 %v1362, %v1354
    %v1931 = vpack.c.b16 %v1363, %v1355
    %v1932 = vpack.c.b16 %v1364, %v1356
    %v1933 = vpack.c.b16 %v1365, %v1357
    %v1934 = vpack.c.b16 %v1366, %v1358
    %v1935 = vpack.c.b16 %v1367, %v1359
    %v1936 = vpack.c.b16 %v1368, %v1360
    %v1937 = vpack.c.b16 %v1369, %v1361
    %v1938 = vpack.c.b16 %v1378, %v1370
    %v1939 = vpack.c.b16 %v1379, %v1371
    %v1940 = vpack.c.b16 %v1380, %v1372
    %v1941 = vpack.c.b16 %v1381, %v1373
    %v1942 = vpack.c.b16 %v1382, %v1374
    %v1943 = vpack.c.b16 %v1383, %v1375
    %v1944 = vpack.c.b16 %v1384, %v1376
    %v1945 = vpack.c.b16 %v1385, %v1377
    %v1946 = vpack.c.b16 %v1394, %v1386
    %v1947 = vpack.c.b16 %v1395, %v1387
    %v1948 = vpack.c.b16 %v1396, %v1388
    %v1949 = vpack.c.b16 %v1397, %v1389
    %v1950 = vpack.c.b16 %v1398, %v1390
    %v1951 = vpack.c.b16 %v1399, %v1391
    %v1952 = vpack.c.b16 %v1400, %v1392
    %v1953 = vpack.c.b16 %v1401, %v1393
    %v1954 = vpack.c.b16 %v1410, %v1402
    %v1955 = vpack.c.b16 %v1411, %v1403
    %v1956 = vpack.c.b16 %v1412, %v1404
    %v1957 = vpack.c.b16 %v1413, %v1405
    %v1958 = vpack.c.b16 %v1414, %v1406
    %v1959 = vpack.c.b16 %v1415, %v1407
    %v1960 = vpack.c.b16 %v1416, %v1408
    %v1961 = vpack.c.b16 %v1417, %v1409
    %v1962 = vpack.c.b16 %v1426, %v1418
    %v1963 = vpack.c.b16 %v1427, %v1419
    %v1964 = vpack.c.b16 %v1428, %v1420
    %v1965 = vpack.c.b16 %v1429, %v1421
    %v1966 = vpack.c.b16 %v1430, %v1422
    %v1967 = vpack.c.b16 %v1431, %v1423
    %v1968 = vpack.c.b16 %v1432, %v1424
    %v1969 = vpack.c.b16 %v1433, %v1425
    %v1970 = vpack.c.b16 %v1442, %v1434
    %v1971 = vpack.c.b16 %v1443, %v1435
    %v1972 = vpack.c.b16 %v1444, %v1436
    %v1973 = vpack.c.b16 %v1445, %v1437
    %v1974 = vpack.c.b16 %v1446, %v1438
    %v1975 = vpack.c.b16 %v1447, %v1439
    %v1976 = vpack.c.b16 %v1448, %v1440
    %v1977 = vpack.c.b16 %v1449, %v1441
    %v1978 = vpack.c.b16 %v1458, %v1450
    %v1979 = vpack.c.b16 %v1459, %v1451
    %v1980 = vpack.c.b16 %v1460, %v1452
    %v1981 = vpack.c.b16 %v1461, %v1453
    %v1982 = vpack.c.b16 %v1462, %v1454
    %v1983 = vpack.c.b16 %v1463, %v1455
    %v1984 = vpack.c.b16 %v1464, %v1456
    %v1985 = vpack.c.b16 %v1465, %v1457
    %v1986 = vpack.c.b16 %v1474, %v1466
    %v1987 = vpack.c.b16 %v1475, %v1467
    %v1988 = vpack.c.b16 %v1476, %v1468
    %v1989 = vpack.c.b16 %v1477, %v1469
    %v1990 = vpack.c.b16 %v1478, %v1470
    %v1991 = vpack.c.b16 %v1479, %v1471
    %v1992 = vpack.c.b16 %v1480, %v1472
    %v1993 = vpack.c.b16 %v1481, %v1473
    %v1994 = vpack.c.b16 %v1490, %v1482
    %v1995 = vpack.c.b16 %v1491, %v1483
    %v1996 = vpack.c.b16 %v1492, %v1484
    %v1997 = vpack.c.b16 %v1493, %v1485
    %v1998 = vpack.c.b16 %v1494, %v1486
    %v1999 = vpack.c.b16 %v1495, %v1487
    %v2000 = vpack.c.b16 %v1496, %v1488
    %v2001 = vpack.c.b16 %v1497, %v1489
    %v2002 = vpack.c.b16 %v1506, %v1498
    %v2003 = vpack.c.b16 %v1507, %v1499
    %v2004 = vpack.c.b16 %v1508, %v1500
    %v2005 = vpack.c.b16 %v1509, %v1501
    %v2006 = vpack.c.b16 %v1510, %v1502
    %v2007 = vpack.c.b16 %v1511, %v1503
    %v2008 = vpack.c.b16 %v1512, %v1504
    %v2009 = vpack.c.b16 %v1513, %v1505
    %v2010 = vpack.c.b16 %v1522, %v1514
    %v2011 = vpack.c.b16 %v1523, %v1515
    %v2012 = vpack.c.b16 %v1524, %v1516
    %v2013 = vpack.c.b16 %v1525, %v1517
    %v2014 = vpack.c.b16 %v1526, %v1518
    %v2015 = vpack.c.b16 %v1527, %v1519
    %v2016 = vpack.c.b16 %v1528, %v1520
    %v2017 = vpack.c.b16 %v1529, %v1521
    %v2018 = vpack.c.b16 %v1538, %v1530
    %v2019 = vpack.c.b16 %v1539, %v1531
    %v2020 = vpack.c.b16 %v1540, %v1532
    %v2021 = vpack.c.b16 %v1541, %v1533
    %v2022 = vpack.c.b16 %v1542, %v1534
    %v2023 = vpack.c.b16 %v1543, %v1535
    %v2024 = vpack.c.b16 %v1544, %v1536
    %v2025 = vpack.c.b16 %v1545, %v1537
    %v2026 = vpack.c.b16 %v1554, %v1546
    %v2027 = vpack.c.b16 %v1555, %v1547
    %v2028 = vpack.c.b16 %v1556, %v1548
    %v2029 = vpack.c.b16 %v1557, %v1549
    %v2030 = vpack.c.b16 %v1558, %v1550
    %v2031 = vpack.c.b16 %v1559, %v1551
    %v2032 = vpack.c.b16 %v1560, %v1552
    %v2033 = vpack.c.b16 %v1561, %v1553
    %v2034 = vpack.c.b16 %v1570, %v1562
    %v2035 = vpack.c.b16 %v1571, %v1563
    %v2036 = vpack.c.b16 %v1572, %v1564
    %v2037 = vpack.c.b16 %v1573, %v1565
    %v2038 = vpack.c.b16 %v1574, %v1566
    %v2039 = vpack.c.b16 %v1575, %v1567
    %v2040 = vpack.c.b16 %v1576, %v1568
    %v2041 = vpack.c.b16 %v1577, %v1569
    %v2042 = vpack.c.b16 %v1586, %v1578
    %v2043 = vpack.c.b16 %v1587, %v1579
    %v2044 = vpack.c.b16 %v1588, %v1580
    %v2045 = vpack.c.b16 %v1589, %v1581
    %v2046 = vpack.c.b16 %v1590, %v1582
    %v2047 = vpack.c.b16 %v1591, %v1583
    %v2048 = vpack.c.b16 %v1592, %v1584
    %v2049 = vpack.c.b16 %v1593, %v1585
    %v2050 = vpack.c.b16 %v1602, %v1594
    %v2051 = vpack.c.b16 %v1603, %v1595
    %v2052 = vpack.c.b16 %v1604, %v1596
    %v2053 = vpack.c.b16 %v1605, %v1597
    %v2054 = vpack.c.b16 %v1606, %v1598
    %v2055 = vpack.c.b16 %v1607, %v1599
    %v2056 = vpack.c.b16 %v1608, %v1600
    %v2057 = vpack.c.b16 %v1609, %v1601
    %v2058 = vpack.c.b16 %v1618, %v1610
    %v2059 = vpack.c.b16 %v1619, %v1611
    %v2060 = vpack.c.b16 %v1620, %v1612
    %v2061 = vpack.c.b16 %v1621, %v1613
    %v2062 = vpack.c.b16 %v1622, %v1614
    %v2063 = vpack.c.b16 %v1623, %v1615
    %v2064 = vpack.c.b16 %v1624, %v1616
    %v2065 = vpack.c.b16 %v1625, %v1617
    %v2066 = vpack.c.b16 %v1634, %v1626
    %v2067 = vpack.c.b16 %v1635, %v1627
    %v2068 = vpack.c.b16 %v1636, %v1628
    %v2069 = vpack.c.b16 %v1637, %v1629
    %v2070 = vpack.c.b16 %v1638, %v1630
    %v2071 = vpack.c.b16 %v1639, %v1631
    %v2072 = vpack.c.b16 %v1640, %v1632
    %v2073 = vpack.c.b16 %v1641, %v1633
    %v2074 = vpack.c.b16 %v1650, %v1642
    %v2075 = vpack.c.b16 %v1651, %v1643
    %v2076 = vpack.c.b16 %v1652, %v1644
    %v2077 = vpack.c.b16 %v1653, %v1645
    %v2078 = vpack.c.b16 %v1654, %v1646
    %v2079 = vpack.c.b16 %v1655, %v1647
    %v2080 = vpack.c.b16 %v1656, %v1648
    %v2081 = vpack.c.b16 %v1657, %v1649
    %v2082 = vpack.c.b16 %v1666, %v1658
    %v2083 = vpack.c.b16 %v1667, %v1659
    %v2084 = vpack.c.b16 %v1668, %v1660
    %v2085 = vpack.c.b16 %v1669, %v1661
    %v2086 = vpack.c.b16 %v1670, %v1662
    %v2087 = vpack.c.b16 %v1671, %v1663
    %v2088 = vpack.c.b16 %v1672, %v1664
    %v2089 = vpack.c.b16 %v1673, %v1665
    %v2090 = vpack.c.b16 %v1682, %v1674
    %v2091 = vpack.c.b16 %v1683, %v1675
    %v2092 = vpack.c.b16 %v1684, %v1676
    %v2093 = vpack.c.b16 %v1685, %v1677
    %v2094 = vpack.c.b16 %v1686, %v1678
    %v2095 = vpack.c.b16 %v1687, %v1679
    %v2096 = vpack.c.b16 %v1688, %v1680
    %v2097 = vpack.c.b16 %v1689, %v1681
    %v2098 = vpack.c.b16 %v1698, %v1690
    %v2099 = vpack.c.b16 %v1699, %v1691
    %v2100 = vpack.c.b16 %v1700, %v1692
    %v2101 = vpack.c.b16 %v1701, %v1693
    %v2102 = vpack.c.b16 %v1702, %v1694
    %v2103 = vpack.c.b16 %v1703, %v1695
    %v2104 = vpack.c.b16 %v1704, %v1696
    %v2105 = vpack.c.b16 %v1705, %v1697
    %v2106 = vpack.c.b16 %v1714, %v1706
    %v2107 = vpack.c.b16 %v1715, %v1707
    %v2108 = vpack.c.b16 %v1716, %v1708
    %v2109 = vpack.c.b16 %v1717, %v1709
    %v2110 = vpack.c.b16 %v1718, %v1710
    %v2111 = vpack.c.b16 %v1719, %v1711
    %v2112 = vpack.c.b16 %v1720, %v1712
    %v2113 = vpack.c.b16 %v1721, %v1713
    %vm2506 = vcmask 130048
    %v2508 = vsel %vm2506, %v135, 0
    %2510 = vmatpush.bf16.msra.mxu0 %v1778
    %2511 = vmatpush.bf16.msra.mxu0 %v1770
    %2512 = vmatpush.bf16.msra.mxu0 %v1762
    %2513 = vmatpush.bf16.msra.mxu0 %v1754
    %2514 = vmatpush.bf16.msra.mxu0 %v1746
    %2515 = vmatpush.bf16.msra.mxu0 %v1738
    %2516 = vmatpush.bf16.msra.mxu0 %v1730
    %2517 = vmatpush.bf16.msra.mxu0 %v1722
    %2518 = vmatmul.bf16.gmra.mxu0 %v129
    %v2519 = vpop.f32.mrf.mxu0
    %v2520 = vadd.f32 %v530, %v2519
    %v2521 = vpop.f32.mrf.mxu0
    %v2522 = vadd.f32 %v530, %v2521
    %2523 = vdwg.mxu0
    %2524 = vmatpush.bf16.msra.mxu0 %v1842
    %2525 = vmatpush.bf16.msra.mxu0 %v1834
    %2526 = vmatpush.bf16.msra.mxu0 %v1826
    %2527 = vmatpush.bf16.msra.mxu0 %v1818
    %2528 = vmatpush.bf16.msra.mxu0 %v1810
    %2529 = vmatpush.bf16.msra.mxu0 %v1802
    %2530 = vmatpush.bf16.msra.mxu0 %v1794
    %2531 = vmatpush.bf16.msra.mxu0 %v1786
    %2532 = vmatmul.bf16.gmra.mxu0 %v130
    %v2533 = vpop.f32.mrf.mxu0
    %v2534 = vadd.f32 %v2520, %v2533
    %v2535 = vpop.f32.mrf.mxu0
    %v2536 = vadd.f32 %v2522, %v2535
    %2537 = vdwg.mxu0
    %2538 = vmatpush.bf16.msra.mxu0 %v1906
    %2539 = vmatpush.bf16.msra.mxu0 %v1898
    %2540 = vmatpush.bf16.msra.mxu0 %v1890
    %2541 = vmatpush.bf16.msra.mxu0 %v1882
    %2542 = vmatpush.bf16.msra.mxu0 %v1874
    %2543 = vmatpush.bf16.msra.mxu0 %v1866
    %2544 = vmatpush.bf16.msra.mxu0 %v1858
    %2545 = vmatpush.bf16.msra.mxu0 %v1850
    %2546 = vmatmul.bf16.gmra.mxu0 %v131
    %v2547 = vpop.f32.mrf.mxu0
    %v2548 = vadd.f32 %v2534, %v2547
    %v2549 = vpop.f32.mrf.mxu0
    %v2550 = vadd.f32 %v2536, %v2549
    %2551 = vdwg.mxu0
    %2552 = vmatpush.bf16.msra.mxu0 %v1970
    %2553 = vmatpush.bf16.msra.mxu0 %v1962
    %2554 = vmatpush.bf16.msra.mxu0 %v1954
    %2555 = vmatpush.bf16.msra.mxu0 %v1946
    %2556 = vmatpush.bf16.msra.mxu0 %v1938
    %2557 = vmatpush.bf16.msra.mxu0 %v1930
    %2558 = vmatpush.bf16.msra.mxu0 %v1922
    %2559 = vmatpush.bf16.msra.mxu0 %v1914
    %2560 = vmatmul.bf16.gmra.mxu0 %v132
    %v2561 = vpop.f32.mrf.mxu0
    %v2562 = vadd.f32 %v2548, %v2561
    %v2563 = vpop.f32.mrf.mxu0
    %v2564 = vadd.f32 %v2550, %v2563
    %2565 = vdwg.mxu0
    %2566 = vmatpush.bf16.msra.mxu0 %v2034
    %2567 = vmatpush.bf16.msra.mxu0 %v2026
    %2568 = vmatpush.bf16.msra.mxu0 %v2018
    %2569 = vmatpush.bf16.msra.mxu0 %v2010
    %2570 = vmatpush.bf16.msra.mxu0 %v2002
    %2571 = vmatpush.bf16.msra.mxu0 %v1994
    %2572 = vmatpush.bf16.msra.mxu0 %v1986
    %2573 = vmatpush.bf16.msra.mxu0 %v1978
    %2574 = vmatmul.bf16.gmra.mxu0 %v133
    %v2575 = vpop.f32.mrf.mxu0
    %v2576 = vadd.f32 %v2562, %v2575
    %v2577 = vpop.f32.mrf.mxu0
    %v2578 = vadd.f32 %v2564, %v2577
    %2579 = vdwg.mxu0
    %2580 = vmatpush.bf16.msra.mxu0 %v2098
    %2581 = vmatpush.bf16.msra.mxu0 %v2090
    %2582 = vmatpush.bf16.msra.mxu0 %v2082
    %2583 = vmatpush.bf16.msra.mxu0 %v2074
    %2584 = vmatpush.bf16.msra.mxu0 %v2066
    %2585 = vmatpush.bf16.msra.mxu0 %v2058
    %2586 = vmatpush.bf16.msra.mxu0 %v2050
    %2587 = vmatpush.bf16.msra.mxu0 %v2042
    %2588 = vmatmul.bf16.gmra.mxu0 %v134
    %v2589 = vpop.f32.mrf.mxu0
    %v2590 = vadd.f32 %v2576, %v2589
    %v2591 = vpop.f32.mrf.mxu0
    %v2592 = vadd.f32 %v2578, %v2591
    %2593 = vdwg.mxu0
    %2594 = vmatpush.bf16.msra.mxu0 0
    %2595 = vmatpush.bf16.msra.mxu0 0
    %2596 = vmatpush.bf16.msra.mxu0 0
    %2597 = vmatpush.bf16.msra.mxu0 0
    %2598 = vmatpush.bf16.msra.mxu0 0
    %2599 = vmatpush.bf16.msra.mxu0 0
    %2600 = vmatpush.bf16.msra.mxu0 0
    %2601 = vmatpush.bf16.msra.mxu0 %v2106
    %2602 = vmatmul.bf16.gmra.mxu0 %v2508
    %v2603 = vpop.f32.mrf.mxu0
    %v2604 = vadd.f32 %v2590, %v2603
    %v2605 = vpop.f32.mrf.mxu0
    %v2606 = vadd.f32 %v2592, %v2605
    %2607 = vdwg.mxu0
    %2608 = vmatpush.bf16.msra.mxu0 %v1779
    %2609 = vmatpush.bf16.msra.mxu0 %v1771
    %2610 = vmatpush.bf16.msra.mxu0 %v1763
    %2611 = vmatpush.bf16.msra.mxu0 %v1755
    %2612 = vmatpush.bf16.msra.mxu0 %v1747
    %2613 = vmatpush.bf16.msra.mxu0 %v1739
    %2614 = vmatpush.bf16.msra.mxu0 %v1731
    %2615 = vmatpush.bf16.msra.mxu0 %v1723
    %2616 = vmatmul.bf16.gmra.mxu0 %v129
    %v2617 = vpop.f32.mrf.mxu0
    %v2618 = vadd.f32 %v531, %v2617
    %v2619 = vpop.f32.mrf.mxu0
    %v2620 = vadd.f32 %v531, %v2619
    %2621 = vdwg.mxu0
    %2622 = vmatpush.bf16.msra.mxu0 %v1843
    %2623 = vmatpush.bf16.msra.mxu0 %v1835
    %2624 = vmatpush.bf16.msra.mxu0 %v1827
    %2625 = vmatpush.bf16.msra.mxu0 %v1819
    %2626 = vmatpush.bf16.msra.mxu0 %v1811
    %2627 = vmatpush.bf16.msra.mxu0 %v1803
    %2628 = vmatpush.bf16.msra.mxu0 %v1795
    %2629 = vmatpush.bf16.msra.mxu0 %v1787
    %2630 = vmatmul.bf16.gmra.mxu0 %v130
    %v2631 = vpop.f32.mrf.mxu0
    %v2632 = vadd.f32 %v2618, %v2631
    %v2633 = vpop.f32.mrf.mxu0
    %v2634 = vadd.f32 %v2620, %v2633
    %2635 = vdwg.mxu0
    %2636 = vmatpush.bf16.msra.mxu0 %v1907
    %2637 = vmatpush.bf16.msra.mxu0 %v1899
    %2638 = vmatpush.bf16.msra.mxu0 %v1891
    %2639 = vmatpush.bf16.msra.mxu0 %v1883
    %2640 = vmatpush.bf16.msra.mxu0 %v1875
    %2641 = vmatpush.bf16.msra.mxu0 %v1867
    %2642 = vmatpush.bf16.msra.mxu0 %v1859
    %2643 = vmatpush.bf16.msra.mxu0 %v1851
    %2644 = vmatmul.bf16.gmra.mxu0 %v131
    %v2645 = vpop.f32.mrf.mxu0
    %v2646 = vadd.f32 %v2632, %v2645
    %v2647 = vpop.f32.mrf.mxu0
    %v2648 = vadd.f32 %v2634, %v2647
    %2649 = vdwg.mxu0
    %2650 = vmatpush.bf16.msra.mxu0 %v1971
    %2651 = vmatpush.bf16.msra.mxu0 %v1963
    %2652 = vmatpush.bf16.msra.mxu0 %v1955
    %2653 = vmatpush.bf16.msra.mxu0 %v1947
    %2654 = vmatpush.bf16.msra.mxu0 %v1939
    %2655 = vmatpush.bf16.msra.mxu0 %v1931
    %2656 = vmatpush.bf16.msra.mxu0 %v1923
    %2657 = vmatpush.bf16.msra.mxu0 %v1915
    %2658 = vmatmul.bf16.gmra.mxu0 %v132
    %v2659 = vpop.f32.mrf.mxu0
    %v2660 = vadd.f32 %v2646, %v2659
    %v2661 = vpop.f32.mrf.mxu0
    %v2662 = vadd.f32 %v2648, %v2661
    %2663 = vdwg.mxu0
    %2664 = vmatpush.bf16.msra.mxu0 %v2035
    %2665 = vmatpush.bf16.msra.mxu0 %v2027
    %2666 = vmatpush.bf16.msra.mxu0 %v2019
    %2667 = vmatpush.bf16.msra.mxu0 %v2011
    %2668 = vmatpush.bf16.msra.mxu0 %v2003
    %2669 = vmatpush.bf16.msra.mxu0 %v1995
    %2670 = vmatpush.bf16.msra.mxu0 %v1987
    %2671 = vmatpush.bf16.msra.mxu0 %v1979
    %2672 = vmatmul.bf16.gmra.mxu0 %v133
    %v2673 = vpop.f32.mrf.mxu0
    %v2674 = vadd.f32 %v2660, %v2673
    %v2675 = vpop.f32.mrf.mxu0
    %v2676 = vadd.f32 %v2662, %v2675
    %2677 = vdwg.mxu0
    %2678 = vmatpush.bf16.msra.mxu0 %v2099
    %2679 = vmatpush.bf16.msra.mxu0 %v2091
    %2680 = vmatpush.bf16.msra.mxu0 %v2083
    %2681 = vmatpush.bf16.msra.mxu0 %v2075
    %2682 = vmatpush.bf16.msra.mxu0 %v2067
    %2683 = vmatpush.bf16.msra.mxu0 %v2059
    %2684 = vmatpush.bf16.msra.mxu0 %v2051
    %2685 = vmatpush.bf16.msra.mxu0 %v2043
    %2686 = vmatmul.bf16.gmra.mxu0 %v134
    %v2687 = vpop.f32.mrf.mxu0
    %v2688 = vadd.f32 %v2674, %v2687
    %v2689 = vpop.f32.mrf.mxu0
    %v2690 = vadd.f32 %v2676, %v2689
    %2691 = vdwg.mxu0
    %2692 = vmatpush.bf16.msra.mxu0 0
    %2693 = vmatpush.bf16.msra.mxu0 0
    %2694 = vmatpush.bf16.msra.mxu0 0
    %2695 = vmatpush.bf16.msra.mxu0 0
    %2696 = vmatpush.bf16.msra.mxu0 0
    %2697 = vmatpush.bf16.msra.mxu0 0
    %2698 = vmatpush.bf16.msra.mxu0 0
    %2699 = vmatpush.bf16.msra.mxu0 %v2107
    %2700 = vmatmul.bf16.gmra.mxu0 %v2508
    %v2701 = vpop.f32.mrf.mxu0
    %v2702 = vadd.f32 %v2688, %v2701
    %v2703 = vpop.f32.mrf.mxu0
    %v2704 = vadd.f32 %v2690, %v2703
    %2705 = vdwg.mxu0
    %2706 = vmatpush.bf16.msra.mxu0 %v1780
    %2707 = vmatpush.bf16.msra.mxu0 %v1772
    %2708 = vmatpush.bf16.msra.mxu0 %v1764
    %2709 = vmatpush.bf16.msra.mxu0 %v1756
    %2710 = vmatpush.bf16.msra.mxu0 %v1748
    %2711 = vmatpush.bf16.msra.mxu0 %v1740
    %2712 = vmatpush.bf16.msra.mxu0 %v1732
    %2713 = vmatpush.bf16.msra.mxu0 %v1724
    %2714 = vmatmul.bf16.gmra.mxu0 %v129
    %v2715 = vpop.f32.mrf.mxu0
    %v2716 = vadd.f32 %v532, %v2715
    %v2717 = vpop.f32.mrf.mxu0
    %v2718 = vadd.f32 %v532, %v2717
    %2719 = vdwg.mxu0
    %2720 = vmatpush.bf16.msra.mxu0 %v1844
    %2721 = vmatpush.bf16.msra.mxu0 %v1836
    %2722 = vmatpush.bf16.msra.mxu0 %v1828
    %2723 = vmatpush.bf16.msra.mxu0 %v1820
    %2724 = vmatpush.bf16.msra.mxu0 %v1812
    %2725 = vmatpush.bf16.msra.mxu0 %v1804
    %2726 = vmatpush.bf16.msra.mxu0 %v1796
    %2727 = vmatpush.bf16.msra.mxu0 %v1788
    %2728 = vmatmul.bf16.gmra.mxu0 %v130
    %v2729 = vpop.f32.mrf.mxu0
    %v2730 = vadd.f32 %v2716, %v2729
    %v2731 = vpop.f32.mrf.mxu0
    %v2732 = vadd.f32 %v2718, %v2731
    %2733 = vdwg.mxu0
    %2734 = vmatpush.bf16.msra.mxu0 %v1908
    %2735 = vmatpush.bf16.msra.mxu0 %v1900
    %2736 = vmatpush.bf16.msra.mxu0 %v1892
    %2737 = vmatpush.bf16.msra.mxu0 %v1884
    %2738 = vmatpush.bf16.msra.mxu0 %v1876
    %2739 = vmatpush.bf16.msra.mxu0 %v1868
    %2740 = vmatpush.bf16.msra.mxu0 %v1860
    %2741 = vmatpush.bf16.msra.mxu0 %v1852
    %2742 = vmatmul.bf16.gmra.mxu0 %v131
    %v2743 = vpop.f32.mrf.mxu0
    %v2744 = vadd.f32 %v2730, %v2743
    %v2745 = vpop.f32.mrf.mxu0
    %v2746 = vadd.f32 %v2732, %v2745
    %2747 = vdwg.mxu0
    %2748 = vmatpush.bf16.msra.mxu0 %v1972
    %2749 = vmatpush.bf16.msra.mxu0 %v1964
    %2750 = vmatpush.bf16.msra.mxu0 %v1956
    %2751 = vmatpush.bf16.msra.mxu0 %v1948
    %2752 = vmatpush.bf16.msra.mxu0 %v1940
    %2753 = vmatpush.bf16.msra.mxu0 %v1932
    %2754 = vmatpush.bf16.msra.mxu0 %v1924
    %2755 = vmatpush.bf16.msra.mxu0 %v1916
    %2756 = vmatmul.bf16.gmra.mxu0 %v132
    %v2757 = vpop.f32.mrf.mxu0
    %v2758 = vadd.f32 %v2744, %v2757
    %v2759 = vpop.f32.mrf.mxu0
    %v2760 = vadd.f32 %v2746, %v2759
    %2761 = vdwg.mxu0
    %2762 = vmatpush.bf16.msra.mxu0 %v2036
    %2763 = vmatpush.bf16.msra.mxu0 %v2028
    %2764 = vmatpush.bf16.msra.mxu0 %v2020
    %2765 = vmatpush.bf16.msra.mxu0 %v2012
    %2766 = vmatpush.bf16.msra.mxu0 %v2004
    %2767 = vmatpush.bf16.msra.mxu0 %v1996
    %2768 = vmatpush.bf16.msra.mxu0 %v1988
    %2769 = vmatpush.bf16.msra.mxu0 %v1980
    %2770 = vmatmul.bf16.gmra.mxu0 %v133
    %v2771 = vpop.f32.mrf.mxu0
    %v2772 = vadd.f32 %v2758, %v2771
    %v2773 = vpop.f32.mrf.mxu0
    %v2774 = vadd.f32 %v2760, %v2773
    %2775 = vdwg.mxu0
    %2776 = vmatpush.bf16.msra.mxu0 %v2100
    %2777 = vmatpush.bf16.msra.mxu0 %v2092
    %2778 = vmatpush.bf16.msra.mxu0 %v2084
    %2779 = vmatpush.bf16.msra.mxu0 %v2076
    %2780 = vmatpush.bf16.msra.mxu0 %v2068
    %2781 = vmatpush.bf16.msra.mxu0 %v2060
    %2782 = vmatpush.bf16.msra.mxu0 %v2052
    %2783 = vmatpush.bf16.msra.mxu0 %v2044
    %2784 = vmatmul.bf16.gmra.mxu0 %v134
    %v2785 = vpop.f32.mrf.mxu0
    %v2786 = vadd.f32 %v2772, %v2785
    %v2787 = vpop.f32.mrf.mxu0
    %v2788 = vadd.f32 %v2774, %v2787
    %2789 = vdwg.mxu0
    %2790 = vmatpush.bf16.msra.mxu0 0
    %2791 = vmatpush.bf16.msra.mxu0 0
    %2792 = vmatpush.bf16.msra.mxu0 0
    %2793 = vmatpush.bf16.msra.mxu0 0
    %2794 = vmatpush.bf16.msra.mxu0 0
    %2795 = vmatpush.bf16.msra.mxu0 0
    %2796 = vmatpush.bf16.msra.mxu0 0
    %2797 = vmatpush.bf16.msra.mxu0 %v2108
    %2798 = vmatmul.bf16.gmra.mxu0 %v2508
    %v2799 = vpop.f32.mrf.mxu0
    %v2800 = vadd.f32 %v2786, %v2799
    %v2801 = vpop.f32.mrf.mxu0
    %v2802 = vadd.f32 %v2788, %v2801
    %2803 = vdwg.mxu0
    %2804 = vmatpush.bf16.msra.mxu0 %v1781
    %2805 = vmatpush.bf16.msra.mxu0 %v1773
    %2806 = vmatpush.bf16.msra.mxu0 %v1765
    %2807 = vmatpush.bf16.msra.mxu0 %v1757
    %2808 = vmatpush.bf16.msra.mxu0 %v1749
    %2809 = vmatpush.bf16.msra.mxu0 %v1741
    %2810 = vmatpush.bf16.msra.mxu0 %v1733
    %2811 = vmatpush.bf16.msra.mxu0 %v1725
    %2812 = vmatmul.bf16.gmra.mxu0 %v129
    %v2813 = vpop.f32.mrf.mxu0
    %v2814 = vadd.f32 %v533, %v2813
    %v2815 = vpop.f32.mrf.mxu0
    %v2816 = vadd.f32 %v533, %v2815
    %2817 = vdwg.mxu0
    %2818 = vmatpush.bf16.msra.mxu0 %v1845
    %2819 = vmatpush.bf16.msra.mxu0 %v1837
    %2820 = vmatpush.bf16.msra.mxu0 %v1829
    %2821 = vmatpush.bf16.msra.mxu0 %v1821
    %2822 = vmatpush.bf16.msra.mxu0 %v1813
    %2823 = vmatpush.bf16.msra.mxu0 %v1805
    %2824 = vmatpush.bf16.msra.mxu0 %v1797
    %2825 = vmatpush.bf16.msra.mxu0 %v1789
    %2826 = vmatmul.bf16.gmra.mxu0 %v130
    %v2827 = vpop.f32.mrf.mxu0
    %v2828 = vadd.f32 %v2814, %v2827
    %v2829 = vpop.f32.mrf.mxu0
    %v2830 = vadd.f32 %v2816, %v2829
    %2831 = vdwg.mxu0
    %2832 = vmatpush.bf16.msra.mxu0 %v1909
    %2833 = vmatpush.bf16.msra.mxu0 %v1901
    %2834 = vmatpush.bf16.msra.mxu0 %v1893
    %2835 = vmatpush.bf16.msra.mxu0 %v1885
    %2836 = vmatpush.bf16.msra.mxu0 %v1877
    %2837 = vmatpush.bf16.msra.mxu0 %v1869
    %2838 = vmatpush.bf16.msra.mxu0 %v1861
    %2839 = vmatpush.bf16.msra.mxu0 %v1853
    %2840 = vmatmul.bf16.gmra.mxu0 %v131
    %v2841 = vpop.f32.mrf.mxu0
    %v2842 = vadd.f32 %v2828, %v2841
    %v2843 = vpop.f32.mrf.mxu0
    %v2844 = vadd.f32 %v2830, %v2843
    %2845 = vdwg.mxu0
    %2846 = vmatpush.bf16.msra.mxu0 %v1973
    %2847 = vmatpush.bf16.msra.mxu0 %v1965
    %2848 = vmatpush.bf16.msra.mxu0 %v1957
    %2849 = vmatpush.bf16.msra.mxu0 %v1949
    %2850 = vmatpush.bf16.msra.mxu0 %v1941
    %2851 = vmatpush.bf16.msra.mxu0 %v1933
    %2852 = vmatpush.bf16.msra.mxu0 %v1925
    %2853 = vmatpush.bf16.msra.mxu0 %v1917
    %2854 = vmatmul.bf16.gmra.mxu0 %v132
    %v2855 = vpop.f32.mrf.mxu0
    %v2856 = vadd.f32 %v2842, %v2855
    %v2857 = vpop.f32.mrf.mxu0
    %v2858 = vadd.f32 %v2844, %v2857
    %2859 = vdwg.mxu0
    %2860 = vmatpush.bf16.msra.mxu0 %v2037
    %2861 = vmatpush.bf16.msra.mxu0 %v2029
    %2862 = vmatpush.bf16.msra.mxu0 %v2021
    %2863 = vmatpush.bf16.msra.mxu0 %v2013
    %2864 = vmatpush.bf16.msra.mxu0 %v2005
    %2865 = vmatpush.bf16.msra.mxu0 %v1997
    %2866 = vmatpush.bf16.msra.mxu0 %v1989
    %2867 = vmatpush.bf16.msra.mxu0 %v1981
    %2868 = vmatmul.bf16.gmra.mxu0 %v133
    %v2869 = vpop.f32.mrf.mxu0
    %v2870 = vadd.f32 %v2856, %v2869
    %v2871 = vpop.f32.mrf.mxu0
    %v2872 = vadd.f32 %v2858, %v2871
    %2873 = vdwg.mxu0
    %2874 = vmatpush.bf16.msra.mxu0 %v2101
    %2875 = vmatpush.bf16.msra.mxu0 %v2093
    %2876 = vmatpush.bf16.msra.mxu0 %v2085
    %2877 = vmatpush.bf16.msra.mxu0 %v2077
    %2878 = vmatpush.bf16.msra.mxu0 %v2069
    %2879 = vmatpush.bf16.msra.mxu0 %v2061
    %2880 = vmatpush.bf16.msra.mxu0 %v2053
    %2881 = vmatpush.bf16.msra.mxu0 %v2045
    %2882 = vmatmul.bf16.gmra.mxu0 %v134
    %v2883 = vpop.f32.mrf.mxu0
    %v2884 = vadd.f32 %v2870, %v2883
    %v2885 = vpop.f32.mrf.mxu0
    %v2886 = vadd.f32 %v2872, %v2885
    %2887 = vdwg.mxu0
    %2888 = vmatpush.bf16.msra.mxu0 0
    %2889 = vmatpush.bf16.msra.mxu0 0
    %2890 = vmatpush.bf16.msra.mxu0 0
    %2891 = vmatpush.bf16.msra.mxu0 0
    %2892 = vmatpush.bf16.msra.mxu0 0
    %2893 = vmatpush.bf16.msra.mxu0 0
    %2894 = vmatpush.bf16.msra.mxu0 0
    %2895 = vmatpush.bf16.msra.mxu0 %v2109
    %2896 = vmatmul.bf16.gmra.mxu0 %v2508
    %v2897 = vpop.f32.mrf.mxu0
    %v2898 = vadd.f32 %v2884, %v2897
    %v2899 = vpop.f32.mrf.mxu0
    %v2900 = vadd.f32 %v2886, %v2899
    %2901 = vdwg.mxu0
    %2902 = vmatpush.bf16.msra.mxu0 %v1782
    %2903 = vmatpush.bf16.msra.mxu0 %v1774
    %2904 = vmatpush.bf16.msra.mxu0 %v1766
    %2905 = vmatpush.bf16.msra.mxu0 %v1758
    %2906 = vmatpush.bf16.msra.mxu0 %v1750
    %2907 = vmatpush.bf16.msra.mxu0 %v1742
    %2908 = vmatpush.bf16.msra.mxu0 %v1734
    %2909 = vmatpush.bf16.msra.mxu0 %v1726
    %2910 = vmatmul.bf16.gmra.mxu0 %v129
    %v2911 = vpop.f32.mrf.mxu0
    %v2912 = vadd.f32 %v534, %v2911
    %v2913 = vpop.f32.mrf.mxu0
    %v2914 = vadd.f32 %v534, %v2913
    %2915 = vdwg.mxu0
    %2916 = vmatpush.bf16.msra.mxu0 %v1846
    %2917 = vmatpush.bf16.msra.mxu0 %v1838
    %2918 = vmatpush.bf16.msra.mxu0 %v1830
    %2919 = vmatpush.bf16.msra.mxu0 %v1822
    %2920 = vmatpush.bf16.msra.mxu0 %v1814
    %2921 = vmatpush.bf16.msra.mxu0 %v1806
    %2922 = vmatpush.bf16.msra.mxu0 %v1798
    %2923 = vmatpush.bf16.msra.mxu0 %v1790
    %2924 = vmatmul.bf16.gmra.mxu0 %v130
    %v2925 = vpop.f32.mrf.mxu0
    %v2926 = vadd.f32 %v2912, %v2925
    %v2927 = vpop.f32.mrf.mxu0
    %v2928 = vadd.f32 %v2914, %v2927
    %2929 = vdwg.mxu0
    %2930 = vmatpush.bf16.msra.mxu0 %v1910
    %2931 = vmatpush.bf16.msra.mxu0 %v1902
    %2932 = vmatpush.bf16.msra.mxu0 %v1894
    %2933 = vmatpush.bf16.msra.mxu0 %v1886
    %2934 = vmatpush.bf16.msra.mxu0 %v1878
    %2935 = vmatpush.bf16.msra.mxu0 %v1870
    %2936 = vmatpush.bf16.msra.mxu0 %v1862
    %2937 = vmatpush.bf16.msra.mxu0 %v1854
    %2938 = vmatmul.bf16.gmra.mxu0 %v131
    %v2939 = vpop.f32.mrf.mxu0
    %v2940 = vadd.f32 %v2926, %v2939
    %v2941 = vpop.f32.mrf.mxu0
    %v2942 = vadd.f32 %v2928, %v2941
    %2943 = vdwg.mxu0
    %2944 = vmatpush.bf16.msra.mxu0 %v1974
    %2945 = vmatpush.bf16.msra.mxu0 %v1966
    %2946 = vmatpush.bf16.msra.mxu0 %v1958
    %2947 = vmatpush.bf16.msra.mxu0 %v1950
    %2948 = vmatpush.bf16.msra.mxu0 %v1942
    %2949 = vmatpush.bf16.msra.mxu0 %v1934
    %2950 = vmatpush.bf16.msra.mxu0 %v1926
    %2951 = vmatpush.bf16.msra.mxu0 %v1918
    %2952 = vmatmul.bf16.gmra.mxu0 %v132
    %v2953 = vpop.f32.mrf.mxu0
    %v2954 = vadd.f32 %v2940, %v2953
    %v2955 = vpop.f32.mrf.mxu0
    %v2956 = vadd.f32 %v2942, %v2955
    %2957 = vdwg.mxu0
    %2958 = vmatpush.bf16.msra.mxu0 %v2038
    %2959 = vmatpush.bf16.msra.mxu0 %v2030
    %2960 = vmatpush.bf16.msra.mxu0 %v2022
    %2961 = vmatpush.bf16.msra.mxu0 %v2014
    %2962 = vmatpush.bf16.msra.mxu0 %v2006
    %2963 = vmatpush.bf16.msra.mxu0 %v1998
    %2964 = vmatpush.bf16.msra.mxu0 %v1990
    %2965 = vmatpush.bf16.msra.mxu0 %v1982
    %2966 = vmatmul.bf16.gmra.mxu0 %v133
    %v2967 = vpop.f32.mrf.mxu0
    %v2968 = vadd.f32 %v2954, %v2967
    %v2969 = vpop.f32.mrf.mxu0
    %v2970 = vadd.f32 %v2956, %v2969
    %2971 = vdwg.mxu0
    %2972 = vmatpush.bf16.msra.mxu0 %v2102
    %2973 = vmatpush.bf16.msra.mxu0 %v2094
    %2974 = vmatpush.bf16.msra.mxu0 %v2086
    %2975 = vmatpush.bf16.msra.mxu0 %v2078
    %2976 = vmatpush.bf16.msra.mxu0 %v2070
    %2977 = vmatpush.bf16.msra.mxu0 %v2062
    %2978 = vmatpush.bf16.msra.mxu0 %v2054
    %2979 = vmatpush.bf16.msra.mxu0 %v2046
    %2980 = vmatmul.bf16.gmra.mxu0 %v134
    %v2981 = vpop.f32.mrf.mxu0
    %v2982 = vadd.f32 %v2968, %v2981
    %v2983 = vpop.f32.mrf.mxu0
    %v2984 = vadd.f32 %v2970, %v2983
    %2985 = vdwg.mxu0
    %2986 = vmatpush.bf16.msra.mxu0 0
    %2987 = vmatpush.bf16.msra.mxu0 0
    %2988 = vmatpush.bf16.msra.mxu0 0
    %2989 = vmatpush.bf16.msra.mxu0 0
    %2990 = vmatpush.bf16.msra.mxu0 0
    %2991 = vmatpush.bf16.msra.mxu0 0
    %2992 = vmatpush.bf16.msra.mxu0 0
    %2993 = vmatpush.bf16.msra.mxu0 %v2110
    %2994 = vmatmul.bf16.gmra.mxu0 %v2508
    %v2995 = vpop.f32.mrf.mxu0
    %v2996 = vadd.f32 %v2982, %v2995
    %v2997 = vpop.f32.mrf.mxu0
    %v2998 = vadd.f32 %v2984, %v2997
    %2999 = vdwg.mxu0
    %3000 = vmatpush.bf16.msra.mxu0 %v1783
    %3001 = vmatpush.bf16.msra.mxu0 %v1775
    %3002 = vmatpush.bf16.msra.mxu0 %v1767
    %3003 = vmatpush.bf16.msra.mxu0 %v1759
    %3004 = vmatpush.bf16.msra.mxu0 %v1751
    %3005 = vmatpush.bf16.msra.mxu0 %v1743
    %3006 = vmatpush.bf16.msra.mxu0 %v1735
    %3007 = vmatpush.bf16.msra.mxu0 %v1727
    %3008 = vmatmul.bf16.gmra.mxu0 %v129
    %v3009 = vpop.f32.mrf.mxu0
    %v3010 = vadd.f32 %v535, %v3009
    %v3011 = vpop.f32.mrf.mxu0
    %v3012 = vadd.f32 %v535, %v3011
    %3013 = vdwg.mxu0
    %3014 = vmatpush.bf16.msra.mxu0 %v1847
    %3015 = vmatpush.bf16.msra.mxu0 %v1839
    %3016 = vmatpush.bf16.msra.mxu0 %v1831
    %3017 = vmatpush.bf16.msra.mxu0 %v1823
    %3018 = vmatpush.bf16.msra.mxu0 %v1815
    %3019 = vmatpush.bf16.msra.mxu0 %v1807
    %3020 = vmatpush.bf16.msra.mxu0 %v1799
    %3021 = vmatpush.bf16.msra.mxu0 %v1791
    %3022 = vmatmul.bf16.gmra.mxu0 %v130
    %v3023 = vpop.f32.mrf.mxu0
    %v3024 = vadd.f32 %v3010, %v3023
    %v3025 = vpop.f32.mrf.mxu0
    %v3026 = vadd.f32 %v3012, %v3025
    %3027 = vdwg.mxu0
    %3028 = vmatpush.bf16.msra.mxu0 %v1911
    %3029 = vmatpush.bf16.msra.mxu0 %v1903
    %3030 = vmatpush.bf16.msra.mxu0 %v1895
    %3031 = vmatpush.bf16.msra.mxu0 %v1887
    %3032 = vmatpush.bf16.msra.mxu0 %v1879
    %3033 = vmatpush.bf16.msra.mxu0 %v1871
    %3034 = vmatpush.bf16.msra.mxu0 %v1863
    %3035 = vmatpush.bf16.msra.mxu0 %v1855
    %3036 = vmatmul.bf16.gmra.mxu0 %v131
    %v3037 = vpop.f32.mrf.mxu0
    %v3038 = vadd.f32 %v3024, %v3037
    %v3039 = vpop.f32.mrf.mxu0
    %v3040 = vadd.f32 %v3026, %v3039
    %3041 = vdwg.mxu0
    %3042 = vmatpush.bf16.msra.mxu0 %v1975
    %3043 = vmatpush.bf16.msra.mxu0 %v1967
    %3044 = vmatpush.bf16.msra.mxu0 %v1959
    %3045 = vmatpush.bf16.msra.mxu0 %v1951
    %3046 = vmatpush.bf16.msra.mxu0 %v1943
    %3047 = vmatpush.bf16.msra.mxu0 %v1935
    %3048 = vmatpush.bf16.msra.mxu0 %v1927
    %3049 = vmatpush.bf16.msra.mxu0 %v1919
    %3050 = vmatmul.bf16.gmra.mxu0 %v132
    %v3051 = vpop.f32.mrf.mxu0
    %v3052 = vadd.f32 %v3038, %v3051
    %v3053 = vpop.f32.mrf.mxu0
    %v3054 = vadd.f32 %v3040, %v3053
    %3055 = vdwg.mxu0
    %3056 = vmatpush.bf16.msra.mxu0 %v2039
    %3057 = vmatpush.bf16.msra.mxu0 %v2031
    %3058 = vmatpush.bf16.msra.mxu0 %v2023
    %3059 = vmatpush.bf16.msra.mxu0 %v2015
    %3060 = vmatpush.bf16.msra.mxu0 %v2007
    %3061 = vmatpush.bf16.msra.mxu0 %v1999
    %3062 = vmatpush.bf16.msra.mxu0 %v1991
    %3063 = vmatpush.bf16.msra.mxu0 %v1983
    %3064 = vmatmul.bf16.gmra.mxu0 %v133
    %v3065 = vpop.f32.mrf.mxu0
    %v3066 = vadd.f32 %v3052, %v3065
    %v3067 = vpop.f32.mrf.mxu0
    %v3068 = vadd.f32 %v3054, %v3067
    %3069 = vdwg.mxu0
    %3070 = vmatpush.bf16.msra.mxu0 %v2103
    %3071 = vmatpush.bf16.msra.mxu0 %v2095
    %3072 = vmatpush.bf16.msra.mxu0 %v2087
    %3073 = vmatpush.bf16.msra.mxu0 %v2079
    %3074 = vmatpush.bf16.msra.mxu0 %v2071
    %3075 = vmatpush.bf16.msra.mxu0 %v2063
    %3076 = vmatpush.bf16.msra.mxu0 %v2055
    %3077 = vmatpush.bf16.msra.mxu0 %v2047
    %3078 = vmatmul.bf16.gmra.mxu0 %v134
    %v3079 = vpop.f32.mrf.mxu0
    %v3080 = vadd.f32 %v3066, %v3079
    %v3081 = vpop.f32.mrf.mxu0
    %v3082 = vadd.f32 %v3068, %v3081
    %3083 = vdwg.mxu0
    %3084 = vmatpush.bf16.msra.mxu0 0
    %3085 = vmatpush.bf16.msra.mxu0 0
    %3086 = vmatpush.bf16.msra.mxu0 0
    %3087 = vmatpush.bf16.msra.mxu0 0
    %3088 = vmatpush.bf16.msra.mxu0 0
    %3089 = vmatpush.bf16.msra.mxu0 0
    %3090 = vmatpush.bf16.msra.mxu0 0
    %3091 = vmatpush.bf16.msra.mxu0 %v2111
    %3092 = vmatmul.bf16.gmra.mxu0 %v2508
    %v3093 = vpop.f32.mrf.mxu0
    %v3094 = vadd.f32 %v3080, %v3093
    %v3095 = vpop.f32.mrf.mxu0
    %v3096 = vadd.f32 %v3082, %v3095
    %3097 = vdwg.mxu0
    %3098 = vmatpush.bf16.msra.mxu0 %v1784
    %3099 = vmatpush.bf16.msra.mxu0 %v1776
    %3100 = vmatpush.bf16.msra.mxu0 %v1768
    %3101 = vmatpush.bf16.msra.mxu0 %v1760
    %3102 = vmatpush.bf16.msra.mxu0 %v1752
    %3103 = vmatpush.bf16.msra.mxu0 %v1744
    %3104 = vmatpush.bf16.msra.mxu0 %v1736
    %3105 = vmatpush.bf16.msra.mxu0 %v1728
    %3106 = vmatmul.bf16.gmra.mxu0 %v129
    %v3107 = vpop.f32.mrf.mxu0
    %v3108 = vadd.f32 %v536, %v3107
    %v3109 = vpop.f32.mrf.mxu0
    %v3110 = vadd.f32 %v536, %v3109
    %3111 = vdwg.mxu0
    %3112 = vmatpush.bf16.msra.mxu0 %v1848
    %3113 = vmatpush.bf16.msra.mxu0 %v1840
    %3114 = vmatpush.bf16.msra.mxu0 %v1832
    %3115 = vmatpush.bf16.msra.mxu0 %v1824
    %3116 = vmatpush.bf16.msra.mxu0 %v1816
    %3117 = vmatpush.bf16.msra.mxu0 %v1808
    %3118 = vmatpush.bf16.msra.mxu0 %v1800
    %3119 = vmatpush.bf16.msra.mxu0 %v1792
    %3120 = vmatmul.bf16.gmra.mxu0 %v130
    %v3121 = vpop.f32.mrf.mxu0
    %v3122 = vadd.f32 %v3108, %v3121
    %v3123 = vpop.f32.mrf.mxu0
    %v3124 = vadd.f32 %v3110, %v3123
    %3125 = vdwg.mxu0
    %3126 = vmatpush.bf16.msra.mxu0 %v1912
    %3127 = vmatpush.bf16.msra.mxu0 %v1904
    %3128 = vmatpush.bf16.msra.mxu0 %v1896
    %3129 = vmatpush.bf16.msra.mxu0 %v1888
    %3130 = vmatpush.bf16.msra.mxu0 %v1880
    %3131 = vmatpush.bf16.msra.mxu0 %v1872
    %3132 = vmatpush.bf16.msra.mxu0 %v1864
    %3133 = vmatpush.bf16.msra.mxu0 %v1856
    %3134 = vmatmul.bf16.gmra.mxu0 %v131
    %v3135 = vpop.f32.mrf.mxu0
    %v3136 = vadd.f32 %v3122, %v3135
    %v3137 = vpop.f32.mrf.mxu0
    %v3138 = vadd.f32 %v3124, %v3137
    %3139 = vdwg.mxu0
    %3140 = vmatpush.bf16.msra.mxu0 %v1976
    %3141 = vmatpush.bf16.msra.mxu0 %v1968
    %3142 = vmatpush.bf16.msra.mxu0 %v1960
    %3143 = vmatpush.bf16.msra.mxu0 %v1952
    %3144 = vmatpush.bf16.msra.mxu0 %v1944
    %3145 = vmatpush.bf16.msra.mxu0 %v1936
    %3146 = vmatpush.bf16.msra.mxu0 %v1928
    %3147 = vmatpush.bf16.msra.mxu0 %v1920
    %3148 = vmatmul.bf16.gmra.mxu0 %v132
    %v3149 = vpop.f32.mrf.mxu0
    %v3150 = vadd.f32 %v3136, %v3149
    %v3151 = vpop.f32.mrf.mxu0
    %v3152 = vadd.f32 %v3138, %v3151
    %3153 = vdwg.mxu0
    %3154 = vmatpush.bf16.msra.mxu0 %v2040
    %3155 = vmatpush.bf16.msra.mxu0 %v2032
    %3156 = vmatpush.bf16.msra.mxu0 %v2024
    %3157 = vmatpush.bf16.msra.mxu0 %v2016
    %3158 = vmatpush.bf16.msra.mxu0 %v2008
    %3159 = vmatpush.bf16.msra.mxu0 %v2000
    %3160 = vmatpush.bf16.msra.mxu0 %v1992
    %3161 = vmatpush.bf16.msra.mxu0 %v1984
    %3162 = vmatmul.bf16.gmra.mxu0 %v133
    %v3163 = vpop.f32.mrf.mxu0
    %v3164 = vadd.f32 %v3150, %v3163
    %v3165 = vpop.f32.mrf.mxu0
    %v3166 = vadd.f32 %v3152, %v3165
    %3167 = vdwg.mxu0
    %3168 = vmatpush.bf16.msra.mxu0 %v2104
    %3169 = vmatpush.bf16.msra.mxu0 %v2096
    %3170 = vmatpush.bf16.msra.mxu0 %v2088
    %3171 = vmatpush.bf16.msra.mxu0 %v2080
    %3172 = vmatpush.bf16.msra.mxu0 %v2072
    %3173 = vmatpush.bf16.msra.mxu0 %v2064
    %3174 = vmatpush.bf16.msra.mxu0 %v2056
    %3175 = vmatpush.bf16.msra.mxu0 %v2048
    %3176 = vmatmul.bf16.gmra.mxu0 %v134
    %v3177 = vpop.f32.mrf.mxu0
    %v3178 = vadd.f32 %v3164, %v3177
    %v3179 = vpop.f32.mrf.mxu0
    %v3180 = vadd.f32 %v3166, %v3179
    %3181 = vdwg.mxu0
    %3182 = vmatpush.bf16.msra.mxu0 0
    %3183 = vmatpush.bf16.msra.mxu0 0
    %3184 = vmatpush.bf16.msra.mxu0 0
    %3185 = vmatpush.bf16.msra.mxu0 0
    %3186 = vmatpush.bf16.msra.mxu0 0
    %3187 = vmatpush.bf16.msra.mxu0 0
    %3188 = vmatpush.bf16.msra.mxu0 0
    %3189 = vmatpush.bf16.msra.mxu0 %v2112
    %3190 = vmatmul.bf16.gmra.mxu0 %v2508
    %v3191 = vpop.f32.mrf.mxu0
    %v3192 = vadd.f32 %v3178, %v3191
    %v3193 = vpop.f32.mrf.mxu0
    %v3194 = vadd.f32 %v3180, %v3193
    %3195 = vdwg.mxu0
    %3196 = vmatpush.bf16.msra.mxu0 %v1785
    %3197 = vmatpush.bf16.msra.mxu0 %v1777
    %3198 = vmatpush.bf16.msra.mxu0 %v1769
    %3199 = vmatpush.bf16.msra.mxu0 %v1761
    %3200 = vmatpush.bf16.msra.mxu0 %v1753
    %3201 = vmatpush.bf16.msra.mxu0 %v1745
    %3202 = vmatpush.bf16.msra.mxu0 %v1737
    %3203 = vmatpush.bf16.msra.mxu0 %v1729
    %3204 = vmatmul.bf16.gmra.mxu0 %v129
    %v3205 = vpop.f32.mrf.mxu0
    %v3206 = vadd.f32 %v537, %v3205
    %v3207 = vpop.f32.mrf.mxu0
    %v3208 = vadd.f32 %v537, %v3207
    %3209 = vdwg.mxu0
    %3210 = vmatpush.bf16.msra.mxu0 %v1849
    %3211 = vmatpush.bf16.msra.mxu0 %v1841
    %3212 = vmatpush.bf16.msra.mxu0 %v1833
    %3213 = vmatpush.bf16.msra.mxu0 %v1825
    %3214 = vmatpush.bf16.msra.mxu0 %v1817
    %3215 = vmatpush.bf16.msra.mxu0 %v1809
    %3216 = vmatpush.bf16.msra.mxu0 %v1801
    %3217 = vmatpush.bf16.msra.mxu0 %v1793
    %3218 = vmatmul.bf16.gmra.mxu0 %v130
    %v3219 = vpop.f32.mrf.mxu0
    %v3220 = vadd.f32 %v3206, %v3219
    %v3221 = vpop.f32.mrf.mxu0
    %v3222 = vadd.f32 %v3208, %v3221
    %3223 = vdwg.mxu0
    %3224 = vmatpush.bf16.msra.mxu0 %v1913
    %3225 = vmatpush.bf16.msra.mxu0 %v1905
    %3226 = vmatpush.bf16.msra.mxu0 %v1897
    %3227 = vmatpush.bf16.msra.mxu0 %v1889
    %3228 = vmatpush.bf16.msra.mxu0 %v1881
    %3229 = vmatpush.bf16.msra.mxu0 %v1873
    %3230 = vmatpush.bf16.msra.mxu0 %v1865
    %3231 = vmatpush.bf16.msra.mxu0 %v1857
    %3232 = vmatmul.bf16.gmra.mxu0 %v131
    %v3233 = vpop.f32.mrf.mxu0
    %v3234 = vadd.f32 %v3220, %v3233
    %v3235 = vpop.f32.mrf.mxu0
    %v3236 = vadd.f32 %v3222, %v3235
    %3237 = vdwg.mxu0
    %3238 = vmatpush.bf16.msra.mxu0 %v1977
    %3239 = vmatpush.bf16.msra.mxu0 %v1969
    %3240 = vmatpush.bf16.msra.mxu0 %v1961
    %3241 = vmatpush.bf16.msra.mxu0 %v1953
    %3242 = vmatpush.bf16.msra.mxu0 %v1945
    %3243 = vmatpush.bf16.msra.mxu0 %v1937
    %3244 = vmatpush.bf16.msra.mxu0 %v1929
    %3245 = vmatpush.bf16.msra.mxu0 %v1921
    %3246 = vmatmul.bf16.gmra.mxu0 %v132
    %v3247 = vpop.f32.mrf.mxu0
    %v3248 = vadd.f32 %v3234, %v3247
    %v3249 = vpop.f32.mrf.mxu0
    %v3250 = vadd.f32 %v3236, %v3249
    %3251 = vdwg.mxu0
    %3252 = vmatpush.bf16.msra.mxu0 %v2041
    %3253 = vmatpush.bf16.msra.mxu0 %v2033
    %3254 = vmatpush.bf16.msra.mxu0 %v2025
    %3255 = vmatpush.bf16.msra.mxu0 %v2017
    %3256 = vmatpush.bf16.msra.mxu0 %v2009
    %3257 = vmatpush.bf16.msra.mxu0 %v2001
    %3258 = vmatpush.bf16.msra.mxu0 %v1993
    %3259 = vmatpush.bf16.msra.mxu0 %v1985
    %3260 = vmatmul.bf16.gmra.mxu0 %v133
    %v3261 = vpop.f32.mrf.mxu0
    %v3262 = vadd.f32 %v3248, %v3261
    %v3263 = vpop.f32.mrf.mxu0
    %v3264 = vadd.f32 %v3250, %v3263
    %3265 = vdwg.mxu0
    %3266 = vmatpush.bf16.msra.mxu0 %v2105
    %3267 = vmatpush.bf16.msra.mxu0 %v2097
    %3268 = vmatpush.bf16.msra.mxu0 %v2089
    %3269 = vmatpush.bf16.msra.mxu0 %v2081
    %3270 = vmatpush.bf16.msra.mxu0 %v2073
    %3271 = vmatpush.bf16.msra.mxu0 %v2065
    %3272 = vmatpush.bf16.msra.mxu0 %v2057
    %3273 = vmatpush.bf16.msra.mxu0 %v2049
    %3274 = vmatmul.bf16.gmra.mxu0 %v134
    %v3275 = vpop.f32.mrf.mxu0
    %v3276 = vadd.f32 %v3262, %v3275
    %v3277 = vpop.f32.mrf.mxu0
    %v3278 = vadd.f32 %v3264, %v3277
    %3279 = vdwg.mxu0
    %3280 = vmatpush.bf16.msra.mxu0 0
    %3281 = vmatpush.bf16.msra.mxu0 0
    %3282 = vmatpush.bf16.msra.mxu0 0
    %3283 = vmatpush.bf16.msra.mxu0 0
    %3284 = vmatpush.bf16.msra.mxu0 0
    %3285 = vmatpush.bf16.msra.mxu0 0
    %3286 = vmatpush.bf16.msra.mxu0 0
    %3287 = vmatpush.bf16.msra.mxu0 %v2113
    %3288 = vmatmul.bf16.gmra.mxu0 %v2508
    %v3289 = vpop.f32.mrf.mxu0
    %v3290 = vadd.f32 %v3276, %v3289
    %v3291 = vpop.f32.mrf.mxu0
    %v3292 = vadd.f32 %v3278, %v3291
    %3293 = vdwg.mxu0
    %v3294 = vmax.f32 %v2604, 0.0
    %v3295 = vmax.f32 %v2702, 0.0
    %v3296 = vmax.f32 %v2800, 0.0
    %v3297 = vmax.f32 %v2898, 0.0
    %v3298 = vmax.f32 %v2996, 0.0
    %v3299 = vmax.f32 %v3094, 0.0
    %v3300 = vmax.f32 %v3192, 0.0
    %v3301 = vmax.f32 %v3290, 0.0
    %v3302 = vmax.f32 %v2606, 0.0
    %v3303 = vmax.f32 %v2704, 0.0
    %v3304 = vmax.f32 %v2802, 0.0
    %v3305 = vmax.f32 %v2900, 0.0
    %v3306 = vmax.f32 %v2998, 0.0
    %v3307 = vmax.f32 %v3096, 0.0
    %v3308 = vmax.f32 %v3194, 0.0
    %v3309 = vmax.f32 %v3292, 0.0
    %v3310 = vpack.c.bf16 %v3295, %v3294
    %v3311 = vpack.c.bf16 %v3297, %v3296
    %v3312 = vpack.c.bf16 %v3299, %v3298
    %v3313 = vpack.c.bf16 %v3301, %v3300
    %v3314 = vpack.c.bf16 %v3303, %v3302
    %v3315 = vpack.c.bf16 %v3305, %v3304
    %v3316 = vpack.c.bf16 %v3307, %v3306
    %v3317 = vpack.c.bf16 %v3309, %v3308
    %3318 = vst [vmem:[#allocation2] sm:$0xff] %v3310
    %3319 = vst [vmem:[#allocation2 + $0x8] sm:$0xff] %v3311
    %3320 = vst [vmem:[#allocation2 + $0x10] sm:$0xff] %v3312
    %3321 = vst [vmem:[#allocation2 + $0x18] sm:$0xff] %v3313
    %3322 = vst [vmem:[#allocation2 + $0x20] sm:$0xff] %v3314
    %3323 = vst [vmem:[#allocation2 + $0x28] sm:$0xff] %v3315
    %3324 = vst [vmem:[#allocation2 + $0x30] sm:$0xff] %v3316
    %3325 = vst [vmem:[#allocation2 + $0x38] sm:$0xff] %v3317
    %v3326 = vld [vmem:[#allocation2] sm:$0xff]
    %v3327 = vld [vmem:[#allocation2 + $0x8] sm:$0xff]
    %v3328 = vld [vmem:[#allocation2 + $0x10] sm:$0xff]
    %v3329 = vld [vmem:[#allocation2 + $0x18] sm:$0xff]
    %v3330 = vld [vmem:[#allocation2 + $0x20] sm:$0xff]
    %v3331 = vld [vmem:[#allocation2 + $0x28] sm:$0xff]
    %v3332 = vld [vmem:[#allocation2 + $0x30] sm:$0xff]
    %v3333 = vld [vmem:[#allocation2 + $0x38] sm:$0xff]
    %v3334 = vld [vmem:[#allocation8] sm:$0xff]
    %v3335 = vld [vmem:[#allocation8 + $0x8] sm:$0xff]
    %v3336 = vld [vmem:[#allocation8 + $0x10] sm:$0xff]
    %v3337 = vld [vmem:[#allocation8 + $0x18] sm:$0xff]
    %v3338 = vld [vmem:[#allocation8 + $0x20] sm:$0xff]
    %v3339 = vld [vmem:[#allocation8 + $0x28] sm:$0xff]
    %v3340 = vld [vmem:[#allocation8 + $0x30] sm:$0xff]
    %v3341 = vld [vmem:[#allocation8 + $0x38] sm:$0xff]
    %v3342 = vld [vmem:[#allocation8 + $0x40] sm:$0xff]
    %v3343 = vld [vmem:[#allocation8 + $0x48] sm:$0xff]
    %v3344 = vld [vmem:[#allocation8 + $0x50] sm:$0xff]
    %v3345 = vld [vmem:[#allocation8 + $0x58] sm:$0xff]
    %v3346 = vld [vmem:[#allocation8 + $0x60] sm:$0xff]
    %v3347 = vld [vmem:[#allocation8 + $0x68] sm:$0xff]
    %v3348 = vld [vmem:[#allocation8 + $0x70] sm:$0xff]
    %v3349 = vld [vmem:[#allocation8 + $0x78] sm:$0xff]
    %v3350 = vld [vmem:[#allocation8 + $0x80] sm:$0xff]
    %v3351 = vld [vmem:[#allocation8 + $0x88] sm:$0xff]
    %v3352 = vld [vmem:[#allocation8 + $0x90] sm:$0xff]
    %v3353 = vld [vmem:[#allocation8 + $0x98] sm:$0xff]
    %v3354 = vld [vmem:[#allocation8 + $0xa0] sm:$0xff]
    %v3355 = vld [vmem:[#allocation8 + $0xa8] sm:$0xff]
    %v3356 = vld [vmem:[#allocation8 + $0xb0] sm:$0xff]
    %v3357 = vld [vmem:[#allocation8 + $0xb8] sm:$0xff]
    %v3358 = vld [vmem:[#allocation8 + $0xc0] sm:$0xff]
    %v3359 = vld [vmem:[#allocation8 + $0xc8] sm:$0xff]
    %v3360 = vld [vmem:[#allocation8 + $0xd0] sm:$0xff]
    %v3361 = vld [vmem:[#allocation8 + $0xd8] sm:$0xff]
    %v3362 = vld [vmem:[#allocation8 + $0xe0] sm:$0xff]
    %v3363 = vld [vmem:[#allocation8 + $0xe8] sm:$0xff]
    %v3364 = vld [vmem:[#allocation8 + $0xf0] sm:$0xff]
    %v3365 = vld [vmem:[#allocation8 + $0xf8] sm:$0xff]
    %v3366 = vld [vmem:[#allocation8 + $0x100] sm:$0xff]
    %v3367 = vld [vmem:[#allocation8 + $0x108] sm:$0xff]
    %v3368 = vld [vmem:[#allocation8 + $0x110] sm:$0xff]
    %v3369 = vld [vmem:[#allocation8 + $0x118] sm:$0xff]
    %v3370 = vld [vmem:[#allocation8 + $0x120] sm:$0xff]
    %v3371 = vld [vmem:[#allocation8 + $0x128] sm:$0xff]
    %v3372 = vld [vmem:[#allocation8 + $0x130] sm:$0xff]
    %v3373 = vld [vmem:[#allocation8 + $0x138] sm:$0xff]
    %v3374 = vld [vmem:[#allocation8 + $0x140] sm:$0xff]
    %v3375 = vld [vmem:[#allocation8 + $0x148] sm:$0xff]
    %v3376 = vld [vmem:[#allocation8 + $0x150] sm:$0xff]
    %v3377 = vld [vmem:[#allocation8 + $0x158] sm:$0xff]
    %v3378 = vld [vmem:[#allocation8 + $0x160] sm:$0xff]
    %v3379 = vld [vmem:[#allocation8 + $0x168] sm:$0xff]
    %v3380 = vld [vmem:[#allocation8 + $0x170] sm:$0xff]
    %v3381 = vld [vmem:[#allocation8 + $0x178] sm:$0xff]
    %v3382 = vld [vmem:[#allocation8 + $0x180] sm:$0xff]
    %v3383 = vld [vmem:[#allocation8 + $0x188] sm:$0xff]
    %v3384 = vld [vmem:[#allocation8 + $0x190] sm:$0xff]
    %v3385 = vld [vmem:[#allocation8 + $0x198] sm:$0xff]
    %v3386 = vld [vmem:[#allocation8 + $0x1a0] sm:$0xff]
    %v3387 = vld [vmem:[#allocation8 + $0x1a8] sm:$0xff]
    %v3388 = vld [vmem:[#allocation8 + $0x1b0] sm:$0xff]
    %v3389 = vld [vmem:[#allocation8 + $0x1b8] sm:$0xff]
    %v3390 = vld [vmem:[#allocation8 + $0x1c0] sm:$0xff]
    %v3391 = vld [vmem:[#allocation8 + $0x1c8] sm:$0xff]
    %v3392 = vld [vmem:[#allocation8 + $0x1d0] sm:$0xff]
    %v3393 = vld [vmem:[#allocation8 + $0x1d8] sm:$0xff]
    %v3394 = vld [vmem:[#allocation8 + $0x1e0] sm:$0xff]
    %v3395 = vld [vmem:[#allocation8 + $0x1e8] sm:$0xff]
    %v3396 = vld [vmem:[#allocation8 + $0x1f0] sm:$0xff]
    %v3397 = vld [vmem:[#allocation8 + $0x1f8] sm:$0xff]
    %v3398 = vld [vmem:[#allocation8 + $0x200] sm:$0xff]
    %v3399 = vld [vmem:[#allocation8 + $0x208] sm:$0xff]
    %v3400 = vld [vmem:[#allocation8 + $0x210] sm:$0xff]
    %v3401 = vld [vmem:[#allocation8 + $0x218] sm:$0xff]
    %v3402 = vld [vmem:[#allocation8 + $0x220] sm:$0xff]
    %v3403 = vld [vmem:[#allocation8 + $0x228] sm:$0xff]
    %v3404 = vld [vmem:[#allocation8 + $0x230] sm:$0xff]
    %v3405 = vld [vmem:[#allocation8 + $0x238] sm:$0xff]
    %v3406 = vld [vmem:[#allocation8 + $0x240] sm:$0xff]
    %v3407 = vld [vmem:[#allocation8 + $0x248] sm:$0xff]
    %v3408 = vld [vmem:[#allocation8 + $0x250] sm:$0xff]
    %v3409 = vld [vmem:[#allocation8 + $0x258] sm:$0xff]
    %v3410 = vld [vmem:[#allocation8 + $0x260] sm:$0xff]
    %v3411 = vld [vmem:[#allocation8 + $0x268] sm:$0xff]
    %v3412 = vld [vmem:[#allocation8 + $0x270] sm:$0xff]
    %v3413 = vld [vmem:[#allocation8 + $0x278] sm:$0xff]
    %v3414 = vld [vmem:[#allocation8 + $0x280] sm:$0xff]
    %v3415 = vld [vmem:[#allocation8 + $0x288] sm:$0xff]
    %v3416 = vld [vmem:[#allocation8 + $0x290] sm:$0xff]
    %v3417 = vld [vmem:[#allocation8 + $0x298] sm:$0xff]
    %v3418 = vld [vmem:[#allocation8 + $0x2a0] sm:$0xff]
    %v3419 = vld [vmem:[#allocation8 + $0x2a8] sm:$0xff]
    %v3420 = vld [vmem:[#allocation8 + $0x2b0] sm:$0xff]
    %v3421 = vld [vmem:[#allocation8 + $0x2b8] sm:$0xff]
    %v3422 = vld [vmem:[#allocation8 + $0x2c0] sm:$0xff]
    %v3423 = vld [vmem:[#allocation8 + $0x2c8] sm:$0xff]
    %v3424 = vld [vmem:[#allocation8 + $0x2d0] sm:$0xff]
    %v3425 = vld [vmem:[#allocation8 + $0x2d8] sm:$0xff]
    %v3426 = vld [vmem:[#allocation8 + $0x2e0] sm:$0xff]
    %v3427 = vld [vmem:[#allocation8 + $0x2e8] sm:$0xff]
    %v3428 = vld [vmem:[#allocation8 + $0x2f0] sm:$0xff]
    %v3429 = vld [vmem:[#allocation8 + $0x2f8] sm:$0xff]
    %v3430 = vld [vmem:[#allocation8 + $0x300] sm:$0xff]
    %v3431 = vld [vmem:[#allocation8 + $0x308] sm:$0xff]
    %v3432 = vld [vmem:[#allocation8 + $0x310] sm:$0xff]
    %v3433 = vld [vmem:[#allocation8 + $0x318] sm:$0xff]
    %v3434 = vld [vmem:[#allocation8 + $0x320] sm:$0xff]
    %v3435 = vld [vmem:[#allocation8 + $0x328] sm:$0xff]
    %v3436 = vld [vmem:[#allocation8 + $0x330] sm:$0xff]
    %v3437 = vld [vmem:[#allocation8 + $0x338] sm:$0xff]
    %v3438 = vld [vmem:[#allocation8 + $0x340] sm:$0xff]
    %v3439 = vld [vmem:[#allocation8 + $0x348] sm:$0xff]
    %v3440 = vld [vmem:[#allocation8 + $0x350] sm:$0xff]
    %v3441 = vld [vmem:[#allocation8 + $0x358] sm:$0xff]
    %v3442 = vld [vmem:[#allocation8 + $0x360] sm:$0xff]
    %v3443 = vld [vmem:[#allocation8 + $0x368] sm:$0xff]
    %v3444 = vld [vmem:[#allocation8 + $0x370] sm:$0xff]
    %v3445 = vld [vmem:[#allocation8 + $0x378] sm:$0xff]
    %v3446 = vld [vmem:[#allocation8 + $0x380] sm:$0xff]
    %v3447 = vld [vmem:[#allocation8 + $0x388] sm:$0xff]
    %v3448 = vld [vmem:[#allocation8 + $0x390] sm:$0xff]
    %v3449 = vld [vmem:[#allocation8 + $0x398] sm:$0xff]
    %v3450 = vld [vmem:[#allocation8 + $0x3a0] sm:$0xff]
    %v3451 = vld [vmem:[#allocation8 + $0x3a8] sm:$0xff]
    %v3452 = vld [vmem:[#allocation8 + $0x3b0] sm:$0xff]
    %v3453 = vld [vmem:[#allocation8 + $0x3b8] sm:$0xff]
    %v3454 = vld [vmem:[#allocation8 + $0x3c0] sm:$0xff]
    %v3455 = vld [vmem:[#allocation8 + $0x3c8] sm:$0xff]
    %v3456 = vld [vmem:[#allocation8 + $0x3d0] sm:$0xff]
    %v3457 = vld [vmem:[#allocation8 + $0x3d8] sm:$0xff]
    %v3458 = vld [vmem:[#allocation8 + $0x3e0] sm:$0xff]
    %v3459 = vld [vmem:[#allocation8 + $0x3e8] sm:$0xff]
    %v3460 = vld [vmem:[#allocation8 + $0x3f0] sm:$0xff]
    %v3461 = vld [vmem:[#allocation8 + $0x3f8] sm:$0xff]
    %v3462 = vld [vmem:[#allocation8 + $0x400] sm:$0xff]
    %v3463 = vld [vmem:[#allocation8 + $0x408] sm:$0xff]
    %v3464 = vld [vmem:[#allocation8 + $0x410] sm:$0xff]
    %v3465 = vld [vmem:[#allocation8 + $0x418] sm:$0xff]
    %v3466 = vld [vmem:[#allocation8 + $0x420] sm:$0xff]
    %v3467 = vld [vmem:[#allocation8 + $0x428] sm:$0xff]
    %v3468 = vld [vmem:[#allocation8 + $0x430] sm:$0xff]
    %v3469 = vld [vmem:[#allocation8 + $0x438] sm:$0xff]
    %v3470 = vld [vmem:[#allocation8 + $0x440] sm:$0xff]
    %v3471 = vld [vmem:[#allocation8 + $0x448] sm:$0xff]
    %v3472 = vld [vmem:[#allocation8 + $0x450] sm:$0xff]
    %v3473 = vld [vmem:[#allocation8 + $0x458] sm:$0xff]
    %v3474 = vld [vmem:[#allocation8 + $0x460] sm:$0xff]
    %v3475 = vld [vmem:[#allocation8 + $0x468] sm:$0xff]
    %v3476 = vld [vmem:[#allocation8 + $0x470] sm:$0xff]
    %v3477 = vld [vmem:[#allocation8 + $0x478] sm:$0xff]
    %v3478 = vld [vmem:[#allocation8 + $0x480] sm:$0xff]
    %v3479 = vld [vmem:[#allocation8 + $0x488] sm:$0xff]
    %v3480 = vld [vmem:[#allocation8 + $0x490] sm:$0xff]
    %v3481 = vld [vmem:[#allocation8 + $0x498] sm:$0xff]
    %v3482 = vld [vmem:[#allocation8 + $0x4a0] sm:$0xff]
    %v3483 = vld [vmem:[#allocation8 + $0x4a8] sm:$0xff]
    %v3484 = vld [vmem:[#allocation8 + $0x4b0] sm:$0xff]
    %v3485 = vld [vmem:[#allocation8 + $0x4b8] sm:$0xff]
    %v3486 = vld [vmem:[#allocation8 + $0x4c0] sm:$0xff]
    %v3487 = vld [vmem:[#allocation8 + $0x4c8] sm:$0xff]
    %v3488 = vld [vmem:[#allocation8 + $0x4d0] sm:$0xff]
    %v3489 = vld [vmem:[#allocation8 + $0x4d8] sm:$0xff]
    %v3490 = vld [vmem:[#allocation8 + $0x4e0] sm:$0xff]
    %v3491 = vld [vmem:[#allocation8 + $0x4e8] sm:$0xff]
    %v3492 = vld [vmem:[#allocation8 + $0x4f0] sm:$0xff]
    %v3493 = vld [vmem:[#allocation8 + $0x4f8] sm:$0xff]
    %v3494 = vld [vmem:[#allocation8 + $0x500] sm:$0xff]
    %v3495 = vld [vmem:[#allocation8 + $0x508] sm:$0xff]
    %v3496 = vld [vmem:[#allocation8 + $0x510] sm:$0xff]
    %v3497 = vld [vmem:[#allocation8 + $0x518] sm:$0xff]
    %v3498 = vld [vmem:[#allocation8 + $0x520] sm:$0xff]
    %v3499 = vld [vmem:[#allocation8 + $0x528] sm:$0xff]
    %v3500 = vld [vmem:[#allocation8 + $0x530] sm:$0xff]
    %v3501 = vld [vmem:[#allocation8 + $0x538] sm:$0xff]
    %v3502 = vld [vmem:[#allocation8 + $0x540] sm:$0xff]
    %v3503 = vld [vmem:[#allocation8 + $0x548] sm:$0xff]
    %v3504 = vld [vmem:[#allocation8 + $0x550] sm:$0xff]
    %v3505 = vld [vmem:[#allocation8 + $0x558] sm:$0xff]
    %v3506 = vld [vmem:[#allocation8 + $0x560] sm:$0xff]
    %v3507 = vld [vmem:[#allocation8 + $0x568] sm:$0xff]
    %v3508 = vld [vmem:[#allocation8 + $0x570] sm:$0xff]
    %v3509 = vld [vmem:[#allocation8 + $0x578] sm:$0xff]
    %v3510 = vld [vmem:[#allocation8 + $0x580] sm:$0xff]
    %v3511 = vld [vmem:[#allocation8 + $0x588] sm:$0xff]
    %v3512 = vld [vmem:[#allocation8 + $0x590] sm:$0xff]
    %v3513 = vld [vmem:[#allocation8 + $0x598] sm:$0xff]
    %v3514 = vld [vmem:[#allocation8 + $0x5a0] sm:$0xff]
    %v3515 = vld [vmem:[#allocation8 + $0x5a8] sm:$0xff]
    %v3516 = vld [vmem:[#allocation8 + $0x5b0] sm:$0xff]
    %v3517 = vld [vmem:[#allocation8 + $0x5b8] sm:$0xff]
    %v3518 = vld [vmem:[#allocation8 + $0x5c0] sm:$0xff]
    %v3519 = vld [vmem:[#allocation8 + $0x5c8] sm:$0xff]
    %v3520 = vld [vmem:[#allocation8 + $0x5d0] sm:$0xff]
    %v3521 = vld [vmem:[#allocation8 + $0x5d8] sm:$0xff]
    %v3522 = vld [vmem:[#allocation8 + $0x5e0] sm:$0xff]
    %v3523 = vld [vmem:[#allocation8 + $0x5e8] sm:$0xff]
    %v3524 = vld [vmem:[#allocation8 + $0x5f0] sm:$0xff]
    %v3525 = vld [vmem:[#allocation8 + $0x5f8] sm:$0xff]
    %v3526 = vld [vmem:[#allocation8 + $0x600] sm:$0xff]
    %v3527 = vld [vmem:[#allocation8 + $0x608] sm:$0xff]
    %v3528 = vld [vmem:[#allocation8 + $0x610] sm:$0xff]
    %v3529 = vld [vmem:[#allocation8 + $0x618] sm:$0xff]
    %v3530 = vld [vmem:[#allocation8 + $0x620] sm:$0xff]
    %v3531 = vld [vmem:[#allocation8 + $0x628] sm:$0xff]
    %v3532 = vld [vmem:[#allocation8 + $0x630] sm:$0xff]
    %v3533 = vld [vmem:[#allocation8 + $0x638] sm:$0xff]
    %v3534 = vld [vmem:[#allocation8 + $0x640] sm:$0xff]
    %v3535 = vld [vmem:[#allocation8 + $0x648] sm:$0xff]
    %v3536 = vld [vmem:[#allocation8 + $0x650] sm:$0xff]
    %v3537 = vld [vmem:[#allocation8 + $0x658] sm:$0xff]
    %v3538 = vld [vmem:[#allocation8 + $0x660] sm:$0xff]
    %v3539 = vld [vmem:[#allocation8 + $0x668] sm:$0xff]
    %v3540 = vld [vmem:[#allocation8 + $0x670] sm:$0xff]
    %v3541 = vld [vmem:[#allocation8 + $0x678] sm:$0xff]
    %v3542 = vld [vmem:[#allocation8 + $0x680] sm:$0xff]
    %v3543 = vld [vmem:[#allocation8 + $0x688] sm:$0xff]
    %v3544 = vld [vmem:[#allocation8 + $0x690] sm:$0xff]
    %v3545 = vld [vmem:[#allocation8 + $0x698] sm:$0xff]
    %v3546 = vld [vmem:[#allocation8 + $0x6a0] sm:$0xff]
    %v3547 = vld [vmem:[#allocation8 + $0x6a8] sm:$0xff]
    %v3548 = vld [vmem:[#allocation8 + $0x6b0] sm:$0xff]
    %v3549 = vld [vmem:[#allocation8 + $0x6b8] sm:$0xff]
    %v3550 = vld [vmem:[#allocation8 + $0x6c0] sm:$0xff]
    %v3551 = vld [vmem:[#allocation8 + $0x6c8] sm:$0xff]
    %v3552 = vld [vmem:[#allocation8 + $0x6d0] sm:$0xff]
    %v3553 = vld [vmem:[#allocation8 + $0x6d8] sm:$0xff]
    %v3554 = vld [vmem:[#allocation8 + $0x6e0] sm:$0xff]
    %v3555 = vld [vmem:[#allocation8 + $0x6e8] sm:$0xff]
    %v3556 = vld [vmem:[#allocation8 + $0x6f0] sm:$0xff]
    %v3557 = vld [vmem:[#allocation8 + $0x6f8] sm:$0xff]
    %v3558 = vld [vmem:[#allocation8 + $0x700] sm:$0xff]
    %v3559 = vld [vmem:[#allocation8 + $0x708] sm:$0xff]
    %v3560 = vld [vmem:[#allocation8 + $0x710] sm:$0xff]
    %v3561 = vld [vmem:[#allocation8 + $0x718] sm:$0xff]
    %v3562 = vld [vmem:[#allocation8 + $0x720] sm:$0xff]
    %v3563 = vld [vmem:[#allocation8 + $0x728] sm:$0xff]
    %v3564 = vld [vmem:[#allocation8 + $0x730] sm:$0xff]
    %v3565 = vld [vmem:[#allocation8 + $0x738] sm:$0xff]
    %v3566 = vld [vmem:[#allocation8 + $0x740] sm:$0xff]
    %v3567 = vld [vmem:[#allocation8 + $0x748] sm:$0xff]
    %v3568 = vld [vmem:[#allocation8 + $0x750] sm:$0xff]
    %v3569 = vld [vmem:[#allocation8 + $0x758] sm:$0xff]
    %v3570 = vld [vmem:[#allocation8 + $0x760] sm:$0xff]
    %v3571 = vld [vmem:[#allocation8 + $0x768] sm:$0xff]
    %v3572 = vld [vmem:[#allocation8 + $0x770] sm:$0xff]
    %v3573 = vld [vmem:[#allocation8 + $0x778] sm:$0xff]
    %v3574 = vld [vmem:[#allocation8 + $0x780] sm:$0xff]
    %v3575 = vld [vmem:[#allocation8 + $0x788] sm:$0xff]
    %v3576 = vld [vmem:[#allocation8 + $0x790] sm:$0xff]
    %v3577 = vld [vmem:[#allocation8 + $0x798] sm:$0xff]
    %v3578 = vld [vmem:[#allocation8 + $0x7a0] sm:$0xff]
    %v3579 = vld [vmem:[#allocation8 + $0x7a8] sm:$0xff]
    %v3580 = vld [vmem:[#allocation8 + $0x7b0] sm:$0xff]
    %v3581 = vld [vmem:[#allocation8 + $0x7b8] sm:$0xff]
    %v3582 = vld [vmem:[#allocation8 + $0x7c0] sm:$0xff]
    %v3583 = vld [vmem:[#allocation8 + $0x7c8] sm:$0xff]
    %v3584 = vld [vmem:[#allocation8 + $0x7d0] sm:$0xff]
    %v3585 = vld [vmem:[#allocation8 + $0x7d8] sm:$0xff]
    %v3586 = vld [vmem:[#allocation8 + $0x7e0] sm:$0xff]
    %v3587 = vld [vmem:[#allocation8 + $0x7e8] sm:$0xff]
    %v3588 = vld [vmem:[#allocation8 + $0x7f0] sm:$0xff]
    %v3589 = vld [vmem:[#allocation8 + $0x7f8] sm:$0xff]
    %v3590 = vld [vmem:[#allocation8 + $0x800] sm:$0xff]
    %v3591 = vld [vmem:[#allocation8 + $0x808] sm:$0xff]
    %v3592 = vld [vmem:[#allocation8 + $0x810] sm:$0xff]
    %v3593 = vld [vmem:[#allocation8 + $0x818] sm:$0xff]
    %v3594 = vld [vmem:[#allocation8 + $0x820] sm:$0xff]
    %v3595 = vld [vmem:[#allocation8 + $0x828] sm:$0xff]
    %v3596 = vld [vmem:[#allocation8 + $0x830] sm:$0xff]
    %v3597 = vld [vmem:[#allocation8 + $0x838] sm:$0xff]
    %v3598 = vld [vmem:[#allocation8 + $0x840] sm:$0xff]
    %v3599 = vld [vmem:[#allocation8 + $0x848] sm:$0xff]
    %v3600 = vld [vmem:[#allocation8 + $0x850] sm:$0xff]
    %v3601 = vld [vmem:[#allocation8 + $0x858] sm:$0xff]
    %v3602 = vld [vmem:[#allocation8 + $0x860] sm:$0xff]
    %v3603 = vld [vmem:[#allocation8 + $0x868] sm:$0xff]
    %v3604 = vld [vmem:[#allocation8 + $0x870] sm:$0xff]
    %v3605 = vld [vmem:[#allocation8 + $0x878] sm:$0xff]
    %v3606 = vld [vmem:[#allocation8 + $0x880] sm:$0xff]
    %v3607 = vld [vmem:[#allocation8 + $0x888] sm:$0xff]
    %v3608 = vld [vmem:[#allocation8 + $0x890] sm:$0xff]
    %v3609 = vld [vmem:[#allocation8 + $0x898] sm:$0xff]
    %v3610 = vld [vmem:[#allocation8 + $0x8a0] sm:$0xff]
    %v3611 = vld [vmem:[#allocation8 + $0x8a8] sm:$0xff]
    %v3612 = vld [vmem:[#allocation8 + $0x8b0] sm:$0xff]
    %v3613 = vld [vmem:[#allocation8 + $0x8b8] sm:$0xff]
    %v3614 = vld [vmem:[#allocation8 + $0x8c0] sm:$0xff]
    %v3615 = vld [vmem:[#allocation8 + $0x8c8] sm:$0xff]
    %v3616 = vld [vmem:[#allocation8 + $0x8d0] sm:$0xff]
    %v3617 = vld [vmem:[#allocation8 + $0x8d8] sm:$0xff]
    %v3618 = vld [vmem:[#allocation8 + $0x8e0] sm:$0xff]
    %v3619 = vld [vmem:[#allocation8 + $0x8e8] sm:$0xff]
    %v3620 = vld [vmem:[#allocation8 + $0x8f0] sm:$0xff]
    %v3621 = vld [vmem:[#allocation8 + $0x8f8] sm:$0xff]
    %v3622 = vld [vmem:[#allocation8 + $0x900] sm:$0xff]
    %v3623 = vld [vmem:[#allocation8 + $0x908] sm:$0xff]
    %v3624 = vld [vmem:[#allocation8 + $0x910] sm:$0xff]
    %v3625 = vld [vmem:[#allocation8 + $0x918] sm:$0xff]
    %v3626 = vld [vmem:[#allocation8 + $0x920] sm:$0xff]
    %v3627 = vld [vmem:[#allocation8 + $0x928] sm:$0xff]
    %v3628 = vld [vmem:[#allocation8 + $0x930] sm:$0xff]
    %v3629 = vld [vmem:[#allocation8 + $0x938] sm:$0xff]
    %v3630 = vld [vmem:[#allocation8 + $0x940] sm:$0xff]
    %v3631 = vld [vmem:[#allocation8 + $0x948] sm:$0xff]
    %v3632 = vld [vmem:[#allocation8 + $0x950] sm:$0xff]
    %v3633 = vld [vmem:[#allocation8 + $0x958] sm:$0xff]
    %v3634 = vld [vmem:[#allocation8 + $0x960] sm:$0xff]
    %v3635 = vld [vmem:[#allocation8 + $0x968] sm:$0xff]
    %v3636 = vld [vmem:[#allocation8 + $0x970] sm:$0xff]
    %v3637 = vld [vmem:[#allocation8 + $0x978] sm:$0xff]
    %v3638 = vld [vmem:[#allocation8 + $0x980] sm:$0xff]
    %v3639 = vld [vmem:[#allocation8 + $0x988] sm:$0xff]
    %v3640 = vld [vmem:[#allocation8 + $0x990] sm:$0xff]
    %v3641 = vld [vmem:[#allocation8 + $0x998] sm:$0xff]
    %v3642 = vld [vmem:[#allocation8 + $0x9a0] sm:$0xff]
    %v3643 = vld [vmem:[#allocation8 + $0x9a8] sm:$0xff]
    %v3644 = vld [vmem:[#allocation8 + $0x9b0] sm:$0xff]
    %v3645 = vld [vmem:[#allocation8 + $0x9b8] sm:$0xff]
    %v3646 = vld [vmem:[#allocation8 + $0x9c0] sm:$0xff]
    %v3647 = vld [vmem:[#allocation8 + $0x9c8] sm:$0xff]
    %v3648 = vld [vmem:[#allocation8 + $0x9d0] sm:$0xff]
    %v3649 = vld [vmem:[#allocation8 + $0x9d8] sm:$0xff]
    %v3650 = vld [vmem:[#allocation8 + $0x9e0] sm:$0xff]
    %v3651 = vld [vmem:[#allocation8 + $0x9e8] sm:$0xff]
    %v3652 = vld [vmem:[#allocation8 + $0x9f0] sm:$0xff]
    %v3653 = vld [vmem:[#allocation8 + $0x9f8] sm:$0xff]
    %v3654 = vld [vmem:[#allocation8 + $0xa00] sm:$0xff]
    %v3655 = vld [vmem:[#allocation8 + $0xa08] sm:$0xff]
    %v3656 = vld [vmem:[#allocation8 + $0xa10] sm:$0xff]
    %v3657 = vld [vmem:[#allocation8 + $0xa18] sm:$0xff]
    %v3658 = vld [vmem:[#allocation8 + $0xa20] sm:$0xff]
    %v3659 = vld [vmem:[#allocation8 + $0xa28] sm:$0xff]
    %v3660 = vld [vmem:[#allocation8 + $0xa30] sm:$0xff]
    %v3661 = vld [vmem:[#allocation8 + $0xa38] sm:$0xff]
    %v3662 = vld [vmem:[#allocation8 + $0xa40] sm:$0xff]
    %v3663 = vld [vmem:[#allocation8 + $0xa48] sm:$0xff]
    %v3664 = vld [vmem:[#allocation8 + $0xa50] sm:$0xff]
    %v3665 = vld [vmem:[#allocation8 + $0xa58] sm:$0xff]
    %v3666 = vld [vmem:[#allocation8 + $0xa60] sm:$0xff]
    %v3667 = vld [vmem:[#allocation8 + $0xa68] sm:$0xff]
    %v3668 = vld [vmem:[#allocation8 + $0xa70] sm:$0xff]
    %v3669 = vld [vmem:[#allocation8 + $0xa78] sm:$0xff]
    %v3670 = vld [vmem:[#allocation8 + $0xa80] sm:$0xff]
    %v3671 = vld [vmem:[#allocation8 + $0xa88] sm:$0xff]
    %v3672 = vld [vmem:[#allocation8 + $0xa90] sm:$0xff]
    %v3673 = vld [vmem:[#allocation8 + $0xa98] sm:$0xff]
    %v3674 = vld [vmem:[#allocation8 + $0xaa0] sm:$0xff]
    %v3675 = vld [vmem:[#allocation8 + $0xaa8] sm:$0xff]
    %v3676 = vld [vmem:[#allocation8 + $0xab0] sm:$0xff]
    %v3677 = vld [vmem:[#allocation8 + $0xab8] sm:$0xff]
    %v3678 = vld [vmem:[#allocation8 + $0xac0] sm:$0xff]
    %v3679 = vld [vmem:[#allocation8 + $0xac8] sm:$0xff]
    %v3680 = vld [vmem:[#allocation8 + $0xad0] sm:$0xff]
    %v3681 = vld [vmem:[#allocation8 + $0xad8] sm:$0xff]
    %v3682 = vld [vmem:[#allocation8 + $0xae0] sm:$0xff]
    %v3683 = vld [vmem:[#allocation8 + $0xae8] sm:$0xff]
    %v3684 = vld [vmem:[#allocation8 + $0xaf0] sm:$0xff]
    %v3685 = vld [vmem:[#allocation8 + $0xaf8] sm:$0xff]
    %v3686 = vld [vmem:[#allocation8 + $0xb00] sm:$0xff]
    %v3687 = vld [vmem:[#allocation8 + $0xb08] sm:$0xff]
    %v3688 = vld [vmem:[#allocation8 + $0xb10] sm:$0xff]
    %v3689 = vld [vmem:[#allocation8 + $0xb18] sm:$0xff]
    %v3690 = vld [vmem:[#allocation8 + $0xb20] sm:$0xff]
    %v3691 = vld [vmem:[#allocation8 + $0xb28] sm:$0xff]
    %v3692 = vld [vmem:[#allocation8 + $0xb30] sm:$0xff]
    %v3693 = vld [vmem:[#allocation8 + $0xb38] sm:$0xff]
    %v3694 = vld [vmem:[#allocation8 + $0xb40] sm:$0xff]
    %v3695 = vld [vmem:[#allocation8 + $0xb48] sm:$0xff]
    %v3696 = vld [vmem:[#allocation8 + $0xb50] sm:$0xff]
    %v3697 = vld [vmem:[#allocation8 + $0xb58] sm:$0xff]
    %v3698 = vld [vmem:[#allocation8 + $0xb60] sm:$0xff]
    %v3699 = vld [vmem:[#allocation8 + $0xb68] sm:$0xff]
    %v3700 = vld [vmem:[#allocation8 + $0xb70] sm:$0xff]
    %v3701 = vld [vmem:[#allocation8 + $0xb78] sm:$0xff]
    %v3702 = vld [vmem:[#allocation8 + $0xb80] sm:$0xff]
    %v3703 = vld [vmem:[#allocation8 + $0xb88] sm:$0xff]
    %v3704 = vld [vmem:[#allocation8 + $0xb90] sm:$0xff]
    %v3705 = vld [vmem:[#allocation8 + $0xb98] sm:$0xff]
    %v3706 = vld [vmem:[#allocation8 + $0xba0] sm:$0xff]
    %v3707 = vld [vmem:[#allocation8 + $0xba8] sm:$0xff]
    %v3708 = vld [vmem:[#allocation8 + $0xbb0] sm:$0xff]
    %v3709 = vld [vmem:[#allocation8 + $0xbb8] sm:$0xff]
    %v3710 = vld [vmem:[#allocation8 + $0xbc0] sm:$0xff]
    %v3711 = vld [vmem:[#allocation8 + $0xbc8] sm:$0xff]
    %v3712 = vld [vmem:[#allocation8 + $0xbd0] sm:$0xff]
    %v3713 = vld [vmem:[#allocation8 + $0xbd8] sm:$0xff]
    %v3714 = vld [vmem:[#allocation8 + $0xbe0] sm:$0xff]
    %v3715 = vld [vmem:[#allocation8 + $0xbe8] sm:$0xff]
    %v3716 = vld [vmem:[#allocation8 + $0xbf0] sm:$0xff]
    %v3717 = vld [vmem:[#allocation8 + $0xbf8] sm:$0xff]
    %v3718 = vld [vmem:[#allocation8 + $0xc00] sm:$0xff]
    %v3719 = vld [vmem:[#allocation8 + $0xc08] sm:$0xff]
    %v3720 = vld [vmem:[#allocation8 + $0xc10] sm:$0xff]
    %v3721 = vld [vmem:[#allocation8 + $0xc18] sm:$0xff]
    %v3722 = vld [vmem:[#allocation8 + $0xc20] sm:$0xff]
    %v3723 = vld [vmem:[#allocation8 + $0xc28] sm:$0xff]
    %v3724 = vld [vmem:[#allocation8 + $0xc30] sm:$0xff]
    %v3725 = vld [vmem:[#allocation8 + $0xc38] sm:$0xff]
    %v3726 = vld [vmem:[#allocation8 + $0xc40] sm:$0xff]
    %v3727 = vld [vmem:[#allocation8 + $0xc48] sm:$0xff]
    %v3728 = vld [vmem:[#allocation8 + $0xc50] sm:$0xff]
    %v3729 = vld [vmem:[#allocation8 + $0xc58] sm:$0xff]
    %v3730 = vld [vmem:[#allocation8 + $0xc60] sm:$0xff]
    %v3731 = vld [vmem:[#allocation8 + $0xc68] sm:$0xff]
    %v3732 = vld [vmem:[#allocation8 + $0xc70] sm:$0xff]
    %v3733 = vld [vmem:[#allocation8 + $0xc78] sm:$0xff]
    %v3734 = vld [vmem:[#allocation8 + $0xc80] sm:$0xff]
    %v3735 = vld [vmem:[#allocation8 + $0xc88] sm:$0xff]
    %v3736 = vld [vmem:[#allocation8 + $0xc90] sm:$0xff]
    %v3737 = vld [vmem:[#allocation8 + $0xc98] sm:$0xff]
    %v3738 = vld [vmem:[#allocation8 + $0xca0] sm:$0xff]
    %v3739 = vld [vmem:[#allocation8 + $0xca8] sm:$0xff]
    %v3740 = vld [vmem:[#allocation8 + $0xcb0] sm:$0xff]
    %v3741 = vld [vmem:[#allocation8 + $0xcb8] sm:$0xff]
    %v3742 = vld [vmem:[#allocation8 + $0xcc0] sm:$0xff]
    %v3743 = vld [vmem:[#allocation8 + $0xcc8] sm:$0xff]
    %v3744 = vld [vmem:[#allocation8 + $0xcd0] sm:$0xff]
    %v3745 = vld [vmem:[#allocation8 + $0xcd8] sm:$0xff]
    %v3746 = vld [vmem:[#allocation8 + $0xce0] sm:$0xff]
    %v3747 = vld [vmem:[#allocation8 + $0xce8] sm:$0xff]
    %v3748 = vld [vmem:[#allocation8 + $0xcf0] sm:$0xff]
    %v3749 = vld [vmem:[#allocation8 + $0xcf8] sm:$0xff]
    %v3750 = vld [vmem:[#allocation8 + $0xd00] sm:$0xff]
    %v3751 = vld [vmem:[#allocation8 + $0xd08] sm:$0xff]
    %v3752 = vld [vmem:[#allocation8 + $0xd10] sm:$0xff]
    %v3753 = vld [vmem:[#allocation8 + $0xd18] sm:$0xff]
    %v3754 = vld [vmem:[#allocation8 + $0xd20] sm:$0xff]
    %v3755 = vld [vmem:[#allocation8 + $0xd28] sm:$0xff]
    %v3756 = vld [vmem:[#allocation8 + $0xd30] sm:$0xff]
    %v3757 = vld [vmem:[#allocation8 + $0xd38] sm:$0xff]
    %v3758 = vld [vmem:[#allocation8 + $0xd40] sm:$0xff]
    %v3759 = vld [vmem:[#allocation8 + $0xd48] sm:$0xff]
    %v3760 = vld [vmem:[#allocation8 + $0xd50] sm:$0xff]
    %v3761 = vld [vmem:[#allocation8 + $0xd58] sm:$0xff]
    %v3762 = vld [vmem:[#allocation8 + $0xd60] sm:$0xff]
    %v3763 = vld [vmem:[#allocation8 + $0xd68] sm:$0xff]
    %v3764 = vld [vmem:[#allocation8 + $0xd70] sm:$0xff]
    %v3765 = vld [vmem:[#allocation8 + $0xd78] sm:$0xff]
    %v3766 = vld [vmem:[#allocation8 + $0xd80] sm:$0xff]
    %v3767 = vld [vmem:[#allocation8 + $0xd88] sm:$0xff]
    %v3768 = vld [vmem:[#allocation8 + $0xd90] sm:$0xff]
    %v3769 = vld [vmem:[#allocation8 + $0xd98] sm:$0xff]
    %v3770 = vld [vmem:[#allocation8 + $0xda0] sm:$0xff]
    %v3771 = vld [vmem:[#allocation8 + $0xda8] sm:$0xff]
    %v3772 = vld [vmem:[#allocation8 + $0xdb0] sm:$0xff]
    %v3773 = vld [vmem:[#allocation8 + $0xdb8] sm:$0xff]
    %v3774 = vld [vmem:[#allocation8 + $0xdc0] sm:$0xff]
    %v3775 = vld [vmem:[#allocation8 + $0xdc8] sm:$0xff]
    %v3776 = vld [vmem:[#allocation8 + $0xdd0] sm:$0xff]
    %v3777 = vld [vmem:[#allocation8 + $0xdd8] sm:$0xff]
    %v3778 = vld [vmem:[#allocation8 + $0xde0] sm:$0xff]
    %v3779 = vld [vmem:[#allocation8 + $0xde8] sm:$0xff]
    %v3780 = vld [vmem:[#allocation8 + $0xdf0] sm:$0xff]
    %v3781 = vld [vmem:[#allocation8 + $0xdf8] sm:$0xff]
    %v3782 = vld [vmem:[#allocation8 + $0xe00] sm:$0xff]
    %v3783 = vld [vmem:[#allocation8 + $0xe08] sm:$0xff]
    %v3784 = vld [vmem:[#allocation8 + $0xe10] sm:$0xff]
    %v3785 = vld [vmem:[#allocation8 + $0xe18] sm:$0xff]
    %v3786 = vld [vmem:[#allocation8 + $0xe20] sm:$0xff]
    %v3787 = vld [vmem:[#allocation8 + $0xe28] sm:$0xff]
    %v3788 = vld [vmem:[#allocation8 + $0xe30] sm:$0xff]
    %v3789 = vld [vmem:[#allocation8 + $0xe38] sm:$0xff]
    %v3790 = vld [vmem:[#allocation8 + $0xe40] sm:$0xff]
    %v3791 = vld [vmem:[#allocation8 + $0xe48] sm:$0xff]
    %v3792 = vld [vmem:[#allocation8 + $0xe50] sm:$0xff]
    %v3793 = vld [vmem:[#allocation8 + $0xe58] sm:$0xff]
    %v3794 = vld [vmem:[#allocation8 + $0xe60] sm:$0xff]
    %v3795 = vld [vmem:[#allocation8 + $0xe68] sm:$0xff]
    %v3796 = vld [vmem:[#allocation8 + $0xe70] sm:$0xff]
    %v3797 = vld [vmem:[#allocation8 + $0xe78] sm:$0xff]
    %v3798 = vld [vmem:[#allocation8 + $0xe80] sm:$0xff]
    %v3799 = vld [vmem:[#allocation8 + $0xe88] sm:$0xff]
    %v3800 = vld [vmem:[#allocation8 + $0xe90] sm:$0xff]
    %v3801 = vld [vmem:[#allocation8 + $0xe98] sm:$0xff]
    %v3802 = vld [vmem:[#allocation8 + $0xea0] sm:$0xff]
    %v3803 = vld [vmem:[#allocation8 + $0xea8] sm:$0xff]
    %v3804 = vld [vmem:[#allocation8 + $0xeb0] sm:$0xff]
    %v3805 = vld [vmem:[#allocation8 + $0xeb8] sm:$0xff]
    %v3806 = vld [vmem:[#allocation8 + $0xec0] sm:$0xff]
    %v3807 = vld [vmem:[#allocation8 + $0xec8] sm:$0xff]
    %v3808 = vld [vmem:[#allocation8 + $0xed0] sm:$0xff]
    %v3809 = vld [vmem:[#allocation8 + $0xed8] sm:$0xff]
    %v3810 = vld [vmem:[#allocation8 + $0xee0] sm:$0xff]
    %v3811 = vld [vmem:[#allocation8 + $0xee8] sm:$0xff]
    %v3812 = vld [vmem:[#allocation8 + $0xef0] sm:$0xff]
    %v3813 = vld [vmem:[#allocation8 + $0xef8] sm:$0xff]
    %v3814 = vld [vmem:[#allocation8 + $0xf00] sm:$0xff]
    %v3815 = vld [vmem:[#allocation8 + $0xf08] sm:$0xff]
    %v3816 = vld [vmem:[#allocation8 + $0xf10] sm:$0xff]
    %v3817 = vld [vmem:[#allocation8 + $0xf18] sm:$0xff]
    %v3818 = vld [vmem:[#allocation8 + $0xf20] sm:$0xff]
    %v3819 = vld [vmem:[#allocation8 + $0xf28] sm:$0xff]
    %v3820 = vld [vmem:[#allocation8 + $0xf30] sm:$0xff]
    %v3821 = vld [vmem:[#allocation8 + $0xf38] sm:$0xff]
    %v3822 = vld [vmem:[#allocation8 + $0xf40] sm:$0xff]
    %v3823 = vld [vmem:[#allocation8 + $0xf48] sm:$0xff]
    %v3824 = vld [vmem:[#allocation8 + $0xf50] sm:$0xff]
    %v3825 = vld [vmem:[#allocation8 + $0xf58] sm:$0xff]
    %v3826 = vld [vmem:[#allocation8 + $0xf60] sm:$0xff]
    %v3827 = vld [vmem:[#allocation8 + $0xf68] sm:$0xff]
    %v3828 = vld [vmem:[#allocation8 + $0xf70] sm:$0xff]
    %v3829 = vld [vmem:[#allocation8 + $0xf78] sm:$0xff]
    %v3830 = vld [vmem:[#allocation8 + $0xf80] sm:$0xff]
    %v3831 = vld [vmem:[#allocation8 + $0xf88] sm:$0xff]
    %v3832 = vld [vmem:[#allocation8 + $0xf90] sm:$0xff]
    %v3833 = vld [vmem:[#allocation8 + $0xf98] sm:$0xff]
    %v3834 = vld [vmem:[#allocation8 + $0xfa0] sm:$0xff]
    %v3835 = vld [vmem:[#allocation8 + $0xfa8] sm:$0xff]
    %v3836 = vld [vmem:[#allocation8 + $0xfb0] sm:$0xff]
    %v3837 = vld [vmem:[#allocation8 + $0xfb8] sm:$0xff]
    %v3838 = vld [vmem:[#allocation8 + $0xfc0] sm:$0xff]
    %v3839 = vld [vmem:[#allocation8 + $0xfc8] sm:$0xff]
    %v3840 = vld [vmem:[#allocation8 + $0xfd0] sm:$0xff]
    %v3841 = vld [vmem:[#allocation8 + $0xfd8] sm:$0xff]
    %v3842 = vld [vmem:[#allocation8 + $0xfe0] sm:$0xff]
    %v3843 = vld [vmem:[#allocation8 + $0xfe8] sm:$0xff]
    %v3844 = vld [vmem:[#allocation8 + $0xff0] sm:$0xff]
    %v3845 = vld [vmem:[#allocation8 + $0xff8] sm:$0xff]
    %v3846 = vld [vmem:[#allocation8 + $0x1000] sm:$0xff]
    %v3847 = vld [vmem:[#allocation8 + $0x1008] sm:$0xff]
    %v3848 = vld [vmem:[#allocation8 + $0x1010] sm:$0xff]
    %v3849 = vld [vmem:[#allocation8 + $0x1018] sm:$0xff]
    %v3850 = vld [vmem:[#allocation8 + $0x1020] sm:$0xff]
    %v3851 = vld [vmem:[#allocation8 + $0x1028] sm:$0xff]
    %v3852 = vld [vmem:[#allocation8 + $0x1030] sm:$0xff]
    %v3853 = vld [vmem:[#allocation8 + $0x1038] sm:$0xff]
    %v3854 = vld [vmem:[#allocation8 + $0x1040] sm:$0xff]
    %v3855 = vld [vmem:[#allocation8 + $0x1048] sm:$0xff]
    %v3856 = vld [vmem:[#allocation8 + $0x1050] sm:$0xff]
    %v3857 = vld [vmem:[#allocation8 + $0x1058] sm:$0xff]
    %v3858 = vld [vmem:[#allocation8 + $0x1060] sm:$0xff]
    %v3859 = vld [vmem:[#allocation8 + $0x1068] sm:$0xff]
    %v3860 = vld [vmem:[#allocation8 + $0x1070] sm:$0xff]
    %v3861 = vld [vmem:[#allocation8 + $0x1078] sm:$0xff]
    %v3862 = vld [vmem:[#allocation8 + $0x1080] sm:$0xff]
    %v3863 = vld [vmem:[#allocation8 + $0x1088] sm:$0xff]
    %v3864 = vld [vmem:[#allocation8 + $0x1090] sm:$0xff]
    %v3865 = vld [vmem:[#allocation8 + $0x1098] sm:$0xff]
    %v3866 = vld [vmem:[#allocation8 + $0x10a0] sm:$0xff]
    %v3867 = vld [vmem:[#allocation8 + $0x10a8] sm:$0xff]
    %v3868 = vld [vmem:[#allocation8 + $0x10b0] sm:$0xff]
    %v3869 = vld [vmem:[#allocation8 + $0x10b8] sm:$0xff]
    %v3870 = vld [vmem:[#allocation8 + $0x10c0] sm:$0xff]
    %v3871 = vld [vmem:[#allocation8 + $0x10c8] sm:$0xff]
    %v3872 = vld [vmem:[#allocation8 + $0x10d0] sm:$0xff]
    %v3873 = vld [vmem:[#allocation8 + $0x10d8] sm:$0xff]
    %v3874 = vld [vmem:[#allocation8 + $0x10e0] sm:$0xff]
    %v3875 = vld [vmem:[#allocation8 + $0x10e8] sm:$0xff]
    %v3876 = vld [vmem:[#allocation8 + $0x10f0] sm:$0xff]
    %v3877 = vld [vmem:[#allocation8 + $0x10f8] sm:$0xff]
    %v3878 = vld [vmem:[#allocation8 + $0x1100] sm:$0xff]
    %v3879 = vld [vmem:[#allocation8 + $0x1108] sm:$0xff]
    %v3880 = vld [vmem:[#allocation8 + $0x1110] sm:$0xff]
    %v3881 = vld [vmem:[#allocation8 + $0x1118] sm:$0xff]
    %v3882 = vld [vmem:[#allocation8 + $0x1120] sm:$0xff]
    %v3883 = vld [vmem:[#allocation8 + $0x1128] sm:$0xff]
    %v3884 = vld [vmem:[#allocation8 + $0x1130] sm:$0xff]
    %v3885 = vld [vmem:[#allocation8 + $0x1138] sm:$0xff]
    %v3886 = vld [vmem:[#allocation8 + $0x1140] sm:$0xff]
    %v3887 = vld [vmem:[#allocation8 + $0x1148] sm:$0xff]
    %v3888 = vld [vmem:[#allocation8 + $0x1150] sm:$0xff]
    %v3889 = vld [vmem:[#allocation8 + $0x1158] sm:$0xff]
    %v3890 = vld [vmem:[#allocation8 + $0x1160] sm:$0xff]
    %v3891 = vld [vmem:[#allocation8 + $0x1168] sm:$0xff]
    %v3892 = vld [vmem:[#allocation8 + $0x1170] sm:$0xff]
    %v3893 = vld [vmem:[#allocation8 + $0x1178] sm:$0xff]
    %v3894 = vld [vmem:[#allocation8 + $0x1180] sm:$0xff]
    %v3895 = vld [vmem:[#allocation8 + $0x1188] sm:$0xff]
    %v3896 = vld [vmem:[#allocation8 + $0x1190] sm:$0xff]
    %v3897 = vld [vmem:[#allocation8 + $0x1198] sm:$0xff]
    %v3898 = vld [vmem:[#allocation8 + $0x11a0] sm:$0xff]
    %v3899 = vld [vmem:[#allocation8 + $0x11a8] sm:$0xff]
    %v3900 = vld [vmem:[#allocation8 + $0x11b0] sm:$0xff]
    %v3901 = vld [vmem:[#allocation8 + $0x11b8] sm:$0xff]
    %v3902 = vld [vmem:[#allocation8 + $0x11c0] sm:$0xff]
    %v3903 = vld [vmem:[#allocation8 + $0x11c8] sm:$0xff]
    %v3904 = vld [vmem:[#allocation8 + $0x11d0] sm:$0xff]
    %v3905 = vld [vmem:[#allocation8 + $0x11d8] sm:$0xff]
    %v3906 = vld [vmem:[#allocation8 + $0x11e0] sm:$0xff]
    %v3907 = vld [vmem:[#allocation8 + $0x11e8] sm:$0xff]
    %v3908 = vld [vmem:[#allocation8 + $0x11f0] sm:$0xff]
    %v3909 = vld [vmem:[#allocation8 + $0x11f8] sm:$0xff]
    %v3910 = vld [vmem:[#allocation8 + $0x1200] sm:$0xff]
    %v3911 = vld [vmem:[#allocation8 + $0x1208] sm:$0xff]
    %v3912 = vld [vmem:[#allocation8 + $0x1210] sm:$0xff]
    %v3913 = vld [vmem:[#allocation8 + $0x1218] sm:$0xff]
    %v3914 = vld [vmem:[#allocation8 + $0x1220] sm:$0xff]
    %v3915 = vld [vmem:[#allocation8 + $0x1228] sm:$0xff]
    %v3916 = vld [vmem:[#allocation8 + $0x1230] sm:$0xff]
    %v3917 = vld [vmem:[#allocation8 + $0x1238] sm:$0xff]
    %v3918 = vld [vmem:[#allocation8 + $0x1240] sm:$0xff]
    %v3919 = vld [vmem:[#allocation8 + $0x1248] sm:$0xff]
    %v3920 = vld [vmem:[#allocation8 + $0x1250] sm:$0xff]
    %v3921 = vld [vmem:[#allocation8 + $0x1258] sm:$0xff]
    %v3922 = vld [vmem:[#allocation8 + $0x1260] sm:$0xff]
    %v3923 = vld [vmem:[#allocation8 + $0x1268] sm:$0xff]
    %v3924 = vld [vmem:[#allocation8 + $0x1270] sm:$0xff]
    %v3925 = vld [vmem:[#allocation8 + $0x1278] sm:$0xff]
    %v3926 = vld [vmem:[#allocation8 + $0x1280] sm:$0xff]
    %v3927 = vld [vmem:[#allocation8 + $0x1288] sm:$0xff]
    %v3928 = vld [vmem:[#allocation8 + $0x1290] sm:$0xff]
    %v3929 = vld [vmem:[#allocation8 + $0x1298] sm:$0xff]
    %v3930 = vld [vmem:[#allocation8 + $0x12a0] sm:$0xff]
    %v3931 = vld [vmem:[#allocation8 + $0x12a8] sm:$0xff]
    %v3932 = vld [vmem:[#allocation8 + $0x12b0] sm:$0xff]
    %v3933 = vld [vmem:[#allocation8 + $0x12b8] sm:$0xff]
    %v3934 = vld [vmem:[#allocation8 + $0x12c0] sm:$0xff]
    %v3935 = vld [vmem:[#allocation8 + $0x12c8] sm:$0xff]
    %v3936 = vld [vmem:[#allocation8 + $0x12d0] sm:$0xff]
    %v3937 = vld [vmem:[#allocation8 + $0x12d8] sm:$0xff]
    %v3938 = vld [vmem:[#allocation8 + $0x12e0] sm:$0xff]
    %v3939 = vld [vmem:[#allocation8 + $0x12e8] sm:$0xff]
    %v3940 = vld [vmem:[#allocation8 + $0x12f0] sm:$0xff]
    %v3941 = vld [vmem:[#allocation8 + $0x12f8] sm:$0xff]
    %v3942 = vld [vmem:[#allocation8 + $0x1300] sm:$0xff]
    %v3943 = vld [vmem:[#allocation8 + $0x1308] sm:$0xff]
    %v3944 = vld [vmem:[#allocation8 + $0x1310] sm:$0xff]
    %v3945 = vld [vmem:[#allocation8 + $0x1318] sm:$0xff]
    %v3946 = vld [vmem:[#allocation8 + $0x1320] sm:$0xff]
    %v3947 = vld [vmem:[#allocation8 + $0x1328] sm:$0xff]
    %v3948 = vld [vmem:[#allocation8 + $0x1330] sm:$0xff]
    %v3949 = vld [vmem:[#allocation8 + $0x1338] sm:$0xff]
    %v3950 = vld [vmem:[#allocation8 + $0x1340] sm:$0xff]
    %v3951 = vld [vmem:[#allocation8 + $0x1348] sm:$0xff]
    %v3952 = vld [vmem:[#allocation8 + $0x1350] sm:$0xff]
    %v3953 = vld [vmem:[#allocation8 + $0x1358] sm:$0xff]
    %v3954 = vld [vmem:[#allocation8 + $0x1360] sm:$0xff]
    %v3955 = vld [vmem:[#allocation8 + $0x1368] sm:$0xff]
    %v3956 = vld [vmem:[#allocation8 + $0x1370] sm:$0xff]
    %v3957 = vld [vmem:[#allocation8 + $0x1378] sm:$0xff]
    %v3958 = vld [vmem:[#allocation8 + $0x1380] sm:$0xff]
    %v3959 = vld [vmem:[#allocation8 + $0x1388] sm:$0xff]
    %v3960 = vld [vmem:[#allocation8 + $0x1390] sm:$0xff]
    %v3961 = vld [vmem:[#allocation8 + $0x1398] sm:$0xff]
    %v3962 = vld [vmem:[#allocation8 + $0x13a0] sm:$0xff]
    %v3963 = vld [vmem:[#allocation8 + $0x13a8] sm:$0xff]
    %v3964 = vld [vmem:[#allocation8 + $0x13b0] sm:$0xff]
    %v3965 = vld [vmem:[#allocation8 + $0x13b8] sm:$0xff]
    %v3966 = vld [vmem:[#allocation8 + $0x13c0] sm:$0xff]
    %v3967 = vld [vmem:[#allocation8 + $0x13c8] sm:$0xff]
    %v3968 = vld [vmem:[#allocation8 + $0x13d0] sm:$0xff]
    %v3969 = vld [vmem:[#allocation8 + $0x13d8] sm:$0xff]
    %v3970 = vld [vmem:[#allocation8 + $0x13e0] sm:$0xff]
    %v3971 = vld [vmem:[#allocation8 + $0x13e8] sm:$0xff]
    %v3972 = vld [vmem:[#allocation8 + $0x13f0] sm:$0xff]
    %v3973 = vld [vmem:[#allocation8 + $0x13f8] sm:$0xff]
    %v3974 = vld [vmem:[#allocation8 + $0x1400] sm:$0xff]
    %v3975 = vld [vmem:[#allocation8 + $0x1408] sm:$0xff]
    %v3976 = vld [vmem:[#allocation8 + $0x1410] sm:$0xff]
    %v3977 = vld [vmem:[#allocation8 + $0x1418] sm:$0xff]
    %v3978 = vld [vmem:[#allocation8 + $0x1420] sm:$0xff]
    %v3979 = vld [vmem:[#allocation8 + $0x1428] sm:$0xff]
    %v3980 = vld [vmem:[#allocation8 + $0x1430] sm:$0xff]
    %v3981 = vld [vmem:[#allocation8 + $0x1438] sm:$0xff]
    %v3982 = vld [vmem:[#allocation8 + $0x1440] sm:$0xff]
    %v3983 = vld [vmem:[#allocation8 + $0x1448] sm:$0xff]
    %v3984 = vld [vmem:[#allocation8 + $0x1450] sm:$0xff]
    %v3985 = vld [vmem:[#allocation8 + $0x1458] sm:$0xff]
    %v3986 = vld [vmem:[#allocation8 + $0x1460] sm:$0xff]
    %v3987 = vld [vmem:[#allocation8 + $0x1468] sm:$0xff]
    %v3988 = vld [vmem:[#allocation8 + $0x1470] sm:$0xff]
    %v3989 = vld [vmem:[#allocation8 + $0x1478] sm:$0xff]
    %v3990 = vld [vmem:[#allocation8 + $0x1480] sm:$0xff]
    %v3991 = vld [vmem:[#allocation8 + $0x1488] sm:$0xff]
    %v3992 = vld [vmem:[#allocation8 + $0x1490] sm:$0xff]
    %v3993 = vld [vmem:[#allocation8 + $0x1498] sm:$0xff]
    %v3994 = vld [vmem:[#allocation8 + $0x14a0] sm:$0xff]
    %v3995 = vld [vmem:[#allocation8 + $0x14a8] sm:$0xff]
    %v3996 = vld [vmem:[#allocation8 + $0x14b0] sm:$0xff]
    %v3997 = vld [vmem:[#allocation8 + $0x14b8] sm:$0xff]
    %v3998 = vld [vmem:[#allocation8 + $0x14c0] sm:$0xff]
    %v3999 = vld [vmem:[#allocation8 + $0x14c8] sm:$0xff]
    %v4000 = vld [vmem:[#allocation8 + $0x14d0] sm:$0xff]
    %v4001 = vld [vmem:[#allocation8 + $0x14d8] sm:$0xff]
    %v4002 = vld [vmem:[#allocation8 + $0x14e0] sm:$0xff]
    %v4003 = vld [vmem:[#allocation8 + $0x14e8] sm:$0xff]
    %v4004 = vld [vmem:[#allocation8 + $0x14f0] sm:$0xff]
    %v4005 = vld [vmem:[#allocation8 + $0x14f8] sm:$0xff]
    %v4006 = vld [vmem:[#allocation8 + $0x1500] sm:$0xff]
    %v4007 = vld [vmem:[#allocation8 + $0x1508] sm:$0xff]
    %v4008 = vld [vmem:[#allocation8 + $0x1510] sm:$0xff]
    %v4009 = vld [vmem:[#allocation8 + $0x1518] sm:$0xff]
    %v4010 = vld [vmem:[#allocation8 + $0x1520] sm:$0xff]
    %v4011 = vld [vmem:[#allocation8 + $0x1528] sm:$0xff]
    %v4012 = vld [vmem:[#allocation8 + $0x1530] sm:$0xff]
    %v4013 = vld [vmem:[#allocation8 + $0x1538] sm:$0xff]
    %v4014 = vld [vmem:[#allocation8 + $0x1540] sm:$0xff]
    %v4015 = vld [vmem:[#allocation8 + $0x1548] sm:$0xff]
    %v4016 = vld [vmem:[#allocation8 + $0x1550] sm:$0xff]
    %v4017 = vld [vmem:[#allocation8 + $0x1558] sm:$0xff]
    %v4018 = vld [vmem:[#allocation8 + $0x1560] sm:$0xff]
    %v4019 = vld [vmem:[#allocation8 + $0x1568] sm:$0xff]
    %v4020 = vld [vmem:[#allocation8 + $0x1570] sm:$0xff]
    %v4021 = vld [vmem:[#allocation8 + $0x1578] sm:$0xff]
    %v4022 = vld [vmem:[#allocation8 + $0x1580] sm:$0xff]
    %v4023 = vld [vmem:[#allocation8 + $0x1588] sm:$0xff]
    %v4024 = vld [vmem:[#allocation8 + $0x1590] sm:$0xff]
    %v4025 = vld [vmem:[#allocation8 + $0x1598] sm:$0xff]
    %v4026 = vld [vmem:[#allocation8 + $0x15a0] sm:$0xff]
    %v4027 = vld [vmem:[#allocation8 + $0x15a8] sm:$0xff]
    %v4028 = vld [vmem:[#allocation8 + $0x15b0] sm:$0xff]
    %v4029 = vld [vmem:[#allocation8 + $0x15b8] sm:$0xff]
    %v4030 = vld [vmem:[#allocation8 + $0x15c0] sm:$0xff]
    %v4031 = vld [vmem:[#allocation8 + $0x15c8] sm:$0xff]
    %v4032 = vld [vmem:[#allocation8 + $0x15d0] sm:$0xff]
    %v4033 = vld [vmem:[#allocation8 + $0x15d8] sm:$0xff]
    %v4034 = vld [vmem:[#allocation8 + $0x15e0] sm:$0xff]
    %v4035 = vld [vmem:[#allocation8 + $0x15e8] sm:$0xff]
    %v4036 = vld [vmem:[#allocation8 + $0x15f0] sm:$0xff]
    %v4037 = vld [vmem:[#allocation8 + $0x15f8] sm:$0xff]
    %v4038 = vld [vmem:[#allocation8 + $0x1600] sm:$0xff]
    %v4039 = vld [vmem:[#allocation8 + $0x1608] sm:$0xff]
    %v4040 = vld [vmem:[#allocation8 + $0x1610] sm:$0xff]
    %v4041 = vld [vmem:[#allocation8 + $0x1618] sm:$0xff]
    %v4042 = vld [vmem:[#allocation8 + $0x1620] sm:$0xff]
    %v4043 = vld [vmem:[#allocation8 + $0x1628] sm:$0xff]
    %v4044 = vld [vmem:[#allocation8 + $0x1630] sm:$0xff]
    %v4045 = vld [vmem:[#allocation8 + $0x1638] sm:$0xff]
    %v4046 = vld [vmem:[#allocation8 + $0x1640] sm:$0xff]
    %v4047 = vld [vmem:[#allocation8 + $0x1648] sm:$0xff]
    %v4048 = vld [vmem:[#allocation8 + $0x1650] sm:$0xff]
    %v4049 = vld [vmem:[#allocation8 + $0x1658] sm:$0xff]
    %v4050 = vld [vmem:[#allocation8 + $0x1660] sm:$0xff]
    %v4051 = vld [vmem:[#allocation8 + $0x1668] sm:$0xff]
    %v4052 = vld [vmem:[#allocation8 + $0x1670] sm:$0xff]
    %v4053 = vld [vmem:[#allocation8 + $0x1678] sm:$0xff]
    %v4054 = vld [vmem:[#allocation8 + $0x1680] sm:$0xff]
    %v4055 = vld [vmem:[#allocation8 + $0x1688] sm:$0xff]
    %v4056 = vld [vmem:[#allocation8 + $0x1690] sm:$0xff]
    %v4057 = vld [vmem:[#allocation8 + $0x1698] sm:$0xff]
    %v4058 = vld [vmem:[#allocation8 + $0x16a0] sm:$0xff]
    %v4059 = vld [vmem:[#allocation8 + $0x16a8] sm:$0xff]
    %v4060 = vld [vmem:[#allocation8 + $0x16b0] sm:$0xff]
    %v4061 = vld [vmem:[#allocation8 + $0x16b8] sm:$0xff]
    %v4062 = vld [vmem:[#allocation8 + $0x16c0] sm:$0xff]
    %v4063 = vld [vmem:[#allocation8 + $0x16c8] sm:$0xff]
    %v4064 = vld [vmem:[#allocation8 + $0x16d0] sm:$0xff]
    %v4065 = vld [vmem:[#allocation8 + $0x16d8] sm:$0xff]
    %v4066 = vld [vmem:[#allocation8 + $0x16e0] sm:$0xff]
    %v4067 = vld [vmem:[#allocation8 + $0x16e8] sm:$0xff]
    %v4068 = vld [vmem:[#allocation8 + $0x16f0] sm:$0xff]
    %v4069 = vld [vmem:[#allocation8 + $0x16f8] sm:$0xff]
    %v4070 = vld [vmem:[#allocation8 + $0x1700] sm:$0xff]
    %v4071 = vld [vmem:[#allocation8 + $0x1708] sm:$0xff]
    %v4072 = vld [vmem:[#allocation8 + $0x1710] sm:$0xff]
    %v4073 = vld [vmem:[#allocation8 + $0x1718] sm:$0xff]
    %v4074 = vld [vmem:[#allocation8 + $0x1720] sm:$0xff]
    %v4075 = vld [vmem:[#allocation8 + $0x1728] sm:$0xff]
    %v4076 = vld [vmem:[#allocation8 + $0x1730] sm:$0xff]
    %v4077 = vld [vmem:[#allocation8 + $0x1738] sm:$0xff]
    %v4078 = vld [vmem:[#allocation8 + $0x1740] sm:$0xff]
    %v4079 = vld [vmem:[#allocation8 + $0x1748] sm:$0xff]
    %v4080 = vld [vmem:[#allocation8 + $0x1750] sm:$0xff]
    %v4081 = vld [vmem:[#allocation8 + $0x1758] sm:$0xff]
    %v4082 = vld [vmem:[#allocation8 + $0x1760] sm:$0xff]
    %v4083 = vld [vmem:[#allocation8 + $0x1768] sm:$0xff]
    %v4084 = vld [vmem:[#allocation8 + $0x1770] sm:$0xff]
    %v4085 = vld [vmem:[#allocation8 + $0x1778] sm:$0xff]
    %v4086 = vld [vmem:[#allocation8 + $0x1780] sm:$0xff]
    %v4087 = vld [vmem:[#allocation8 + $0x1788] sm:$0xff]
    %v4088 = vld [vmem:[#allocation8 + $0x1790] sm:$0xff]
    %v4089 = vld [vmem:[#allocation8 + $0x1798] sm:$0xff]
    %v4090 = vld [vmem:[#allocation8 + $0x17a0] sm:$0xff]
    %v4091 = vld [vmem:[#allocation8 + $0x17a8] sm:$0xff]
    %v4092 = vld [vmem:[#allocation8 + $0x17b0] sm:$0xff]
    %v4093 = vld [vmem:[#allocation8 + $0x17b8] sm:$0xff]
    %v4094 = vld [vmem:[#allocation8 + $0x17c0] sm:$0xff]
    %v4095 = vld [vmem:[#allocation8 + $0x17c8] sm:$0xff]
    %v4096 = vld [vmem:[#allocation8 + $0x17d0] sm:$0xff]
    %v4097 = vld [vmem:[#allocation8 + $0x17d8] sm:$0xff]
    %v4098 = vld [vmem:[#allocation8 + $0x17e0] sm:$0xff]
    %v4099 = vld [vmem:[#allocation8 + $0x17e8] sm:$0xff]
    %v4100 = vld [vmem:[#allocation8 + $0x17f0] sm:$0xff]
    %v4101 = vld [vmem:[#allocation8 + $0x17f8] sm:$0xff]
    %v4102 = vld [vmem:[#allocation8 + $0x1800] sm:$0xff]
    %v4103 = vld [vmem:[#allocation8 + $0x1808] sm:$0xff]
    %v4104 = vld [vmem:[#allocation8 + $0x1810] sm:$0xff]
    %v4105 = vld [vmem:[#allocation8 + $0x1818] sm:$0xff]
    %v4106 = vld [vmem:[#allocation8 + $0x1820] sm:$0xff]
    %v4107 = vld [vmem:[#allocation8 + $0x1828] sm:$0xff]
    %v4108 = vld [vmem:[#allocation8 + $0x1830] sm:$0xff]
    %v4109 = vld [vmem:[#allocation8 + $0x1838] sm:$0xff]
    %v4110 = vld [vmem:[#allocation8 + $0x1840] sm:$0xff]
    %v4111 = vld [vmem:[#allocation8 + $0x1848] sm:$0xff]
    %v4112 = vld [vmem:[#allocation8 + $0x1850] sm:$0xff]
    %v4113 = vld [vmem:[#allocation8 + $0x1858] sm:$0xff]
    %v4114 = vld [vmem:[#allocation8 + $0x1860] sm:$0xff]
    %v4115 = vld [vmem:[#allocation8 + $0x1868] sm:$0xff]
    %v4116 = vld [vmem:[#allocation8 + $0x1870] sm:$0xff]
    %v4117 = vld [vmem:[#allocation8 + $0x1878] sm:$0xff]
    %v4118 = vld [vmem:[#allocation8 + $0x1880] sm:$0xff]
    %v4119 = vld [vmem:[#allocation8 + $0x1888] sm:$0xff]
    %v4120 = vld [vmem:[#allocation8 + $0x1890] sm:$0xff]
    %v4121 = vld [vmem:[#allocation8 + $0x1898] sm:$0xff]
    %v4122 = vld [vmem:[#allocation8 + $0x18a0] sm:$0xff]
    %v4123 = vld [vmem:[#allocation8 + $0x18a8] sm:$0xff]
    %v4124 = vld [vmem:[#allocation8 + $0x18b0] sm:$0xff]
    %v4125 = vld [vmem:[#allocation8 + $0x18b8] sm:$0xff]
    %v4126 = vld [vmem:[#allocation8 + $0x18c0] sm:$0xff]
    %v4127 = vld [vmem:[#allocation8 + $0x18c8] sm:$0xff]
    %v4128 = vld [vmem:[#allocation8 + $0x18d0] sm:$0xff]
    %v4129 = vld [vmem:[#allocation8 + $0x18d8] sm:$0xff]
    %v4130 = vld [vmem:[#allocation8 + $0x18e0] sm:$0xff]
    %v4131 = vld [vmem:[#allocation8 + $0x18e8] sm:$0xff]
    %v4132 = vld [vmem:[#allocation8 + $0x18f0] sm:$0xff]
    %v4133 = vld [vmem:[#allocation8 + $0x18f8] sm:$0xff]
    %v4134 = vld [vmem:[#allocation8 + $0x1900] sm:$0xff]
    %v4135 = vld [vmem:[#allocation8 + $0x1908] sm:$0xff]
    %v4136 = vld [vmem:[#allocation8 + $0x1910] sm:$0xff]
    %v4137 = vld [vmem:[#allocation8 + $0x1918] sm:$0xff]
    %v4138 = vld [vmem:[#allocation8 + $0x1920] sm:$0xff]
    %v4139 = vld [vmem:[#allocation8 + $0x1928] sm:$0xff]
    %v4140 = vld [vmem:[#allocation8 + $0x1930] sm:$0xff]
    %v4141 = vld [vmem:[#allocation8 + $0x1938] sm:$0xff]
    %v4142 = vld [vmem:[#allocation8 + $0x1940] sm:$0xff]
    %v4143 = vld [vmem:[#allocation8 + $0x1948] sm:$0xff]
    %v4144 = vld [vmem:[#allocation8 + $0x1950] sm:$0xff]
    %v4145 = vld [vmem:[#allocation8 + $0x1958] sm:$0xff]
    %v4146 = vld [vmem:[#allocation8 + $0x1960] sm:$0xff]
    %v4147 = vld [vmem:[#allocation8 + $0x1968] sm:$0xff]
    %v4148 = vld [vmem:[#allocation8 + $0x1970] sm:$0xff]
    %v4149 = vld [vmem:[#allocation8 + $0x1978] sm:$0xff]
    %v4150 = vld [vmem:[#allocation8 + $0x1980] sm:$0xff]
    %v4151 = vld [vmem:[#allocation8 + $0x1988] sm:$0xff]
    %v4152 = vld [vmem:[#allocation8 + $0x1990] sm:$0xff]
    %v4153 = vld [vmem:[#allocation8 + $0x1998] sm:$0xff]
    %v4154 = vld [vmem:[#allocation8 + $0x19a0] sm:$0xff]
    %v4155 = vld [vmem:[#allocation8 + $0x19a8] sm:$0xff]
    %v4156 = vld [vmem:[#allocation8 + $0x19b0] sm:$0xff]
    %v4157 = vld [vmem:[#allocation8 + $0x19b8] sm:$0xff]
    %v4158 = vld [vmem:[#allocation8 + $0x19c0] sm:$0xff]
    %v4159 = vld [vmem:[#allocation8 + $0x19c8] sm:$0xff]
    %v4160 = vld [vmem:[#allocation8 + $0x19d0] sm:$0xff]
    %v4161 = vld [vmem:[#allocation8 + $0x19d8] sm:$0xff]
    %v4162 = vld [vmem:[#allocation8 + $0x19e0] sm:$0xff]
    %v4163 = vld [vmem:[#allocation8 + $0x19e8] sm:$0xff]
    %v4164 = vld [vmem:[#allocation8 + $0x19f0] sm:$0xff]
    %v4165 = vld [vmem:[#allocation8 + $0x19f8] sm:$0xff]
    %v4166 = vld [vmem:[#allocation8 + $0x1a00] sm:$0xff]
    %v4167 = vld [vmem:[#allocation8 + $0x1a08] sm:$0xff]
    %v4168 = vld [vmem:[#allocation8 + $0x1a10] sm:$0xff]
    %v4169 = vld [vmem:[#allocation8 + $0x1a18] sm:$0xff]
    %v4170 = vld [vmem:[#allocation8 + $0x1a20] sm:$0xff]
    %v4171 = vld [vmem:[#allocation8 + $0x1a28] sm:$0xff]
    %v4172 = vld [vmem:[#allocation8 + $0x1a30] sm:$0xff]
    %v4173 = vld [vmem:[#allocation8 + $0x1a38] sm:$0xff]
    %v4174 = vld [vmem:[#allocation8 + $0x1a40] sm:$0xff]
    %v4175 = vld [vmem:[#allocation8 + $0x1a48] sm:$0xff]
    %v4176 = vld [vmem:[#allocation8 + $0x1a50] sm:$0xff]
    %v4177 = vld [vmem:[#allocation8 + $0x1a58] sm:$0xff]
    %v4178 = vld [vmem:[#allocation8 + $0x1a60] sm:$0xff]
    %v4179 = vld [vmem:[#allocation8 + $0x1a68] sm:$0xff]
    %v4180 = vld [vmem:[#allocation8 + $0x1a70] sm:$0xff]
    %v4181 = vld [vmem:[#allocation8 + $0x1a78] sm:$0xff]
    %v4182 = vld [vmem:[#allocation8 + $0x1a80] sm:$0xff]
    %v4183 = vld [vmem:[#allocation8 + $0x1a88] sm:$0xff]
    %v4184 = vld [vmem:[#allocation8 + $0x1a90] sm:$0xff]
    %v4185 = vld [vmem:[#allocation8 + $0x1a98] sm:$0xff]
    %v4186 = vld [vmem:[#allocation8 + $0x1aa0] sm:$0xff]
    %v4187 = vld [vmem:[#allocation8 + $0x1aa8] sm:$0xff]
    %v4188 = vld [vmem:[#allocation8 + $0x1ab0] sm:$0xff]
    %v4189 = vld [vmem:[#allocation8 + $0x1ab8] sm:$0xff]
    %v4190 = vld [vmem:[#allocation8 + $0x1ac0] sm:$0xff]
    %v4191 = vld [vmem:[#allocation8 + $0x1ac8] sm:$0xff]
    %v4192 = vld [vmem:[#allocation8 + $0x1ad0] sm:$0xff]
    %v4193 = vld [vmem:[#allocation8 + $0x1ad8] sm:$0xff]
    %v4194 = vld [vmem:[#allocation8 + $0x1ae0] sm:$0xff]
    %v4195 = vld [vmem:[#allocation8 + $0x1ae8] sm:$0xff]
    %v4196 = vld [vmem:[#allocation8 + $0x1af0] sm:$0xff]
    %v4197 = vld [vmem:[#allocation8 + $0x1af8] sm:$0xff]
    %v4198 = vld [vmem:[#allocation8 + $0x1b00] sm:$0xff]
    %v4199 = vld [vmem:[#allocation8 + $0x1b08] sm:$0xff]
    %v4200 = vld [vmem:[#allocation8 + $0x1b10] sm:$0xff]
    %v4201 = vld [vmem:[#allocation8 + $0x1b18] sm:$0xff]
    %v4202 = vld [vmem:[#allocation8 + $0x1b20] sm:$0xff]
    %v4203 = vld [vmem:[#allocation8 + $0x1b28] sm:$0xff]
    %v4204 = vld [vmem:[#allocation8 + $0x1b30] sm:$0xff]
    %v4205 = vld [vmem:[#allocation8 + $0x1b38] sm:$0xff]
    %v4206 = vld [vmem:[#allocation8 + $0x1b40] sm:$0xff]
    %v4207 = vld [vmem:[#allocation8 + $0x1b48] sm:$0xff]
    %v4208 = vld [vmem:[#allocation8 + $0x1b50] sm:$0xff]
    %v4209 = vld [vmem:[#allocation8 + $0x1b58] sm:$0xff]
    %v4210 = vld [vmem:[#allocation8 + $0x1b60] sm:$0xff]
    %v4211 = vld [vmem:[#allocation8 + $0x1b68] sm:$0xff]
    %v4212 = vld [vmem:[#allocation8 + $0x1b70] sm:$0xff]
    %v4213 = vld [vmem:[#allocation8 + $0x1b78] sm:$0xff]
    %v4214 = vld [vmem:[#allocation8 + $0x1b80] sm:$0xff]
    %v4215 = vld [vmem:[#allocation8 + $0x1b88] sm:$0xff]
    %v4216 = vld [vmem:[#allocation8 + $0x1b90] sm:$0xff]
    %v4217 = vld [vmem:[#allocation8 + $0x1b98] sm:$0xff]
    %v4218 = vld [vmem:[#allocation8 + $0x1ba0] sm:$0xff]
    %v4219 = vld [vmem:[#allocation8 + $0x1ba8] sm:$0xff]
    %v4220 = vld [vmem:[#allocation8 + $0x1bb0] sm:$0xff]
    %v4221 = vld [vmem:[#allocation8 + $0x1bb8] sm:$0xff]
    %v4222 = vld [vmem:[#allocation8 + $0x1bc0] sm:$0xff]
    %v4223 = vld [vmem:[#allocation8 + $0x1bc8] sm:$0xff]
    %v4224 = vld [vmem:[#allocation8 + $0x1bd0] sm:$0xff]
    %v4225 = vld [vmem:[#allocation8 + $0x1bd8] sm:$0xff]
    %v4226 = vld [vmem:[#allocation8 + $0x1be0] sm:$0xff]
    %v4227 = vld [vmem:[#allocation8 + $0x1be8] sm:$0xff]
    %v4228 = vld [vmem:[#allocation8 + $0x1bf0] sm:$0xff]
    %v4229 = vld [vmem:[#allocation8 + $0x1bf8] sm:$0xff]
    %v4230 = vld [vmem:[#allocation8 + $0x1c00] sm:$0xff]
    %v4231 = vld [vmem:[#allocation8 + $0x1c08] sm:$0xff]
    %v4232 = vld [vmem:[#allocation8 + $0x1c10] sm:$0xff]
    %v4233 = vld [vmem:[#allocation8 + $0x1c18] sm:$0xff]
    %v4234 = vld [vmem:[#allocation8 + $0x1c20] sm:$0xff]
    %v4235 = vld [vmem:[#allocation8 + $0x1c28] sm:$0xff]
    %v4236 = vld [vmem:[#allocation8 + $0x1c30] sm:$0xff]
    %v4237 = vld [vmem:[#allocation8 + $0x1c38] sm:$0xff]
    %v4238 = vld [vmem:[#allocation8 + $0x1c40] sm:$0xff]
    %v4239 = vld [vmem:[#allocation8 + $0x1c48] sm:$0xff]
    %v4240 = vld [vmem:[#allocation8 + $0x1c50] sm:$0xff]
    %v4241 = vld [vmem:[#allocation8 + $0x1c58] sm:$0xff]
    %v4242 = vld [vmem:[#allocation8 + $0x1c60] sm:$0xff]
    %v4243 = vld [vmem:[#allocation8 + $0x1c68] sm:$0xff]
    %v4244 = vld [vmem:[#allocation8 + $0x1c70] sm:$0xff]
    %v4245 = vld [vmem:[#allocation8 + $0x1c78] sm:$0xff]
    %v4246 = vld [vmem:[#allocation8 + $0x1c80] sm:$0xff]
    %v4247 = vld [vmem:[#allocation8 + $0x1c88] sm:$0xff]
    %v4248 = vld [vmem:[#allocation8 + $0x1c90] sm:$0xff]
    %v4249 = vld [vmem:[#allocation8 + $0x1c98] sm:$0xff]
    %v4250 = vld [vmem:[#allocation8 + $0x1ca0] sm:$0xff]
    %v4251 = vld [vmem:[#allocation8 + $0x1ca8] sm:$0xff]
    %v4252 = vld [vmem:[#allocation8 + $0x1cb0] sm:$0xff]
    %v4253 = vld [vmem:[#allocation8 + $0x1cb8] sm:$0xff]
    %v4254 = vld [vmem:[#allocation8 + $0x1cc0] sm:$0xff]
    %v4255 = vld [vmem:[#allocation8 + $0x1cc8] sm:$0xff]
    %v4256 = vld [vmem:[#allocation8 + $0x1cd0] sm:$0xff]
    %v4257 = vld [vmem:[#allocation8 + $0x1cd8] sm:$0xff]
    %v4258 = vld [vmem:[#allocation8 + $0x1ce0] sm:$0xff]
    %v4259 = vld [vmem:[#allocation8 + $0x1ce8] sm:$0xff]
    %v4260 = vld [vmem:[#allocation8 + $0x1cf0] sm:$0xff]
    %v4261 = vld [vmem:[#allocation8 + $0x1cf8] sm:$0xff]
    %v4262 = vld [vmem:[#allocation8 + $0x1d00] sm:$0xff]
    %v4263 = vld [vmem:[#allocation8 + $0x1d08] sm:$0xff]
    %v4264 = vld [vmem:[#allocation8 + $0x1d10] sm:$0xff]
    %v4265 = vld [vmem:[#allocation8 + $0x1d18] sm:$0xff]
    %v4266 = vld [vmem:[#allocation8 + $0x1d20] sm:$0xff]
    %v4267 = vld [vmem:[#allocation8 + $0x1d28] sm:$0xff]
    %v4268 = vld [vmem:[#allocation8 + $0x1d30] sm:$0xff]
    %v4269 = vld [vmem:[#allocation8 + $0x1d38] sm:$0xff]
    %v4270 = vld [vmem:[#allocation8 + $0x1d40] sm:$0xff]
    %v4271 = vld [vmem:[#allocation8 + $0x1d48] sm:$0xff]
    %v4272 = vld [vmem:[#allocation8 + $0x1d50] sm:$0xff]
    %v4273 = vld [vmem:[#allocation8 + $0x1d58] sm:$0xff]
    %v4274 = vld [vmem:[#allocation8 + $0x1d60] sm:$0xff]
    %v4275 = vld [vmem:[#allocation8 + $0x1d68] sm:$0xff]
    %v4276 = vld [vmem:[#allocation8 + $0x1d70] sm:$0xff]
    %v4277 = vld [vmem:[#allocation8 + $0x1d78] sm:$0xff]
    %v4278 = vld [vmem:[#allocation8 + $0x1d80] sm:$0xff]
    %v4279 = vld [vmem:[#allocation8 + $0x1d88] sm:$0xff]
    %v4280 = vld [vmem:[#allocation8 + $0x1d90] sm:$0xff]
    %v4281 = vld [vmem:[#allocation8 + $0x1d98] sm:$0xff]
    %v4282 = vld [vmem:[#allocation8 + $0x1da0] sm:$0xff]
    %v4283 = vld [vmem:[#allocation8 + $0x1da8] sm:$0xff]
    %v4284 = vld [vmem:[#allocation8 + $0x1db0] sm:$0xff]
    %v4285 = vld [vmem:[#allocation8 + $0x1db8] sm:$0xff]
    %v4286 = vld [vmem:[#allocation8 + $0x1dc0] sm:$0xff]
    %v4287 = vld [vmem:[#allocation8 + $0x1dc8] sm:$0xff]
    %v4288 = vld [vmem:[#allocation8 + $0x1dd0] sm:$0xff]
    %v4289 = vld [vmem:[#allocation8 + $0x1dd8] sm:$0xff]
    %v4290 = vld [vmem:[#allocation8 + $0x1de0] sm:$0xff]
    %v4291 = vld [vmem:[#allocation8 + $0x1de8] sm:$0xff]
    %v4292 = vld [vmem:[#allocation8 + $0x1df0] sm:$0xff]
    %v4293 = vld [vmem:[#allocation8 + $0x1df8] sm:$0xff]
    %v4294 = vld [vmem:[#allocation8 + $0x1e00] sm:$0xff]
    %v4295 = vld [vmem:[#allocation8 + $0x1e08] sm:$0xff]
    %v4296 = vld [vmem:[#allocation8 + $0x1e10] sm:$0xff]
    %v4297 = vld [vmem:[#allocation8 + $0x1e18] sm:$0xff]
    %v4298 = vld [vmem:[#allocation8 + $0x1e20] sm:$0xff]
    %v4299 = vld [vmem:[#allocation8 + $0x1e28] sm:$0xff]
    %v4300 = vld [vmem:[#allocation8 + $0x1e30] sm:$0xff]
    %v4301 = vld [vmem:[#allocation8 + $0x1e38] sm:$0xff]
    %v4302 = vld [vmem:[#allocation8 + $0x1e40] sm:$0xff]
    %v4303 = vld [vmem:[#allocation8 + $0x1e48] sm:$0xff]
    %v4304 = vld [vmem:[#allocation8 + $0x1e50] sm:$0xff]
    %v4305 = vld [vmem:[#allocation8 + $0x1e58] sm:$0xff]
    %v4306 = vld [vmem:[#allocation8 + $0x1e60] sm:$0xff]
    %v4307 = vld [vmem:[#allocation8 + $0x1e68] sm:$0xff]
    %v4308 = vld [vmem:[#allocation8 + $0x1e70] sm:$0xff]
    %v4309 = vld [vmem:[#allocation8 + $0x1e78] sm:$0xff]
    %v4310 = vld [vmem:[#allocation8 + $0x1e80] sm:$0xff]
    %v4311 = vld [vmem:[#allocation8 + $0x1e88] sm:$0xff]
    %v4312 = vld [vmem:[#allocation8 + $0x1e90] sm:$0xff]
    %v4313 = vld [vmem:[#allocation8 + $0x1e98] sm:$0xff]
    %v4314 = vld [vmem:[#allocation8 + $0x1ea0] sm:$0xff]
    %v4315 = vld [vmem:[#allocation8 + $0x1ea8] sm:$0xff]
    %v4316 = vld [vmem:[#allocation8 + $0x1eb0] sm:$0xff]
    %v4317 = vld [vmem:[#allocation8 + $0x1eb8] sm:$0xff]
    %v4318 = vld [vmem:[#allocation8 + $0x1ec0] sm:$0xff]
    %v4319 = vld [vmem:[#allocation8 + $0x1ec8] sm:$0xff]
    %v4320 = vld [vmem:[#allocation8 + $0x1ed0] sm:$0xff]
    %v4321 = vld [vmem:[#allocation8 + $0x1ed8] sm:$0xff]
    %v4322 = vld [vmem:[#allocation8 + $0x1ee0] sm:$0xff]
    %v4323 = vld [vmem:[#allocation8 + $0x1ee8] sm:$0xff]
    %v4324 = vld [vmem:[#allocation8 + $0x1ef0] sm:$0xff]
    %v4325 = vld [vmem:[#allocation8 + $0x1ef8] sm:$0xff]
    %v4326 = vld [vmem:[#allocation8 + $0x1f00] sm:$0xff]
    %v4327 = vld [vmem:[#allocation8 + $0x1f08] sm:$0xff]
    %v4328 = vld [vmem:[#allocation8 + $0x1f10] sm:$0xff]
    %v4329 = vld [vmem:[#allocation8 + $0x1f18] sm:$0xff]
    %v4330 = vld [vmem:[#allocation8 + $0x1f20] sm:$0xff]
    %v4331 = vld [vmem:[#allocation8 + $0x1f28] sm:$0xff]
    %v4332 = vld [vmem:[#allocation8 + $0x1f30] sm:$0xff]
    %v4333 = vld [vmem:[#allocation8 + $0x1f38] sm:$0xff]
    %v4334 = vld [vmem:[#allocation8 + $0x1f40] sm:$0xff]
    %v4335 = vld [vmem:[#allocation8 + $0x1f48] sm:$0xff]
    %v4336 = vld [vmem:[#allocation8 + $0x1f50] sm:$0xff]
    %v4337 = vld [vmem:[#allocation8 + $0x1f58] sm:$0xff]
    %v4338 = vld [vmem:[#allocation8 + $0x1f60] sm:$0xff]
    %v4339 = vld [vmem:[#allocation8 + $0x1f68] sm:$0xff]
    %v4340 = vld [vmem:[#allocation8 + $0x1f70] sm:$0xff]
    %v4341 = vld [vmem:[#allocation8 + $0x1f78] sm:$0xff]
    %v4342 = vld [vmem:[#allocation8 + $0x1f80] sm:$0xff]
    %v4343 = vld [vmem:[#allocation8 + $0x1f88] sm:$0xff]
    %v4344 = vld [vmem:[#allocation8 + $0x1f90] sm:$0xff]
    %v4345 = vld [vmem:[#allocation8 + $0x1f98] sm:$0xff]
    %v4346 = vld [vmem:[#allocation8 + $0x1fa0] sm:$0xff]
    %v4347 = vld [vmem:[#allocation8 + $0x1fa8] sm:$0xff]
    %v4348 = vld [vmem:[#allocation8 + $0x1fb0] sm:$0xff]
    %v4349 = vld [vmem:[#allocation8 + $0x1fb8] sm:$0xff]
    %v4350 = vld [vmem:[#allocation8 + $0x1fc0] sm:$0xff]
    %v4351 = vld [vmem:[#allocation8 + $0x1fc8] sm:$0xff]
    %v4352 = vld [vmem:[#allocation8 + $0x1fd0] sm:$0xff]
    %v4353 = vld [vmem:[#allocation8 + $0x1fd8] sm:$0xff]
    %v4354 = vld [vmem:[#allocation8 + $0x1fe0] sm:$0xff]
    %v4355 = vld [vmem:[#allocation8 + $0x1fe8] sm:$0xff]
    %v4356 = vld [vmem:[#allocation8 + $0x1ff0] sm:$0xff]
    %v4357 = vld [vmem:[#allocation8 + $0x1ff8] sm:$0xff]
    %v4358 = vld [vmem:[#allocation9] sm:$0xff]
    %v4359 = vld [vmem:[#allocation9 + $0x8] sm:$0xff]
    %v4362 = vperm.slane %v4358, 0
    %v4363 = vperm.slane %v4358, 1
    %v4364 = vperm.slane %v4358, 2
    %v4365 = vperm.slane %v4358, 3
    %v4366 = vperm.slane %v4358, 4
    %v4367 = vperm.slane %v4358, 5
    %v4368 = vperm.slane %v4358, 6
    %v4369 = vperm.slane %v4358, 7
    %v4370 = vperm.slane %v4359, 0
    %v4371 = vperm.slane %v4359, 1
    %v4372 = vperm.slane %v4359, 2
    %v4373 = vperm.slane %v4359, 3
    %v4374 = vperm.slane %v4359, 4
    %v4375 = vperm.slane %v4359, 5
    %v4376 = vperm.slane %v4359, 6
    %v4377 = vperm.slane %v4359, 7
    %v4402 = vunpack.c.l.b16 %v3326
    %v4403 = vunpack.c.h.b16 %v3326
    %v4404 = vunpack.c.l.b16 %v3327
    %v4405 = vunpack.c.h.b16 %v3327
    %v4406 = vunpack.c.l.b16 %v3328
    %v4407 = vunpack.c.h.b16 %v3328
    %v4408 = vunpack.c.l.b16 %v3329
    %v4409 = vunpack.c.h.b16 %v3329
    %v4410 = vunpack.c.l.b16 %v3330
    %v4411 = vunpack.c.h.b16 %v3330
    %v4412 = vunpack.c.l.b16 %v3331
    %v4413 = vunpack.c.h.b16 %v3331
    %v4414 = vunpack.c.l.b16 %v3332
    %v4415 = vunpack.c.h.b16 %v3332
    %v4416 = vunpack.c.l.b16 %v3333
    %v4417 = vunpack.c.h.b16 %v3333
    %v4418 = vpack.c.b16 %v4410, %v4402
    %v4419 = vpack.c.b16 %v4411, %v4403
    %v4420 = vpack.c.b16 %v4412, %v4404
    %v4421 = vpack.c.b16 %v4413, %v4405
    %v4422 = vpack.c.b16 %v4414, %v4406
    %v4423 = vpack.c.b16 %v4415, %v4407
    %v4424 = vpack.c.b16 %v4416, %v4408
    %v4425 = vpack.c.b16 %v4417, %v4409
    %v5458 = vunpack.c.l.b16 %v3334
    %v5459 = vunpack.c.h.b16 %v3334
    %v5460 = vunpack.c.l.b16 %v3335
    %v5461 = vunpack.c.h.b16 %v3335
    %v5462 = vunpack.c.l.b16 %v3336
    %v5463 = vunpack.c.h.b16 %v3336
    %v5464 = vunpack.c.l.b16 %v3337
    %v5465 = vunpack.c.h.b16 %v3337
    %v5466 = vunpack.c.l.b16 %v3338
    %v5467 = vunpack.c.h.b16 %v3338
    %v5468 = vunpack.c.l.b16 %v3339
    %v5469 = vunpack.c.h.b16 %v3339
    %v5470 = vunpack.c.l.b16 %v3340
    %v5471 = vunpack.c.h.b16 %v3340
    %v5472 = vunpack.c.l.b16 %v3341
    %v5473 = vunpack.c.h.b16 %v3341
    %v5474 = vunpack.c.l.b16 %v3342
    %v5475 = vunpack.c.h.b16 %v3342
    %v5476 = vunpack.c.l.b16 %v3343
    %v5477 = vunpack.c.h.b16 %v3343
    %v5478 = vunpack.c.l.b16 %v3344
    %v5479 = vunpack.c.h.b16 %v3344
    %v5480 = vunpack.c.l.b16 %v3345
    %v5481 = vunpack.c.h.b16 %v3345
    %v5482 = vunpack.c.l.b16 %v3346
    %v5483 = vunpack.c.h.b16 %v3346
    %v5484 = vunpack.c.l.b16 %v3347
    %v5485 = vunpack.c.h.b16 %v3347
    %v5486 = vunpack.c.l.b16 %v3348
    %v5487 = vunpack.c.h.b16 %v3348
    %v5488 = vunpack.c.l.b16 %v3349
    %v5489 = vunpack.c.h.b16 %v3349
    %v5490 = vunpack.c.l.b16 %v3350
    %v5491 = vunpack.c.h.b16 %v3350
    %v5492 = vunpack.c.l.b16 %v3351
    %v5493 = vunpack.c.h.b16 %v3351
    %v5494 = vunpack.c.l.b16 %v3352
    %v5495 = vunpack.c.h.b16 %v3352
    %v5496 = vunpack.c.l.b16 %v3353
    %v5497 = vunpack.c.h.b16 %v3353
    %v5498 = vunpack.c.l.b16 %v3354
    %v5499 = vunpack.c.h.b16 %v3354
    %v5500 = vunpack.c.l.b16 %v3355
    %v5501 = vunpack.c.h.b16 %v3355
    %v5502 = vunpack.c.l.b16 %v3356
    %v5503 = vunpack.c.h.b16 %v3356
    %v5504 = vunpack.c.l.b16 %v3357
    %v5505 = vunpack.c.h.b16 %v3357
    %v5506 = vunpack.c.l.b16 %v3358
    %v5507 = vunpack.c.h.b16 %v3358
    %v5508 = vunpack.c.l.b16 %v3359
    %v5509 = vunpack.c.h.b16 %v3359
    %v5510 = vunpack.c.l.b16 %v3360
    %v5511 = vunpack.c.h.b16 %v3360
    %v5512 = vunpack.c.l.b16 %v3361
    %v5513 = vunpack.c.h.b16 %v3361
    %v5514 = vunpack.c.l.b16 %v3362
    %v5515 = vunpack.c.h.b16 %v3362
    %v5516 = vunpack.c.l.b16 %v3363
    %v5517 = vunpack.c.h.b16 %v3363
    %v5518 = vunpack.c.l.b16 %v3364
    %v5519 = vunpack.c.h.b16 %v3364
    %v5520 = vunpack.c.l.b16 %v3365
    %v5521 = vunpack.c.h.b16 %v3365
    %v5522 = vunpack.c.l.b16 %v3366
    %v5523 = vunpack.c.h.b16 %v3366
    %v5524 = vunpack.c.l.b16 %v3367
    %v5525 = vunpack.c.h.b16 %v3367
    %v5526 = vunpack.c.l.b16 %v3368
    %v5527 = vunpack.c.h.b16 %v3368
    %v5528 = vunpack.c.l.b16 %v3369
    %v5529 = vunpack.c.h.b16 %v3369
    %v5530 = vunpack.c.l.b16 %v3370
    %v5531 = vunpack.c.h.b16 %v3370
    %v5532 = vunpack.c.l.b16 %v3371
    %v5533 = vunpack.c.h.b16 %v3371
    %v5534 = vunpack.c.l.b16 %v3372
    %v5535 = vunpack.c.h.b16 %v3372
    %v5536 = vunpack.c.l.b16 %v3373
    %v5537 = vunpack.c.h.b16 %v3373
    %v5538 = vunpack.c.l.b16 %v3374
    %v5539 = vunpack.c.h.b16 %v3374
    %v5540 = vunpack.c.l.b16 %v3375
    %v5541 = vunpack.c.h.b16 %v3375
    %v5542 = vunpack.c.l.b16 %v3376
    %v5543 = vunpack.c.h.b16 %v3376
    %v5544 = vunpack.c.l.b16 %v3377
    %v5545 = vunpack.c.h.b16 %v3377
    %v5546 = vunpack.c.l.b16 %v3378
    %v5547 = vunpack.c.h.b16 %v3378
    %v5548 = vunpack.c.l.b16 %v3379
    %v5549 = vunpack.c.h.b16 %v3379
    %v5550 = vunpack.c.l.b16 %v3380
    %v5551 = vunpack.c.h.b16 %v3380
    %v5552 = vunpack.c.l.b16 %v3381
    %v5553 = vunpack.c.h.b16 %v3381
    %v5554 = vunpack.c.l.b16 %v3382
    %v5555 = vunpack.c.h.b16 %v3382
    %v5556 = vunpack.c.l.b16 %v3383
    %v5557 = vunpack.c.h.b16 %v3383
    %v5558 = vunpack.c.l.b16 %v3384
    %v5559 = vunpack.c.h.b16 %v3384
    %v5560 = vunpack.c.l.b16 %v3385
    %v5561 = vunpack.c.h.b16 %v3385
    %v5562 = vunpack.c.l.b16 %v3386
    %v5563 = vunpack.c.h.b16 %v3386
    %v5564 = vunpack.c.l.b16 %v3387
    %v5565 = vunpack.c.h.b16 %v3387
    %v5566 = vunpack.c.l.b16 %v3388
    %v5567 = vunpack.c.h.b16 %v3388
    %v5568 = vunpack.c.l.b16 %v3389
    %v5569 = vunpack.c.h.b16 %v3389
    %v5570 = vunpack.c.l.b16 %v3390
    %v5571 = vunpack.c.h.b16 %v3390
    %v5572 = vunpack.c.l.b16 %v3391
    %v5573 = vunpack.c.h.b16 %v3391
    %v5574 = vunpack.c.l.b16 %v3392
    %v5575 = vunpack.c.h.b16 %v3392
    %v5576 = vunpack.c.l.b16 %v3393
    %v5577 = vunpack.c.h.b16 %v3393
    %v5578 = vunpack.c.l.b16 %v3394
    %v5579 = vunpack.c.h.b16 %v3394
    %v5580 = vunpack.c.l.b16 %v3395
    %v5581 = vunpack.c.h.b16 %v3395
    %v5582 = vunpack.c.l.b16 %v3396
    %v5583 = vunpack.c.h.b16 %v3396
    %v5584 = vunpack.c.l.b16 %v3397
    %v5585 = vunpack.c.h.b16 %v3397
    %v5586 = vunpack.c.l.b16 %v3398
    %v5587 = vunpack.c.h.b16 %v3398
    %v5588 = vunpack.c.l.b16 %v3399
    %v5589 = vunpack.c.h.b16 %v3399
    %v5590 = vunpack.c.l.b16 %v3400
    %v5591 = vunpack.c.h.b16 %v3400
    %v5592 = vunpack.c.l.b16 %v3401
    %v5593 = vunpack.c.h.b16 %v3401
    %v5594 = vunpack.c.l.b16 %v3402
    %v5595 = vunpack.c.h.b16 %v3402
    %v5596 = vunpack.c.l.b16 %v3403
    %v5597 = vunpack.c.h.b16 %v3403
    %v5598 = vunpack.c.l.b16 %v3404
    %v5599 = vunpack.c.h.b16 %v3404
    %v5600 = vunpack.c.l.b16 %v3405
    %v5601 = vunpack.c.h.b16 %v3405
    %v5602 = vunpack.c.l.b16 %v3406
    %v5603 = vunpack.c.h.b16 %v3406
    %v5604 = vunpack.c.l.b16 %v3407
    %v5605 = vunpack.c.h.b16 %v3407
    %v5606 = vunpack.c.l.b16 %v3408
    %v5607 = vunpack.c.h.b16 %v3408
    %v5608 = vunpack.c.l.b16 %v3409
    %v5609 = vunpack.c.h.b16 %v3409
    %v5610 = vunpack.c.l.b16 %v3410
    %v5611 = vunpack.c.h.b16 %v3410
    %v5612 = vunpack.c.l.b16 %v3411
    %v5613 = vunpack.c.h.b16 %v3411
    %v5614 = vunpack.c.l.b16 %v3412
    %v5615 = vunpack.c.h.b16 %v3412
    %v5616 = vunpack.c.l.b16 %v3413
    %v5617 = vunpack.c.h.b16 %v3413
    %v5618 = vunpack.c.l.b16 %v3414
    %v5619 = vunpack.c.h.b16 %v3414
    %v5620 = vunpack.c.l.b16 %v3415
    %v5621 = vunpack.c.h.b16 %v3415
    %v5622 = vunpack.c.l.b16 %v3416
    %v5623 = vunpack.c.h.b16 %v3416
    %v5624 = vunpack.c.l.b16 %v3417
    %v5625 = vunpack.c.h.b16 %v3417
    %v5626 = vunpack.c.l.b16 %v3418
    %v5627 = vunpack.c.h.b16 %v3418
    %v5628 = vunpack.c.l.b16 %v3419
    %v5629 = vunpack.c.h.b16 %v3419
    %v5630 = vunpack.c.l.b16 %v3420
    %v5631 = vunpack.c.h.b16 %v3420
    %v5632 = vunpack.c.l.b16 %v3421
    %v5633 = vunpack.c.h.b16 %v3421
    %v5634 = vunpack.c.l.b16 %v3422
    %v5635 = vunpack.c.h.b16 %v3422
    %v5636 = vunpack.c.l.b16 %v3423
    %v5637 = vunpack.c.h.b16 %v3423
    %v5638 = vunpack.c.l.b16 %v3424
    %v5639 = vunpack.c.h.b16 %v3424
    %v5640 = vunpack.c.l.b16 %v3425
    %v5641 = vunpack.c.h.b16 %v3425
    %v5642 = vunpack.c.l.b16 %v3426
    %v5643 = vunpack.c.h.b16 %v3426
    %v5644 = vunpack.c.l.b16 %v3427
    %v5645 = vunpack.c.h.b16 %v3427
    %v5646 = vunpack.c.l.b16 %v3428
    %v5647 = vunpack.c.h.b16 %v3428
    %v5648 = vunpack.c.l.b16 %v3429
    %v5649 = vunpack.c.h.b16 %v3429
    %v5650 = vunpack.c.l.b16 %v3430
    %v5651 = vunpack.c.h.b16 %v3430
    %v5652 = vunpack.c.l.b16 %v3431
    %v5653 = vunpack.c.h.b16 %v3431
    %v5654 = vunpack.c.l.b16 %v3432
    %v5655 = vunpack.c.h.b16 %v3432
    %v5656 = vunpack.c.l.b16 %v3433
    %v5657 = vunpack.c.h.b16 %v3433
    %v5658 = vunpack.c.l.b16 %v3434
    %v5659 = vunpack.c.h.b16 %v3434
    %v5660 = vunpack.c.l.b16 %v3435
    %v5661 = vunpack.c.h.b16 %v3435
    %v5662 = vunpack.c.l.b16 %v3436
    %v5663 = vunpack.c.h.b16 %v3436
    %v5664 = vunpack.c.l.b16 %v3437
    %v5665 = vunpack.c.h.b16 %v3437
    %v5666 = vunpack.c.l.b16 %v3438
    %v5667 = vunpack.c.h.b16 %v3438
    %v5668 = vunpack.c.l.b16 %v3439
    %v5669 = vunpack.c.h.b16 %v3439
    %v5670 = vunpack.c.l.b16 %v3440
    %v5671 = vunpack.c.h.b16 %v3440
    %v5672 = vunpack.c.l.b16 %v3441
    %v5673 = vunpack.c.h.b16 %v3441
    %v5674 = vunpack.c.l.b16 %v3442
    %v5675 = vunpack.c.h.b16 %v3442
    %v5676 = vunpack.c.l.b16 %v3443
    %v5677 = vunpack.c.h.b16 %v3443
    %v5678 = vunpack.c.l.b16 %v3444
    %v5679 = vunpack.c.h.b16 %v3444
    %v5680 = vunpack.c.l.b16 %v3445
    %v5681 = vunpack.c.h.b16 %v3445
    %v5682 = vunpack.c.l.b16 %v3446
    %v5683 = vunpack.c.h.b16 %v3446
    %v5684 = vunpack.c.l.b16 %v3447
    %v5685 = vunpack.c.h.b16 %v3447
    %v5686 = vunpack.c.l.b16 %v3448
    %v5687 = vunpack.c.h.b16 %v3448
    %v5688 = vunpack.c.l.b16 %v3449
    %v5689 = vunpack.c.h.b16 %v3449
    %v5690 = vunpack.c.l.b16 %v3450
    %v5691 = vunpack.c.h.b16 %v3450
    %v5692 = vunpack.c.l.b16 %v3451
    %v5693 = vunpack.c.h.b16 %v3451
    %v5694 = vunpack.c.l.b16 %v3452
    %v5695 = vunpack.c.h.b16 %v3452
    %v5696 = vunpack.c.l.b16 %v3453
    %v5697 = vunpack.c.h.b16 %v3453
    %v5698 = vunpack.c.l.b16 %v3454
    %v5699 = vunpack.c.h.b16 %v3454
    %v5700 = vunpack.c.l.b16 %v3455
    %v5701 = vunpack.c.h.b16 %v3455
    %v5702 = vunpack.c.l.b16 %v3456
    %v5703 = vunpack.c.h.b16 %v3456
    %v5704 = vunpack.c.l.b16 %v3457
    %v5705 = vunpack.c.h.b16 %v3457
    %v5706 = vunpack.c.l.b16 %v3458
    %v5707 = vunpack.c.h.b16 %v3458
    %v5708 = vunpack.c.l.b16 %v3459
    %v5709 = vunpack.c.h.b16 %v3459
    %v5710 = vunpack.c.l.b16 %v3460
    %v5711 = vunpack.c.h.b16 %v3460
    %v5712 = vunpack.c.l.b16 %v3461
    %v5713 = vunpack.c.h.b16 %v3461
    %v5714 = vunpack.c.l.b16 %v3462
    %v5715 = vunpack.c.h.b16 %v3462
    %v5716 = vunpack.c.l.b16 %v3463
    %v5717 = vunpack.c.h.b16 %v3463
    %v5718 = vunpack.c.l.b16 %v3464
    %v5719 = vunpack.c.h.b16 %v3464
    %v5720 = vunpack.c.l.b16 %v3465
    %v5721 = vunpack.c.h.b16 %v3465
    %v5722 = vunpack.c.l.b16 %v3466
    %v5723 = vunpack.c.h.b16 %v3466
    %v5724 = vunpack.c.l.b16 %v3467
    %v5725 = vunpack.c.h.b16 %v3467
    %v5726 = vunpack.c.l.b16 %v3468
    %v5727 = vunpack.c.h.b16 %v3468
    %v5728 = vunpack.c.l.b16 %v3469
    %v5729 = vunpack.c.h.b16 %v3469
    %v5730 = vunpack.c.l.b16 %v3470
    %v5731 = vunpack.c.h.b16 %v3470
    %v5732 = vunpack.c.l.b16 %v3471
    %v5733 = vunpack.c.h.b16 %v3471
    %v5734 = vunpack.c.l.b16 %v3472
    %v5735 = vunpack.c.h.b16 %v3472
    %v5736 = vunpack.c.l.b16 %v3473
    %v5737 = vunpack.c.h.b16 %v3473
    %v5738 = vunpack.c.l.b16 %v3474
    %v5739 = vunpack.c.h.b16 %v3474
    %v5740 = vunpack.c.l.b16 %v3475
    %v5741 = vunpack.c.h.b16 %v3475
    %v5742 = vunpack.c.l.b16 %v3476
    %v5743 = vunpack.c.h.b16 %v3476
    %v5744 = vunpack.c.l.b16 %v3477
    %v5745 = vunpack.c.h.b16 %v3477
    %v5746 = vunpack.c.l.b16 %v3478
    %v5747 = vunpack.c.h.b16 %v3478
    %v5748 = vunpack.c.l.b16 %v3479
    %v5749 = vunpack.c.h.b16 %v3479
    %v5750 = vunpack.c.l.b16 %v3480
    %v5751 = vunpack.c.h.b16 %v3480
    %v5752 = vunpack.c.l.b16 %v3481
    %v5753 = vunpack.c.h.b16 %v3481
    %v5754 = vunpack.c.l.b16 %v3482
    %v5755 = vunpack.c.h.b16 %v3482
    %v5756 = vunpack.c.l.b16 %v3483
    %v5757 = vunpack.c.h.b16 %v3483
    %v5758 = vunpack.c.l.b16 %v3484
    %v5759 = vunpack.c.h.b16 %v3484
    %v5760 = vunpack.c.l.b16 %v3485
    %v5761 = vunpack.c.h.b16 %v3485
    %v5762 = vunpack.c.l.b16 %v3486
    %v5763 = vunpack.c.h.b16 %v3486
    %v5764 = vunpack.c.l.b16 %v3487
    %v5765 = vunpack.c.h.b16 %v3487
    %v5766 = vunpack.c.l.b16 %v3488
    %v5767 = vunpack.c.h.b16 %v3488
    %v5768 = vunpack.c.l.b16 %v3489
    %v5769 = vunpack.c.h.b16 %v3489
    %v5770 = vunpack.c.l.b16 %v3490
    %v5771 = vunpack.c.h.b16 %v3490
    %v5772 = vunpack.c.l.b16 %v3491
    %v5773 = vunpack.c.h.b16 %v3491
    %v5774 = vunpack.c.l.b16 %v3492
    %v5775 = vunpack.c.h.b16 %v3492
    %v5776 = vunpack.c.l.b16 %v3493
    %v5777 = vunpack.c.h.b16 %v3493
    %v5778 = vunpack.c.l.b16 %v3494
    %v5779 = vunpack.c.h.b16 %v3494
    %v5780 = vunpack.c.l.b16 %v3495
    %v5781 = vunpack.c.h.b16 %v3495
    %v5782 = vunpack.c.l.b16 %v3496
    %v5783 = vunpack.c.h.b16 %v3496
    %v5784 = vunpack.c.l.b16 %v3497
    %v5785 = vunpack.c.h.b16 %v3497
    %v5786 = vunpack.c.l.b16 %v3498
    %v5787 = vunpack.c.h.b16 %v3498
    %v5788 = vunpack.c.l.b16 %v3499
    %v5789 = vunpack.c.h.b16 %v3499
    %v5790 = vunpack.c.l.b16 %v3500
    %v5791 = vunpack.c.h.b16 %v3500
    %v5792 = vunpack.c.l.b16 %v3501
    %v5793 = vunpack.c.h.b16 %v3501
    %v5794 = vunpack.c.l.b16 %v3502
    %v5795 = vunpack.c.h.b16 %v3502
    %v5796 = vunpack.c.l.b16 %v3503
    %v5797 = vunpack.c.h.b16 %v3503
    %v5798 = vunpack.c.l.b16 %v3504
    %v5799 = vunpack.c.h.b16 %v3504
    %v5800 = vunpack.c.l.b16 %v3505
    %v5801 = vunpack.c.h.b16 %v3505
    %v5802 = vunpack.c.l.b16 %v3506
    %v5803 = vunpack.c.h.b16 %v3506
    %v5804 = vunpack.c.l.b16 %v3507
    %v5805 = vunpack.c.h.b16 %v3507
    %v5806 = vunpack.c.l.b16 %v3508
    %v5807 = vunpack.c.h.b16 %v3508
    %v5808 = vunpack.c.l.b16 %v3509
    %v5809 = vunpack.c.h.b16 %v3509
    %v5810 = vunpack.c.l.b16 %v3510
    %v5811 = vunpack.c.h.b16 %v3510
    %v5812 = vunpack.c.l.b16 %v3511
    %v5813 = vunpack.c.h.b16 %v3511
    %v5814 = vunpack.c.l.b16 %v3512
    %v5815 = vunpack.c.h.b16 %v3512
    %v5816 = vunpack.c.l.b16 %v3513
    %v5817 = vunpack.c.h.b16 %v3513
    %v5818 = vunpack.c.l.b16 %v3514
    %v5819 = vunpack.c.h.b16 %v3514
    %v5820 = vunpack.c.l.b16 %v3515
    %v5821 = vunpack.c.h.b16 %v3515
    %v5822 = vunpack.c.l.b16 %v3516
    %v5823 = vunpack.c.h.b16 %v3516
    %v5824 = vunpack.c.l.b16 %v3517
    %v5825 = vunpack.c.h.b16 %v3517
    %v5826 = vunpack.c.l.b16 %v3518
    %v5827 = vunpack.c.h.b16 %v3518
    %v5828 = vunpack.c.l.b16 %v3519
    %v5829 = vunpack.c.h.b16 %v3519
    %v5830 = vunpack.c.l.b16 %v3520
    %v5831 = vunpack.c.h.b16 %v3520
    %v5832 = vunpack.c.l.b16 %v3521
    %v5833 = vunpack.c.h.b16 %v3521
    %v5834 = vunpack.c.l.b16 %v3522
    %v5835 = vunpack.c.h.b16 %v3522
    %v5836 = vunpack.c.l.b16 %v3523
    %v5837 = vunpack.c.h.b16 %v3523
    %v5838 = vunpack.c.l.b16 %v3524
    %v5839 = vunpack.c.h.b16 %v3524
    %v5840 = vunpack.c.l.b16 %v3525
    %v5841 = vunpack.c.h.b16 %v3525
    %v5842 = vunpack.c.l.b16 %v3526
    %v5843 = vunpack.c.h.b16 %v3526
    %v5844 = vunpack.c.l.b16 %v3527
    %v5845 = vunpack.c.h.b16 %v3527
    %v5846 = vunpack.c.l.b16 %v3528
    %v5847 = vunpack.c.h.b16 %v3528
    %v5848 = vunpack.c.l.b16 %v3529
    %v5849 = vunpack.c.h.b16 %v3529
    %v5850 = vunpack.c.l.b16 %v3530
    %v5851 = vunpack.c.h.b16 %v3530
    %v5852 = vunpack.c.l.b16 %v3531
    %v5853 = vunpack.c.h.b16 %v3531
    %v5854 = vunpack.c.l.b16 %v3532
    %v5855 = vunpack.c.h.b16 %v3532
    %v5856 = vunpack.c.l.b16 %v3533
    %v5857 = vunpack.c.h.b16 %v3533
    %v5858 = vunpack.c.l.b16 %v3534
    %v5859 = vunpack.c.h.b16 %v3534
    %v5860 = vunpack.c.l.b16 %v3535
    %v5861 = vunpack.c.h.b16 %v3535
    %v5862 = vunpack.c.l.b16 %v3536
    %v5863 = vunpack.c.h.b16 %v3536
    %v5864 = vunpack.c.l.b16 %v3537
    %v5865 = vunpack.c.h.b16 %v3537
    %v5866 = vunpack.c.l.b16 %v3538
    %v5867 = vunpack.c.h.b16 %v3538
    %v5868 = vunpack.c.l.b16 %v3539
    %v5869 = vunpack.c.h.b16 %v3539
    %v5870 = vunpack.c.l.b16 %v3540
    %v5871 = vunpack.c.h.b16 %v3540
    %v5872 = vunpack.c.l.b16 %v3541
    %v5873 = vunpack.c.h.b16 %v3541
    %v5874 = vunpack.c.l.b16 %v3542
    %v5875 = vunpack.c.h.b16 %v3542
    %v5876 = vunpack.c.l.b16 %v3543
    %v5877 = vunpack.c.h.b16 %v3543
    %v5878 = vunpack.c.l.b16 %v3544
    %v5879 = vunpack.c.h.b16 %v3544
    %v5880 = vunpack.c.l.b16 %v3545
    %v5881 = vunpack.c.h.b16 %v3545
    %v5882 = vunpack.c.l.b16 %v3546
    %v5883 = vunpack.c.h.b16 %v3546
    %v5884 = vunpack.c.l.b16 %v3547
    %v5885 = vunpack.c.h.b16 %v3547
    %v5886 = vunpack.c.l.b16 %v3548
    %v5887 = vunpack.c.h.b16 %v3548
    %v5888 = vunpack.c.l.b16 %v3549
    %v5889 = vunpack.c.h.b16 %v3549
    %v5890 = vunpack.c.l.b16 %v3550
    %v5891 = vunpack.c.h.b16 %v3550
    %v5892 = vunpack.c.l.b16 %v3551
    %v5893 = vunpack.c.h.b16 %v3551
    %v5894 = vunpack.c.l.b16 %v3552
    %v5895 = vunpack.c.h.b16 %v3552
    %v5896 = vunpack.c.l.b16 %v3553
    %v5897 = vunpack.c.h.b16 %v3553
    %v5898 = vunpack.c.l.b16 %v3554
    %v5899 = vunpack.c.h.b16 %v3554
    %v5900 = vunpack.c.l.b16 %v3555
    %v5901 = vunpack.c.h.b16 %v3555
    %v5902 = vunpack.c.l.b16 %v3556
    %v5903 = vunpack.c.h.b16 %v3556
    %v5904 = vunpack.c.l.b16 %v3557
    %v5905 = vunpack.c.h.b16 %v3557
    %v5906 = vunpack.c.l.b16 %v3558
    %v5907 = vunpack.c.h.b16 %v3558
    %v5908 = vunpack.c.l.b16 %v3559
    %v5909 = vunpack.c.h.b16 %v3559
    %v5910 = vunpack.c.l.b16 %v3560
    %v5911 = vunpack.c.h.b16 %v3560
    %v5912 = vunpack.c.l.b16 %v3561
    %v5913 = vunpack.c.h.b16 %v3561
    %v5914 = vunpack.c.l.b16 %v3562
    %v5915 = vunpack.c.h.b16 %v3562
    %v5916 = vunpack.c.l.b16 %v3563
    %v5917 = vunpack.c.h.b16 %v3563
    %v5918 = vunpack.c.l.b16 %v3564
    %v5919 = vunpack.c.h.b16 %v3564
    %v5920 = vunpack.c.l.b16 %v3565
    %v5921 = vunpack.c.h.b16 %v3565
    %v5922 = vunpack.c.l.b16 %v3566
    %v5923 = vunpack.c.h.b16 %v3566
    %v5924 = vunpack.c.l.b16 %v3567
    %v5925 = vunpack.c.h.b16 %v3567
    %v5926 = vunpack.c.l.b16 %v3568
    %v5927 = vunpack.c.h.b16 %v3568
    %v5928 = vunpack.c.l.b16 %v3569
    %v5929 = vunpack.c.h.b16 %v3569
    %v5930 = vunpack.c.l.b16 %v3570
    %v5931 = vunpack.c.h.b16 %v3570
    %v5932 = vunpack.c.l.b16 %v3571
    %v5933 = vunpack.c.h.b16 %v3571
    %v5934 = vunpack.c.l.b16 %v3572
    %v5935 = vunpack.c.h.b16 %v3572
    %v5936 = vunpack.c.l.b16 %v3573
    %v5937 = vunpack.c.h.b16 %v3573
    %v5938 = vunpack.c.l.b16 %v3574
    %v5939 = vunpack.c.h.b16 %v3574
    %v5940 = vunpack.c.l.b16 %v3575
    %v5941 = vunpack.c.h.b16 %v3575
    %v5942 = vunpack.c.l.b16 %v3576
    %v5943 = vunpack.c.h.b16 %v3576
    %v5944 = vunpack.c.l.b16 %v3577
    %v5945 = vunpack.c.h.b16 %v3577
    %v5946 = vunpack.c.l.b16 %v3578
    %v5947 = vunpack.c.h.b16 %v3578
    %v5948 = vunpack.c.l.b16 %v3579
    %v5949 = vunpack.c.h.b16 %v3579
    %v5950 = vunpack.c.l.b16 %v3580
    %v5951 = vunpack.c.h.b16 %v3580
    %v5952 = vunpack.c.l.b16 %v3581
    %v5953 = vunpack.c.h.b16 %v3581
    %v5954 = vunpack.c.l.b16 %v3582
    %v5955 = vunpack.c.h.b16 %v3582
    %v5956 = vunpack.c.l.b16 %v3583
    %v5957 = vunpack.c.h.b16 %v3583
    %v5958 = vunpack.c.l.b16 %v3584
    %v5959 = vunpack.c.h.b16 %v3584
    %v5960 = vunpack.c.l.b16 %v3585
    %v5961 = vunpack.c.h.b16 %v3585
    %v5962 = vunpack.c.l.b16 %v3586
    %v5963 = vunpack.c.h.b16 %v3586
    %v5964 = vunpack.c.l.b16 %v3587
    %v5965 = vunpack.c.h.b16 %v3587
    %v5966 = vunpack.c.l.b16 %v3588
    %v5967 = vunpack.c.h.b16 %v3588
    %v5968 = vunpack.c.l.b16 %v3589
    %v5969 = vunpack.c.h.b16 %v3589
    %v5970 = vunpack.c.l.b16 %v3590
    %v5971 = vunpack.c.h.b16 %v3590
    %v5972 = vunpack.c.l.b16 %v3591
    %v5973 = vunpack.c.h.b16 %v3591
    %v5974 = vunpack.c.l.b16 %v3592
    %v5975 = vunpack.c.h.b16 %v3592
    %v5976 = vunpack.c.l.b16 %v3593
    %v5977 = vunpack.c.h.b16 %v3593
    %v5978 = vunpack.c.l.b16 %v3594
    %v5979 = vunpack.c.h.b16 %v3594
    %v5980 = vunpack.c.l.b16 %v3595
    %v5981 = vunpack.c.h.b16 %v3595
    %v5982 = vunpack.c.l.b16 %v3596
    %v5983 = vunpack.c.h.b16 %v3596
    %v5984 = vunpack.c.l.b16 %v3597
    %v5985 = vunpack.c.h.b16 %v3597
    %v5986 = vunpack.c.l.b16 %v3598
    %v5987 = vunpack.c.h.b16 %v3598
    %v5988 = vunpack.c.l.b16 %v3599
    %v5989 = vunpack.c.h.b16 %v3599
    %v5990 = vunpack.c.l.b16 %v3600
    %v5991 = vunpack.c.h.b16 %v3600
    %v5992 = vunpack.c.l.b16 %v3601
    %v5993 = vunpack.c.h.b16 %v3601
    %v5994 = vunpack.c.l.b16 %v3602
    %v5995 = vunpack.c.h.b16 %v3602
    %v5996 = vunpack.c.l.b16 %v3603
    %v5997 = vunpack.c.h.b16 %v3603
    %v5998 = vunpack.c.l.b16 %v3604
    %v5999 = vunpack.c.h.b16 %v3604
    %v6000 = vunpack.c.l.b16 %v3605
    %v6001 = vunpack.c.h.b16 %v3605
    %v6002 = vunpack.c.l.b16 %v3606
    %v6003 = vunpack.c.h.b16 %v3606
    %v6004 = vunpack.c.l.b16 %v3607
    %v6005 = vunpack.c.h.b16 %v3607
    %v6006 = vunpack.c.l.b16 %v3608
    %v6007 = vunpack.c.h.b16 %v3608
    %v6008 = vunpack.c.l.b16 %v3609
    %v6009 = vunpack.c.h.b16 %v3609
    %v6010 = vunpack.c.l.b16 %v3610
    %v6011 = vunpack.c.h.b16 %v3610
    %v6012 = vunpack.c.l.b16 %v3611
    %v6013 = vunpack.c.h.b16 %v3611
    %v6014 = vunpack.c.l.b16 %v3612
    %v6015 = vunpack.c.h.b16 %v3612
    %v6016 = vunpack.c.l.b16 %v3613
    %v6017 = vunpack.c.h.b16 %v3613
    %v6018 = vunpack.c.l.b16 %v3614
    %v6019 = vunpack.c.h.b16 %v3614
    %v6020 = vunpack.c.l.b16 %v3615
    %v6021 = vunpack.c.h.b16 %v3615
    %v6022 = vunpack.c.l.b16 %v3616
    %v6023 = vunpack.c.h.b16 %v3616
    %v6024 = vunpack.c.l.b16 %v3617
    %v6025 = vunpack.c.h.b16 %v3617
    %v6026 = vunpack.c.l.b16 %v3618
    %v6027 = vunpack.c.h.b16 %v3618
    %v6028 = vunpack.c.l.b16 %v3619
    %v6029 = vunpack.c.h.b16 %v3619
    %v6030 = vunpack.c.l.b16 %v3620
    %v6031 = vunpack.c.h.b16 %v3620
    %v6032 = vunpack.c.l.b16 %v3621
    %v6033 = vunpack.c.h.b16 %v3621
    %v6034 = vunpack.c.l.b16 %v3622
    %v6035 = vunpack.c.h.b16 %v3622
    %v6036 = vunpack.c.l.b16 %v3623
    %v6037 = vunpack.c.h.b16 %v3623
    %v6038 = vunpack.c.l.b16 %v3624
    %v6039 = vunpack.c.h.b16 %v3624
    %v6040 = vunpack.c.l.b16 %v3625
    %v6041 = vunpack.c.h.b16 %v3625
    %v6042 = vunpack.c.l.b16 %v3626
    %v6043 = vunpack.c.h.b16 %v3626
    %v6044 = vunpack.c.l.b16 %v3627
    %v6045 = vunpack.c.h.b16 %v3627
    %v6046 = vunpack.c.l.b16 %v3628
    %v6047 = vunpack.c.h.b16 %v3628
    %v6048 = vunpack.c.l.b16 %v3629
    %v6049 = vunpack.c.h.b16 %v3629
    %v6050 = vunpack.c.l.b16 %v3630
    %v6051 = vunpack.c.h.b16 %v3630
    %v6052 = vunpack.c.l.b16 %v3631
    %v6053 = vunpack.c.h.b16 %v3631
    %v6054 = vunpack.c.l.b16 %v3632
    %v6055 = vunpack.c.h.b16 %v3632
    %v6056 = vunpack.c.l.b16 %v3633
    %v6057 = vunpack.c.h.b16 %v3633
    %v6058 = vunpack.c.l.b16 %v3634
    %v6059 = vunpack.c.h.b16 %v3634
    %v6060 = vunpack.c.l.b16 %v3635
    %v6061 = vunpack.c.h.b16 %v3635
    %v6062 = vunpack.c.l.b16 %v3636
    %v6063 = vunpack.c.h.b16 %v3636
    %v6064 = vunpack.c.l.b16 %v3637
    %v6065 = vunpack.c.h.b16 %v3637
    %v6066 = vunpack.c.l.b16 %v3638
    %v6067 = vunpack.c.h.b16 %v3638
    %v6068 = vunpack.c.l.b16 %v3639
    %v6069 = vunpack.c.h.b16 %v3639
    %v6070 = vunpack.c.l.b16 %v3640
    %v6071 = vunpack.c.h.b16 %v3640
    %v6072 = vunpack.c.l.b16 %v3641
    %v6073 = vunpack.c.h.b16 %v3641
    %v6074 = vunpack.c.l.b16 %v3642
    %v6075 = vunpack.c.h.b16 %v3642
    %v6076 = vunpack.c.l.b16 %v3643
    %v6077 = vunpack.c.h.b16 %v3643
    %v6078 = vunpack.c.l.b16 %v3644
    %v6079 = vunpack.c.h.b16 %v3644
    %v6080 = vunpack.c.l.b16 %v3645
    %v6081 = vunpack.c.h.b16 %v3645
    %v6082 = vunpack.c.l.b16 %v3646
    %v6083 = vunpack.c.h.b16 %v3646
    %v6084 = vunpack.c.l.b16 %v3647
    %v6085 = vunpack.c.h.b16 %v3647
    %v6086 = vunpack.c.l.b16 %v3648
    %v6087 = vunpack.c.h.b16 %v3648
    %v6088 = vunpack.c.l.b16 %v3649
    %v6089 = vunpack.c.h.b16 %v3649
    %v6090 = vunpack.c.l.b16 %v3650
    %v6091 = vunpack.c.h.b16 %v3650
    %v6092 = vunpack.c.l.b16 %v3651
    %v6093 = vunpack.c.h.b16 %v3651
    %v6094 = vunpack.c.l.b16 %v3652
    %v6095 = vunpack.c.h.b16 %v3652
    %v6096 = vunpack.c.l.b16 %v3653
    %v6097 = vunpack.c.h.b16 %v3653
    %v6098 = vunpack.c.l.b16 %v3654
    %v6099 = vunpack.c.h.b16 %v3654
    %v6100 = vunpack.c.l.b16 %v3655
    %v6101 = vunpack.c.h.b16 %v3655
    %v6102 = vunpack.c.l.b16 %v3656
    %v6103 = vunpack.c.h.b16 %v3656
    %v6104 = vunpack.c.l.b16 %v3657
    %v6105 = vunpack.c.h.b16 %v3657
    %v6106 = vunpack.c.l.b16 %v3658
    %v6107 = vunpack.c.h.b16 %v3658
    %v6108 = vunpack.c.l.b16 %v3659
    %v6109 = vunpack.c.h.b16 %v3659
    %v6110 = vunpack.c.l.b16 %v3660
    %v6111 = vunpack.c.h.b16 %v3660
    %v6112 = vunpack.c.l.b16 %v3661
    %v6113 = vunpack.c.h.b16 %v3661
    %v6114 = vunpack.c.l.b16 %v3662
    %v6115 = vunpack.c.h.b16 %v3662
    %v6116 = vunpack.c.l.b16 %v3663
    %v6117 = vunpack.c.h.b16 %v3663
    %v6118 = vunpack.c.l.b16 %v3664
    %v6119 = vunpack.c.h.b16 %v3664
    %v6120 = vunpack.c.l.b16 %v3665
    %v6121 = vunpack.c.h.b16 %v3665
    %v6122 = vunpack.c.l.b16 %v3666
    %v6123 = vunpack.c.h.b16 %v3666
    %v6124 = vunpack.c.l.b16 %v3667
    %v6125 = vunpack.c.h.b16 %v3667
    %v6126 = vunpack.c.l.b16 %v3668
    %v6127 = vunpack.c.h.b16 %v3668
    %v6128 = vunpack.c.l.b16 %v3669
    %v6129 = vunpack.c.h.b16 %v3669
    %v6130 = vunpack.c.l.b16 %v3670
    %v6131 = vunpack.c.h.b16 %v3670
    %v6132 = vunpack.c.l.b16 %v3671
    %v6133 = vunpack.c.h.b16 %v3671
    %v6134 = vunpack.c.l.b16 %v3672
    %v6135 = vunpack.c.h.b16 %v3672
    %v6136 = vunpack.c.l.b16 %v3673
    %v6137 = vunpack.c.h.b16 %v3673
    %v6138 = vunpack.c.l.b16 %v3674
    %v6139 = vunpack.c.h.b16 %v3674
    %v6140 = vunpack.c.l.b16 %v3675
    %v6141 = vunpack.c.h.b16 %v3675
    %v6142 = vunpack.c.l.b16 %v3676
    %v6143 = vunpack.c.h.b16 %v3676
    %v6144 = vunpack.c.l.b16 %v3677
    %v6145 = vunpack.c.h.b16 %v3677
    %v6146 = vunpack.c.l.b16 %v3678
    %v6147 = vunpack.c.h.b16 %v3678
    %v6148 = vunpack.c.l.b16 %v3679
    %v6149 = vunpack.c.h.b16 %v3679
    %v6150 = vunpack.c.l.b16 %v3680
    %v6151 = vunpack.c.h.b16 %v3680
    %v6152 = vunpack.c.l.b16 %v3681
    %v6153 = vunpack.c.h.b16 %v3681
    %v6154 = vunpack.c.l.b16 %v3682
    %v6155 = vunpack.c.h.b16 %v3682
    %v6156 = vunpack.c.l.b16 %v3683
    %v6157 = vunpack.c.h.b16 %v3683
    %v6158 = vunpack.c.l.b16 %v3684
    %v6159 = vunpack.c.h.b16 %v3684
    %v6160 = vunpack.c.l.b16 %v3685
    %v6161 = vunpack.c.h.b16 %v3685
    %v6162 = vunpack.c.l.b16 %v3686
    %v6163 = vunpack.c.h.b16 %v3686
    %v6164 = vunpack.c.l.b16 %v3687
    %v6165 = vunpack.c.h.b16 %v3687
    %v6166 = vunpack.c.l.b16 %v3688
    %v6167 = vunpack.c.h.b16 %v3688
    %v6168 = vunpack.c.l.b16 %v3689
    %v6169 = vunpack.c.h.b16 %v3689
    %v6170 = vunpack.c.l.b16 %v3690
    %v6171 = vunpack.c.h.b16 %v3690
    %v6172 = vunpack.c.l.b16 %v3691
    %v6173 = vunpack.c.h.b16 %v3691
    %v6174 = vunpack.c.l.b16 %v3692
    %v6175 = vunpack.c.h.b16 %v3692
    %v6176 = vunpack.c.l.b16 %v3693
    %v6177 = vunpack.c.h.b16 %v3693
    %v6178 = vunpack.c.l.b16 %v3694
    %v6179 = vunpack.c.h.b16 %v3694
    %v6180 = vunpack.c.l.b16 %v3695
    %v6181 = vunpack.c.h.b16 %v3695
    %v6182 = vunpack.c.l.b16 %v3696
    %v6183 = vunpack.c.h.b16 %v3696
    %v6184 = vunpack.c.l.b16 %v3697
    %v6185 = vunpack.c.h.b16 %v3697
    %v6186 = vunpack.c.l.b16 %v3698
    %v6187 = vunpack.c.h.b16 %v3698
    %v6188 = vunpack.c.l.b16 %v3699
    %v6189 = vunpack.c.h.b16 %v3699
    %v6190 = vunpack.c.l.b16 %v3700
    %v6191 = vunpack.c.h.b16 %v3700
    %v6192 = vunpack.c.l.b16 %v3701
    %v6193 = vunpack.c.h.b16 %v3701
    %v6194 = vunpack.c.l.b16 %v3702
    %v6195 = vunpack.c.h.b16 %v3702
    %v6196 = vunpack.c.l.b16 %v3703
    %v6197 = vunpack.c.h.b16 %v3703
    %v6198 = vunpack.c.l.b16 %v3704
    %v6199 = vunpack.c.h.b16 %v3704
    %v6200 = vunpack.c.l.b16 %v3705
    %v6201 = vunpack.c.h.b16 %v3705
    %v6202 = vunpack.c.l.b16 %v3706
    %v6203 = vunpack.c.h.b16 %v3706
    %v6204 = vunpack.c.l.b16 %v3707
    %v6205 = vunpack.c.h.b16 %v3707
    %v6206 = vunpack.c.l.b16 %v3708
    %v6207 = vunpack.c.h.b16 %v3708
    %v6208 = vunpack.c.l.b16 %v3709
    %v6209 = vunpack.c.h.b16 %v3709
    %v6210 = vunpack.c.l.b16 %v3710
    %v6211 = vunpack.c.h.b16 %v3710
    %v6212 = vunpack.c.l.b16 %v3711
    %v6213 = vunpack.c.h.b16 %v3711
    %v6214 = vunpack.c.l.b16 %v3712
    %v6215 = vunpack.c.h.b16 %v3712
    %v6216 = vunpack.c.l.b16 %v3713
    %v6217 = vunpack.c.h.b16 %v3713
    %v6218 = vunpack.c.l.b16 %v3714
    %v6219 = vunpack.c.h.b16 %v3714
    %v6220 = vunpack.c.l.b16 %v3715
    %v6221 = vunpack.c.h.b16 %v3715
    %v6222 = vunpack.c.l.b16 %v3716
    %v6223 = vunpack.c.h.b16 %v3716
    %v6224 = vunpack.c.l.b16 %v3717
    %v6225 = vunpack.c.h.b16 %v3717
    %v6226 = vunpack.c.l.b16 %v3718
    %v6227 = vunpack.c.h.b16 %v3718
    %v6228 = vunpack.c.l.b16 %v3719
    %v6229 = vunpack.c.h.b16 %v3719
    %v6230 = vunpack.c.l.b16 %v3720
    %v6231 = vunpack.c.h.b16 %v3720
    %v6232 = vunpack.c.l.b16 %v3721
    %v6233 = vunpack.c.h.b16 %v3721
    %v6234 = vunpack.c.l.b16 %v3722
    %v6235 = vunpack.c.h.b16 %v3722
    %v6236 = vunpack.c.l.b16 %v3723
    %v6237 = vunpack.c.h.b16 %v3723
    %v6238 = vunpack.c.l.b16 %v3724
    %v6239 = vunpack.c.h.b16 %v3724
    %v6240 = vunpack.c.l.b16 %v3725
    %v6241 = vunpack.c.h.b16 %v3725
    %v6242 = vunpack.c.l.b16 %v3726
    %v6243 = vunpack.c.h.b16 %v3726
    %v6244 = vunpack.c.l.b16 %v3727
    %v6245 = vunpack.c.h.b16 %v3727
    %v6246 = vunpack.c.l.b16 %v3728
    %v6247 = vunpack.c.h.b16 %v3728
    %v6248 = vunpack.c.l.b16 %v3729
    %v6249 = vunpack.c.h.b16 %v3729
    %v6250 = vunpack.c.l.b16 %v3730
    %v6251 = vunpack.c.h.b16 %v3730
    %v6252 = vunpack.c.l.b16 %v3731
    %v6253 = vunpack.c.h.b16 %v3731
    %v6254 = vunpack.c.l.b16 %v3732
    %v6255 = vunpack.c.h.b16 %v3732
    %v6256 = vunpack.c.l.b16 %v3733
    %v6257 = vunpack.c.h.b16 %v3733
    %v6258 = vunpack.c.l.b16 %v3734
    %v6259 = vunpack.c.h.b16 %v3734
    %v6260 = vunpack.c.l.b16 %v3735
    %v6261 = vunpack.c.h.b16 %v3735
    %v6262 = vunpack.c.l.b16 %v3736
    %v6263 = vunpack.c.h.b16 %v3736
    %v6264 = vunpack.c.l.b16 %v3737
    %v6265 = vunpack.c.h.b16 %v3737
    %v6266 = vunpack.c.l.b16 %v3738
    %v6267 = vunpack.c.h.b16 %v3738
    %v6268 = vunpack.c.l.b16 %v3739
    %v6269 = vunpack.c.h.b16 %v3739
    %v6270 = vunpack.c.l.b16 %v3740
    %v6271 = vunpack.c.h.b16 %v3740
    %v6272 = vunpack.c.l.b16 %v3741
    %v6273 = vunpack.c.h.b16 %v3741
    %v6274 = vunpack.c.l.b16 %v3742
    %v6275 = vunpack.c.h.b16 %v3742
    %v6276 = vunpack.c.l.b16 %v3743
    %v6277 = vunpack.c.h.b16 %v3743
    %v6278 = vunpack.c.l.b16 %v3744
    %v6279 = vunpack.c.h.b16 %v3744
    %v6280 = vunpack.c.l.b16 %v3745
    %v6281 = vunpack.c.h.b16 %v3745
    %v6282 = vunpack.c.l.b16 %v3746
    %v6283 = vunpack.c.h.b16 %v3746
    %v6284 = vunpack.c.l.b16 %v3747
    %v6285 = vunpack.c.h.b16 %v3747
    %v6286 = vunpack.c.l.b16 %v3748
    %v6287 = vunpack.c.h.b16 %v3748
    %v6288 = vunpack.c.l.b16 %v3749
    %v6289 = vunpack.c.h.b16 %v3749
    %v6290 = vunpack.c.l.b16 %v3750
    %v6291 = vunpack.c.h.b16 %v3750
    %v6292 = vunpack.c.l.b16 %v3751
    %v6293 = vunpack.c.h.b16 %v3751
    %v6294 = vunpack.c.l.b16 %v3752
    %v6295 = vunpack.c.h.b16 %v3752
    %v6296 = vunpack.c.l.b16 %v3753
    %v6297 = vunpack.c.h.b16 %v3753
    %v6298 = vunpack.c.l.b16 %v3754
    %v6299 = vunpack.c.h.b16 %v3754
    %v6300 = vunpack.c.l.b16 %v3755
    %v6301 = vunpack.c.h.b16 %v3755
    %v6302 = vunpack.c.l.b16 %v3756
    %v6303 = vunpack.c.h.b16 %v3756
    %v6304 = vunpack.c.l.b16 %v3757
    %v6305 = vunpack.c.h.b16 %v3757
    %v6306 = vunpack.c.l.b16 %v3758
    %v6307 = vunpack.c.h.b16 %v3758
    %v6308 = vunpack.c.l.b16 %v3759
    %v6309 = vunpack.c.h.b16 %v3759
    %v6310 = vunpack.c.l.b16 %v3760
    %v6311 = vunpack.c.h.b16 %v3760
    %v6312 = vunpack.c.l.b16 %v3761
    %v6313 = vunpack.c.h.b16 %v3761
    %v6314 = vunpack.c.l.b16 %v3762
    %v6315 = vunpack.c.h.b16 %v3762
    %v6316 = vunpack.c.l.b16 %v3763
    %v6317 = vunpack.c.h.b16 %v3763
    %v6318 = vunpack.c.l.b16 %v3764
    %v6319 = vunpack.c.h.b16 %v3764
    %v6320 = vunpack.c.l.b16 %v3765
    %v6321 = vunpack.c.h.b16 %v3765
    %v6322 = vunpack.c.l.b16 %v3766
    %v6323 = vunpack.c.h.b16 %v3766
    %v6324 = vunpack.c.l.b16 %v3767
    %v6325 = vunpack.c.h.b16 %v3767
    %v6326 = vunpack.c.l.b16 %v3768
    %v6327 = vunpack.c.h.b16 %v3768
    %v6328 = vunpack.c.l.b16 %v3769
    %v6329 = vunpack.c.h.b16 %v3769
    %v6330 = vunpack.c.l.b16 %v3770
    %v6331 = vunpack.c.h.b16 %v3770
    %v6332 = vunpack.c.l.b16 %v3771
    %v6333 = vunpack.c.h.b16 %v3771
    %v6334 = vunpack.c.l.b16 %v3772
    %v6335 = vunpack.c.h.b16 %v3772
    %v6336 = vunpack.c.l.b16 %v3773
    %v6337 = vunpack.c.h.b16 %v3773
    %v6338 = vunpack.c.l.b16 %v3774
    %v6339 = vunpack.c.h.b16 %v3774
    %v6340 = vunpack.c.l.b16 %v3775
    %v6341 = vunpack.c.h.b16 %v3775
    %v6342 = vunpack.c.l.b16 %v3776
    %v6343 = vunpack.c.h.b16 %v3776
    %v6344 = vunpack.c.l.b16 %v3777
    %v6345 = vunpack.c.h.b16 %v3777
    %v6346 = vunpack.c.l.b16 %v3778
    %v6347 = vunpack.c.h.b16 %v3778
    %v6348 = vunpack.c.l.b16 %v3779
    %v6349 = vunpack.c.h.b16 %v3779
    %v6350 = vunpack.c.l.b16 %v3780
    %v6351 = vunpack.c.h.b16 %v3780
    %v6352 = vunpack.c.l.b16 %v3781
    %v6353 = vunpack.c.h.b16 %v3781
    %v6354 = vunpack.c.l.b16 %v3782
    %v6355 = vunpack.c.h.b16 %v3782
    %v6356 = vunpack.c.l.b16 %v3783
    %v6357 = vunpack.c.h.b16 %v3783
    %v6358 = vunpack.c.l.b16 %v3784
    %v6359 = vunpack.c.h.b16 %v3784
    %v6360 = vunpack.c.l.b16 %v3785
    %v6361 = vunpack.c.h.b16 %v3785
    %v6362 = vunpack.c.l.b16 %v3786
    %v6363 = vunpack.c.h.b16 %v3786
    %v6364 = vunpack.c.l.b16 %v3787
    %v6365 = vunpack.c.h.b16 %v3787
    %v6366 = vunpack.c.l.b16 %v3788
    %v6367 = vunpack.c.h.b16 %v3788
    %v6368 = vunpack.c.l.b16 %v3789
    %v6369 = vunpack.c.h.b16 %v3789
    %v6370 = vunpack.c.l.b16 %v3790
    %v6371 = vunpack.c.h.b16 %v3790
    %v6372 = vunpack.c.l.b16 %v3791
    %v6373 = vunpack.c.h.b16 %v3791
    %v6374 = vunpack.c.l.b16 %v3792
    %v6375 = vunpack.c.h.b16 %v3792
    %v6376 = vunpack.c.l.b16 %v3793
    %v6377 = vunpack.c.h.b16 %v3793
    %v6378 = vunpack.c.l.b16 %v3794
    %v6379 = vunpack.c.h.b16 %v3794
    %v6380 = vunpack.c.l.b16 %v3795
    %v6381 = vunpack.c.h.b16 %v3795
    %v6382 = vunpack.c.l.b16 %v3796
    %v6383 = vunpack.c.h.b16 %v3796
    %v6384 = vunpack.c.l.b16 %v3797
    %v6385 = vunpack.c.h.b16 %v3797
    %v6386 = vunpack.c.l.b16 %v3798
    %v6387 = vunpack.c.h.b16 %v3798
    %v6388 = vunpack.c.l.b16 %v3799
    %v6389 = vunpack.c.h.b16 %v3799
    %v6390 = vunpack.c.l.b16 %v3800
    %v6391 = vunpack.c.h.b16 %v3800
    %v6392 = vunpack.c.l.b16 %v3801
    %v6393 = vunpack.c.h.b16 %v3801
    %v6394 = vunpack.c.l.b16 %v3802
    %v6395 = vunpack.c.h.b16 %v3802
    %v6396 = vunpack.c.l.b16 %v3803
    %v6397 = vunpack.c.h.b16 %v3803
    %v6398 = vunpack.c.l.b16 %v3804
    %v6399 = vunpack.c.h.b16 %v3804
    %v6400 = vunpack.c.l.b16 %v3805
    %v6401 = vunpack.c.h.b16 %v3805
    %v6402 = vunpack.c.l.b16 %v3806
    %v6403 = vunpack.c.h.b16 %v3806
    %v6404 = vunpack.c.l.b16 %v3807
    %v6405 = vunpack.c.h.b16 %v3807
    %v6406 = vunpack.c.l.b16 %v3808
    %v6407 = vunpack.c.h.b16 %v3808
    %v6408 = vunpack.c.l.b16 %v3809
    %v6409 = vunpack.c.h.b16 %v3809
    %v6410 = vunpack.c.l.b16 %v3810
    %v6411 = vunpack.c.h.b16 %v3810
    %v6412 = vunpack.c.l.b16 %v3811
    %v6413 = vunpack.c.h.b16 %v3811
    %v6414 = vunpack.c.l.b16 %v3812
    %v6415 = vunpack.c.h.b16 %v3812
    %v6416 = vunpack.c.l.b16 %v3813
    %v6417 = vunpack.c.h.b16 %v3813
    %v6418 = vunpack.c.l.b16 %v3814
    %v6419 = vunpack.c.h.b16 %v3814
    %v6420 = vunpack.c.l.b16 %v3815
    %v6421 = vunpack.c.h.b16 %v3815
    %v6422 = vunpack.c.l.b16 %v3816
    %v6423 = vunpack.c.h.b16 %v3816
    %v6424 = vunpack.c.l.b16 %v3817
    %v6425 = vunpack.c.h.b16 %v3817
    %v6426 = vunpack.c.l.b16 %v3818
    %v6427 = vunpack.c.h.b16 %v3818
    %v6428 = vunpack.c.l.b16 %v3819
    %v6429 = vunpack.c.h.b16 %v3819
    %v6430 = vunpack.c.l.b16 %v3820
    %v6431 = vunpack.c.h.b16 %v3820
    %v6432 = vunpack.c.l.b16 %v3821
    %v6433 = vunpack.c.h.b16 %v3821
    %v6434 = vunpack.c.l.b16 %v3822
    %v6435 = vunpack.c.h.b16 %v3822
    %v6436 = vunpack.c.l.b16 %v3823
    %v6437 = vunpack.c.h.b16 %v3823
    %v6438 = vunpack.c.l.b16 %v3824
    %v6439 = vunpack.c.h.b16 %v3824
    %v6440 = vunpack.c.l.b16 %v3825
    %v6441 = vunpack.c.h.b16 %v3825
    %v6442 = vunpack.c.l.b16 %v3826
    %v6443 = vunpack.c.h.b16 %v3826
    %v6444 = vunpack.c.l.b16 %v3827
    %v6445 = vunpack.c.h.b16 %v3827
    %v6446 = vunpack.c.l.b16 %v3828
    %v6447 = vunpack.c.h.b16 %v3828
    %v6448 = vunpack.c.l.b16 %v3829
    %v6449 = vunpack.c.h.b16 %v3829
    %v6450 = vunpack.c.l.b16 %v3830
    %v6451 = vunpack.c.h.b16 %v3830
    %v6452 = vunpack.c.l.b16 %v3831
    %v6453 = vunpack.c.h.b16 %v3831
    %v6454 = vunpack.c.l.b16 %v3832
    %v6455 = vunpack.c.h.b16 %v3832
    %v6456 = vunpack.c.l.b16 %v3833
    %v6457 = vunpack.c.h.b16 %v3833
    %v6458 = vunpack.c.l.b16 %v3834
    %v6459 = vunpack.c.h.b16 %v3834
    %v6460 = vunpack.c.l.b16 %v3835
    %v6461 = vunpack.c.h.b16 %v3835
    %v6462 = vunpack.c.l.b16 %v3836
    %v6463 = vunpack.c.h.b16 %v3836
    %v6464 = vunpack.c.l.b16 %v3837
    %v6465 = vunpack.c.h.b16 %v3837
    %v6466 = vunpack.c.l.b16 %v3838
    %v6467 = vunpack.c.h.b16 %v3838
    %v6468 = vunpack.c.l.b16 %v3839
    %v6469 = vunpack.c.h.b16 %v3839
    %v6470 = vunpack.c.l.b16 %v3840
    %v6471 = vunpack.c.h.b16 %v3840
    %v6472 = vunpack.c.l.b16 %v3841
    %v6473 = vunpack.c.h.b16 %v3841
    %v6474 = vunpack.c.l.b16 %v3842
    %v6475 = vunpack.c.h.b16 %v3842
    %v6476 = vunpack.c.l.b16 %v3843
    %v6477 = vunpack.c.h.b16 %v3843
    %v6478 = vunpack.c.l.b16 %v3844
    %v6479 = vunpack.c.h.b16 %v3844
    %v6480 = vunpack.c.l.b16 %v3845
    %v6481 = vunpack.c.h.b16 %v3845
    %v6482 = vunpack.c.l.b16 %v3846
    %v6483 = vunpack.c.h.b16 %v3846
    %v6484 = vunpack.c.l.b16 %v3847
    %v6485 = vunpack.c.h.b16 %v3847
    %v6486 = vunpack.c.l.b16 %v3848
    %v6487 = vunpack.c.h.b16 %v3848
    %v6488 = vunpack.c.l.b16 %v3849
    %v6489 = vunpack.c.h.b16 %v3849
    %v6490 = vunpack.c.l.b16 %v3850
    %v6491 = vunpack.c.h.b16 %v3850
    %v6492 = vunpack.c.l.b16 %v3851
    %v6493 = vunpack.c.h.b16 %v3851
    %v6494 = vunpack.c.l.b16 %v3852
    %v6495 = vunpack.c.h.b16 %v3852
    %v6496 = vunpack.c.l.b16 %v3853
    %v6497 = vunpack.c.h.b16 %v3853
    %v6498 = vunpack.c.l.b16 %v3854
    %v6499 = vunpack.c.h.b16 %v3854
    %v6500 = vunpack.c.l.b16 %v3855
    %v6501 = vunpack.c.h.b16 %v3855
    %v6502 = vunpack.c.l.b16 %v3856
    %v6503 = vunpack.c.h.b16 %v3856
    %v6504 = vunpack.c.l.b16 %v3857
    %v6505 = vunpack.c.h.b16 %v3857
    %v6506 = vunpack.c.l.b16 %v3858
    %v6507 = vunpack.c.h.b16 %v3858
    %v6508 = vunpack.c.l.b16 %v3859
    %v6509 = vunpack.c.h.b16 %v3859
    %v6510 = vunpack.c.l.b16 %v3860
    %v6511 = vunpack.c.h.b16 %v3860
    %v6512 = vunpack.c.l.b16 %v3861
    %v6513 = vunpack.c.h.b16 %v3861
    %v6514 = vunpack.c.l.b16 %v3862
    %v6515 = vunpack.c.h.b16 %v3862
    %v6516 = vunpack.c.l.b16 %v3863
    %v6517 = vunpack.c.h.b16 %v3863
    %v6518 = vunpack.c.l.b16 %v3864
    %v6519 = vunpack.c.h.b16 %v3864
    %v6520 = vunpack.c.l.b16 %v3865
    %v6521 = vunpack.c.h.b16 %v3865
    %v6522 = vunpack.c.l.b16 %v3866
    %v6523 = vunpack.c.h.b16 %v3866
    %v6524 = vunpack.c.l.b16 %v3867
    %v6525 = vunpack.c.h.b16 %v3867
    %v6526 = vunpack.c.l.b16 %v3868
    %v6527 = vunpack.c.h.b16 %v3868
    %v6528 = vunpack.c.l.b16 %v3869
    %v6529 = vunpack.c.h.b16 %v3869
    %v6530 = vunpack.c.l.b16 %v3870
    %v6531 = vunpack.c.h.b16 %v3870
    %v6532 = vunpack.c.l.b16 %v3871
    %v6533 = vunpack.c.h.b16 %v3871
    %v6534 = vunpack.c.l.b16 %v3872
    %v6535 = vunpack.c.h.b16 %v3872
    %v6536 = vunpack.c.l.b16 %v3873
    %v6537 = vunpack.c.h.b16 %v3873
    %v6538 = vunpack.c.l.b16 %v3874
    %v6539 = vunpack.c.h.b16 %v3874
    %v6540 = vunpack.c.l.b16 %v3875
    %v6541 = vunpack.c.h.b16 %v3875
    %v6542 = vunpack.c.l.b16 %v3876
    %v6543 = vunpack.c.h.b16 %v3876
    %v6544 = vunpack.c.l.b16 %v3877
    %v6545 = vunpack.c.h.b16 %v3877
    %v6546 = vunpack.c.l.b16 %v3878
    %v6547 = vunpack.c.h.b16 %v3878
    %v6548 = vunpack.c.l.b16 %v3879
    %v6549 = vunpack.c.h.b16 %v3879
    %v6550 = vunpack.c.l.b16 %v3880
    %v6551 = vunpack.c.h.b16 %v3880
    %v6552 = vunpack.c.l.b16 %v3881
    %v6553 = vunpack.c.h.b16 %v3881
    %v6554 = vunpack.c.l.b16 %v3882
    %v6555 = vunpack.c.h.b16 %v3882
    %v6556 = vunpack.c.l.b16 %v3883
    %v6557 = vunpack.c.h.b16 %v3883
    %v6558 = vunpack.c.l.b16 %v3884
    %v6559 = vunpack.c.h.b16 %v3884
    %v6560 = vunpack.c.l.b16 %v3885
    %v6561 = vunpack.c.h.b16 %v3885
    %v6562 = vunpack.c.l.b16 %v3886
    %v6563 = vunpack.c.h.b16 %v3886
    %v6564 = vunpack.c.l.b16 %v3887
    %v6565 = vunpack.c.h.b16 %v3887
    %v6566 = vunpack.c.l.b16 %v3888
    %v6567 = vunpack.c.h.b16 %v3888
    %v6568 = vunpack.c.l.b16 %v3889
    %v6569 = vunpack.c.h.b16 %v3889
    %v6570 = vunpack.c.l.b16 %v3890
    %v6571 = vunpack.c.h.b16 %v3890
    %v6572 = vunpack.c.l.b16 %v3891
    %v6573 = vunpack.c.h.b16 %v3891
    %v6574 = vunpack.c.l.b16 %v3892
    %v6575 = vunpack.c.h.b16 %v3892
    %v6576 = vunpack.c.l.b16 %v3893
    %v6577 = vunpack.c.h.b16 %v3893
    %v6578 = vunpack.c.l.b16 %v3894
    %v6579 = vunpack.c.h.b16 %v3894
    %v6580 = vunpack.c.l.b16 %v3895
    %v6581 = vunpack.c.h.b16 %v3895
    %v6582 = vunpack.c.l.b16 %v3896
    %v6583 = vunpack.c.h.b16 %v3896
    %v6584 = vunpack.c.l.b16 %v3897
    %v6585 = vunpack.c.h.b16 %v3897
    %v6586 = vunpack.c.l.b16 %v3898
    %v6587 = vunpack.c.h.b16 %v3898
    %v6588 = vunpack.c.l.b16 %v3899
    %v6589 = vunpack.c.h.b16 %v3899
    %v6590 = vunpack.c.l.b16 %v3900
    %v6591 = vunpack.c.h.b16 %v3900
    %v6592 = vunpack.c.l.b16 %v3901
    %v6593 = vunpack.c.h.b16 %v3901
    %v6594 = vunpack.c.l.b16 %v3902
    %v6595 = vunpack.c.h.b16 %v3902
    %v6596 = vunpack.c.l.b16 %v3903
    %v6597 = vunpack.c.h.b16 %v3903
    %v6598 = vunpack.c.l.b16 %v3904
    %v6599 = vunpack.c.h.b16 %v3904
    %v6600 = vunpack.c.l.b16 %v3905
    %v6601 = vunpack.c.h.b16 %v3905
    %v6602 = vunpack.c.l.b16 %v3906
    %v6603 = vunpack.c.h.b16 %v3906
    %v6604 = vunpack.c.l.b16 %v3907
    %v6605 = vunpack.c.h.b16 %v3907
    %v6606 = vunpack.c.l.b16 %v3908
    %v6607 = vunpack.c.h.b16 %v3908
    %v6608 = vunpack.c.l.b16 %v3909
    %v6609 = vunpack.c.h.b16 %v3909
    %v6610 = vunpack.c.l.b16 %v3910
    %v6611 = vunpack.c.h.b16 %v3910
    %v6612 = vunpack.c.l.b16 %v3911
    %v6613 = vunpack.c.h.b16 %v3911
    %v6614 = vunpack.c.l.b16 %v3912
    %v6615 = vunpack.c.h.b16 %v3912
    %v6616 = vunpack.c.l.b16 %v3913
    %v6617 = vunpack.c.h.b16 %v3913
    %v6618 = vunpack.c.l.b16 %v3914
    %v6619 = vunpack.c.h.b16 %v3914
    %v6620 = vunpack.c.l.b16 %v3915
    %v6621 = vunpack.c.h.b16 %v3915
    %v6622 = vunpack.c.l.b16 %v3916
    %v6623 = vunpack.c.h.b16 %v3916
    %v6624 = vunpack.c.l.b16 %v3917
    %v6625 = vunpack.c.h.b16 %v3917
    %v6626 = vunpack.c.l.b16 %v3918
    %v6627 = vunpack.c.h.b16 %v3918
    %v6628 = vunpack.c.l.b16 %v3919
    %v6629 = vunpack.c.h.b16 %v3919
    %v6630 = vunpack.c.l.b16 %v3920
    %v6631 = vunpack.c.h.b16 %v3920
    %v6632 = vunpack.c.l.b16 %v3921
    %v6633 = vunpack.c.h.b16 %v3921
    %v6634 = vunpack.c.l.b16 %v3922
    %v6635 = vunpack.c.h.b16 %v3922
    %v6636 = vunpack.c.l.b16 %v3923
    %v6637 = vunpack.c.h.b16 %v3923
    %v6638 = vunpack.c.l.b16 %v3924
    %v6639 = vunpack.c.h.b16 %v3924
    %v6640 = vunpack.c.l.b16 %v3925
    %v6641 = vunpack.c.h.b16 %v3925
    %v6642 = vunpack.c.l.b16 %v3926
    %v6643 = vunpack.c.h.b16 %v3926
    %v6644 = vunpack.c.l.b16 %v3927
    %v6645 = vunpack.c.h.b16 %v3927
    %v6646 = vunpack.c.l.b16 %v3928
    %v6647 = vunpack.c.h.b16 %v3928
    %v6648 = vunpack.c.l.b16 %v3929
    %v6649 = vunpack.c.h.b16 %v3929
    %v6650 = vunpack.c.l.b16 %v3930
    %v6651 = vunpack.c.h.b16 %v3930
    %v6652 = vunpack.c.l.b16 %v3931
    %v6653 = vunpack.c.h.b16 %v3931
    %v6654 = vunpack.c.l.b16 %v3932
    %v6655 = vunpack.c.h.b16 %v3932
    %v6656 = vunpack.c.l.b16 %v3933
    %v6657 = vunpack.c.h.b16 %v3933
    %v6658 = vunpack.c.l.b16 %v3934
    %v6659 = vunpack.c.h.b16 %v3934
    %v6660 = vunpack.c.l.b16 %v3935
    %v6661 = vunpack.c.h.b16 %v3935
    %v6662 = vunpack.c.l.b16 %v3936
    %v6663 = vunpack.c.h.b16 %v3936
    %v6664 = vunpack.c.l.b16 %v3937
    %v6665 = vunpack.c.h.b16 %v3937
    %v6666 = vunpack.c.l.b16 %v3938
    %v6667 = vunpack.c.h.b16 %v3938
    %v6668 = vunpack.c.l.b16 %v3939
    %v6669 = vunpack.c.h.b16 %v3939
    %v6670 = vunpack.c.l.b16 %v3940
    %v6671 = vunpack.c.h.b16 %v3940
    %v6672 = vunpack.c.l.b16 %v3941
    %v6673 = vunpack.c.h.b16 %v3941
    %v6674 = vunpack.c.l.b16 %v3942
    %v6675 = vunpack.c.h.b16 %v3942
    %v6676 = vunpack.c.l.b16 %v3943
    %v6677 = vunpack.c.h.b16 %v3943
    %v6678 = vunpack.c.l.b16 %v3944
    %v6679 = vunpack.c.h.b16 %v3944
    %v6680 = vunpack.c.l.b16 %v3945
    %v6681 = vunpack.c.h.b16 %v3945
    %v6682 = vunpack.c.l.b16 %v3946
    %v6683 = vunpack.c.h.b16 %v3946
    %v6684 = vunpack.c.l.b16 %v3947
    %v6685 = vunpack.c.h.b16 %v3947
    %v6686 = vunpack.c.l.b16 %v3948
    %v6687 = vunpack.c.h.b16 %v3948
    %v6688 = vunpack.c.l.b16 %v3949
    %v6689 = vunpack.c.h.b16 %v3949
    %v6690 = vunpack.c.l.b16 %v3950
    %v6691 = vunpack.c.h.b16 %v3950
    %v6692 = vunpack.c.l.b16 %v3951
    %v6693 = vunpack.c.h.b16 %v3951
    %v6694 = vunpack.c.l.b16 %v3952
    %v6695 = vunpack.c.h.b16 %v3952
    %v6696 = vunpack.c.l.b16 %v3953
    %v6697 = vunpack.c.h.b16 %v3953
    %v6698 = vunpack.c.l.b16 %v3954
    %v6699 = vunpack.c.h.b16 %v3954
    %v6700 = vunpack.c.l.b16 %v3955
    %v6701 = vunpack.c.h.b16 %v3955
    %v6702 = vunpack.c.l.b16 %v3956
    %v6703 = vunpack.c.h.b16 %v3956
    %v6704 = vunpack.c.l.b16 %v3957
    %v6705 = vunpack.c.h.b16 %v3957
    %v6706 = vunpack.c.l.b16 %v3958
    %v6707 = vunpack.c.h.b16 %v3958
    %v6708 = vunpack.c.l.b16 %v3959
    %v6709 = vunpack.c.h.b16 %v3959
    %v6710 = vunpack.c.l.b16 %v3960
    %v6711 = vunpack.c.h.b16 %v3960
    %v6712 = vunpack.c.l.b16 %v3961
    %v6713 = vunpack.c.h.b16 %v3961
    %v6714 = vunpack.c.l.b16 %v3962
    %v6715 = vunpack.c.h.b16 %v3962
    %v6716 = vunpack.c.l.b16 %v3963
    %v6717 = vunpack.c.h.b16 %v3963
    %v6718 = vunpack.c.l.b16 %v3964
    %v6719 = vunpack.c.h.b16 %v3964
    %v6720 = vunpack.c.l.b16 %v3965
    %v6721 = vunpack.c.h.b16 %v3965
    %v6722 = vunpack.c.l.b16 %v3966
    %v6723 = vunpack.c.h.b16 %v3966
    %v6724 = vunpack.c.l.b16 %v3967
    %v6725 = vunpack.c.h.b16 %v3967
    %v6726 = vunpack.c.l.b16 %v3968
    %v6727 = vunpack.c.h.b16 %v3968
    %v6728 = vunpack.c.l.b16 %v3969
    %v6729 = vunpack.c.h.b16 %v3969
    %v6730 = vunpack.c.l.b16 %v3970
    %v6731 = vunpack.c.h.b16 %v3970
    %v6732 = vunpack.c.l.b16 %v3971
    %v6733 = vunpack.c.h.b16 %v3971
    %v6734 = vunpack.c.l.b16 %v3972
    %v6735 = vunpack.c.h.b16 %v3972
    %v6736 = vunpack.c.l.b16 %v3973
    %v6737 = vunpack.c.h.b16 %v3973
    %v6738 = vunpack.c.l.b16 %v3974
    %v6739 = vunpack.c.h.b16 %v3974
    %v6740 = vunpack.c.l.b16 %v3975
    %v6741 = vunpack.c.h.b16 %v3975
    %v6742 = vunpack.c.l.b16 %v3976
    %v6743 = vunpack.c.h.b16 %v3976
    %v6744 = vunpack.c.l.b16 %v3977
    %v6745 = vunpack.c.h.b16 %v3977
    %v6746 = vunpack.c.l.b16 %v3978
    %v6747 = vunpack.c.h.b16 %v3978
    %v6748 = vunpack.c.l.b16 %v3979
    %v6749 = vunpack.c.h.b16 %v3979
    %v6750 = vunpack.c.l.b16 %v3980
    %v6751 = vunpack.c.h.b16 %v3980
    %v6752 = vunpack.c.l.b16 %v3981
    %v6753 = vunpack.c.h.b16 %v3981
    %v6754 = vunpack.c.l.b16 %v3982
    %v6755 = vunpack.c.h.b16 %v3982
    %v6756 = vunpack.c.l.b16 %v3983
    %v6757 = vunpack.c.h.b16 %v3983
    %v6758 = vunpack.c.l.b16 %v3984
    %v6759 = vunpack.c.h.b16 %v3984
    %v6760 = vunpack.c.l.b16 %v3985
    %v6761 = vunpack.c.h.b16 %v3985
    %v6762 = vunpack.c.l.b16 %v3986
    %v6763 = vunpack.c.h.b16 %v3986
    %v6764 = vunpack.c.l.b16 %v3987
    %v6765 = vunpack.c.h.b16 %v3987
    %v6766 = vunpack.c.l.b16 %v3988
    %v6767 = vunpack.c.h.b16 %v3988
    %v6768 = vunpack.c.l.b16 %v3989
    %v6769 = vunpack.c.h.b16 %v3989
    %v6770 = vunpack.c.l.b16 %v3990
    %v6771 = vunpack.c.h.b16 %v3990
    %v6772 = vunpack.c.l.b16 %v3991
    %v6773 = vunpack.c.h.b16 %v3991
    %v6774 = vunpack.c.l.b16 %v3992
    %v6775 = vunpack.c.h.b16 %v3992
    %v6776 = vunpack.c.l.b16 %v3993
    %v6777 = vunpack.c.h.b16 %v3993
    %v6778 = vunpack.c.l.b16 %v3994
    %v6779 = vunpack.c.h.b16 %v3994
    %v6780 = vunpack.c.l.b16 %v3995
    %v6781 = vunpack.c.h.b16 %v3995
    %v6782 = vunpack.c.l.b16 %v3996
    %v6783 = vunpack.c.h.b16 %v3996
    %v6784 = vunpack.c.l.b16 %v3997
    %v6785 = vunpack.c.h.b16 %v3997
    %v6786 = vunpack.c.l.b16 %v3998
    %v6787 = vunpack.c.h.b16 %v3998
    %v6788 = vunpack.c.l.b16 %v3999
    %v6789 = vunpack.c.h.b16 %v3999
    %v6790 = vunpack.c.l.b16 %v4000
    %v6791 = vunpack.c.h.b16 %v4000
    %v6792 = vunpack.c.l.b16 %v4001
    %v6793 = vunpack.c.h.b16 %v4001
    %v6794 = vunpack.c.l.b16 %v4002
    %v6795 = vunpack.c.h.b16 %v4002
    %v6796 = vunpack.c.l.b16 %v4003
    %v6797 = vunpack.c.h.b16 %v4003
    %v6798 = vunpack.c.l.b16 %v4004
    %v6799 = vunpack.c.h.b16 %v4004
    %v6800 = vunpack.c.l.b16 %v4005
    %v6801 = vunpack.c.h.b16 %v4005
    %v6802 = vunpack.c.l.b16 %v4006
    %v6803 = vunpack.c.h.b16 %v4006
    %v6804 = vunpack.c.l.b16 %v4007
    %v6805 = vunpack.c.h.b16 %v4007
    %v6806 = vunpack.c.l.b16 %v4008
    %v6807 = vunpack.c.h.b16 %v4008
    %v6808 = vunpack.c.l.b16 %v4009
    %v6809 = vunpack.c.h.b16 %v4009
    %v6810 = vunpack.c.l.b16 %v4010
    %v6811 = vunpack.c.h.b16 %v4010
    %v6812 = vunpack.c.l.b16 %v4011
    %v6813 = vunpack.c.h.b16 %v4011
    %v6814 = vunpack.c.l.b16 %v4012
    %v6815 = vunpack.c.h.b16 %v4012
    %v6816 = vunpack.c.l.b16 %v4013
    %v6817 = vunpack.c.h.b16 %v4013
    %v6818 = vunpack.c.l.b16 %v4014
    %v6819 = vunpack.c.h.b16 %v4014
    %v6820 = vunpack.c.l.b16 %v4015
    %v6821 = vunpack.c.h.b16 %v4015
    %v6822 = vunpack.c.l.b16 %v4016
    %v6823 = vunpack.c.h.b16 %v4016
    %v6824 = vunpack.c.l.b16 %v4017
    %v6825 = vunpack.c.h.b16 %v4017
    %v6826 = vunpack.c.l.b16 %v4018
    %v6827 = vunpack.c.h.b16 %v4018
    %v6828 = vunpack.c.l.b16 %v4019
    %v6829 = vunpack.c.h.b16 %v4019
    %v6830 = vunpack.c.l.b16 %v4020
    %v6831 = vunpack.c.h.b16 %v4020
    %v6832 = vunpack.c.l.b16 %v4021
    %v6833 = vunpack.c.h.b16 %v4021
    %v6834 = vunpack.c.l.b16 %v4022
    %v6835 = vunpack.c.h.b16 %v4022
    %v6836 = vunpack.c.l.b16 %v4023
    %v6837 = vunpack.c.h.b16 %v4023
    %v6838 = vunpack.c.l.b16 %v4024
    %v6839 = vunpack.c.h.b16 %v4024
    %v6840 = vunpack.c.l.b16 %v4025
    %v6841 = vunpack.c.h.b16 %v4025
    %v6842 = vunpack.c.l.b16 %v4026
    %v6843 = vunpack.c.h.b16 %v4026
    %v6844 = vunpack.c.l.b16 %v4027
    %v6845 = vunpack.c.h.b16 %v4027
    %v6846 = vunpack.c.l.b16 %v4028
    %v6847 = vunpack.c.h.b16 %v4028
    %v6848 = vunpack.c.l.b16 %v4029
    %v6849 = vunpack.c.h.b16 %v4029
    %v6850 = vunpack.c.l.b16 %v4030
    %v6851 = vunpack.c.h.b16 %v4030
    %v6852 = vunpack.c.l.b16 %v4031
    %v6853 = vunpack.c.h.b16 %v4031
    %v6854 = vunpack.c.l.b16 %v4032
    %v6855 = vunpack.c.h.b16 %v4032
    %v6856 = vunpack.c.l.b16 %v4033
    %v6857 = vunpack.c.h.b16 %v4033
    %v6858 = vunpack.c.l.b16 %v4034
    %v6859 = vunpack.c.h.b16 %v4034
    %v6860 = vunpack.c.l.b16 %v4035
    %v6861 = vunpack.c.h.b16 %v4035
    %v6862 = vunpack.c.l.b16 %v4036
    %v6863 = vunpack.c.h.b16 %v4036
    %v6864 = vunpack.c.l.b16 %v4037
    %v6865 = vunpack.c.h.b16 %v4037
    %v6866 = vunpack.c.l.b16 %v4038
    %v6867 = vunpack.c.h.b16 %v4038
    %v6868 = vunpack.c.l.b16 %v4039
    %v6869 = vunpack.c.h.b16 %v4039
    %v6870 = vunpack.c.l.b16 %v4040
    %v6871 = vunpack.c.h.b16 %v4040
    %v6872 = vunpack.c.l.b16 %v4041
    %v6873 = vunpack.c.h.b16 %v4041
    %v6874 = vunpack.c.l.b16 %v4042
    %v6875 = vunpack.c.h.b16 %v4042
    %v6876 = vunpack.c.l.b16 %v4043
    %v6877 = vunpack.c.h.b16 %v4043
    %v6878 = vunpack.c.l.b16 %v4044
    %v6879 = vunpack.c.h.b16 %v4044
    %v6880 = vunpack.c.l.b16 %v4045
    %v6881 = vunpack.c.h.b16 %v4045
    %v6882 = vunpack.c.l.b16 %v4046
    %v6883 = vunpack.c.h.b16 %v4046
    %v6884 = vunpack.c.l.b16 %v4047
    %v6885 = vunpack.c.h.b16 %v4047
    %v6886 = vunpack.c.l.b16 %v4048
    %v6887 = vunpack.c.h.b16 %v4048
    %v6888 = vunpack.c.l.b16 %v4049
    %v6889 = vunpack.c.h.b16 %v4049
    %v6890 = vunpack.c.l.b16 %v4050
    %v6891 = vunpack.c.h.b16 %v4050
    %v6892 = vunpack.c.l.b16 %v4051
    %v6893 = vunpack.c.h.b16 %v4051
    %v6894 = vunpack.c.l.b16 %v4052
    %v6895 = vunpack.c.h.b16 %v4052
    %v6896 = vunpack.c.l.b16 %v4053
    %v6897 = vunpack.c.h.b16 %v4053
    %v6898 = vunpack.c.l.b16 %v4054
    %v6899 = vunpack.c.h.b16 %v4054
    %v6900 = vunpack.c.l.b16 %v4055
    %v6901 = vunpack.c.h.b16 %v4055
    %v6902 = vunpack.c.l.b16 %v4056
    %v6903 = vunpack.c.h.b16 %v4056
    %v6904 = vunpack.c.l.b16 %v4057
    %v6905 = vunpack.c.h.b16 %v4057
    %v6906 = vunpack.c.l.b16 %v4058
    %v6907 = vunpack.c.h.b16 %v4058
    %v6908 = vunpack.c.l.b16 %v4059
    %v6909 = vunpack.c.h.b16 %v4059
    %v6910 = vunpack.c.l.b16 %v4060
    %v6911 = vunpack.c.h.b16 %v4060
    %v6912 = vunpack.c.l.b16 %v4061
    %v6913 = vunpack.c.h.b16 %v4061
    %v6914 = vunpack.c.l.b16 %v4062
    %v6915 = vunpack.c.h.b16 %v4062
    %v6916 = vunpack.c.l.b16 %v4063
    %v6917 = vunpack.c.h.b16 %v4063
    %v6918 = vunpack.c.l.b16 %v4064
    %v6919 = vunpack.c.h.b16 %v4064
    %v6920 = vunpack.c.l.b16 %v4065
    %v6921 = vunpack.c.h.b16 %v4065
    %v6922 = vunpack.c.l.b16 %v4066
    %v6923 = vunpack.c.h.b16 %v4066
    %v6924 = vunpack.c.l.b16 %v4067
    %v6925 = vunpack.c.h.b16 %v4067
    %v6926 = vunpack.c.l.b16 %v4068
    %v6927 = vunpack.c.h.b16 %v4068
    %v6928 = vunpack.c.l.b16 %v4069
    %v6929 = vunpack.c.h.b16 %v4069
    %v6930 = vunpack.c.l.b16 %v4070
    %v6931 = vunpack.c.h.b16 %v4070
    %v6932 = vunpack.c.l.b16 %v4071
    %v6933 = vunpack.c.h.b16 %v4071
    %v6934 = vunpack.c.l.b16 %v4072
    %v6935 = vunpack.c.h.b16 %v4072
    %v6936 = vunpack.c.l.b16 %v4073
    %v6937 = vunpack.c.h.b16 %v4073
    %v6938 = vunpack.c.l.b16 %v4074
    %v6939 = vunpack.c.h.b16 %v4074
    %v6940 = vunpack.c.l.b16 %v4075
    %v6941 = vunpack.c.h.b16 %v4075
    %v6942 = vunpack.c.l.b16 %v4076
    %v6943 = vunpack.c.h.b16 %v4076
    %v6944 = vunpack.c.l.b16 %v4077
    %v6945 = vunpack.c.h.b16 %v4077
    %v6946 = vunpack.c.l.b16 %v4078
    %v6947 = vunpack.c.h.b16 %v4078
    %v6948 = vunpack.c.l.b16 %v4079
    %v6949 = vunpack.c.h.b16 %v4079
    %v6950 = vunpack.c.l.b16 %v4080
    %v6951 = vunpack.c.h.b16 %v4080
    %v6952 = vunpack.c.l.b16 %v4081
    %v6953 = vunpack.c.h.b16 %v4081
    %v6954 = vunpack.c.l.b16 %v4082
    %v6955 = vunpack.c.h.b16 %v4082
    %v6956 = vunpack.c.l.b16 %v4083
    %v6957 = vunpack.c.h.b16 %v4083
    %v6958 = vunpack.c.l.b16 %v4084
    %v6959 = vunpack.c.h.b16 %v4084
    %v6960 = vunpack.c.l.b16 %v4085
    %v6961 = vunpack.c.h.b16 %v4085
    %v6962 = vunpack.c.l.b16 %v4086
    %v6963 = vunpack.c.h.b16 %v4086
    %v6964 = vunpack.c.l.b16 %v4087
    %v6965 = vunpack.c.h.b16 %v4087
    %v6966 = vunpack.c.l.b16 %v4088
    %v6967 = vunpack.c.h.b16 %v4088
    %v6968 = vunpack.c.l.b16 %v4089
    %v6969 = vunpack.c.h.b16 %v4089
    %v6970 = vunpack.c.l.b16 %v4090
    %v6971 = vunpack.c.h.b16 %v4090
    %v6972 = vunpack.c.l.b16 %v4091
    %v6973 = vunpack.c.h.b16 %v4091
    %v6974 = vunpack.c.l.b16 %v4092
    %v6975 = vunpack.c.h.b16 %v4092
    %v6976 = vunpack.c.l.b16 %v4093
    %v6977 = vunpack.c.h.b16 %v4093
    %v6978 = vunpack.c.l.b16 %v4094
    %v6979 = vunpack.c.h.b16 %v4094
    %v6980 = vunpack.c.l.b16 %v4095
    %v6981 = vunpack.c.h.b16 %v4095
    %v6982 = vunpack.c.l.b16 %v4096
    %v6983 = vunpack.c.h.b16 %v4096
    %v6984 = vunpack.c.l.b16 %v4097
    %v6985 = vunpack.c.h.b16 %v4097
    %v6986 = vunpack.c.l.b16 %v4098
    %v6987 = vunpack.c.h.b16 %v4098
    %v6988 = vunpack.c.l.b16 %v4099
    %v6989 = vunpack.c.h.b16 %v4099
    %v6990 = vunpack.c.l.b16 %v4100
    %v6991 = vunpack.c.h.b16 %v4100
    %v6992 = vunpack.c.l.b16 %v4101
    %v6993 = vunpack.c.h.b16 %v4101
    %v6994 = vunpack.c.l.b16 %v4102
    %v6995 = vunpack.c.h.b16 %v4102
    %v6996 = vunpack.c.l.b16 %v4103
    %v6997 = vunpack.c.h.b16 %v4103
    %v6998 = vunpack.c.l.b16 %v4104
    %v6999 = vunpack.c.h.b16 %v4104
    %v7000 = vunpack.c.l.b16 %v4105
    %v7001 = vunpack.c.h.b16 %v4105
    %v7002 = vunpack.c.l.b16 %v4106
    %v7003 = vunpack.c.h.b16 %v4106
    %v7004 = vunpack.c.l.b16 %v4107
    %v7005 = vunpack.c.h.b16 %v4107
    %v7006 = vunpack.c.l.b16 %v4108
    %v7007 = vunpack.c.h.b16 %v4108
    %v7008 = vunpack.c.l.b16 %v4109
    %v7009 = vunpack.c.h.b16 %v4109
    %v7010 = vunpack.c.l.b16 %v4110
    %v7011 = vunpack.c.h.b16 %v4110
    %v7012 = vunpack.c.l.b16 %v4111
    %v7013 = vunpack.c.h.b16 %v4111
    %v7014 = vunpack.c.l.b16 %v4112
    %v7015 = vunpack.c.h.b16 %v4112
    %v7016 = vunpack.c.l.b16 %v4113
    %v7017 = vunpack.c.h.b16 %v4113
    %v7018 = vunpack.c.l.b16 %v4114
    %v7019 = vunpack.c.h.b16 %v4114
    %v7020 = vunpack.c.l.b16 %v4115
    %v7021 = vunpack.c.h.b16 %v4115
    %v7022 = vunpack.c.l.b16 %v4116
    %v7023 = vunpack.c.h.b16 %v4116
    %v7024 = vunpack.c.l.b16 %v4117
    %v7025 = vunpack.c.h.b16 %v4117
    %v7026 = vunpack.c.l.b16 %v4118
    %v7027 = vunpack.c.h.b16 %v4118
    %v7028 = vunpack.c.l.b16 %v4119
    %v7029 = vunpack.c.h.b16 %v4119
    %v7030 = vunpack.c.l.b16 %v4120
    %v7031 = vunpack.c.h.b16 %v4120
    %v7032 = vunpack.c.l.b16 %v4121
    %v7033 = vunpack.c.h.b16 %v4121
    %v7034 = vunpack.c.l.b16 %v4122
    %v7035 = vunpack.c.h.b16 %v4122
    %v7036 = vunpack.c.l.b16 %v4123
    %v7037 = vunpack.c.h.b16 %v4123
    %v7038 = vunpack.c.l.b16 %v4124
    %v7039 = vunpack.c.h.b16 %v4124
    %v7040 = vunpack.c.l.b16 %v4125
    %v7041 = vunpack.c.h.b16 %v4125
    %v7042 = vunpack.c.l.b16 %v4126
    %v7043 = vunpack.c.h.b16 %v4126
    %v7044 = vunpack.c.l.b16 %v4127
    %v7045 = vunpack.c.h.b16 %v4127
    %v7046 = vunpack.c.l.b16 %v4128
    %v7047 = vunpack.c.h.b16 %v4128
    %v7048 = vunpack.c.l.b16 %v4129
    %v7049 = vunpack.c.h.b16 %v4129
    %v7050 = vunpack.c.l.b16 %v4130
    %v7051 = vunpack.c.h.b16 %v4130
    %v7052 = vunpack.c.l.b16 %v4131
    %v7053 = vunpack.c.h.b16 %v4131
    %v7054 = vunpack.c.l.b16 %v4132
    %v7055 = vunpack.c.h.b16 %v4132
    %v7056 = vunpack.c.l.b16 %v4133
    %v7057 = vunpack.c.h.b16 %v4133
    %v7058 = vunpack.c.l.b16 %v4134
    %v7059 = vunpack.c.h.b16 %v4134
    %v7060 = vunpack.c.l.b16 %v4135
    %v7061 = vunpack.c.h.b16 %v4135
    %v7062 = vunpack.c.l.b16 %v4136
    %v7063 = vunpack.c.h.b16 %v4136
    %v7064 = vunpack.c.l.b16 %v4137
    %v7065 = vunpack.c.h.b16 %v4137
    %v7066 = vunpack.c.l.b16 %v4138
    %v7067 = vunpack.c.h.b16 %v4138
    %v7068 = vunpack.c.l.b16 %v4139
    %v7069 = vunpack.c.h.b16 %v4139
    %v7070 = vunpack.c.l.b16 %v4140
    %v7071 = vunpack.c.h.b16 %v4140
    %v7072 = vunpack.c.l.b16 %v4141
    %v7073 = vunpack.c.h.b16 %v4141
    %v7074 = vunpack.c.l.b16 %v4142
    %v7075 = vunpack.c.h.b16 %v4142
    %v7076 = vunpack.c.l.b16 %v4143
    %v7077 = vunpack.c.h.b16 %v4143
    %v7078 = vunpack.c.l.b16 %v4144
    %v7079 = vunpack.c.h.b16 %v4144
    %v7080 = vunpack.c.l.b16 %v4145
    %v7081 = vunpack.c.h.b16 %v4145
    %v7082 = vunpack.c.l.b16 %v4146
    %v7083 = vunpack.c.h.b16 %v4146
    %v7084 = vunpack.c.l.b16 %v4147
    %v7085 = vunpack.c.h.b16 %v4147
    %v7086 = vunpack.c.l.b16 %v4148
    %v7087 = vunpack.c.h.b16 %v4148
    %v7088 = vunpack.c.l.b16 %v4149
    %v7089 = vunpack.c.h.b16 %v4149
    %v7090 = vunpack.c.l.b16 %v4150
    %v7091 = vunpack.c.h.b16 %v4150
    %v7092 = vunpack.c.l.b16 %v4151
    %v7093 = vunpack.c.h.b16 %v4151
    %v7094 = vunpack.c.l.b16 %v4152
    %v7095 = vunpack.c.h.b16 %v4152
    %v7096 = vunpack.c.l.b16 %v4153
    %v7097 = vunpack.c.h.b16 %v4153
    %v7098 = vunpack.c.l.b16 %v4154
    %v7099 = vunpack.c.h.b16 %v4154
    %v7100 = vunpack.c.l.b16 %v4155
    %v7101 = vunpack.c.h.b16 %v4155
    %v7102 = vunpack.c.l.b16 %v4156
    %v7103 = vunpack.c.h.b16 %v4156
    %v7104 = vunpack.c.l.b16 %v4157
    %v7105 = vunpack.c.h.b16 %v4157
    %v7106 = vunpack.c.l.b16 %v4158
    %v7107 = vunpack.c.h.b16 %v4158
    %v7108 = vunpack.c.l.b16 %v4159
    %v7109 = vunpack.c.h.b16 %v4159
    %v7110 = vunpack.c.l.b16 %v4160
    %v7111 = vunpack.c.h.b16 %v4160
    %v7112 = vunpack.c.l.b16 %v4161
    %v7113 = vunpack.c.h.b16 %v4161
    %v7114 = vunpack.c.l.b16 %v4162
    %v7115 = vunpack.c.h.b16 %v4162
    %v7116 = vunpack.c.l.b16 %v4163
    %v7117 = vunpack.c.h.b16 %v4163
    %v7118 = vunpack.c.l.b16 %v4164
    %v7119 = vunpack.c.h.b16 %v4164
    %v7120 = vunpack.c.l.b16 %v4165
    %v7121 = vunpack.c.h.b16 %v4165
    %v7122 = vunpack.c.l.b16 %v4166
    %v7123 = vunpack.c.h.b16 %v4166
    %v7124 = vunpack.c.l.b16 %v4167
    %v7125 = vunpack.c.h.b16 %v4167
    %v7126 = vunpack.c.l.b16 %v4168
    %v7127 = vunpack.c.h.b16 %v4168
    %v7128 = vunpack.c.l.b16 %v4169
    %v7129 = vunpack.c.h.b16 %v4169
    %v7130 = vunpack.c.l.b16 %v4170
    %v7131 = vunpack.c.h.b16 %v4170
    %v7132 = vunpack.c.l.b16 %v4171
    %v7133 = vunpack.c.h.b16 %v4171
    %v7134 = vunpack.c.l.b16 %v4172
    %v7135 = vunpack.c.h.b16 %v4172
    %v7136 = vunpack.c.l.b16 %v4173
    %v7137 = vunpack.c.h.b16 %v4173
    %v7138 = vunpack.c.l.b16 %v4174
    %v7139 = vunpack.c.h.b16 %v4174
    %v7140 = vunpack.c.l.b16 %v4175
    %v7141 = vunpack.c.h.b16 %v4175
    %v7142 = vunpack.c.l.b16 %v4176
    %v7143 = vunpack.c.h.b16 %v4176
    %v7144 = vunpack.c.l.b16 %v4177
    %v7145 = vunpack.c.h.b16 %v4177
    %v7146 = vunpack.c.l.b16 %v4178
    %v7147 = vunpack.c.h.b16 %v4178
    %v7148 = vunpack.c.l.b16 %v4179
    %v7149 = vunpack.c.h.b16 %v4179
    %v7150 = vunpack.c.l.b16 %v4180
    %v7151 = vunpack.c.h.b16 %v4180
    %v7152 = vunpack.c.l.b16 %v4181
    %v7153 = vunpack.c.h.b16 %v4181
    %v7154 = vunpack.c.l.b16 %v4182
    %v7155 = vunpack.c.h.b16 %v4182
    %v7156 = vunpack.c.l.b16 %v4183
    %v7157 = vunpack.c.h.b16 %v4183
    %v7158 = vunpack.c.l.b16 %v4184
    %v7159 = vunpack.c.h.b16 %v4184
    %v7160 = vunpack.c.l.b16 %v4185
    %v7161 = vunpack.c.h.b16 %v4185
    %v7162 = vunpack.c.l.b16 %v4186
    %v7163 = vunpack.c.h.b16 %v4186
    %v7164 = vunpack.c.l.b16 %v4187
    %v7165 = vunpack.c.h.b16 %v4187
    %v7166 = vunpack.c.l.b16 %v4188
    %v7167 = vunpack.c.h.b16 %v4188
    %v7168 = vunpack.c.l.b16 %v4189
    %v7169 = vunpack.c.h.b16 %v4189
    %v7170 = vunpack.c.l.b16 %v4190
    %v7171 = vunpack.c.h.b16 %v4190
    %v7172 = vunpack.c.l.b16 %v4191
    %v7173 = vunpack.c.h.b16 %v4191
    %v7174 = vunpack.c.l.b16 %v4192
    %v7175 = vunpack.c.h.b16 %v4192
    %v7176 = vunpack.c.l.b16 %v4193
    %v7177 = vunpack.c.h.b16 %v4193
    %v7178 = vunpack.c.l.b16 %v4194
    %v7179 = vunpack.c.h.b16 %v4194
    %v7180 = vunpack.c.l.b16 %v4195
    %v7181 = vunpack.c.h.b16 %v4195
    %v7182 = vunpack.c.l.b16 %v4196
    %v7183 = vunpack.c.h.b16 %v4196
    %v7184 = vunpack.c.l.b16 %v4197
    %v7185 = vunpack.c.h.b16 %v4197
    %v7186 = vunpack.c.l.b16 %v4198
    %v7187 = vunpack.c.h.b16 %v4198
    %v7188 = vunpack.c.l.b16 %v4199
    %v7189 = vunpack.c.h.b16 %v4199
    %v7190 = vunpack.c.l.b16 %v4200
    %v7191 = vunpack.c.h.b16 %v4200
    %v7192 = vunpack.c.l.b16 %v4201
    %v7193 = vunpack.c.h.b16 %v4201
    %v7194 = vunpack.c.l.b16 %v4202
    %v7195 = vunpack.c.h.b16 %v4202
    %v7196 = vunpack.c.l.b16 %v4203
    %v7197 = vunpack.c.h.b16 %v4203
    %v7198 = vunpack.c.l.b16 %v4204
    %v7199 = vunpack.c.h.b16 %v4204
    %v7200 = vunpack.c.l.b16 %v4205
    %v7201 = vunpack.c.h.b16 %v4205
    %v7202 = vunpack.c.l.b16 %v4206
    %v7203 = vunpack.c.h.b16 %v4206
    %v7204 = vunpack.c.l.b16 %v4207
    %v7205 = vunpack.c.h.b16 %v4207
    %v7206 = vunpack.c.l.b16 %v4208
    %v7207 = vunpack.c.h.b16 %v4208
    %v7208 = vunpack.c.l.b16 %v4209
    %v7209 = vunpack.c.h.b16 %v4209
    %v7210 = vunpack.c.l.b16 %v4210
    %v7211 = vunpack.c.h.b16 %v4210
    %v7212 = vunpack.c.l.b16 %v4211
    %v7213 = vunpack.c.h.b16 %v4211
    %v7214 = vunpack.c.l.b16 %v4212
    %v7215 = vunpack.c.h.b16 %v4212
    %v7216 = vunpack.c.l.b16 %v4213
    %v7217 = vunpack.c.h.b16 %v4213
    %v7218 = vunpack.c.l.b16 %v4214
    %v7219 = vunpack.c.h.b16 %v4214
    %v7220 = vunpack.c.l.b16 %v4215
    %v7221 = vunpack.c.h.b16 %v4215
    %v7222 = vunpack.c.l.b16 %v4216
    %v7223 = vunpack.c.h.b16 %v4216
    %v7224 = vunpack.c.l.b16 %v4217
    %v7225 = vunpack.c.h.b16 %v4217
    %v7226 = vunpack.c.l.b16 %v4218
    %v7227 = vunpack.c.h.b16 %v4218
    %v7228 = vunpack.c.l.b16 %v4219
    %v7229 = vunpack.c.h.b16 %v4219
    %v7230 = vunpack.c.l.b16 %v4220
    %v7231 = vunpack.c.h.b16 %v4220
    %v7232 = vunpack.c.l.b16 %v4221
    %v7233 = vunpack.c.h.b16 %v4221
    %v7234 = vunpack.c.l.b16 %v4222
    %v7235 = vunpack.c.h.b16 %v4222
    %v7236 = vunpack.c.l.b16 %v4223
    %v7237 = vunpack.c.h.b16 %v4223
    %v7238 = vunpack.c.l.b16 %v4224
    %v7239 = vunpack.c.h.b16 %v4224
    %v7240 = vunpack.c.l.b16 %v4225
    %v7241 = vunpack.c.h.b16 %v4225
    %v7242 = vunpack.c.l.b16 %v4226
    %v7243 = vunpack.c.h.b16 %v4226
    %v7244 = vunpack.c.l.b16 %v4227
    %v7245 = vunpack.c.h.b16 %v4227
    %v7246 = vunpack.c.l.b16 %v4228
    %v7247 = vunpack.c.h.b16 %v4228
    %v7248 = vunpack.c.l.b16 %v4229
    %v7249 = vunpack.c.h.b16 %v4229
    %v7250 = vunpack.c.l.b16 %v4230
    %v7251 = vunpack.c.h.b16 %v4230
    %v7252 = vunpack.c.l.b16 %v4231
    %v7253 = vunpack.c.h.b16 %v4231
    %v7254 = vunpack.c.l.b16 %v4232
    %v7255 = vunpack.c.h.b16 %v4232
    %v7256 = vunpack.c.l.b16 %v4233
    %v7257 = vunpack.c.h.b16 %v4233
    %v7258 = vunpack.c.l.b16 %v4234
    %v7259 = vunpack.c.h.b16 %v4234
    %v7260 = vunpack.c.l.b16 %v4235
    %v7261 = vunpack.c.h.b16 %v4235
    %v7262 = vunpack.c.l.b16 %v4236
    %v7263 = vunpack.c.h.b16 %v4236
    %v7264 = vunpack.c.l.b16 %v4237
    %v7265 = vunpack.c.h.b16 %v4237
    %v7266 = vunpack.c.l.b16 %v4238
    %v7267 = vunpack.c.h.b16 %v4238
    %v7268 = vunpack.c.l.b16 %v4239
    %v7269 = vunpack.c.h.b16 %v4239
    %v7270 = vunpack.c.l.b16 %v4240
    %v7271 = vunpack.c.h.b16 %v4240
    %v7272 = vunpack.c.l.b16 %v4241
    %v7273 = vunpack.c.h.b16 %v4241
    %v7274 = vunpack.c.l.b16 %v4242
    %v7275 = vunpack.c.h.b16 %v4242
    %v7276 = vunpack.c.l.b16 %v4243
    %v7277 = vunpack.c.h.b16 %v4243
    %v7278 = vunpack.c.l.b16 %v4244
    %v7279 = vunpack.c.h.b16 %v4244
    %v7280 = vunpack.c.l.b16 %v4245
    %v7281 = vunpack.c.h.b16 %v4245
    %v7282 = vunpack.c.l.b16 %v4246
    %v7283 = vunpack.c.h.b16 %v4246
    %v7284 = vunpack.c.l.b16 %v4247
    %v7285 = vunpack.c.h.b16 %v4247
    %v7286 = vunpack.c.l.b16 %v4248
    %v7287 = vunpack.c.h.b16 %v4248
    %v7288 = vunpack.c.l.b16 %v4249
    %v7289 = vunpack.c.h.b16 %v4249
    %v7290 = vunpack.c.l.b16 %v4250
    %v7291 = vunpack.c.h.b16 %v4250
    %v7292 = vunpack.c.l.b16 %v4251
    %v7293 = vunpack.c.h.b16 %v4251
    %v7294 = vunpack.c.l.b16 %v4252
    %v7295 = vunpack.c.h.b16 %v4252
    %v7296 = vunpack.c.l.b16 %v4253
    %v7297 = vunpack.c.h.b16 %v4253
    %v7298 = vunpack.c.l.b16 %v4254
    %v7299 = vunpack.c.h.b16 %v4254
    %v7300 = vunpack.c.l.b16 %v4255
    %v7301 = vunpack.c.h.b16 %v4255
    %v7302 = vunpack.c.l.b16 %v4256
    %v7303 = vunpack.c.h.b16 %v4256
    %v7304 = vunpack.c.l.b16 %v4257
    %v7305 = vunpack.c.h.b16 %v4257
    %v7306 = vunpack.c.l.b16 %v4258
    %v7307 = vunpack.c.h.b16 %v4258
    %v7308 = vunpack.c.l.b16 %v4259
    %v7309 = vunpack.c.h.b16 %v4259
    %v7310 = vunpack.c.l.b16 %v4260
    %v7311 = vunpack.c.h.b16 %v4260
    %v7312 = vunpack.c.l.b16 %v4261
    %v7313 = vunpack.c.h.b16 %v4261
    %v7314 = vunpack.c.l.b16 %v4262
    %v7315 = vunpack.c.h.b16 %v4262
    %v7316 = vunpack.c.l.b16 %v4263
    %v7317 = vunpack.c.h.b16 %v4263
    %v7318 = vunpack.c.l.b16 %v4264
    %v7319 = vunpack.c.h.b16 %v4264
    %v7320 = vunpack.c.l.b16 %v4265
    %v7321 = vunpack.c.h.b16 %v4265
    %v7322 = vunpack.c.l.b16 %v4266
    %v7323 = vunpack.c.h.b16 %v4266
    %v7324 = vunpack.c.l.b16 %v4267
    %v7325 = vunpack.c.h.b16 %v4267
    %v7326 = vunpack.c.l.b16 %v4268
    %v7327 = vunpack.c.h.b16 %v4268
    %v7328 = vunpack.c.l.b16 %v4269
    %v7329 = vunpack.c.h.b16 %v4269
    %v7330 = vunpack.c.l.b16 %v4270
    %v7331 = vunpack.c.h.b16 %v4270
    %v7332 = vunpack.c.l.b16 %v4271
    %v7333 = vunpack.c.h.b16 %v4271
    %v7334 = vunpack.c.l.b16 %v4272
    %v7335 = vunpack.c.h.b16 %v4272
    %v7336 = vunpack.c.l.b16 %v4273
    %v7337 = vunpack.c.h.b16 %v4273
    %v7338 = vunpack.c.l.b16 %v4274
    %v7339 = vunpack.c.h.b16 %v4274
    %v7340 = vunpack.c.l.b16 %v4275
    %v7341 = vunpack.c.h.b16 %v4275
    %v7342 = vunpack.c.l.b16 %v4276
    %v7343 = vunpack.c.h.b16 %v4276
    %v7344 = vunpack.c.l.b16 %v4277
    %v7345 = vunpack.c.h.b16 %v4277
    %v7346 = vunpack.c.l.b16 %v4278
    %v7347 = vunpack.c.h.b16 %v4278
    %v7348 = vunpack.c.l.b16 %v4279
    %v7349 = vunpack.c.h.b16 %v4279
    %v7350 = vunpack.c.l.b16 %v4280
    %v7351 = vunpack.c.h.b16 %v4280
    %v7352 = vunpack.c.l.b16 %v4281
    %v7353 = vunpack.c.h.b16 %v4281
    %v7354 = vunpack.c.l.b16 %v4282
    %v7355 = vunpack.c.h.b16 %v4282
    %v7356 = vunpack.c.l.b16 %v4283
    %v7357 = vunpack.c.h.b16 %v4283
    %v7358 = vunpack.c.l.b16 %v4284
    %v7359 = vunpack.c.h.b16 %v4284
    %v7360 = vunpack.c.l.b16 %v4285
    %v7361 = vunpack.c.h.b16 %v4285
    %v7362 = vunpack.c.l.b16 %v4286
    %v7363 = vunpack.c.h.b16 %v4286
    %v7364 = vunpack.c.l.b16 %v4287
    %v7365 = vunpack.c.h.b16 %v4287
    %v7366 = vunpack.c.l.b16 %v4288
    %v7367 = vunpack.c.h.b16 %v4288
    %v7368 = vunpack.c.l.b16 %v4289
    %v7369 = vunpack.c.h.b16 %v4289
    %v7370 = vunpack.c.l.b16 %v4290
    %v7371 = vunpack.c.h.b16 %v4290
    %v7372 = vunpack.c.l.b16 %v4291
    %v7373 = vunpack.c.h.b16 %v4291
    %v7374 = vunpack.c.l.b16 %v4292
    %v7375 = vunpack.c.h.b16 %v4292
    %v7376 = vunpack.c.l.b16 %v4293
    %v7377 = vunpack.c.h.b16 %v4293
    %v7378 = vunpack.c.l.b16 %v4294
    %v7379 = vunpack.c.h.b16 %v4294
    %v7380 = vunpack.c.l.b16 %v4295
    %v7381 = vunpack.c.h.b16 %v4295
    %v7382 = vunpack.c.l.b16 %v4296
    %v7383 = vunpack.c.h.b16 %v4296
    %v7384 = vunpack.c.l.b16 %v4297
    %v7385 = vunpack.c.h.b16 %v4297
    %v7386 = vunpack.c.l.b16 %v4298
    %v7387 = vunpack.c.h.b16 %v4298
    %v7388 = vunpack.c.l.b16 %v4299
    %v7389 = vunpack.c.h.b16 %v4299
    %v7390 = vunpack.c.l.b16 %v4300
    %v7391 = vunpack.c.h.b16 %v4300
    %v7392 = vunpack.c.l.b16 %v4301
    %v7393 = vunpack.c.h.b16 %v4301
    %v7394 = vunpack.c.l.b16 %v4302
    %v7395 = vunpack.c.h.b16 %v4302
    %v7396 = vunpack.c.l.b16 %v4303
    %v7397 = vunpack.c.h.b16 %v4303
    %v7398 = vunpack.c.l.b16 %v4304
    %v7399 = vunpack.c.h.b16 %v4304
    %v7400 = vunpack.c.l.b16 %v4305
    %v7401 = vunpack.c.h.b16 %v4305
    %v7402 = vunpack.c.l.b16 %v4306
    %v7403 = vunpack.c.h.b16 %v4306
    %v7404 = vunpack.c.l.b16 %v4307
    %v7405 = vunpack.c.h.b16 %v4307
    %v7406 = vunpack.c.l.b16 %v4308
    %v7407 = vunpack.c.h.b16 %v4308
    %v7408 = vunpack.c.l.b16 %v4309
    %v7409 = vunpack.c.h.b16 %v4309
    %v7410 = vunpack.c.l.b16 %v4310
    %v7411 = vunpack.c.h.b16 %v4310
    %v7412 = vunpack.c.l.b16 %v4311
    %v7413 = vunpack.c.h.b16 %v4311
    %v7414 = vunpack.c.l.b16 %v4312
    %v7415 = vunpack.c.h.b16 %v4312
    %v7416 = vunpack.c.l.b16 %v4313
    %v7417 = vunpack.c.h.b16 %v4313
    %v7418 = vunpack.c.l.b16 %v4314
    %v7419 = vunpack.c.h.b16 %v4314
    %v7420 = vunpack.c.l.b16 %v4315
    %v7421 = vunpack.c.h.b16 %v4315
    %v7422 = vunpack.c.l.b16 %v4316
    %v7423 = vunpack.c.h.b16 %v4316
    %v7424 = vunpack.c.l.b16 %v4317
    %v7425 = vunpack.c.h.b16 %v4317
    %v7426 = vunpack.c.l.b16 %v4318
    %v7427 = vunpack.c.h.b16 %v4318
    %v7428 = vunpack.c.l.b16 %v4319
    %v7429 = vunpack.c.h.b16 %v4319
    %v7430 = vunpack.c.l.b16 %v4320
    %v7431 = vunpack.c.h.b16 %v4320
    %v7432 = vunpack.c.l.b16 %v4321
    %v7433 = vunpack.c.h.b16 %v4321
    %v7434 = vunpack.c.l.b16 %v4322
    %v7435 = vunpack.c.h.b16 %v4322
    %v7436 = vunpack.c.l.b16 %v4323
    %v7437 = vunpack.c.h.b16 %v4323
    %v7438 = vunpack.c.l.b16 %v4324
    %v7439 = vunpack.c.h.b16 %v4324
    %v7440 = vunpack.c.l.b16 %v4325
    %v7441 = vunpack.c.h.b16 %v4325
    %v7442 = vunpack.c.l.b16 %v4326
    %v7443 = vunpack.c.h.b16 %v4326
    %v7444 = vunpack.c.l.b16 %v4327
    %v7445 = vunpack.c.h.b16 %v4327
    %v7446 = vunpack.c.l.b16 %v4328
    %v7447 = vunpack.c.h.b16 %v4328
    %v7448 = vunpack.c.l.b16 %v4329
    %v7449 = vunpack.c.h.b16 %v4329
    %v7450 = vunpack.c.l.b16 %v4330
    %v7451 = vunpack.c.h.b16 %v4330
    %v7452 = vunpack.c.l.b16 %v4331
    %v7453 = vunpack.c.h.b16 %v4331
    %v7454 = vunpack.c.l.b16 %v4332
    %v7455 = vunpack.c.h.b16 %v4332
    %v7456 = vunpack.c.l.b16 %v4333
    %v7457 = vunpack.c.h.b16 %v4333
    %v7458 = vunpack.c.l.b16 %v4334
    %v7459 = vunpack.c.h.b16 %v4334
    %v7460 = vunpack.c.l.b16 %v4335
    %v7461 = vunpack.c.h.b16 %v4335
    %v7462 = vunpack.c.l.b16 %v4336
    %v7463 = vunpack.c.h.b16 %v4336
    %v7464 = vunpack.c.l.b16 %v4337
    %v7465 = vunpack.c.h.b16 %v4337
    %v7466 = vunpack.c.l.b16 %v4338
    %v7467 = vunpack.c.h.b16 %v4338
    %v7468 = vunpack.c.l.b16 %v4339
    %v7469 = vunpack.c.h.b16 %v4339
    %v7470 = vunpack.c.l.b16 %v4340
    %v7471 = vunpack.c.h.b16 %v4340
    %v7472 = vunpack.c.l.b16 %v4341
    %v7473 = vunpack.c.h.b16 %v4341
    %v7474 = vunpack.c.l.b16 %v4342
    %v7475 = vunpack.c.h.b16 %v4342
    %v7476 = vunpack.c.l.b16 %v4343
    %v7477 = vunpack.c.h.b16 %v4343
    %v7478 = vunpack.c.l.b16 %v4344
    %v7479 = vunpack.c.h.b16 %v4344
    %v7480 = vunpack.c.l.b16 %v4345
    %v7481 = vunpack.c.h.b16 %v4345
    %v7482 = vunpack.c.l.b16 %v4346
    %v7483 = vunpack.c.h.b16 %v4346
    %v7484 = vunpack.c.l.b16 %v4347
    %v7485 = vunpack.c.h.b16 %v4347
    %v7486 = vunpack.c.l.b16 %v4348
    %v7487 = vunpack.c.h.b16 %v4348
    %v7488 = vunpack.c.l.b16 %v4349
    %v7489 = vunpack.c.h.b16 %v4349
    %v7490 = vunpack.c.l.b16 %v4350
    %v7491 = vunpack.c.h.b16 %v4350
    %v7492 = vunpack.c.l.b16 %v4351
    %v7493 = vunpack.c.h.b16 %v4351
    %v7494 = vunpack.c.l.b16 %v4352
    %v7495 = vunpack.c.h.b16 %v4352
    %v7496 = vunpack.c.l.b16 %v4353
    %v7497 = vunpack.c.h.b16 %v4353
    %v7498 = vunpack.c.l.b16 %v4354
    %v7499 = vunpack.c.h.b16 %v4354
    %v7500 = vunpack.c.l.b16 %v4355
    %v7501 = vunpack.c.h.b16 %v4355
    %v7502 = vunpack.c.l.b16 %v4356
    %v7503 = vunpack.c.h.b16 %v4356
    %v7504 = vunpack.c.l.b16 %v4357
    %v7505 = vunpack.c.h.b16 %v4357
    %v7506 = vpack.c.b16 %v5474, %v5458
    %v7507 = vpack.c.b16 %v5475, %v5459
    %v7508 = vpack.c.b16 %v5476, %v5460
    %v7509 = vpack.c.b16 %v5477, %v5461
    %v7510 = vpack.c.b16 %v5478, %v5462
    %v7511 = vpack.c.b16 %v5479, %v5463
    %v7512 = vpack.c.b16 %v5480, %v5464
    %v7513 = vpack.c.b16 %v5481, %v5465
    %v7514 = vpack.c.b16 %v5482, %v5466
    %v7515 = vpack.c.b16 %v5483, %v5467
    %v7516 = vpack.c.b16 %v5484, %v5468
    %v7517 = vpack.c.b16 %v5485, %v5469
    %v7518 = vpack.c.b16 %v5486, %v5470
    %v7519 = vpack.c.b16 %v5487, %v5471
    %v7520 = vpack.c.b16 %v5488, %v5472
    %v7521 = vpack.c.b16 %v5489, %v5473
    %v7522 = vpack.c.b16 %v5506, %v5490
    %v7523 = vpack.c.b16 %v5507, %v5491
    %v7524 = vpack.c.b16 %v5508, %v5492
    %v7525 = vpack.c.b16 %v5509, %v5493
    %v7526 = vpack.c.b16 %v5510, %v5494
    %v7527 = vpack.c.b16 %v5511, %v5495
    %v7528 = vpack.c.b16 %v5512, %v5496
    %v7529 = vpack.c.b16 %v5513, %v5497
    %v7530 = vpack.c.b16 %v5514, %v5498
    %v7531 = vpack.c.b16 %v5515, %v5499
    %v7532 = vpack.c.b16 %v5516, %v5500
    %v7533 = vpack.c.b16 %v5517, %v5501
    %v7534 = vpack.c.b16 %v5518, %v5502
    %v7535 = vpack.c.b16 %v5519, %v5503
    %v7536 = vpack.c.b16 %v5520, %v5504
    %v7537 = vpack.c.b16 %v5521, %v5505
    %v7538 = vpack.c.b16 %v5538, %v5522
    %v7539 = vpack.c.b16 %v5539, %v5523
    %v7540 = vpack.c.b16 %v5540, %v5524
    %v7541 = vpack.c.b16 %v5541, %v5525
    %v7542 = vpack.c.b16 %v5542, %v5526
    %v7543 = vpack.c.b16 %v5543, %v5527
    %v7544 = vpack.c.b16 %v5544, %v5528
    %v7545 = vpack.c.b16 %v5545, %v5529
    %v7546 = vpack.c.b16 %v5546, %v5530
    %v7547 = vpack.c.b16 %v5547, %v5531
    %v7548 = vpack.c.b16 %v5548, %v5532
    %v7549 = vpack.c.b16 %v5549, %v5533
    %v7550 = vpack.c.b16 %v5550, %v5534
    %v7551 = vpack.c.b16 %v5551, %v5535
    %v7552 = vpack.c.b16 %v5552, %v5536
    %v7553 = vpack.c.b16 %v5553, %v5537
    %v7554 = vpack.c.b16 %v5570, %v5554
    %v7555 = vpack.c.b16 %v5571, %v5555
    %v7556 = vpack.c.b16 %v5572, %v5556
    %v7557 = vpack.c.b16 %v5573, %v5557
    %v7558 = vpack.c.b16 %v5574, %v5558
    %v7559 = vpack.c.b16 %v5575, %v5559
    %v7560 = vpack.c.b16 %v5576, %v5560
    %v7561 = vpack.c.b16 %v5577, %v5561
    %v7562 = vpack.c.b16 %v5578, %v5562
    %v7563 = vpack.c.b16 %v5579, %v5563
    %v7564 = vpack.c.b16 %v5580, %v5564
    %v7565 = vpack.c.b16 %v5581, %v5565
    %v7566 = vpack.c.b16 %v5582, %v5566
    %v7567 = vpack.c.b16 %v5583, %v5567
    %v7568 = vpack.c.b16 %v5584, %v5568
    %v7569 = vpack.c.b16 %v5585, %v5569
    %v7570 = vpack.c.b16 %v5602, %v5586
    %v7571 = vpack.c.b16 %v5603, %v5587
    %v7572 = vpack.c.b16 %v5604, %v5588
    %v7573 = vpack.c.b16 %v5605, %v5589
    %v7574 = vpack.c.b16 %v5606, %v5590
    %v7575 = vpack.c.b16 %v5607, %v5591
    %v7576 = vpack.c.b16 %v5608, %v5592
    %v7577 = vpack.c.b16 %v5609, %v5593
    %v7578 = vpack.c.b16 %v5610, %v5594
    %v7579 = vpack.c.b16 %v5611, %v5595
    %v7580 = vpack.c.b16 %v5612, %v5596
    %v7581 = vpack.c.b16 %v5613, %v5597
    %v7582 = vpack.c.b16 %v5614, %v5598
    %v7583 = vpack.c.b16 %v5615, %v5599
    %v7584 = vpack.c.b16 %v5616, %v5600
    %v7585 = vpack.c.b16 %v5617, %v5601
    %v7586 = vpack.c.b16 %v5634, %v5618
    %v7587 = vpack.c.b16 %v5635, %v5619
    %v7588 = vpack.c.b16 %v5636, %v5620
    %v7589 = vpack.c.b16 %v5637, %v5621
    %v7590 = vpack.c.b16 %v5638, %v5622
    %v7591 = vpack.c.b16 %v5639, %v5623
    %v7592 = vpack.c.b16 %v5640, %v5624
    %v7593 = vpack.c.b16 %v5641, %v5625
    %v7594 = vpack.c.b16 %v5642, %v5626
    %v7595 = vpack.c.b16 %v5643, %v5627
    %v7596 = vpack.c.b16 %v5644, %v5628
    %v7597 = vpack.c.b16 %v5645, %v5629
    %v7598 = vpack.c.b16 %v5646, %v5630
    %v7599 = vpack.c.b16 %v5647, %v5631
    %v7600 = vpack.c.b16 %v5648, %v5632
    %v7601 = vpack.c.b16 %v5649, %v5633
    %v7602 = vpack.c.b16 %v5666, %v5650
    %v7603 = vpack.c.b16 %v5667, %v5651
    %v7604 = vpack.c.b16 %v5668, %v5652
    %v7605 = vpack.c.b16 %v5669, %v5653
    %v7606 = vpack.c.b16 %v5670, %v5654
    %v7607 = vpack.c.b16 %v5671, %v5655
    %v7608 = vpack.c.b16 %v5672, %v5656
    %v7609 = vpack.c.b16 %v5673, %v5657
    %v7610 = vpack.c.b16 %v5674, %v5658
    %v7611 = vpack.c.b16 %v5675, %v5659
    %v7612 = vpack.c.b16 %v5676, %v5660
    %v7613 = vpack.c.b16 %v5677, %v5661
    %v7614 = vpack.c.b16 %v5678, %v5662
    %v7615 = vpack.c.b16 %v5679, %v5663
    %v7616 = vpack.c.b16 %v5680, %v5664
    %v7617 = vpack.c.b16 %v5681, %v5665
    %v7618 = vpack.c.b16 %v5698, %v5682
    %v7619 = vpack.c.b16 %v5699, %v5683
    %v7620 = vpack.c.b16 %v5700, %v5684
    %v7621 = vpack.c.b16 %v5701, %v5685
    %v7622 = vpack.c.b16 %v5702, %v5686
    %v7623 = vpack.c.b16 %v5703, %v5687
    %v7624 = vpack.c.b16 %v5704, %v5688
    %v7625 = vpack.c.b16 %v5705, %v5689
    %v7626 = vpack.c.b16 %v5706, %v5690
    %v7627 = vpack.c.b16 %v5707, %v5691
    %v7628 = vpack.c.b16 %v5708, %v5692
    %v7629 = vpack.c.b16 %v5709, %v5693
    %v7630 = vpack.c.b16 %v5710, %v5694
    %v7631 = vpack.c.b16 %v5711, %v5695
    %v7632 = vpack.c.b16 %v5712, %v5696
    %v7633 = vpack.c.b16 %v5713, %v5697
    %v7634 = vpack.c.b16 %v5730, %v5714
    %v7635 = vpack.c.b16 %v5731, %v5715
    %v7636 = vpack.c.b16 %v5732, %v5716
    %v7637 = vpack.c.b16 %v5733, %v5717
    %v7638 = vpack.c.b16 %v5734, %v5718
    %v7639 = vpack.c.b16 %v5735, %v5719
    %v7640 = vpack.c.b16 %v5736, %v5720
    %v7641 = vpack.c.b16 %v5737, %v5721
    %v7642 = vpack.c.b16 %v5738, %v5722
    %v7643 = vpack.c.b16 %v5739, %v5723
    %v7644 = vpack.c.b16 %v5740, %v5724
    %v7645 = vpack.c.b16 %v5741, %v5725
    %v7646 = vpack.c.b16 %v5742, %v5726
    %v7647 = vpack.c.b16 %v5743, %v5727
    %v7648 = vpack.c.b16 %v5744, %v5728
    %v7649 = vpack.c.b16 %v5745, %v5729
    %v7650 = vpack.c.b16 %v5762, %v5746
    %v7651 = vpack.c.b16 %v5763, %v5747
    %v7652 = vpack.c.b16 %v5764, %v5748
    %v7653 = vpack.c.b16 %v5765, %v5749
    %v7654 = vpack.c.b16 %v5766, %v5750
    %v7655 = vpack.c.b16 %v5767, %v5751
    %v7656 = vpack.c.b16 %v5768, %v5752
    %v7657 = vpack.c.b16 %v5769, %v5753
    %v7658 = vpack.c.b16 %v5770, %v5754
    %v7659 = vpack.c.b16 %v5771, %v5755
    %v7660 = vpack.c.b16 %v5772, %v5756
    %v7661 = vpack.c.b16 %v5773, %v5757
    %v7662 = vpack.c.b16 %v5774, %v5758
    %v7663 = vpack.c.b16 %v5775, %v5759
    %v7664 = vpack.c.b16 %v5776, %v5760
    %v7665 = vpack.c.b16 %v5777, %v5761
    %v7666 = vpack.c.b16 %v5794, %v5778
    %v7667 = vpack.c.b16 %v5795, %v5779
    %v7668 = vpack.c.b16 %v5796, %v5780
    %v7669 = vpack.c.b16 %v5797, %v5781
    %v7670 = vpack.c.b16 %v5798, %v5782
    %v7671 = vpack.c.b16 %v5799, %v5783
    %v7672 = vpack.c.b16 %v5800, %v5784
    %v7673 = vpack.c.b16 %v5801, %v5785
    %v7674 = vpack.c.b16 %v5802, %v5786
    %v7675 = vpack.c.b16 %v5803, %v5787
    %v7676 = vpack.c.b16 %v5804, %v5788
    %v7677 = vpack.c.b16 %v5805, %v5789
    %v7678 = vpack.c.b16 %v5806, %v5790
    %v7679 = vpack.c.b16 %v5807, %v5791
    %v7680 = vpack.c.b16 %v5808, %v5792
    %v7681 = vpack.c.b16 %v5809, %v5793
    %v7682 = vpack.c.b16 %v5826, %v5810
    %v7683 = vpack.c.b16 %v5827, %v5811
    %v7684 = vpack.c.b16 %v5828, %v5812
    %v7685 = vpack.c.b16 %v5829, %v5813
    %v7686 = vpack.c.b16 %v5830, %v5814
    %v7687 = vpack.c.b16 %v5831, %v5815
    %v7688 = vpack.c.b16 %v5832, %v5816
    %v7689 = vpack.c.b16 %v5833, %v5817
    %v7690 = vpack.c.b16 %v5834, %v5818
    %v7691 = vpack.c.b16 %v5835, %v5819
    %v7692 = vpack.c.b16 %v5836, %v5820
    %v7693 = vpack.c.b16 %v5837, %v5821
    %v7694 = vpack.c.b16 %v5838, %v5822
    %v7695 = vpack.c.b16 %v5839, %v5823
    %v7696 = vpack.c.b16 %v5840, %v5824
    %v7697 = vpack.c.b16 %v5841, %v5825
    %v7698 = vpack.c.b16 %v5858, %v5842
    %v7699 = vpack.c.b16 %v5859, %v5843
    %v7700 = vpack.c.b16 %v5860, %v5844
    %v7701 = vpack.c.b16 %v5861, %v5845
    %v7702 = vpack.c.b16 %v5862, %v5846
    %v7703 = vpack.c.b16 %v5863, %v5847
    %v7704 = vpack.c.b16 %v5864, %v5848
    %v7705 = vpack.c.b16 %v5865, %v5849
    %v7706 = vpack.c.b16 %v5866, %v5850
    %v7707 = vpack.c.b16 %v5867, %v5851
    %v7708 = vpack.c.b16 %v5868, %v5852
    %v7709 = vpack.c.b16 %v5869, %v5853
    %v7710 = vpack.c.b16 %v5870, %v5854
    %v7711 = vpack.c.b16 %v5871, %v5855
    %v7712 = vpack.c.b16 %v5872, %v5856
    %v7713 = vpack.c.b16 %v5873, %v5857
    %v7714 = vpack.c.b16 %v5890, %v5874
    %v7715 = vpack.c.b16 %v5891, %v5875
    %v7716 = vpack.c.b16 %v5892, %v5876
    %v7717 = vpack.c.b16 %v5893, %v5877
    %v7718 = vpack.c.b16 %v5894, %v5878
    %v7719 = vpack.c.b16 %v5895, %v5879
    %v7720 = vpack.c.b16 %v5896, %v5880
    %v7721 = vpack.c.b16 %v5897, %v5881
    %v7722 = vpack.c.b16 %v5898, %v5882
    %v7723 = vpack.c.b16 %v5899, %v5883
    %v7724 = vpack.c.b16 %v5900, %v5884
    %v7725 = vpack.c.b16 %v5901, %v5885
    %v7726 = vpack.c.b16 %v5902, %v5886
    %v7727 = vpack.c.b16 %v5903, %v5887
    %v7728 = vpack.c.b16 %v5904, %v5888
    %v7729 = vpack.c.b16 %v5905, %v5889
    %v7730 = vpack.c.b16 %v5922, %v5906
    %v7731 = vpack.c.b16 %v5923, %v5907
    %v7732 = vpack.c.b16 %v5924, %v5908
    %v7733 = vpack.c.b16 %v5925, %v5909
    %v7734 = vpack.c.b16 %v5926, %v5910
    %v7735 = vpack.c.b16 %v5927, %v5911
    %v7736 = vpack.c.b16 %v5928, %v5912
    %v7737 = vpack.c.b16 %v5929, %v5913
    %v7738 = vpack.c.b16 %v5930, %v5914
    %v7739 = vpack.c.b16 %v5931, %v5915
    %v7740 = vpack.c.b16 %v5932, %v5916
    %v7741 = vpack.c.b16 %v5933, %v5917
    %v7742 = vpack.c.b16 %v5934, %v5918
    %v7743 = vpack.c.b16 %v5935, %v5919
    %v7744 = vpack.c.b16 %v5936, %v5920
    %v7745 = vpack.c.b16 %v5937, %v5921
    %v7746 = vpack.c.b16 %v5954, %v5938
    %v7747 = vpack.c.b16 %v5955, %v5939
    %v7748 = vpack.c.b16 %v5956, %v5940
    %v7749 = vpack.c.b16 %v5957, %v5941
    %v7750 = vpack.c.b16 %v5958, %v5942
    %v7751 = vpack.c.b16 %v5959, %v5943
    %v7752 = vpack.c.b16 %v5960, %v5944
    %v7753 = vpack.c.b16 %v5961, %v5945
    %v7754 = vpack.c.b16 %v5962, %v5946
    %v7755 = vpack.c.b16 %v5963, %v5947
    %v7756 = vpack.c.b16 %v5964, %v5948
    %v7757 = vpack.c.b16 %v5965, %v5949
    %v7758 = vpack.c.b16 %v5966, %v5950
    %v7759 = vpack.c.b16 %v5967, %v5951
    %v7760 = vpack.c.b16 %v5968, %v5952
    %v7761 = vpack.c.b16 %v5969, %v5953
    %v7762 = vpack.c.b16 %v5986, %v5970
    %v7763 = vpack.c.b16 %v5987, %v5971
    %v7764 = vpack.c.b16 %v5988, %v5972
    %v7765 = vpack.c.b16 %v5989, %v5973
    %v7766 = vpack.c.b16 %v5990, %v5974
    %v7767 = vpack.c.b16 %v5991, %v5975
    %v7768 = vpack.c.b16 %v5992, %v5976
    %v7769 = vpack.c.b16 %v5993, %v5977
    %v7770 = vpack.c.b16 %v5994, %v5978
    %v7771 = vpack.c.b16 %v5995, %v5979
    %v7772 = vpack.c.b16 %v5996, %v5980
    %v7773 = vpack.c.b16 %v5997, %v5981
    %v7774 = vpack.c.b16 %v5998, %v5982
    %v7775 = vpack.c.b16 %v5999, %v5983
    %v7776 = vpack.c.b16 %v6000, %v5984
    %v7777 = vpack.c.b16 %v6001, %v5985
    %v7778 = vpack.c.b16 %v6018, %v6002
    %v7779 = vpack.c.b16 %v6019, %v6003
    %v7780 = vpack.c.b16 %v6020, %v6004
    %v7781 = vpack.c.b16 %v6021, %v6005
    %v7782 = vpack.c.b16 %v6022, %v6006
    %v7783 = vpack.c.b16 %v6023, %v6007
    %v7784 = vpack.c.b16 %v6024, %v6008
    %v7785 = vpack.c.b16 %v6025, %v6009
    %v7786 = vpack.c.b16 %v6026, %v6010
    %v7787 = vpack.c.b16 %v6027, %v6011
    %v7788 = vpack.c.b16 %v6028, %v6012
    %v7789 = vpack.c.b16 %v6029, %v6013
    %v7790 = vpack.c.b16 %v6030, %v6014
    %v7791 = vpack.c.b16 %v6031, %v6015
    %v7792 = vpack.c.b16 %v6032, %v6016
    %v7793 = vpack.c.b16 %v6033, %v6017
    %v7794 = vpack.c.b16 %v6050, %v6034
    %v7795 = vpack.c.b16 %v6051, %v6035
    %v7796 = vpack.c.b16 %v6052, %v6036
    %v7797 = vpack.c.b16 %v6053, %v6037
    %v7798 = vpack.c.b16 %v6054, %v6038
    %v7799 = vpack.c.b16 %v6055, %v6039
    %v7800 = vpack.c.b16 %v6056, %v6040
    %v7801 = vpack.c.b16 %v6057, %v6041
    %v7802 = vpack.c.b16 %v6058, %v6042
    %v7803 = vpack.c.b16 %v6059, %v6043
    %v7804 = vpack.c.b16 %v6060, %v6044
    %v7805 = vpack.c.b16 %v6061, %v6045
    %v7806 = vpack.c.b16 %v6062, %v6046
    %v7807 = vpack.c.b16 %v6063, %v6047
    %v7808 = vpack.c.b16 %v6064, %v6048
    %v7809 = vpack.c.b16 %v6065, %v6049
    %v7810 = vpack.c.b16 %v6082, %v6066
    %v7811 = vpack.c.b16 %v6083, %v6067
    %v7812 = vpack.c.b16 %v6084, %v6068
    %v7813 = vpack.c.b16 %v6085, %v6069
    %v7814 = vpack.c.b16 %v6086, %v6070
    %v7815 = vpack.c.b16 %v6087, %v6071
    %v7816 = vpack.c.b16 %v6088, %v6072
    %v7817 = vpack.c.b16 %v6089, %v6073
    %v7818 = vpack.c.b16 %v6090, %v6074
    %v7819 = vpack.c.b16 %v6091, %v6075
    %v7820 = vpack.c.b16 %v6092, %v6076
    %v7821 = vpack.c.b16 %v6093, %v6077
    %v7822 = vpack.c.b16 %v6094, %v6078
    %v7823 = vpack.c.b16 %v6095, %v6079
    %v7824 = vpack.c.b16 %v6096, %v6080
    %v7825 = vpack.c.b16 %v6097, %v6081
    %v7826 = vpack.c.b16 %v6114, %v6098
    %v7827 = vpack.c.b16 %v6115, %v6099
    %v7828 = vpack.c.b16 %v6116, %v6100
    %v7829 = vpack.c.b16 %v6117, %v6101
    %v7830 = vpack.c.b16 %v6118, %v6102
    %v7831 = vpack.c.b16 %v6119, %v6103
    %v7832 = vpack.c.b16 %v6120, %v6104
    %v7833 = vpack.c.b16 %v6121, %v6105
    %v7834 = vpack.c.b16 %v6122, %v6106
    %v7835 = vpack.c.b16 %v6123, %v6107
    %v7836 = vpack.c.b16 %v6124, %v6108
    %v7837 = vpack.c.b16 %v6125, %v6109
    %v7838 = vpack.c.b16 %v6126, %v6110
    %v7839 = vpack.c.b16 %v6127, %v6111
    %v7840 = vpack.c.b16 %v6128, %v6112
    %v7841 = vpack.c.b16 %v6129, %v6113
    %v7842 = vpack.c.b16 %v6146, %v6130
    %v7843 = vpack.c.b16 %v6147, %v6131
    %v7844 = vpack.c.b16 %v6148, %v6132
    %v7845 = vpack.c.b16 %v6149, %v6133
    %v7846 = vpack.c.b16 %v6150, %v6134
    %v7847 = vpack.c.b16 %v6151, %v6135
    %v7848 = vpack.c.b16 %v6152, %v6136
    %v7849 = vpack.c.b16 %v6153, %v6137
    %v7850 = vpack.c.b16 %v6154, %v6138
    %v7851 = vpack.c.b16 %v6155, %v6139
    %v7852 = vpack.c.b16 %v6156, %v6140
    %v7853 = vpack.c.b16 %v6157, %v6141
    %v7854 = vpack.c.b16 %v6158, %v6142
    %v7855 = vpack.c.b16 %v6159, %v6143
    %v7856 = vpack.c.b16 %v6160, %v6144
    %v7857 = vpack.c.b16 %v6161, %v6145
    %v7858 = vpack.c.b16 %v6178, %v6162
    %v7859 = vpack.c.b16 %v6179, %v6163
    %v7860 = vpack.c.b16 %v6180, %v6164
    %v7861 = vpack.c.b16 %v6181, %v6165
    %v7862 = vpack.c.b16 %v6182, %v6166
    %v7863 = vpack.c.b16 %v6183, %v6167
    %v7864 = vpack.c.b16 %v6184, %v6168
    %v7865 = vpack.c.b16 %v6185, %v6169
    %v7866 = vpack.c.b16 %v6186, %v6170
    %v7867 = vpack.c.b16 %v6187, %v6171
    %v7868 = vpack.c.b16 %v6188, %v6172
    %v7869 = vpack.c.b16 %v6189, %v6173
    %v7870 = vpack.c.b16 %v6190, %v6174
    %v7871 = vpack.c.b16 %v6191, %v6175
    %v7872 = vpack.c.b16 %v6192, %v6176
    %v7873 = vpack.c.b16 %v6193, %v6177
    %v7874 = vpack.c.b16 %v6210, %v6194
    %v7875 = vpack.c.b16 %v6211, %v6195
    %v7876 = vpack.c.b16 %v6212, %v6196
    %v7877 = vpack.c.b16 %v6213, %v6197
    %v7878 = vpack.c.b16 %v6214, %v6198
    %v7879 = vpack.c.b16 %v6215, %v6199
    %v7880 = vpack.c.b16 %v6216, %v6200
    %v7881 = vpack.c.b16 %v6217, %v6201
    %v7882 = vpack.c.b16 %v6218, %v6202
    %v7883 = vpack.c.b16 %v6219, %v6203
    %v7884 = vpack.c.b16 %v6220, %v6204
    %v7885 = vpack.c.b16 %v6221, %v6205
    %v7886 = vpack.c.b16 %v6222, %v6206
    %v7887 = vpack.c.b16 %v6223, %v6207
    %v7888 = vpack.c.b16 %v6224, %v6208
    %v7889 = vpack.c.b16 %v6225, %v6209
    %v7890 = vpack.c.b16 %v6242, %v6226
    %v7891 = vpack.c.b16 %v6243, %v6227
    %v7892 = vpack.c.b16 %v6244, %v6228
    %v7893 = vpack.c.b16 %v6245, %v6229
    %v7894 = vpack.c.b16 %v6246, %v6230
    %v7895 = vpack.c.b16 %v6247, %v6231
    %v7896 = vpack.c.b16 %v6248, %v6232
    %v7897 = vpack.c.b16 %v6249, %v6233
    %v7898 = vpack.c.b16 %v6250, %v6234
    %v7899 = vpack.c.b16 %v6251, %v6235
    %v7900 = vpack.c.b16 %v6252, %v6236
    %v7901 = vpack.c.b16 %v6253, %v6237
    %v7902 = vpack.c.b16 %v6254, %v6238
    %v7903 = vpack.c.b16 %v6255, %v6239
    %v7904 = vpack.c.b16 %v6256, %v6240
    %v7905 = vpack.c.b16 %v6257, %v6241
    %v7906 = vpack.c.b16 %v6274, %v6258
    %v7907 = vpack.c.b16 %v6275, %v6259
    %v7908 = vpack.c.b16 %v6276, %v6260
    %v7909 = vpack.c.b16 %v6277, %v6261
    %v7910 = vpack.c.b16 %v6278, %v6262
    %v7911 = vpack.c.b16 %v6279, %v6263
    %v7912 = vpack.c.b16 %v6280, %v6264
    %v7913 = vpack.c.b16 %v6281, %v6265
    %v7914 = vpack.c.b16 %v6282, %v6266
    %v7915 = vpack.c.b16 %v6283, %v6267
    %v7916 = vpack.c.b16 %v6284, %v6268
    %v7917 = vpack.c.b16 %v6285, %v6269
    %v7918 = vpack.c.b16 %v6286, %v6270
    %v7919 = vpack.c.b16 %v6287, %v6271
    %v7920 = vpack.c.b16 %v6288, %v6272
    %v7921 = vpack.c.b16 %v6289, %v6273
    %v7922 = vpack.c.b16 %v6306, %v6290
    %v7923 = vpack.c.b16 %v6307, %v6291
    %v7924 = vpack.c.b16 %v6308, %v6292
    %v7925 = vpack.c.b16 %v6309, %v6293
    %v7926 = vpack.c.b16 %v6310, %v6294
    %v7927 = vpack.c.b16 %v6311, %v6295
    %v7928 = vpack.c.b16 %v6312, %v6296
    %v7929 = vpack.c.b16 %v6313, %v6297
    %v7930 = vpack.c.b16 %v6314, %v6298
    %v7931 = vpack.c.b16 %v6315, %v6299
    %v7932 = vpack.c.b16 %v6316, %v6300
    %v7933 = vpack.c.b16 %v6317, %v6301
    %v7934 = vpack.c.b16 %v6318, %v6302
    %v7935 = vpack.c.b16 %v6319, %v6303
    %v7936 = vpack.c.b16 %v6320, %v6304
    %v7937 = vpack.c.b16 %v6321, %v6305
    %v7938 = vpack.c.b16 %v6338, %v6322
    %v7939 = vpack.c.b16 %v6339, %v6323
    %v7940 = vpack.c.b16 %v6340, %v6324
    %v7941 = vpack.c.b16 %v6341, %v6325
    %v7942 = vpack.c.b16 %v6342, %v6326
    %v7943 = vpack.c.b16 %v6343, %v6327
    %v7944 = vpack.c.b16 %v6344, %v6328
    %v7945 = vpack.c.b16 %v6345, %v6329
    %v7946 = vpack.c.b16 %v6346, %v6330
    %v7947 = vpack.c.b16 %v6347, %v6331
    %v7948 = vpack.c.b16 %v6348, %v6332
    %v7949 = vpack.c.b16 %v6349, %v6333
    %v7950 = vpack.c.b16 %v6350, %v6334
    %v7951 = vpack.c.b16 %v6351, %v6335
    %v7952 = vpack.c.b16 %v6352, %v6336
    %v7953 = vpack.c.b16 %v6353, %v6337
    %v7954 = vpack.c.b16 %v6370, %v6354
    %v7955 = vpack.c.b16 %v6371, %v6355
    %v7956 = vpack.c.b16 %v6372, %v6356
    %v7957 = vpack.c.b16 %v6373, %v6357
    %v7958 = vpack.c.b16 %v6374, %v6358
    %v7959 = vpack.c.b16 %v6375, %v6359
    %v7960 = vpack.c.b16 %v6376, %v6360
    %v7961 = vpack.c.b16 %v6377, %v6361
    %v7962 = vpack.c.b16 %v6378, %v6362
    %v7963 = vpack.c.b16 %v6379, %v6363
    %v7964 = vpack.c.b16 %v6380, %v6364
    %v7965 = vpack.c.b16 %v6381, %v6365
    %v7966 = vpack.c.b16 %v6382, %v6366
    %v7967 = vpack.c.b16 %v6383, %v6367
    %v7968 = vpack.c.b16 %v6384, %v6368
    %v7969 = vpack.c.b16 %v6385, %v6369
    %v7970 = vpack.c.b16 %v6402, %v6386
    %v7971 = vpack.c.b16 %v6403, %v6387
    %v7972 = vpack.c.b16 %v6404, %v6388
    %v7973 = vpack.c.b16 %v6405, %v6389
    %v7974 = vpack.c.b16 %v6406, %v6390
    %v7975 = vpack.c.b16 %v6407, %v6391
    %v7976 = vpack.c.b16 %v6408, %v6392
    %v7977 = vpack.c.b16 %v6409, %v6393
    %v7978 = vpack.c.b16 %v6410, %v6394
    %v7979 = vpack.c.b16 %v6411, %v6395
    %v7980 = vpack.c.b16 %v6412, %v6396
    %v7981 = vpack.c.b16 %v6413, %v6397
    %v7982 = vpack.c.b16 %v6414, %v6398
    %v7983 = vpack.c.b16 %v6415, %v6399
    %v7984 = vpack.c.b16 %v6416, %v6400
    %v7985 = vpack.c.b16 %v6417, %v6401
    %v7986 = vpack.c.b16 %v6434, %v6418
    %v7987 = vpack.c.b16 %v6435, %v6419
    %v7988 = vpack.c.b16 %v6436, %v6420
    %v7989 = vpack.c.b16 %v6437, %v6421
    %v7990 = vpack.c.b16 %v6438, %v6422
    %v7991 = vpack.c.b16 %v6439, %v6423
    %v7992 = vpack.c.b16 %v6440, %v6424
    %v7993 = vpack.c.b16 %v6441, %v6425
    %v7994 = vpack.c.b16 %v6442, %v6426
    %v7995 = vpack.c.b16 %v6443, %v6427
    %v7996 = vpack.c.b16 %v6444, %v6428
    %v7997 = vpack.c.b16 %v6445, %v6429
    %v7998 = vpack.c.b16 %v6446, %v6430
    %v7999 = vpack.c.b16 %v6447, %v6431
    %v8000 = vpack.c.b16 %v6448, %v6432
    %v8001 = vpack.c.b16 %v6449, %v6433
    %v8002 = vpack.c.b16 %v6466, %v6450
    %v8003 = vpack.c.b16 %v6467, %v6451
    %v8004 = vpack.c.b16 %v6468, %v6452
    %v8005 = vpack.c.b16 %v6469, %v6453
    %v8006 = vpack.c.b16 %v6470, %v6454
    %v8007 = vpack.c.b16 %v6471, %v6455
    %v8008 = vpack.c.b16 %v6472, %v6456
    %v8009 = vpack.c.b16 %v6473, %v6457
    %v8010 = vpack.c.b16 %v6474, %v6458
    %v8011 = vpack.c.b16 %v6475, %v6459
    %v8012 = vpack.c.b16 %v6476, %v6460
    %v8013 = vpack.c.b16 %v6477, %v6461
    %v8014 = vpack.c.b16 %v6478, %v6462
    %v8015 = vpack.c.b16 %v6479, %v6463
    %v8016 = vpack.c.b16 %v6480, %v6464
    %v8017 = vpack.c.b16 %v6481, %v6465
    %v8018 = vpack.c.b16 %v6498, %v6482
    %v8019 = vpack.c.b16 %v6499, %v6483
    %v8020 = vpack.c.b16 %v6500, %v6484
    %v8021 = vpack.c.b16 %v6501, %v6485
    %v8022 = vpack.c.b16 %v6502, %v6486
    %v8023 = vpack.c.b16 %v6503, %v6487
    %v8024 = vpack.c.b16 %v6504, %v6488
    %v8025 = vpack.c.b16 %v6505, %v6489
    %v8026 = vpack.c.b16 %v6506, %v6490
    %v8027 = vpack.c.b16 %v6507, %v6491
    %v8028 = vpack.c.b16 %v6508, %v6492
    %v8029 = vpack.c.b16 %v6509, %v6493
    %v8030 = vpack.c.b16 %v6510, %v6494
    %v8031 = vpack.c.b16 %v6511, %v6495
    %v8032 = vpack.c.b16 %v6512, %v6496
    %v8033 = vpack.c.b16 %v6513, %v6497
    %v8034 = vpack.c.b16 %v6530, %v6514
    %v8035 = vpack.c.b16 %v6531, %v6515
    %v8036 = vpack.c.b16 %v6532, %v6516
    %v8037 = vpack.c.b16 %v6533, %v6517
    %v8038 = vpack.c.b16 %v6534, %v6518
    %v8039 = vpack.c.b16 %v6535, %v6519
    %v8040 = vpack.c.b16 %v6536, %v6520
    %v8041 = vpack.c.b16 %v6537, %v6521
    %v8042 = vpack.c.b16 %v6538, %v6522
    %v8043 = vpack.c.b16 %v6539, %v6523
    %v8044 = vpack.c.b16 %v6540, %v6524
    %v8045 = vpack.c.b16 %v6541, %v6525
    %v8046 = vpack.c.b16 %v6542, %v6526
    %v8047 = vpack.c.b16 %v6543, %v6527
    %v8048 = vpack.c.b16 %v6544, %v6528
    %v8049 = vpack.c.b16 %v6545, %v6529
    %v8050 = vpack.c.b16 %v6562, %v6546
    %v8051 = vpack.c.b16 %v6563, %v6547
    %v8052 = vpack.c.b16 %v6564, %v6548
    %v8053 = vpack.c.b16 %v6565, %v6549
    %v8054 = vpack.c.b16 %v6566, %v6550
    %v8055 = vpack.c.b16 %v6567, %v6551
    %v8056 = vpack.c.b16 %v6568, %v6552
    %v8057 = vpack.c.b16 %v6569, %v6553
    %v8058 = vpack.c.b16 %v6570, %v6554
    %v8059 = vpack.c.b16 %v6571, %v6555
    %v8060 = vpack.c.b16 %v6572, %v6556
    %v8061 = vpack.c.b16 %v6573, %v6557
    %v8062 = vpack.c.b16 %v6574, %v6558
    %v8063 = vpack.c.b16 %v6575, %v6559
    %v8064 = vpack.c.b16 %v6576, %v6560
    %v8065 = vpack.c.b16 %v6577, %v6561
    %v8066 = vpack.c.b16 %v6594, %v6578
    %v8067 = vpack.c.b16 %v6595, %v6579
    %v8068 = vpack.c.b16 %v6596, %v6580
    %v8069 = vpack.c.b16 %v6597, %v6581
    %v8070 = vpack.c.b16 %v6598, %v6582
    %v8071 = vpack.c.b16 %v6599, %v6583
    %v8072 = vpack.c.b16 %v6600, %v6584
    %v8073 = vpack.c.b16 %v6601, %v6585
    %v8074 = vpack.c.b16 %v6602, %v6586
    %v8075 = vpack.c.b16 %v6603, %v6587
    %v8076 = vpack.c.b16 %v6604, %v6588
    %v8077 = vpack.c.b16 %v6605, %v6589
    %v8078 = vpack.c.b16 %v6606, %v6590
    %v8079 = vpack.c.b16 %v6607, %v6591
    %v8080 = vpack.c.b16 %v6608, %v6592
    %v8081 = vpack.c.b16 %v6609, %v6593
    %v8082 = vpack.c.b16 %v6626, %v6610
    %v8083 = vpack.c.b16 %v6627, %v6611
    %v8084 = vpack.c.b16 %v6628, %v6612
    %v8085 = vpack.c.b16 %v6629, %v6613
    %v8086 = vpack.c.b16 %v6630, %v6614
    %v8087 = vpack.c.b16 %v6631, %v6615
    %v8088 = vpack.c.b16 %v6632, %v6616
    %v8089 = vpack.c.b16 %v6633, %v6617
    %v8090 = vpack.c.b16 %v6634, %v6618
    %v8091 = vpack.c.b16 %v6635, %v6619
    %v8092 = vpack.c.b16 %v6636, %v6620
    %v8093 = vpack.c.b16 %v6637, %v6621
    %v8094 = vpack.c.b16 %v6638, %v6622
    %v8095 = vpack.c.b16 %v6639, %v6623
    %v8096 = vpack.c.b16 %v6640, %v6624
    %v8097 = vpack.c.b16 %v6641, %v6625
    %v8098 = vpack.c.b16 %v6658, %v6642
    %v8099 = vpack.c.b16 %v6659, %v6643
    %v8100 = vpack.c.b16 %v6660, %v6644
    %v8101 = vpack.c.b16 %v6661, %v6645
    %v8102 = vpack.c.b16 %v6662, %v6646
    %v8103 = vpack.c.b16 %v6663, %v6647
    %v8104 = vpack.c.b16 %v6664, %v6648
    %v8105 = vpack.c.b16 %v6665, %v6649
    %v8106 = vpack.c.b16 %v6666, %v6650
    %v8107 = vpack.c.b16 %v6667, %v6651
    %v8108 = vpack.c.b16 %v6668, %v6652
    %v8109 = vpack.c.b16 %v6669, %v6653
    %v8110 = vpack.c.b16 %v6670, %v6654
    %v8111 = vpack.c.b16 %v6671, %v6655
    %v8112 = vpack.c.b16 %v6672, %v6656
    %v8113 = vpack.c.b16 %v6673, %v6657
    %v8114 = vpack.c.b16 %v6690, %v6674
    %v8115 = vpack.c.b16 %v6691, %v6675
    %v8116 = vpack.c.b16 %v6692, %v6676
    %v8117 = vpack.c.b16 %v6693, %v6677
    %v8118 = vpack.c.b16 %v6694, %v6678
    %v8119 = vpack.c.b16 %v6695, %v6679
    %v8120 = vpack.c.b16 %v6696, %v6680
    %v8121 = vpack.c.b16 %v6697, %v6681
    %v8122 = vpack.c.b16 %v6698, %v6682
    %v8123 = vpack.c.b16 %v6699, %v6683
    %v8124 = vpack.c.b16 %v6700, %v6684
    %v8125 = vpack.c.b16 %v6701, %v6685
    %v8126 = vpack.c.b16 %v6702, %v6686
    %v8127 = vpack.c.b16 %v6703, %v6687
    %v8128 = vpack.c.b16 %v6704, %v6688
    %v8129 = vpack.c.b16 %v6705, %v6689
    %v8130 = vpack.c.b16 %v6722, %v6706
    %v8131 = vpack.c.b16 %v6723, %v6707
    %v8132 = vpack.c.b16 %v6724, %v6708
    %v8133 = vpack.c.b16 %v6725, %v6709
    %v8134 = vpack.c.b16 %v6726, %v6710
    %v8135 = vpack.c.b16 %v6727, %v6711
    %v8136 = vpack.c.b16 %v6728, %v6712
    %v8137 = vpack.c.b16 %v6729, %v6713
    %v8138 = vpack.c.b16 %v6730, %v6714
    %v8139 = vpack.c.b16 %v6731, %v6715
    %v8140 = vpack.c.b16 %v6732, %v6716
    %v8141 = vpack.c.b16 %v6733, %v6717
    %v8142 = vpack.c.b16 %v6734, %v6718
    %v8143 = vpack.c.b16 %v6735, %v6719
    %v8144 = vpack.c.b16 %v6736, %v6720
    %v8145 = vpack.c.b16 %v6737, %v6721
    %v8146 = vpack.c.b16 %v6754, %v6738
    %v8147 = vpack.c.b16 %v6755, %v6739
    %v8148 = vpack.c.b16 %v6756, %v6740
    %v8149 = vpack.c.b16 %v6757, %v6741
    %v8150 = vpack.c.b16 %v6758, %v6742
    %v8151 = vpack.c.b16 %v6759, %v6743
    %v8152 = vpack.c.b16 %v6760, %v6744
    %v8153 = vpack.c.b16 %v6761, %v6745
    %v8154 = vpack.c.b16 %v6762, %v6746
    %v8155 = vpack.c.b16 %v6763, %v6747
    %v8156 = vpack.c.b16 %v6764, %v6748
    %v8157 = vpack.c.b16 %v6765, %v6749
    %v8158 = vpack.c.b16 %v6766, %v6750
    %v8159 = vpack.c.b16 %v6767, %v6751
    %v8160 = vpack.c.b16 %v6768, %v6752
    %v8161 = vpack.c.b16 %v6769, %v6753
    %v8162 = vpack.c.b16 %v6786, %v6770
    %v8163 = vpack.c.b16 %v6787, %v6771
    %v8164 = vpack.c.b16 %v6788, %v6772
    %v8165 = vpack.c.b16 %v6789, %v6773
    %v8166 = vpack.c.b16 %v6790, %v6774
    %v8167 = vpack.c.b16 %v6791, %v6775
    %v8168 = vpack.c.b16 %v6792, %v6776
    %v8169 = vpack.c.b16 %v6793, %v6777
    %v8170 = vpack.c.b16 %v6794, %v6778
    %v8171 = vpack.c.b16 %v6795, %v6779
    %v8172 = vpack.c.b16 %v6796, %v6780
    %v8173 = vpack.c.b16 %v6797, %v6781
    %v8174 = vpack.c.b16 %v6798, %v6782
    %v8175 = vpack.c.b16 %v6799, %v6783
    %v8176 = vpack.c.b16 %v6800, %v6784
    %v8177 = vpack.c.b16 %v6801, %v6785
    %v8178 = vpack.c.b16 %v6818, %v6802
    %v8179 = vpack.c.b16 %v6819, %v6803
    %v8180 = vpack.c.b16 %v6820, %v6804
    %v8181 = vpack.c.b16 %v6821, %v6805
    %v8182 = vpack.c.b16 %v6822, %v6806
    %v8183 = vpack.c.b16 %v6823, %v6807
    %v8184 = vpack.c.b16 %v6824, %v6808
    %v8185 = vpack.c.b16 %v6825, %v6809
    %v8186 = vpack.c.b16 %v6826, %v6810
    %v8187 = vpack.c.b16 %v6827, %v6811
    %v8188 = vpack.c.b16 %v6828, %v6812
    %v8189 = vpack.c.b16 %v6829, %v6813
    %v8190 = vpack.c.b16 %v6830, %v6814
    %v8191 = vpack.c.b16 %v6831, %v6815
    %v8192 = vpack.c.b16 %v6832, %v6816
    %v8193 = vpack.c.b16 %v6833, %v6817
    %v8194 = vpack.c.b16 %v6850, %v6834
    %v8195 = vpack.c.b16 %v6851, %v6835
    %v8196 = vpack.c.b16 %v6852, %v6836
    %v8197 = vpack.c.b16 %v6853, %v6837
    %v8198 = vpack.c.b16 %v6854, %v6838
    %v8199 = vpack.c.b16 %v6855, %v6839
    %v8200 = vpack.c.b16 %v6856, %v6840
    %v8201 = vpack.c.b16 %v6857, %v6841
    %v8202 = vpack.c.b16 %v6858, %v6842
    %v8203 = vpack.c.b16 %v6859, %v6843
    %v8204 = vpack.c.b16 %v6860, %v6844
    %v8205 = vpack.c.b16 %v6861, %v6845
    %v8206 = vpack.c.b16 %v6862, %v6846
    %v8207 = vpack.c.b16 %v6863, %v6847
    %v8208 = vpack.c.b16 %v6864, %v6848
    %v8209 = vpack.c.b16 %v6865, %v6849
    %v8210 = vpack.c.b16 %v6882, %v6866
    %v8211 = vpack.c.b16 %v6883, %v6867
    %v8212 = vpack.c.b16 %v6884, %v6868
    %v8213 = vpack.c.b16 %v6885, %v6869
    %v8214 = vpack.c.b16 %v6886, %v6870
    %v8215 = vpack.c.b16 %v6887, %v6871
    %v8216 = vpack.c.b16 %v6888, %v6872
    %v8217 = vpack.c.b16 %v6889, %v6873
    %v8218 = vpack.c.b16 %v6890, %v6874
    %v8219 = vpack.c.b16 %v6891, %v6875
    %v8220 = vpack.c.b16 %v6892, %v6876
    %v8221 = vpack.c.b16 %v6893, %v6877
    %v8222 = vpack.c.b16 %v6894, %v6878
    %v8223 = vpack.c.b16 %v6895, %v6879
    %v8224 = vpack.c.b16 %v6896, %v6880
    %v8225 = vpack.c.b16 %v6897, %v6881
    %v8226 = vpack.c.b16 %v6914, %v6898
    %v8227 = vpack.c.b16 %v6915, %v6899
    %v8228 = vpack.c.b16 %v6916, %v6900
    %v8229 = vpack.c.b16 %v6917, %v6901
    %v8230 = vpack.c.b16 %v6918, %v6902
    %v8231 = vpack.c.b16 %v6919, %v6903
    %v8232 = vpack.c.b16 %v6920, %v6904
    %v8233 = vpack.c.b16 %v6921, %v6905
    %v8234 = vpack.c.b16 %v6922, %v6906
    %v8235 = vpack.c.b16 %v6923, %v6907
    %v8236 = vpack.c.b16 %v6924, %v6908
    %v8237 = vpack.c.b16 %v6925, %v6909
    %v8238 = vpack.c.b16 %v6926, %v6910
    %v8239 = vpack.c.b16 %v6927, %v6911
    %v8240 = vpack.c.b16 %v6928, %v6912
    %v8241 = vpack.c.b16 %v6929, %v6913
    %v8242 = vpack.c.b16 %v6946, %v6930
    %v8243 = vpack.c.b16 %v6947, %v6931
    %v8244 = vpack.c.b16 %v6948, %v6932
    %v8245 = vpack.c.b16 %v6949, %v6933
    %v8246 = vpack.c.b16 %v6950, %v6934
    %v8247 = vpack.c.b16 %v6951, %v6935
    %v8248 = vpack.c.b16 %v6952, %v6936
    %v8249 = vpack.c.b16 %v6953, %v6937
    %v8250 = vpack.c.b16 %v6954, %v6938
    %v8251 = vpack.c.b16 %v6955, %v6939
    %v8252 = vpack.c.b16 %v6956, %v6940
    %v8253 = vpack.c.b16 %v6957, %v6941
    %v8254 = vpack.c.b16 %v6958, %v6942
    %v8255 = vpack.c.b16 %v6959, %v6943
    %v8256 = vpack.c.b16 %v6960, %v6944
    %v8257 = vpack.c.b16 %v6961, %v6945
    %v8258 = vpack.c.b16 %v6978, %v6962
    %v8259 = vpack.c.b16 %v6979, %v6963
    %v8260 = vpack.c.b16 %v6980, %v6964
    %v8261 = vpack.c.b16 %v6981, %v6965
    %v8262 = vpack.c.b16 %v6982, %v6966
    %v8263 = vpack.c.b16 %v6983, %v6967
    %v8264 = vpack.c.b16 %v6984, %v6968
    %v8265 = vpack.c.b16 %v6985, %v6969
    %v8266 = vpack.c.b16 %v6986, %v6970
    %v8267 = vpack.c.b16 %v6987, %v6971
    %v8268 = vpack.c.b16 %v6988, %v6972
    %v8269 = vpack.c.b16 %v6989, %v6973
    %v8270 = vpack.c.b16 %v6990, %v6974
    %v8271 = vpack.c.b16 %v6991, %v6975
    %v8272 = vpack.c.b16 %v6992, %v6976
    %v8273 = vpack.c.b16 %v6993, %v6977
    %v8274 = vpack.c.b16 %v7010, %v6994
    %v8275 = vpack.c.b16 %v7011, %v6995
    %v8276 = vpack.c.b16 %v7012, %v6996
    %v8277 = vpack.c.b16 %v7013, %v6997
    %v8278 = vpack.c.b16 %v7014, %v6998
    %v8279 = vpack.c.b16 %v7015, %v6999
    %v8280 = vpack.c.b16 %v7016, %v7000
    %v8281 = vpack.c.b16 %v7017, %v7001
    %v8282 = vpack.c.b16 %v7018, %v7002
    %v8283 = vpack.c.b16 %v7019, %v7003
    %v8284 = vpack.c.b16 %v7020, %v7004
    %v8285 = vpack.c.b16 %v7021, %v7005
    %v8286 = vpack.c.b16 %v7022, %v7006
    %v8287 = vpack.c.b16 %v7023, %v7007
    %v8288 = vpack.c.b16 %v7024, %v7008
    %v8289 = vpack.c.b16 %v7025, %v7009
    %v8290 = vpack.c.b16 %v7042, %v7026
    %v8291 = vpack.c.b16 %v7043, %v7027
    %v8292 = vpack.c.b16 %v7044, %v7028
    %v8293 = vpack.c.b16 %v7045, %v7029
    %v8294 = vpack.c.b16 %v7046, %v7030
    %v8295 = vpack.c.b16 %v7047, %v7031
    %v8296 = vpack.c.b16 %v7048, %v7032
    %v8297 = vpack.c.b16 %v7049, %v7033
    %v8298 = vpack.c.b16 %v7050, %v7034
    %v8299 = vpack.c.b16 %v7051, %v7035
    %v8300 = vpack.c.b16 %v7052, %v7036
    %v8301 = vpack.c.b16 %v7053, %v7037
    %v8302 = vpack.c.b16 %v7054, %v7038
    %v8303 = vpack.c.b16 %v7055, %v7039
    %v8304 = vpack.c.b16 %v7056, %v7040
    %v8305 = vpack.c.b16 %v7057, %v7041
    %v8306 = vpack.c.b16 %v7074, %v7058
    %v8307 = vpack.c.b16 %v7075, %v7059
    %v8308 = vpack.c.b16 %v7076, %v7060
    %v8309 = vpack.c.b16 %v7077, %v7061
    %v8310 = vpack.c.b16 %v7078, %v7062
    %v8311 = vpack.c.b16 %v7079, %v7063
    %v8312 = vpack.c.b16 %v7080, %v7064
    %v8313 = vpack.c.b16 %v7081, %v7065
    %v8314 = vpack.c.b16 %v7082, %v7066
    %v8315 = vpack.c.b16 %v7083, %v7067
    %v8316 = vpack.c.b16 %v7084, %v7068
    %v8317 = vpack.c.b16 %v7085, %v7069
    %v8318 = vpack.c.b16 %v7086, %v7070
    %v8319 = vpack.c.b16 %v7087, %v7071
    %v8320 = vpack.c.b16 %v7088, %v7072
    %v8321 = vpack.c.b16 %v7089, %v7073
    %v8322 = vpack.c.b16 %v7106, %v7090
    %v8323 = vpack.c.b16 %v7107, %v7091
    %v8324 = vpack.c.b16 %v7108, %v7092
    %v8325 = vpack.c.b16 %v7109, %v7093
    %v8326 = vpack.c.b16 %v7110, %v7094
    %v8327 = vpack.c.b16 %v7111, %v7095
    %v8328 = vpack.c.b16 %v7112, %v7096
    %v8329 = vpack.c.b16 %v7113, %v7097
    %v8330 = vpack.c.b16 %v7114, %v7098
    %v8331 = vpack.c.b16 %v7115, %v7099
    %v8332 = vpack.c.b16 %v7116, %v7100
    %v8333 = vpack.c.b16 %v7117, %v7101
    %v8334 = vpack.c.b16 %v7118, %v7102
    %v8335 = vpack.c.b16 %v7119, %v7103
    %v8336 = vpack.c.b16 %v7120, %v7104
    %v8337 = vpack.c.b16 %v7121, %v7105
    %v8338 = vpack.c.b16 %v7138, %v7122
    %v8339 = vpack.c.b16 %v7139, %v7123
    %v8340 = vpack.c.b16 %v7140, %v7124
    %v8341 = vpack.c.b16 %v7141, %v7125
    %v8342 = vpack.c.b16 %v7142, %v7126
    %v8343 = vpack.c.b16 %v7143, %v7127
    %v8344 = vpack.c.b16 %v7144, %v7128
    %v8345 = vpack.c.b16 %v7145, %v7129
    %v8346 = vpack.c.b16 %v7146, %v7130
    %v8347 = vpack.c.b16 %v7147, %v7131
    %v8348 = vpack.c.b16 %v7148, %v7132
    %v8349 = vpack.c.b16 %v7149, %v7133
    %v8350 = vpack.c.b16 %v7150, %v7134
    %v8351 = vpack.c.b16 %v7151, %v7135
    %v8352 = vpack.c.b16 %v7152, %v7136
    %v8353 = vpack.c.b16 %v7153, %v7137
    %v8354 = vpack.c.b16 %v7170, %v7154
    %v8355 = vpack.c.b16 %v7171, %v7155
    %v8356 = vpack.c.b16 %v7172, %v7156
    %v8357 = vpack.c.b16 %v7173, %v7157
    %v8358 = vpack.c.b16 %v7174, %v7158
    %v8359 = vpack.c.b16 %v7175, %v7159
    %v8360 = vpack.c.b16 %v7176, %v7160
    %v8361 = vpack.c.b16 %v7177, %v7161
    %v8362 = vpack.c.b16 %v7178, %v7162
    %v8363 = vpack.c.b16 %v7179, %v7163
    %v8364 = vpack.c.b16 %v7180, %v7164
    %v8365 = vpack.c.b16 %v7181, %v7165
    %v8366 = vpack.c.b16 %v7182, %v7166
    %v8367 = vpack.c.b16 %v7183, %v7167
    %v8368 = vpack.c.b16 %v7184, %v7168
    %v8369 = vpack.c.b16 %v7185, %v7169
    %v8370 = vpack.c.b16 %v7202, %v7186
    %v8371 = vpack.c.b16 %v7203, %v7187
    %v8372 = vpack.c.b16 %v7204, %v7188
    %v8373 = vpack.c.b16 %v7205, %v7189
    %v8374 = vpack.c.b16 %v7206, %v7190
    %v8375 = vpack.c.b16 %v7207, %v7191
    %v8376 = vpack.c.b16 %v7208, %v7192
    %v8377 = vpack.c.b16 %v7209, %v7193
    %v8378 = vpack.c.b16 %v7210, %v7194
    %v8379 = vpack.c.b16 %v7211, %v7195
    %v8380 = vpack.c.b16 %v7212, %v7196
    %v8381 = vpack.c.b16 %v7213, %v7197
    %v8382 = vpack.c.b16 %v7214, %v7198
    %v8383 = vpack.c.b16 %v7215, %v7199
    %v8384 = vpack.c.b16 %v7216, %v7200
    %v8385 = vpack.c.b16 %v7217, %v7201
    %v8386 = vpack.c.b16 %v7234, %v7218
    %v8387 = vpack.c.b16 %v7235, %v7219
    %v8388 = vpack.c.b16 %v7236, %v7220
    %v8389 = vpack.c.b16 %v7237, %v7221
    %v8390 = vpack.c.b16 %v7238, %v7222
    %v8391 = vpack.c.b16 %v7239, %v7223
    %v8392 = vpack.c.b16 %v7240, %v7224
    %v8393 = vpack.c.b16 %v7241, %v7225
    %v8394 = vpack.c.b16 %v7242, %v7226
    %v8395 = vpack.c.b16 %v7243, %v7227
    %v8396 = vpack.c.b16 %v7244, %v7228
    %v8397 = vpack.c.b16 %v7245, %v7229
    %v8398 = vpack.c.b16 %v7246, %v7230
    %v8399 = vpack.c.b16 %v7247, %v7231
    %v8400 = vpack.c.b16 %v7248, %v7232
    %v8401 = vpack.c.b16 %v7249, %v7233
    %v8402 = vpack.c.b16 %v7266, %v7250
    %v8403 = vpack.c.b16 %v7267, %v7251
    %v8404 = vpack.c.b16 %v7268, %v7252
    %v8405 = vpack.c.b16 %v7269, %v7253
    %v8406 = vpack.c.b16 %v7270, %v7254
    %v8407 = vpack.c.b16 %v7271, %v7255
    %v8408 = vpack.c.b16 %v7272, %v7256
    %v8409 = vpack.c.b16 %v7273, %v7257
    %v8410 = vpack.c.b16 %v7274, %v7258
    %v8411 = vpack.c.b16 %v7275, %v7259
    %v8412 = vpack.c.b16 %v7276, %v7260
    %v8413 = vpack.c.b16 %v7277, %v7261
    %v8414 = vpack.c.b16 %v7278, %v7262
    %v8415 = vpack.c.b16 %v7279, %v7263
    %v8416 = vpack.c.b16 %v7280, %v7264
    %v8417 = vpack.c.b16 %v7281, %v7265
    %v8418 = vpack.c.b16 %v7298, %v7282
    %v8419 = vpack.c.b16 %v7299, %v7283
    %v8420 = vpack.c.b16 %v7300, %v7284
    %v8421 = vpack.c.b16 %v7301, %v7285
    %v8422 = vpack.c.b16 %v7302, %v7286
    %v8423 = vpack.c.b16 %v7303, %v7287
    %v8424 = vpack.c.b16 %v7304, %v7288
    %v8425 = vpack.c.b16 %v7305, %v7289
    %v8426 = vpack.c.b16 %v7306, %v7290
    %v8427 = vpack.c.b16 %v7307, %v7291
    %v8428 = vpack.c.b16 %v7308, %v7292
    %v8429 = vpack.c.b16 %v7309, %v7293
    %v8430 = vpack.c.b16 %v7310, %v7294
    %v8431 = vpack.c.b16 %v7311, %v7295
    %v8432 = vpack.c.b16 %v7312, %v7296
    %v8433 = vpack.c.b16 %v7313, %v7297
    %v8434 = vpack.c.b16 %v7330, %v7314
    %v8435 = vpack.c.b16 %v7331, %v7315
    %v8436 = vpack.c.b16 %v7332, %v7316
    %v8437 = vpack.c.b16 %v7333, %v7317
    %v8438 = vpack.c.b16 %v7334, %v7318
    %v8439 = vpack.c.b16 %v7335, %v7319
    %v8440 = vpack.c.b16 %v7336, %v7320
    %v8441 = vpack.c.b16 %v7337, %v7321
    %v8442 = vpack.c.b16 %v7338, %v7322
    %v8443 = vpack.c.b16 %v7339, %v7323
    %v8444 = vpack.c.b16 %v7340, %v7324
    %v8445 = vpack.c.b16 %v7341, %v7325
    %v8446 = vpack.c.b16 %v7342, %v7326
    %v8447 = vpack.c.b16 %v7343, %v7327
    %v8448 = vpack.c.b16 %v7344, %v7328
    %v8449 = vpack.c.b16 %v7345, %v7329
    %v8450 = vpack.c.b16 %v7362, %v7346
    %v8451 = vpack.c.b16 %v7363, %v7347
    %v8452 = vpack.c.b16 %v7364, %v7348
    %v8453 = vpack.c.b16 %v7365, %v7349
    %v8454 = vpack.c.b16 %v7366, %v7350
    %v8455 = vpack.c.b16 %v7367, %v7351
    %v8456 = vpack.c.b16 %v7368, %v7352
    %v8457 = vpack.c.b16 %v7369, %v7353
    %v8458 = vpack.c.b16 %v7370, %v7354
    %v8459 = vpack.c.b16 %v7371, %v7355
    %v8460 = vpack.c.b16 %v7372, %v7356
    %v8461 = vpack.c.b16 %v7373, %v7357
    %v8462 = vpack.c.b16 %v7374, %v7358
    %v8463 = vpack.c.b16 %v7375, %v7359
    %v8464 = vpack.c.b16 %v7376, %v7360
    %v8465 = vpack.c.b16 %v7377, %v7361
    %v8466 = vpack.c.b16 %v7394, %v7378
    %v8467 = vpack.c.b16 %v7395, %v7379
    %v8468 = vpack.c.b16 %v7396, %v7380
    %v8469 = vpack.c.b16 %v7397, %v7381
    %v8470 = vpack.c.b16 %v7398, %v7382
    %v8471 = vpack.c.b16 %v7399, %v7383
    %v8472 = vpack.c.b16 %v7400, %v7384
    %v8473 = vpack.c.b16 %v7401, %v7385
    %v8474 = vpack.c.b16 %v7402, %v7386
    %v8475 = vpack.c.b16 %v7403, %v7387
    %v8476 = vpack.c.b16 %v7404, %v7388
    %v8477 = vpack.c.b16 %v7405, %v7389
    %v8478 = vpack.c.b16 %v7406, %v7390
    %v8479 = vpack.c.b16 %v7407, %v7391
    %v8480 = vpack.c.b16 %v7408, %v7392
    %v8481 = vpack.c.b16 %v7409, %v7393
    %v8482 = vpack.c.b16 %v7426, %v7410
    %v8483 = vpack.c.b16 %v7427, %v7411
    %v8484 = vpack.c.b16 %v7428, %v7412
    %v8485 = vpack.c.b16 %v7429, %v7413
    %v8486 = vpack.c.b16 %v7430, %v7414
    %v8487 = vpack.c.b16 %v7431, %v7415
    %v8488 = vpack.c.b16 %v7432, %v7416
    %v8489 = vpack.c.b16 %v7433, %v7417
    %v8490 = vpack.c.b16 %v7434, %v7418
    %v8491 = vpack.c.b16 %v7435, %v7419
    %v8492 = vpack.c.b16 %v7436, %v7420
    %v8493 = vpack.c.b16 %v7437, %v7421
    %v8494 = vpack.c.b16 %v7438, %v7422
    %v8495 = vpack.c.b16 %v7439, %v7423
    %v8496 = vpack.c.b16 %v7440, %v7424
    %v8497 = vpack.c.b16 %v7441, %v7425
    %v8498 = vpack.c.b16 %v7458, %v7442
    %v8499 = vpack.c.b16 %v7459, %v7443
    %v8500 = vpack.c.b16 %v7460, %v7444
    %v8501 = vpack.c.b16 %v7461, %v7445
    %v8502 = vpack.c.b16 %v7462, %v7446
    %v8503 = vpack.c.b16 %v7463, %v7447
    %v8504 = vpack.c.b16 %v7464, %v7448
    %v8505 = vpack.c.b16 %v7465, %v7449
    %v8506 = vpack.c.b16 %v7466, %v7450
    %v8507 = vpack.c.b16 %v7467, %v7451
    %v8508 = vpack.c.b16 %v7468, %v7452
    %v8509 = vpack.c.b16 %v7469, %v7453
    %v8510 = vpack.c.b16 %v7470, %v7454
    %v8511 = vpack.c.b16 %v7471, %v7455
    %v8512 = vpack.c.b16 %v7472, %v7456
    %v8513 = vpack.c.b16 %v7473, %v7457
    %v8514 = vpack.c.b16 %v7490, %v7474
    %v8515 = vpack.c.b16 %v7491, %v7475
    %v8516 = vpack.c.b16 %v7492, %v7476
    %v8517 = vpack.c.b16 %v7493, %v7477
    %v8518 = vpack.c.b16 %v7494, %v7478
    %v8519 = vpack.c.b16 %v7495, %v7479
    %v8520 = vpack.c.b16 %v7496, %v7480
    %v8521 = vpack.c.b16 %v7497, %v7481
    %v8522 = vpack.c.b16 %v7498, %v7482
    %v8523 = vpack.c.b16 %v7499, %v7483
    %v8524 = vpack.c.b16 %v7500, %v7484
    %v8525 = vpack.c.b16 %v7501, %v7485
    %v8526 = vpack.c.b16 %v7502, %v7486
    %v8527 = vpack.c.b16 %v7503, %v7487
    %v8528 = vpack.c.b16 %v7504, %v7488
    %v8529 = vpack.c.b16 %v7505, %v7489
    %9554 = vmatpush.bf16.msra.mxu0 %v7618
    %9555 = vmatpush.bf16.msra.mxu0 %v7602
    %9556 = vmatpush.bf16.msra.mxu0 %v7586
    %9557 = vmatpush.bf16.msra.mxu0 %v7570
    %9558 = vmatpush.bf16.msra.mxu0 %v7554
    %9559 = vmatpush.bf16.msra.mxu0 %v7538
    %9560 = vmatpush.bf16.msra.mxu0 %v7522
    %9561 = vmatpush.bf16.msra.mxu0 %v7506
    %9562 = vmatmul.bf16.gmra.mxu0 %v4418
    %v9563 = vpop.f32.mrf.mxu0
    %v9564 = vadd.f32 %v4362, %v9563
    %v9565 = vpop.f32.mrf.mxu0
    %v9566 = vadd.f32 %v4362, %v9565
    %9567 = vdwg.mxu0
    %9568 = vmatpush.bf16.msra.mxu0 %v7746
    %9569 = vmatpush.bf16.msra.mxu0 %v7730
    %9570 = vmatpush.bf16.msra.mxu0 %v7714
    %9571 = vmatpush.bf16.msra.mxu0 %v7698
    %9572 = vmatpush.bf16.msra.mxu0 %v7682
    %9573 = vmatpush.bf16.msra.mxu0 %v7666
    %9574 = vmatpush.bf16.msra.mxu0 %v7650
    %9575 = vmatpush.bf16.msra.mxu0 %v7634
    %9576 = vmatmul.bf16.gmra.mxu0 %v4419
    %v9577 = vpop.f32.mrf.mxu0
    %v9578 = vadd.f32 %v9564, %v9577
    %v9579 = vpop.f32.mrf.mxu0
    %v9580 = vadd.f32 %v9566, %v9579
    %9581 = vdwg.mxu0
    %9582 = vmatpush.bf16.msra.mxu0 %v7874
    %9583 = vmatpush.bf16.msra.mxu0 %v7858
    %9584 = vmatpush.bf16.msra.mxu0 %v7842
    %9585 = vmatpush.bf16.msra.mxu0 %v7826
    %9586 = vmatpush.bf16.msra.mxu0 %v7810
    %9587 = vmatpush.bf16.msra.mxu0 %v7794
    %9588 = vmatpush.bf16.msra.mxu0 %v7778
    %9589 = vmatpush.bf16.msra.mxu0 %v7762
    %9590 = vmatmul.bf16.gmra.mxu0 %v4420
    %v9591 = vpop.f32.mrf.mxu0
    %v9592 = vadd.f32 %v9578, %v9591
    %v9593 = vpop.f32.mrf.mxu0
    %v9594 = vadd.f32 %v9580, %v9593
    %9595 = vdwg.mxu0
    %9596 = vmatpush.bf16.msra.mxu0 %v8002
    %9597 = vmatpush.bf16.msra.mxu0 %v7986
    %9598 = vmatpush.bf16.msra.mxu0 %v7970
    %9599 = vmatpush.bf16.msra.mxu0 %v7954
    %9600 = vmatpush.bf16.msra.mxu0 %v7938
    %9601 = vmatpush.bf16.msra.mxu0 %v7922
    %9602 = vmatpush.bf16.msra.mxu0 %v7906
    %9603 = vmatpush.bf16.msra.mxu0 %v7890
    %9604 = vmatmul.bf16.gmra.mxu0 %v4421
    %v9605 = vpop.f32.mrf.mxu0
    %v9606 = vadd.f32 %v9592, %v9605
    %v9607 = vpop.f32.mrf.mxu0
    %v9608 = vadd.f32 %v9594, %v9607
    %9609 = vdwg.mxu0
    %9610 = vmatpush.bf16.msra.mxu0 %v8130
    %9611 = vmatpush.bf16.msra.mxu0 %v8114
    %9612 = vmatpush.bf16.msra.mxu0 %v8098
    %9613 = vmatpush.bf16.msra.mxu0 %v8082
    %9614 = vmatpush.bf16.msra.mxu0 %v8066
    %9615 = vmatpush.bf16.msra.mxu0 %v8050
    %9616 = vmatpush.bf16.msra.mxu0 %v8034
    %9617 = vmatpush.bf16.msra.mxu0 %v8018
    %9618 = vmatmul.bf16.gmra.mxu0 %v4422
    %v9619 = vpop.f32.mrf.mxu0
    %v9620 = vadd.f32 %v9606, %v9619
    %v9621 = vpop.f32.mrf.mxu0
    %v9622 = vadd.f32 %v9608, %v9621
    %9623 = vdwg.mxu0
    %9624 = vmatpush.bf16.msra.mxu0 %v8258
    %9625 = vmatpush.bf16.msra.mxu0 %v8242
    %9626 = vmatpush.bf16.msra.mxu0 %v8226
    %9627 = vmatpush.bf16.msra.mxu0 %v8210
    %9628 = vmatpush.bf16.msra.mxu0 %v8194
    %9629 = vmatpush.bf16.msra.mxu0 %v8178
    %9630 = vmatpush.bf16.msra.mxu0 %v8162
    %9631 = vmatpush.bf16.msra.mxu0 %v8146
    %9632 = vmatmul.bf16.gmra.mxu0 %v4423
    %v9633 = vpop.f32.mrf.mxu0
    %v9634 = vadd.f32 %v9620, %v9633
    %v9635 = vpop.f32.mrf.mxu0
    %v9636 = vadd.f32 %v9622, %v9635
    %9637 = vdwg.mxu0
    %9638 = vmatpush.bf16.msra.mxu0 %v8386
    %9639 = vmatpush.bf16.msra.mxu0 %v8370
    %9640 = vmatpush.bf16.msra.mxu0 %v8354
    %9641 = vmatpush.bf16.msra.mxu0 %v8338
    %9642 = vmatpush.bf16.msra.mxu0 %v8322
    %9643 = vmatpush.bf16.msra.mxu0 %v8306
    %9644 = vmatpush.bf16.msra.mxu0 %v8290
    %9645 = vmatpush.bf16.msra.mxu0 %v8274
    %9646 = vmatmul.bf16.gmra.mxu0 %v4424
    %v9647 = vpop.f32.mrf.mxu0
    %v9648 = vadd.f32 %v9634, %v9647
    %v9649 = vpop.f32.mrf.mxu0
    %v9650 = vadd.f32 %v9636, %v9649
    %9651 = vdwg.mxu0
    %9652 = vmatpush.bf16.msra.mxu0 %v8514
    %9653 = vmatpush.bf16.msra.mxu0 %v8498
    %9654 = vmatpush.bf16.msra.mxu0 %v8482
    %9655 = vmatpush.bf16.msra.mxu0 %v8466
    %9656 = vmatpush.bf16.msra.mxu0 %v8450
    %9657 = vmatpush.bf16.msra.mxu0 %v8434
    %9658 = vmatpush.bf16.msra.mxu0 %v8418
    %9659 = vmatpush.bf16.msra.mxu0 %v8402
    %9660 = vmatmul.bf16.gmra.mxu0 %v4425
    %v9661 = vpop.f32.mrf.mxu0
    %v9662 = vadd.f32 %v9648, %v9661
    %v9663 = vpop.f32.mrf.mxu0
    %v9664 = vadd.f32 %v9650, %v9663
    %9665 = vdwg.mxu0
    %9666 = vmatpush.bf16.msra.mxu0 %v7619
    %9667 = vmatpush.bf16.msra.mxu0 %v7603
    %9668 = vmatpush.bf16.msra.mxu0 %v7587
    %9669 = vmatpush.bf16.msra.mxu0 %v7571
    %9670 = vmatpush.bf16.msra.mxu0 %v7555
    %9671 = vmatpush.bf16.msra.mxu0 %v7539
    %9672 = vmatpush.bf16.msra.mxu0 %v7523
    %9673 = vmatpush.bf16.msra.mxu0 %v7507
    %9674 = vmatmul.bf16.gmra.mxu0 %v4418
    %v9675 = vpop.f32.mrf.mxu0
    %v9676 = vadd.f32 %v4363, %v9675
    %v9677 = vpop.f32.mrf.mxu0
    %v9678 = vadd.f32 %v4363, %v9677
    %9679 = vdwg.mxu0
    %9680 = vmatpush.bf16.msra.mxu0 %v7747
    %9681 = vmatpush.bf16.msra.mxu0 %v7731
    %9682 = vmatpush.bf16.msra.mxu0 %v7715
    %9683 = vmatpush.bf16.msra.mxu0 %v7699
    %9684 = vmatpush.bf16.msra.mxu0 %v7683
    %9685 = vmatpush.bf16.msra.mxu0 %v7667
    %9686 = vmatpush.bf16.msra.mxu0 %v7651
    %9687 = vmatpush.bf16.msra.mxu0 %v7635
    %9688 = vmatmul.bf16.gmra.mxu0 %v4419
    %v9689 = vpop.f32.mrf.mxu0
    %v9690 = vadd.f32 %v9676, %v9689
    %v9691 = vpop.f32.mrf.mxu0
    %v9692 = vadd.f32 %v9678, %v9691
    %9693 = vdwg.mxu0
    %9694 = vmatpush.bf16.msra.mxu0 %v7875
    %9695 = vmatpush.bf16.msra.mxu0 %v7859
    %9696 = vmatpush.bf16.msra.mxu0 %v7843
    %9697 = vmatpush.bf16.msra.mxu0 %v7827
    %9698 = vmatpush.bf16.msra.mxu0 %v7811
    %9699 = vmatpush.bf16.msra.mxu0 %v7795
    %9700 = vmatpush.bf16.msra.mxu0 %v7779
    %9701 = vmatpush.bf16.msra.mxu0 %v7763
    %9702 = vmatmul.bf16.gmra.mxu0 %v4420
    %v9703 = vpop.f32.mrf.mxu0
    %v9704 = vadd.f32 %v9690, %v9703
    %v9705 = vpop.f32.mrf.mxu0
    %v9706 = vadd.f32 %v9692, %v9705
    %9707 = vdwg.mxu0
    %9708 = vmatpush.bf16.msra.mxu0 %v8003
    %9709 = vmatpush.bf16.msra.mxu0 %v7987
    %9710 = vmatpush.bf16.msra.mxu0 %v7971
    %9711 = vmatpush.bf16.msra.mxu0 %v7955
    %9712 = vmatpush.bf16.msra.mxu0 %v7939
    %9713 = vmatpush.bf16.msra.mxu0 %v7923
    %9714 = vmatpush.bf16.msra.mxu0 %v7907
    %9715 = vmatpush.bf16.msra.mxu0 %v7891
    %9716 = vmatmul.bf16.gmra.mxu0 %v4421
    %v9717 = vpop.f32.mrf.mxu0
    %v9718 = vadd.f32 %v9704, %v9717
    %v9719 = vpop.f32.mrf.mxu0
    %v9720 = vadd.f32 %v9706, %v9719
    %9721 = vdwg.mxu0
    %9722 = vmatpush.bf16.msra.mxu0 %v8131
    %9723 = vmatpush.bf16.msra.mxu0 %v8115
    %9724 = vmatpush.bf16.msra.mxu0 %v8099
    %9725 = vmatpush.bf16.msra.mxu0 %v8083
    %9726 = vmatpush.bf16.msra.mxu0 %v8067
    %9727 = vmatpush.bf16.msra.mxu0 %v8051
    %9728 = vmatpush.bf16.msra.mxu0 %v8035
    %9729 = vmatpush.bf16.msra.mxu0 %v8019
    %9730 = vmatmul.bf16.gmra.mxu0 %v4422
    %v9731 = vpop.f32.mrf.mxu0
    %v9732 = vadd.f32 %v9718, %v9731
    %v9733 = vpop.f32.mrf.mxu0
    %v9734 = vadd.f32 %v9720, %v9733
    %9735 = vdwg.mxu0
    %9736 = vmatpush.bf16.msra.mxu0 %v8259
    %9737 = vmatpush.bf16.msra.mxu0 %v8243
    %9738 = vmatpush.bf16.msra.mxu0 %v8227
    %9739 = vmatpush.bf16.msra.mxu0 %v8211
    %9740 = vmatpush.bf16.msra.mxu0 %v8195
    %9741 = vmatpush.bf16.msra.mxu0 %v8179
    %9742 = vmatpush.bf16.msra.mxu0 %v8163
    %9743 = vmatpush.bf16.msra.mxu0 %v8147
    %9744 = vmatmul.bf16.gmra.mxu0 %v4423
    %v9745 = vpop.f32.mrf.mxu0
    %v9746 = vadd.f32 %v9732, %v9745
    %v9747 = vpop.f32.mrf.mxu0
    %v9748 = vadd.f32 %v9734, %v9747
    %9749 = vdwg.mxu0
    %9750 = vmatpush.bf16.msra.mxu0 %v8387
    %9751 = vmatpush.bf16.msra.mxu0 %v8371
    %9752 = vmatpush.bf16.msra.mxu0 %v8355
    %9753 = vmatpush.bf16.msra.mxu0 %v8339
    %9754 = vmatpush.bf16.msra.mxu0 %v8323
    %9755 = vmatpush.bf16.msra.mxu0 %v8307
    %9756 = vmatpush.bf16.msra.mxu0 %v8291
    %9757 = vmatpush.bf16.msra.mxu0 %v8275
    %9758 = vmatmul.bf16.gmra.mxu0 %v4424
    %v9759 = vpop.f32.mrf.mxu0
    %v9760 = vadd.f32 %v9746, %v9759
    %v9761 = vpop.f32.mrf.mxu0
    %v9762 = vadd.f32 %v9748, %v9761
    %9763 = vdwg.mxu0
    %9764 = vmatpush.bf16.msra.mxu0 %v8515
    %9765 = vmatpush.bf16.msra.mxu0 %v8499
    %9766 = vmatpush.bf16.msra.mxu0 %v8483
    %9767 = vmatpush.bf16.msra.mxu0 %v8467
    %9768 = vmatpush.bf16.msra.mxu0 %v8451
    %9769 = vmatpush.bf16.msra.mxu0 %v8435
    %9770 = vmatpush.bf16.msra.mxu0 %v8419
    %9771 = vmatpush.bf16.msra.mxu0 %v8403
    %9772 = vmatmul.bf16.gmra.mxu0 %v4425
    %v9773 = vpop.f32.mrf.mxu0
    %v9774 = vadd.f32 %v9760, %v9773
    %v9775 = vpop.f32.mrf.mxu0
    %v9776 = vadd.f32 %v9762, %v9775
    %9777 = vdwg.mxu0
    %9778 = vmatpush.bf16.msra.mxu0 %v7620
    %9779 = vmatpush.bf16.msra.mxu0 %v7604
    %9780 = vmatpush.bf16.msra.mxu0 %v7588
    %9781 = vmatpush.bf16.msra.mxu0 %v7572
    %9782 = vmatpush.bf16.msra.mxu0 %v7556
    %9783 = vmatpush.bf16.msra.mxu0 %v7540
    %9784 = vmatpush.bf16.msra.mxu0 %v7524
    %9785 = vmatpush.bf16.msra.mxu0 %v7508
    %9786 = vmatmul.bf16.gmra.mxu0 %v4418
    %v9787 = vpop.f32.mrf.mxu0
    %v9788 = vadd.f32 %v4364, %v9787
    %v9789 = vpop.f32.mrf.mxu0
    %v9790 = vadd.f32 %v4364, %v9789
    %9791 = vdwg.mxu0
    %9792 = vmatpush.bf16.msra.mxu0 %v7748
    %9793 = vmatpush.bf16.msra.mxu0 %v7732
    %9794 = vmatpush.bf16.msra.mxu0 %v7716
    %9795 = vmatpush.bf16.msra.mxu0 %v7700
    %9796 = vmatpush.bf16.msra.mxu0 %v7684
    %9797 = vmatpush.bf16.msra.mxu0 %v7668
    %9798 = vmatpush.bf16.msra.mxu0 %v7652
    %9799 = vmatpush.bf16.msra.mxu0 %v7636
    %9800 = vmatmul.bf16.gmra.mxu0 %v4419
    %v9801 = vpop.f32.mrf.mxu0
    %v9802 = vadd.f32 %v9788, %v9801
    %v9803 = vpop.f32.mrf.mxu0
    %v9804 = vadd.f32 %v9790, %v9803
    %9805 = vdwg.mxu0
    %9806 = vmatpush.bf16.msra.mxu0 %v7876
    %9807 = vmatpush.bf16.msra.mxu0 %v7860
    %9808 = vmatpush.bf16.msra.mxu0 %v7844
    %9809 = vmatpush.bf16.msra.mxu0 %v7828
    %9810 = vmatpush.bf16.msra.mxu0 %v7812
    %9811 = vmatpush.bf16.msra.mxu0 %v7796
    %9812 = vmatpush.bf16.msra.mxu0 %v7780
    %9813 = vmatpush.bf16.msra.mxu0 %v7764
    %9814 = vmatmul.bf16.gmra.mxu0 %v4420
    %v9815 = vpop.f32.mrf.mxu0
    %v9816 = vadd.f32 %v9802, %v9815
    %v9817 = vpop.f32.mrf.mxu0
    %v9818 = vadd.f32 %v9804, %v9817
    %9819 = vdwg.mxu0
    %9820 = vmatpush.bf16.msra.mxu0 %v8004
    %9821 = vmatpush.bf16.msra.mxu0 %v7988
    %9822 = vmatpush.bf16.msra.mxu0 %v7972
    %9823 = vmatpush.bf16.msra.mxu0 %v7956
    %9824 = vmatpush.bf16.msra.mxu0 %v7940
    %9825 = vmatpush.bf16.msra.mxu0 %v7924
    %9826 = vmatpush.bf16.msra.mxu0 %v7908
    %9827 = vmatpush.bf16.msra.mxu0 %v7892
    %9828 = vmatmul.bf16.gmra.mxu0 %v4421
    %v9829 = vpop.f32.mrf.mxu0
    %v9830 = vadd.f32 %v9816, %v9829
    %v9831 = vpop.f32.mrf.mxu0
    %v9832 = vadd.f32 %v9818, %v9831
    %9833 = vdwg.mxu0
    %9834 = vmatpush.bf16.msra.mxu0 %v8132
    %9835 = vmatpush.bf16.msra.mxu0 %v8116
    %9836 = vmatpush.bf16.msra.mxu0 %v8100
    %9837 = vmatpush.bf16.msra.mxu0 %v8084
    %9838 = vmatpush.bf16.msra.mxu0 %v8068
    %9839 = vmatpush.bf16.msra.mxu0 %v8052
    %9840 = vmatpush.bf16.msra.mxu0 %v8036
    %9841 = vmatpush.bf16.msra.mxu0 %v8020
    %9842 = vmatmul.bf16.gmra.mxu0 %v4422
    %v9843 = vpop.f32.mrf.mxu0
    %v9844 = vadd.f32 %v9830, %v9843
    %v9845 = vpop.f32.mrf.mxu0
    %v9846 = vadd.f32 %v9832, %v9845
    %9847 = vdwg.mxu0
    %9848 = vmatpush.bf16.msra.mxu0 %v8260
    %9849 = vmatpush.bf16.msra.mxu0 %v8244
    %9850 = vmatpush.bf16.msra.mxu0 %v8228
    %9851 = vmatpush.bf16.msra.mxu0 %v8212
    %9852 = vmatpush.bf16.msra.mxu0 %v8196
    %9853 = vmatpush.bf16.msra.mxu0 %v8180
    %9854 = vmatpush.bf16.msra.mxu0 %v8164
    %9855 = vmatpush.bf16.msra.mxu0 %v8148
    %9856 = vmatmul.bf16.gmra.mxu0 %v4423
    %v9857 = vpop.f32.mrf.mxu0
    %v9858 = vadd.f32 %v9844, %v9857
    %v9859 = vpop.f32.mrf.mxu0
    %v9860 = vadd.f32 %v9846, %v9859
    %9861 = vdwg.mxu0
    %9862 = vmatpush.bf16.msra.mxu0 %v8388
    %9863 = vmatpush.bf16.msra.mxu0 %v8372
    %9864 = vmatpush.bf16.msra.mxu0 %v8356
    %9865 = vmatpush.bf16.msra.mxu0 %v8340
    %9866 = vmatpush.bf16.msra.mxu0 %v8324
    %9867 = vmatpush.bf16.msra.mxu0 %v8308
    %9868 = vmatpush.bf16.msra.mxu0 %v8292
    %9869 = vmatpush.bf16.msra.mxu0 %v8276
    %9870 = vmatmul.bf16.gmra.mxu0 %v4424
    %v9871 = vpop.f32.mrf.mxu0
    %v9872 = vadd.f32 %v9858, %v9871
    %v9873 = vpop.f32.mrf.mxu0
    %v9874 = vadd.f32 %v9860, %v9873
    %9875 = vdwg.mxu0
    %9876 = vmatpush.bf16.msra.mxu0 %v8516
    %9877 = vmatpush.bf16.msra.mxu0 %v8500
    %9878 = vmatpush.bf16.msra.mxu0 %v8484
    %9879 = vmatpush.bf16.msra.mxu0 %v8468
    %9880 = vmatpush.bf16.msra.mxu0 %v8452
    %9881 = vmatpush.bf16.msra.mxu0 %v8436
    %9882 = vmatpush.bf16.msra.mxu0 %v8420
    %9883 = vmatpush.bf16.msra.mxu0 %v8404
    %9884 = vmatmul.bf16.gmra.mxu0 %v4425
    %v9885 = vpop.f32.mrf.mxu0
    %v9886 = vadd.f32 %v9872, %v9885
    %v9887 = vpop.f32.mrf.mxu0
    %v9888 = vadd.f32 %v9874, %v9887
    %9889 = vdwg.mxu0
    %9890 = vmatpush.bf16.msra.mxu0 %v7621
    %9891 = vmatpush.bf16.msra.mxu0 %v7605
    %9892 = vmatpush.bf16.msra.mxu0 %v7589
    %9893 = vmatpush.bf16.msra.mxu0 %v7573
    %9894 = vmatpush.bf16.msra.mxu0 %v7557
    %9895 = vmatpush.bf16.msra.mxu0 %v7541
    %9896 = vmatpush.bf16.msra.mxu0 %v7525
    %9897 = vmatpush.bf16.msra.mxu0 %v7509
    %9898 = vmatmul.bf16.gmra.mxu0 %v4418
    %v9899 = vpop.f32.mrf.mxu0
    %v9900 = vadd.f32 %v4365, %v9899
    %v9901 = vpop.f32.mrf.mxu0
    %v9902 = vadd.f32 %v4365, %v9901
    %9903 = vdwg.mxu0
    %9904 = vmatpush.bf16.msra.mxu0 %v7749
    %9905 = vmatpush.bf16.msra.mxu0 %v7733
    %9906 = vmatpush.bf16.msra.mxu0 %v7717
    %9907 = vmatpush.bf16.msra.mxu0 %v7701
    %9908 = vmatpush.bf16.msra.mxu0 %v7685
    %9909 = vmatpush.bf16.msra.mxu0 %v7669
    %9910 = vmatpush.bf16.msra.mxu0 %v7653
    %9911 = vmatpush.bf16.msra.mxu0 %v7637
    %9912 = vmatmul.bf16.gmra.mxu0 %v4419
    %v9913 = vpop.f32.mrf.mxu0
    %v9914 = vadd.f32 %v9900, %v9913
    %v9915 = vpop.f32.mrf.mxu0
    %v9916 = vadd.f32 %v9902, %v9915
    %9917 = vdwg.mxu0
    %9918 = vmatpush.bf16.msra.mxu0 %v7877
    %9919 = vmatpush.bf16.msra.mxu0 %v7861
    %9920 = vmatpush.bf16.msra.mxu0 %v7845
    %9921 = vmatpush.bf16.msra.mxu0 %v7829
    %9922 = vmatpush.bf16.msra.mxu0 %v7813
    %9923 = vmatpush.bf16.msra.mxu0 %v7797
    %9924 = vmatpush.bf16.msra.mxu0 %v7781
    %9925 = vmatpush.bf16.msra.mxu0 %v7765
    %9926 = vmatmul.bf16.gmra.mxu0 %v4420
    %v9927 = vpop.f32.mrf.mxu0
    %v9928 = vadd.f32 %v9914, %v9927
    %v9929 = vpop.f32.mrf.mxu0
    %v9930 = vadd.f32 %v9916, %v9929
    %9931 = vdwg.mxu0
    %9932 = vmatpush.bf16.msra.mxu0 %v8005
    %9933 = vmatpush.bf16.msra.mxu0 %v7989
    %9934 = vmatpush.bf16.msra.mxu0 %v7973
    %9935 = vmatpush.bf16.msra.mxu0 %v7957
    %9936 = vmatpush.bf16.msra.mxu0 %v7941
    %9937 = vmatpush.bf16.msra.mxu0 %v7925
    %9938 = vmatpush.bf16.msra.mxu0 %v7909
    %9939 = vmatpush.bf16.msra.mxu0 %v7893
    %9940 = vmatmul.bf16.gmra.mxu0 %v4421
    %v9941 = vpop.f32.mrf.mxu0
    %v9942 = vadd.f32 %v9928, %v9941
    %v9943 = vpop.f32.mrf.mxu0
    %v9944 = vadd.f32 %v9930, %v9943
    %9945 = vdwg.mxu0
    %9946 = vmatpush.bf16.msra.mxu0 %v8133
    %9947 = vmatpush.bf16.msra.mxu0 %v8117
    %9948 = vmatpush.bf16.msra.mxu0 %v8101
    %9949 = vmatpush.bf16.msra.mxu0 %v8085
    %9950 = vmatpush.bf16.msra.mxu0 %v8069
    %9951 = vmatpush.bf16.msra.mxu0 %v8053
    %9952 = vmatpush.bf16.msra.mxu0 %v8037
    %9953 = vmatpush.bf16.msra.mxu0 %v8021
    %9954 = vmatmul.bf16.gmra.mxu0 %v4422
    %v9955 = vpop.f32.mrf.mxu0
    %v9956 = vadd.f32 %v9942, %v9955
    %v9957 = vpop.f32.mrf.mxu0
    %v9958 = vadd.f32 %v9944, %v9957
    %9959 = vdwg.mxu0
    %9960 = vmatpush.bf16.msra.mxu0 %v8261
    %9961 = vmatpush.bf16.msra.mxu0 %v8245
    %9962 = vmatpush.bf16.msra.mxu0 %v8229
    %9963 = vmatpush.bf16.msra.mxu0 %v8213
    %9964 = vmatpush.bf16.msra.mxu0 %v8197
    %9965 = vmatpush.bf16.msra.mxu0 %v8181
    %9966 = vmatpush.bf16.msra.mxu0 %v8165
    %9967 = vmatpush.bf16.msra.mxu0 %v8149
    %9968 = vmatmul.bf16.gmra.mxu0 %v4423
    %v9969 = vpop.f32.mrf.mxu0
    %v9970 = vadd.f32 %v9956, %v9969
    %v9971 = vpop.f32.mrf.mxu0
    %v9972 = vadd.f32 %v9958, %v9971
    %9973 = vdwg.mxu0
    %9974 = vmatpush.bf16.msra.mxu0 %v8389
    %9975 = vmatpush.bf16.msra.mxu0 %v8373
    %9976 = vmatpush.bf16.msra.mxu0 %v8357
    %9977 = vmatpush.bf16.msra.mxu0 %v8341
    %9978 = vmatpush.bf16.msra.mxu0 %v8325
    %9979 = vmatpush.bf16.msra.mxu0 %v8309
    %9980 = vmatpush.bf16.msra.mxu0 %v8293
    %9981 = vmatpush.bf16.msra.mxu0 %v8277
    %9982 = vmatmul.bf16.gmra.mxu0 %v4424
    %v9983 = vpop.f32.mrf.mxu0
    %v9984 = vadd.f32 %v9970, %v9983
    %v9985 = vpop.f32.mrf.mxu0
    %v9986 = vadd.f32 %v9972, %v9985
    %9987 = vdwg.mxu0
    %9988 = vmatpush.bf16.msra.mxu0 %v8517
    %9989 = vmatpush.bf16.msra.mxu0 %v8501
    %9990 = vmatpush.bf16.msra.mxu0 %v8485
    %9991 = vmatpush.bf16.msra.mxu0 %v8469
    %9992 = vmatpush.bf16.msra.mxu0 %v8453
    %9993 = vmatpush.bf16.msra.mxu0 %v8437
    %9994 = vmatpush.bf16.msra.mxu0 %v8421
    %9995 = vmatpush.bf16.msra.mxu0 %v8405
    %9996 = vmatmul.bf16.gmra.mxu0 %v4425
    %v9997 = vpop.f32.mrf.mxu0
    %v9998 = vadd.f32 %v9984, %v9997
    %v9999 = vpop.f32.mrf.mxu0
    %v10000 = vadd.f32 %v9986, %v9999
    %10001 = vdwg.mxu0
    %10002 = vmatpush.bf16.msra.mxu0 %v7622
    %10003 = vmatpush.bf16.msra.mxu0 %v7606
    %10004 = vmatpush.bf16.msra.mxu0 %v7590
    %10005 = vmatpush.bf16.msra.mxu0 %v7574
    %10006 = vmatpush.bf16.msra.mxu0 %v7558
    %10007 = vmatpush.bf16.msra.mxu0 %v7542
    %10008 = vmatpush.bf16.msra.mxu0 %v7526
    %10009 = vmatpush.bf16.msra.mxu0 %v7510
    %10010 = vmatmul.bf16.gmra.mxu0 %v4418
    %v10011 = vpop.f32.mrf.mxu0
    %v10012 = vadd.f32 %v4366, %v10011
    %v10013 = vpop.f32.mrf.mxu0
    %v10014 = vadd.f32 %v4366, %v10013
    %10015 = vdwg.mxu0
    %10016 = vmatpush.bf16.msra.mxu0 %v7750
    %10017 = vmatpush.bf16.msra.mxu0 %v7734
    %10018 = vmatpush.bf16.msra.mxu0 %v7718
    %10019 = vmatpush.bf16.msra.mxu0 %v7702
    %10020 = vmatpush.bf16.msra.mxu0 %v7686
    %10021 = vmatpush.bf16.msra.mxu0 %v7670
    %10022 = vmatpush.bf16.msra.mxu0 %v7654
    %10023 = vmatpush.bf16.msra.mxu0 %v7638
    %10024 = vmatmul.bf16.gmra.mxu0 %v4419
    %v10025 = vpop.f32.mrf.mxu0
    %v10026 = vadd.f32 %v10012, %v10025
    %v10027 = vpop.f32.mrf.mxu0
    %v10028 = vadd.f32 %v10014, %v10027
    %10029 = vdwg.mxu0
    %10030 = vmatpush.bf16.msra.mxu0 %v7878
    %10031 = vmatpush.bf16.msra.mxu0 %v7862
    %10032 = vmatpush.bf16.msra.mxu0 %v7846
    %10033 = vmatpush.bf16.msra.mxu0 %v7830
    %10034 = vmatpush.bf16.msra.mxu0 %v7814
    %10035 = vmatpush.bf16.msra.mxu0 %v7798
    %10036 = vmatpush.bf16.msra.mxu0 %v7782
    %10037 = vmatpush.bf16.msra.mxu0 %v7766
    %10038 = vmatmul.bf16.gmra.mxu0 %v4420
    %v10039 = vpop.f32.mrf.mxu0
    %v10040 = vadd.f32 %v10026, %v10039
    %v10041 = vpop.f32.mrf.mxu0
    %v10042 = vadd.f32 %v10028, %v10041
    %10043 = vdwg.mxu0
    %10044 = vmatpush.bf16.msra.mxu0 %v8006
    %10045 = vmatpush.bf16.msra.mxu0 %v7990
    %10046 = vmatpush.bf16.msra.mxu0 %v7974
    %10047 = vmatpush.bf16.msra.mxu0 %v7958
    %10048 = vmatpush.bf16.msra.mxu0 %v7942
    %10049 = vmatpush.bf16.msra.mxu0 %v7926
    %10050 = vmatpush.bf16.msra.mxu0 %v7910
    %10051 = vmatpush.bf16.msra.mxu0 %v7894
    %10052 = vmatmul.bf16.gmra.mxu0 %v4421
    %v10053 = vpop.f32.mrf.mxu0
    %v10054 = vadd.f32 %v10040, %v10053
    %v10055 = vpop.f32.mrf.mxu0
    %v10056 = vadd.f32 %v10042, %v10055
    %10057 = vdwg.mxu0
    %10058 = vmatpush.bf16.msra.mxu0 %v8134
    %10059 = vmatpush.bf16.msra.mxu0 %v8118
    %10060 = vmatpush.bf16.msra.mxu0 %v8102
    %10061 = vmatpush.bf16.msra.mxu0 %v8086
    %10062 = vmatpush.bf16.msra.mxu0 %v8070
    %10063 = vmatpush.bf16.msra.mxu0 %v8054
    %10064 = vmatpush.bf16.msra.mxu0 %v8038
    %10065 = vmatpush.bf16.msra.mxu0 %v8022
    %10066 = vmatmul.bf16.gmra.mxu0 %v4422
    %v10067 = vpop.f32.mrf.mxu0
    %v10068 = vadd.f32 %v10054, %v10067
    %v10069 = vpop.f32.mrf.mxu0
    %v10070 = vadd.f32 %v10056, %v10069
    %10071 = vdwg.mxu0
    %10072 = vmatpush.bf16.msra.mxu0 %v8262
    %10073 = vmatpush.bf16.msra.mxu0 %v8246
    %10074 = vmatpush.bf16.msra.mxu0 %v8230
    %10075 = vmatpush.bf16.msra.mxu0 %v8214
    %10076 = vmatpush.bf16.msra.mxu0 %v8198
    %10077 = vmatpush.bf16.msra.mxu0 %v8182
    %10078 = vmatpush.bf16.msra.mxu0 %v8166
    %10079 = vmatpush.bf16.msra.mxu0 %v8150
    %10080 = vmatmul.bf16.gmra.mxu0 %v4423
    %v10081 = vpop.f32.mrf.mxu0
    %v10082 = vadd.f32 %v10068, %v10081
    %v10083 = vpop.f32.mrf.mxu0
    %v10084 = vadd.f32 %v10070, %v10083
    %10085 = vdwg.mxu0
    %10086 = vmatpush.bf16.msra.mxu0 %v8390
    %10087 = vmatpush.bf16.msra.mxu0 %v8374
    %10088 = vmatpush.bf16.msra.mxu0 %v8358
    %10089 = vmatpush.bf16.msra.mxu0 %v8342
    %10090 = vmatpush.bf16.msra.mxu0 %v8326
    %10091 = vmatpush.bf16.msra.mxu0 %v8310
    %10092 = vmatpush.bf16.msra.mxu0 %v8294
    %10093 = vmatpush.bf16.msra.mxu0 %v8278
    %10094 = vmatmul.bf16.gmra.mxu0 %v4424
    %v10095 = vpop.f32.mrf.mxu0
    %v10096 = vadd.f32 %v10082, %v10095
    %v10097 = vpop.f32.mrf.mxu0
    %v10098 = vadd.f32 %v10084, %v10097
    %10099 = vdwg.mxu0
    %10100 = vmatpush.bf16.msra.mxu0 %v8518
    %10101 = vmatpush.bf16.msra.mxu0 %v8502
    %10102 = vmatpush.bf16.msra.mxu0 %v8486
    %10103 = vmatpush.bf16.msra.mxu0 %v8470
    %10104 = vmatpush.bf16.msra.mxu0 %v8454
    %10105 = vmatpush.bf16.msra.mxu0 %v8438
    %10106 = vmatpush.bf16.msra.mxu0 %v8422
    %10107 = vmatpush.bf16.msra.mxu0 %v8406
    %10108 = vmatmul.bf16.gmra.mxu0 %v4425
    %v10109 = vpop.f32.mrf.mxu0
    %v10110 = vadd.f32 %v10096, %v10109
    %v10111 = vpop.f32.mrf.mxu0
    %v10112 = vadd.f32 %v10098, %v10111
    %10113 = vdwg.mxu0
    %10114 = vmatpush.bf16.msra.mxu0 %v7623
    %10115 = vmatpush.bf16.msra.mxu0 %v7607
    %10116 = vmatpush.bf16.msra.mxu0 %v7591
    %10117 = vmatpush.bf16.msra.mxu0 %v7575
    %10118 = vmatpush.bf16.msra.mxu0 %v7559
    %10119 = vmatpush.bf16.msra.mxu0 %v7543
    %10120 = vmatpush.bf16.msra.mxu0 %v7527
    %10121 = vmatpush.bf16.msra.mxu0 %v7511
    %10122 = vmatmul.bf16.gmra.mxu0 %v4418
    %v10123 = vpop.f32.mrf.mxu0
    %v10124 = vadd.f32 %v4367, %v10123
    %v10125 = vpop.f32.mrf.mxu0
    %v10126 = vadd.f32 %v4367, %v10125
    %10127 = vdwg.mxu0
    %10128 = vmatpush.bf16.msra.mxu0 %v7751
    %10129 = vmatpush.bf16.msra.mxu0 %v7735
    %10130 = vmatpush.bf16.msra.mxu0 %v7719
    %10131 = vmatpush.bf16.msra.mxu0 %v7703
    %10132 = vmatpush.bf16.msra.mxu0 %v7687
    %10133 = vmatpush.bf16.msra.mxu0 %v7671
    %10134 = vmatpush.bf16.msra.mxu0 %v7655
    %10135 = vmatpush.bf16.msra.mxu0 %v7639
    %10136 = vmatmul.bf16.gmra.mxu0 %v4419
    %v10137 = vpop.f32.mrf.mxu0
    %v10138 = vadd.f32 %v10124, %v10137
    %v10139 = vpop.f32.mrf.mxu0
    %v10140 = vadd.f32 %v10126, %v10139
    %10141 = vdwg.mxu0
    %10142 = vmatpush.bf16.msra.mxu0 %v7879
    %10143 = vmatpush.bf16.msra.mxu0 %v7863
    %10144 = vmatpush.bf16.msra.mxu0 %v7847
    %10145 = vmatpush.bf16.msra.mxu0 %v7831
    %10146 = vmatpush.bf16.msra.mxu0 %v7815
    %10147 = vmatpush.bf16.msra.mxu0 %v7799
    %10148 = vmatpush.bf16.msra.mxu0 %v7783
    %10149 = vmatpush.bf16.msra.mxu0 %v7767
    %10150 = vmatmul.bf16.gmra.mxu0 %v4420
    %v10151 = vpop.f32.mrf.mxu0
    %v10152 = vadd.f32 %v10138, %v10151
    %v10153 = vpop.f32.mrf.mxu0
    %v10154 = vadd.f32 %v10140, %v10153
    %10155 = vdwg.mxu0
    %10156 = vmatpush.bf16.msra.mxu0 %v8007
    %10157 = vmatpush.bf16.msra.mxu0 %v7991
    %10158 = vmatpush.bf16.msra.mxu0 %v7975
    %10159 = vmatpush.bf16.msra.mxu0 %v7959
    %10160 = vmatpush.bf16.msra.mxu0 %v7943
    %10161 = vmatpush.bf16.msra.mxu0 %v7927
    %10162 = vmatpush.bf16.msra.mxu0 %v7911
    %10163 = vmatpush.bf16.msra.mxu0 %v7895
    %10164 = vmatmul.bf16.gmra.mxu0 %v4421
    %v10165 = vpop.f32.mrf.mxu0
    %v10166 = vadd.f32 %v10152, %v10165
    %v10167 = vpop.f32.mrf.mxu0
    %v10168 = vadd.f32 %v10154, %v10167
    %10169 = vdwg.mxu0
    %10170 = vmatpush.bf16.msra.mxu0 %v8135
    %10171 = vmatpush.bf16.msra.mxu0 %v8119
    %10172 = vmatpush.bf16.msra.mxu0 %v8103
    %10173 = vmatpush.bf16.msra.mxu0 %v8087
    %10174 = vmatpush.bf16.msra.mxu0 %v8071
    %10175 = vmatpush.bf16.msra.mxu0 %v8055
    %10176 = vmatpush.bf16.msra.mxu0 %v8039
    %10177 = vmatpush.bf16.msra.mxu0 %v8023
    %10178 = vmatmul.bf16.gmra.mxu0 %v4422
    %v10179 = vpop.f32.mrf.mxu0
    %v10180 = vadd.f32 %v10166, %v10179
    %v10181 = vpop.f32.mrf.mxu0
    %v10182 = vadd.f32 %v10168, %v10181
    %10183 = vdwg.mxu0
    %10184 = vmatpush.bf16.msra.mxu0 %v8263
    %10185 = vmatpush.bf16.msra.mxu0 %v8247
    %10186 = vmatpush.bf16.msra.mxu0 %v8231
    %10187 = vmatpush.bf16.msra.mxu0 %v8215
    %10188 = vmatpush.bf16.msra.mxu0 %v8199
    %10189 = vmatpush.bf16.msra.mxu0 %v8183
    %10190 = vmatpush.bf16.msra.mxu0 %v8167
    %10191 = vmatpush.bf16.msra.mxu0 %v8151
    %10192 = vmatmul.bf16.gmra.mxu0 %v4423
    %v10193 = vpop.f32.mrf.mxu0
    %v10194 = vadd.f32 %v10180, %v10193
    %v10195 = vpop.f32.mrf.mxu0
    %v10196 = vadd.f32 %v10182, %v10195
    %10197 = vdwg.mxu0
    %10198 = vmatpush.bf16.msra.mxu0 %v8391
    %10199 = vmatpush.bf16.msra.mxu0 %v8375
    %10200 = vmatpush.bf16.msra.mxu0 %v8359
    %10201 = vmatpush.bf16.msra.mxu0 %v8343
    %10202 = vmatpush.bf16.msra.mxu0 %v8327
    %10203 = vmatpush.bf16.msra.mxu0 %v8311
    %10204 = vmatpush.bf16.msra.mxu0 %v8295
    %10205 = vmatpush.bf16.msra.mxu0 %v8279
    %10206 = vmatmul.bf16.gmra.mxu0 %v4424
    %v10207 = vpop.f32.mrf.mxu0
    %v10208 = vadd.f32 %v10194, %v10207
    %v10209 = vpop.f32.mrf.mxu0
    %v10210 = vadd.f32 %v10196, %v10209
    %10211 = vdwg.mxu0
    %10212 = vmatpush.bf16.msra.mxu0 %v8519
    %10213 = vmatpush.bf16.msra.mxu0 %v8503
    %10214 = vmatpush.bf16.msra.mxu0 %v8487
    %10215 = vmatpush.bf16.msra.mxu0 %v8471
    %10216 = vmatpush.bf16.msra.mxu0 %v8455
    %10217 = vmatpush.bf16.msra.mxu0 %v8439
    %10218 = vmatpush.bf16.msra.mxu0 %v8423
    %10219 = vmatpush.bf16.msra.mxu0 %v8407
    %10220 = vmatmul.bf16.gmra.mxu0 %v4425
    %v10221 = vpop.f32.mrf.mxu0
    %v10222 = vadd.f32 %v10208, %v10221
    %v10223 = vpop.f32.mrf.mxu0
    %v10224 = vadd.f32 %v10210, %v10223
    %10225 = vdwg.mxu0
    %10226 = vmatpush.bf16.msra.mxu0 %v7624
    %10227 = vmatpush.bf16.msra.mxu0 %v7608
    %10228 = vmatpush.bf16.msra.mxu0 %v7592
    %10229 = vmatpush.bf16.msra.mxu0 %v7576
    %10230 = vmatpush.bf16.msra.mxu0 %v7560
    %10231 = vmatpush.bf16.msra.mxu0 %v7544
    %10232 = vmatpush.bf16.msra.mxu0 %v7528
    %10233 = vmatpush.bf16.msra.mxu0 %v7512
    %10234 = vmatmul.bf16.gmra.mxu0 %v4418
    %v10235 = vpop.f32.mrf.mxu0
    %v10236 = vadd.f32 %v4368, %v10235
    %v10237 = vpop.f32.mrf.mxu0
    %v10238 = vadd.f32 %v4368, %v10237
    %10239 = vdwg.mxu0
    %10240 = vmatpush.bf16.msra.mxu0 %v7752
    %10241 = vmatpush.bf16.msra.mxu0 %v7736
    %10242 = vmatpush.bf16.msra.mxu0 %v7720
    %10243 = vmatpush.bf16.msra.mxu0 %v7704
    %10244 = vmatpush.bf16.msra.mxu0 %v7688
    %10245 = vmatpush.bf16.msra.mxu0 %v7672
    %10246 = vmatpush.bf16.msra.mxu0 %v7656
    %10247 = vmatpush.bf16.msra.mxu0 %v7640
    %10248 = vmatmul.bf16.gmra.mxu0 %v4419
    %v10249 = vpop.f32.mrf.mxu0
    %v10250 = vadd.f32 %v10236, %v10249
    %v10251 = vpop.f32.mrf.mxu0
    %v10252 = vadd.f32 %v10238, %v10251
    %10253 = vdwg.mxu0
    %10254 = vmatpush.bf16.msra.mxu0 %v7880
    %10255 = vmatpush.bf16.msra.mxu0 %v7864
    %10256 = vmatpush.bf16.msra.mxu0 %v7848
    %10257 = vmatpush.bf16.msra.mxu0 %v7832
    %10258 = vmatpush.bf16.msra.mxu0 %v7816
    %10259 = vmatpush.bf16.msra.mxu0 %v7800
    %10260 = vmatpush.bf16.msra.mxu0 %v7784
    %10261 = vmatpush.bf16.msra.mxu0 %v7768
    %10262 = vmatmul.bf16.gmra.mxu0 %v4420
    %v10263 = vpop.f32.mrf.mxu0
    %v10264 = vadd.f32 %v10250, %v10263
    %v10265 = vpop.f32.mrf.mxu0
    %v10266 = vadd.f32 %v10252, %v10265
    %10267 = vdwg.mxu0
    %10268 = vmatpush.bf16.msra.mxu0 %v8008
    %10269 = vmatpush.bf16.msra.mxu0 %v7992
    %10270 = vmatpush.bf16.msra.mxu0 %v7976
    %10271 = vmatpush.bf16.msra.mxu0 %v7960
    %10272 = vmatpush.bf16.msra.mxu0 %v7944
    %10273 = vmatpush.bf16.msra.mxu0 %v7928
    %10274 = vmatpush.bf16.msra.mxu0 %v7912
    %10275 = vmatpush.bf16.msra.mxu0 %v7896
    %10276 = vmatmul.bf16.gmra.mxu0 %v4421
    %v10277 = vpop.f32.mrf.mxu0
    %v10278 = vadd.f32 %v10264, %v10277
    %v10279 = vpop.f32.mrf.mxu0
    %v10280 = vadd.f32 %v10266, %v10279
    %10281 = vdwg.mxu0
    %10282 = vmatpush.bf16.msra.mxu0 %v8136
    %10283 = vmatpush.bf16.msra.mxu0 %v8120
    %10284 = vmatpush.bf16.msra.mxu0 %v8104
    %10285 = vmatpush.bf16.msra.mxu0 %v8088
    %10286 = vmatpush.bf16.msra.mxu0 %v8072
    %10287 = vmatpush.bf16.msra.mxu0 %v8056
    %10288 = vmatpush.bf16.msra.mxu0 %v8040
    %10289 = vmatpush.bf16.msra.mxu0 %v8024
    %10290 = vmatmul.bf16.gmra.mxu0 %v4422
    %v10291 = vpop.f32.mrf.mxu0
    %v10292 = vadd.f32 %v10278, %v10291
    %v10293 = vpop.f32.mrf.mxu0
    %v10294 = vadd.f32 %v10280, %v10293
    %10295 = vdwg.mxu0
    %10296 = vmatpush.bf16.msra.mxu0 %v8264
    %10297 = vmatpush.bf16.msra.mxu0 %v8248
    %10298 = vmatpush.bf16.msra.mxu0 %v8232
    %10299 = vmatpush.bf16.msra.mxu0 %v8216
    %10300 = vmatpush.bf16.msra.mxu0 %v8200
    %10301 = vmatpush.bf16.msra.mxu0 %v8184
    %10302 = vmatpush.bf16.msra.mxu0 %v8168
    %10303 = vmatpush.bf16.msra.mxu0 %v8152
    %10304 = vmatmul.bf16.gmra.mxu0 %v4423
    %v10305 = vpop.f32.mrf.mxu0
    %v10306 = vadd.f32 %v10292, %v10305
    %v10307 = vpop.f32.mrf.mxu0
    %v10308 = vadd.f32 %v10294, %v10307
    %10309 = vdwg.mxu0
    %10310 = vmatpush.bf16.msra.mxu0 %v8392
    %10311 = vmatpush.bf16.msra.mxu0 %v8376
    %10312 = vmatpush.bf16.msra.mxu0 %v8360
    %10313 = vmatpush.bf16.msra.mxu0 %v8344
    %10314 = vmatpush.bf16.msra.mxu0 %v8328
    %10315 = vmatpush.bf16.msra.mxu0 %v8312
    %10316 = vmatpush.bf16.msra.mxu0 %v8296
    %10317 = vmatpush.bf16.msra.mxu0 %v8280
    %10318 = vmatmul.bf16.gmra.mxu0 %v4424
    %v10319 = vpop.f32.mrf.mxu0
    %v10320 = vadd.f32 %v10306, %v10319
    %v10321 = vpop.f32.mrf.mxu0
    %v10322 = vadd.f32 %v10308, %v10321
    %10323 = vdwg.mxu0
    %10324 = vmatpush.bf16.msra.mxu0 %v8520
    %10325 = vmatpush.bf16.msra.mxu0 %v8504
    %10326 = vmatpush.bf16.msra.mxu0 %v8488
    %10327 = vmatpush.bf16.msra.mxu0 %v8472
    %10328 = vmatpush.bf16.msra.mxu0 %v8456
    %10329 = vmatpush.bf16.msra.mxu0 %v8440
    %10330 = vmatpush.bf16.msra.mxu0 %v8424
    %10331 = vmatpush.bf16.msra.mxu0 %v8408
    %10332 = vmatmul.bf16.gmra.mxu0 %v4425
    %v10333 = vpop.f32.mrf.mxu0
    %v10334 = vadd.f32 %v10320, %v10333
    %v10335 = vpop.f32.mrf.mxu0
    %v10336 = vadd.f32 %v10322, %v10335
    %10337 = vdwg.mxu0
    %10338 = vmatpush.bf16.msra.mxu0 %v7625
    %10339 = vmatpush.bf16.msra.mxu0 %v7609
    %10340 = vmatpush.bf16.msra.mxu0 %v7593
    %10341 = vmatpush.bf16.msra.mxu0 %v7577
    %10342 = vmatpush.bf16.msra.mxu0 %v7561
    %10343 = vmatpush.bf16.msra.mxu0 %v7545
    %10344 = vmatpush.bf16.msra.mxu0 %v7529
    %10345 = vmatpush.bf16.msra.mxu0 %v7513
    %10346 = vmatmul.bf16.gmra.mxu0 %v4418
    %v10347 = vpop.f32.mrf.mxu0
    %v10348 = vadd.f32 %v4369, %v10347
    %v10349 = vpop.f32.mrf.mxu0
    %v10350 = vadd.f32 %v4369, %v10349
    %10351 = vdwg.mxu0
    %10352 = vmatpush.bf16.msra.mxu0 %v7753
    %10353 = vmatpush.bf16.msra.mxu0 %v7737
    %10354 = vmatpush.bf16.msra.mxu0 %v7721
    %10355 = vmatpush.bf16.msra.mxu0 %v7705
    %10356 = vmatpush.bf16.msra.mxu0 %v7689
    %10357 = vmatpush.bf16.msra.mxu0 %v7673
    %10358 = vmatpush.bf16.msra.mxu0 %v7657
    %10359 = vmatpush.bf16.msra.mxu0 %v7641
    %10360 = vmatmul.bf16.gmra.mxu0 %v4419
    %v10361 = vpop.f32.mrf.mxu0
    %v10362 = vadd.f32 %v10348, %v10361
    %v10363 = vpop.f32.mrf.mxu0
    %v10364 = vadd.f32 %v10350, %v10363
    %10365 = vdwg.mxu0
    %10366 = vmatpush.bf16.msra.mxu0 %v7881
    %10367 = vmatpush.bf16.msra.mxu0 %v7865
    %10368 = vmatpush.bf16.msra.mxu0 %v7849
    %10369 = vmatpush.bf16.msra.mxu0 %v7833
    %10370 = vmatpush.bf16.msra.mxu0 %v7817
    %10371 = vmatpush.bf16.msra.mxu0 %v7801
    %10372 = vmatpush.bf16.msra.mxu0 %v7785
    %10373 = vmatpush.bf16.msra.mxu0 %v7769
    %10374 = vmatmul.bf16.gmra.mxu0 %v4420
    %v10375 = vpop.f32.mrf.mxu0
    %v10376 = vadd.f32 %v10362, %v10375
    %v10377 = vpop.f32.mrf.mxu0
    %v10378 = vadd.f32 %v10364, %v10377
    %10379 = vdwg.mxu0
    %10380 = vmatpush.bf16.msra.mxu0 %v8009
    %10381 = vmatpush.bf16.msra.mxu0 %v7993
    %10382 = vmatpush.bf16.msra.mxu0 %v7977
    %10383 = vmatpush.bf16.msra.mxu0 %v7961
    %10384 = vmatpush.bf16.msra.mxu0 %v7945
    %10385 = vmatpush.bf16.msra.mxu0 %v7929
    %10386 = vmatpush.bf16.msra.mxu0 %v7913
    %10387 = vmatpush.bf16.msra.mxu0 %v7897
    %10388 = vmatmul.bf16.gmra.mxu0 %v4421
    %v10389 = vpop.f32.mrf.mxu0
    %v10390 = vadd.f32 %v10376, %v10389
    %v10391 = vpop.f32.mrf.mxu0
    %v10392 = vadd.f32 %v10378, %v10391
    %10393 = vdwg.mxu0
    %10394 = vmatpush.bf16.msra.mxu0 %v8137
    %10395 = vmatpush.bf16.msra.mxu0 %v8121
    %10396 = vmatpush.bf16.msra.mxu0 %v8105
    %10397 = vmatpush.bf16.msra.mxu0 %v8089
    %10398 = vmatpush.bf16.msra.mxu0 %v8073
    %10399 = vmatpush.bf16.msra.mxu0 %v8057
    %10400 = vmatpush.bf16.msra.mxu0 %v8041
    %10401 = vmatpush.bf16.msra.mxu0 %v8025
    %10402 = vmatmul.bf16.gmra.mxu0 %v4422
    %v10403 = vpop.f32.mrf.mxu0
    %v10404 = vadd.f32 %v10390, %v10403
    %v10405 = vpop.f32.mrf.mxu0
    %v10406 = vadd.f32 %v10392, %v10405
    %10407 = vdwg.mxu0
    %10408 = vmatpush.bf16.msra.mxu0 %v8265
    %10409 = vmatpush.bf16.msra.mxu0 %v8249
    %10410 = vmatpush.bf16.msra.mxu0 %v8233
    %10411 = vmatpush.bf16.msra.mxu0 %v8217
    %10412 = vmatpush.bf16.msra.mxu0 %v8201
    %10413 = vmatpush.bf16.msra.mxu0 %v8185
    %10414 = vmatpush.bf16.msra.mxu0 %v8169
    %10415 = vmatpush.bf16.msra.mxu0 %v8153
    %10416 = vmatmul.bf16.gmra.mxu0 %v4423
    %v10417 = vpop.f32.mrf.mxu0
    %v10418 = vadd.f32 %v10404, %v10417
    %v10419 = vpop.f32.mrf.mxu0
    %v10420 = vadd.f32 %v10406, %v10419
    %10421 = vdwg.mxu0
    %10422 = vmatpush.bf16.msra.mxu0 %v8393
    %10423 = vmatpush.bf16.msra.mxu0 %v8377
    %10424 = vmatpush.bf16.msra.mxu0 %v8361
    %10425 = vmatpush.bf16.msra.mxu0 %v8345
    %10426 = vmatpush.bf16.msra.mxu0 %v8329
    %10427 = vmatpush.bf16.msra.mxu0 %v8313
    %10428 = vmatpush.bf16.msra.mxu0 %v8297
    %10429 = vmatpush.bf16.msra.mxu0 %v8281
    %10430 = vmatmul.bf16.gmra.mxu0 %v4424
    %v10431 = vpop.f32.mrf.mxu0
    %v10432 = vadd.f32 %v10418, %v10431
    %v10433 = vpop.f32.mrf.mxu0
    %v10434 = vadd.f32 %v10420, %v10433
    %10435 = vdwg.mxu0
    %10436 = vmatpush.bf16.msra.mxu0 %v8521
    %10437 = vmatpush.bf16.msra.mxu0 %v8505
    %10438 = vmatpush.bf16.msra.mxu0 %v8489
    %10439 = vmatpush.bf16.msra.mxu0 %v8473
    %10440 = vmatpush.bf16.msra.mxu0 %v8457
    %10441 = vmatpush.bf16.msra.mxu0 %v8441
    %10442 = vmatpush.bf16.msra.mxu0 %v8425
    %10443 = vmatpush.bf16.msra.mxu0 %v8409
    %10444 = vmatmul.bf16.gmra.mxu0 %v4425
    %v10445 = vpop.f32.mrf.mxu0
    %v10446 = vadd.f32 %v10432, %v10445
    %v10447 = vpop.f32.mrf.mxu0
    %v10448 = vadd.f32 %v10434, %v10447
    %10449 = vdwg.mxu0
    %10450 = vmatpush.bf16.msra.mxu0 %v7626
    %10451 = vmatpush.bf16.msra.mxu0 %v7610
    %10452 = vmatpush.bf16.msra.mxu0 %v7594
    %10453 = vmatpush.bf16.msra.mxu0 %v7578
    %10454 = vmatpush.bf16.msra.mxu0 %v7562
    %10455 = vmatpush.bf16.msra.mxu0 %v7546
    %10456 = vmatpush.bf16.msra.mxu0 %v7530
    %10457 = vmatpush.bf16.msra.mxu0 %v7514
    %10458 = vmatmul.bf16.gmra.mxu0 %v4418
    %v10459 = vpop.f32.mrf.mxu0
    %v10460 = vadd.f32 %v4370, %v10459
    %v10461 = vpop.f32.mrf.mxu0
    %v10462 = vadd.f32 %v4370, %v10461
    %10463 = vdwg.mxu0
    %10464 = vmatpush.bf16.msra.mxu0 %v7754
    %10465 = vmatpush.bf16.msra.mxu0 %v7738
    %10466 = vmatpush.bf16.msra.mxu0 %v7722
    %10467 = vmatpush.bf16.msra.mxu0 %v7706
    %10468 = vmatpush.bf16.msra.mxu0 %v7690
    %10469 = vmatpush.bf16.msra.mxu0 %v7674
    %10470 = vmatpush.bf16.msra.mxu0 %v7658
    %10471 = vmatpush.bf16.msra.mxu0 %v7642
    %10472 = vmatmul.bf16.gmra.mxu0 %v4419
    %v10473 = vpop.f32.mrf.mxu0
    %v10474 = vadd.f32 %v10460, %v10473
    %v10475 = vpop.f32.mrf.mxu0
    %v10476 = vadd.f32 %v10462, %v10475
    %10477 = vdwg.mxu0
    %10478 = vmatpush.bf16.msra.mxu0 %v7882
    %10479 = vmatpush.bf16.msra.mxu0 %v7866
    %10480 = vmatpush.bf16.msra.mxu0 %v7850
    %10481 = vmatpush.bf16.msra.mxu0 %v7834
    %10482 = vmatpush.bf16.msra.mxu0 %v7818
    %10483 = vmatpush.bf16.msra.mxu0 %v7802
    %10484 = vmatpush.bf16.msra.mxu0 %v7786
    %10485 = vmatpush.bf16.msra.mxu0 %v7770
    %10486 = vmatmul.bf16.gmra.mxu0 %v4420
    %v10487 = vpop.f32.mrf.mxu0
    %v10488 = vadd.f32 %v10474, %v10487
    %v10489 = vpop.f32.mrf.mxu0
    %v10490 = vadd.f32 %v10476, %v10489
    %10491 = vdwg.mxu0
    %10492 = vmatpush.bf16.msra.mxu0 %v8010
    %10493 = vmatpush.bf16.msra.mxu0 %v7994
    %10494 = vmatpush.bf16.msra.mxu0 %v7978
    %10495 = vmatpush.bf16.msra.mxu0 %v7962
    %10496 = vmatpush.bf16.msra.mxu0 %v7946
    %10497 = vmatpush.bf16.msra.mxu0 %v7930
    %10498 = vmatpush.bf16.msra.mxu0 %v7914
    %10499 = vmatpush.bf16.msra.mxu0 %v7898
    %10500 = vmatmul.bf16.gmra.mxu0 %v4421
    %v10501 = vpop.f32.mrf.mxu0
    %v10502 = vadd.f32 %v10488, %v10501
    %v10503 = vpop.f32.mrf.mxu0
    %v10504 = vadd.f32 %v10490, %v10503
    %10505 = vdwg.mxu0
    %10506 = vmatpush.bf16.msra.mxu0 %v8138
    %10507 = vmatpush.bf16.msra.mxu0 %v8122
    %10508 = vmatpush.bf16.msra.mxu0 %v8106
    %10509 = vmatpush.bf16.msra.mxu0 %v8090
    %10510 = vmatpush.bf16.msra.mxu0 %v8074
    %10511 = vmatpush.bf16.msra.mxu0 %v8058
    %10512 = vmatpush.bf16.msra.mxu0 %v8042
    %10513 = vmatpush.bf16.msra.mxu0 %v8026
    %10514 = vmatmul.bf16.gmra.mxu0 %v4422
    %v10515 = vpop.f32.mrf.mxu0
    %v10516 = vadd.f32 %v10502, %v10515
    %v10517 = vpop.f32.mrf.mxu0
    %v10518 = vadd.f32 %v10504, %v10517
    %10519 = vdwg.mxu0
    %10520 = vmatpush.bf16.msra.mxu0 %v8266
    %10521 = vmatpush.bf16.msra.mxu0 %v8250
    %10522 = vmatpush.bf16.msra.mxu0 %v8234
    %10523 = vmatpush.bf16.msra.mxu0 %v8218
    %10524 = vmatpush.bf16.msra.mxu0 %v8202
    %10525 = vmatpush.bf16.msra.mxu0 %v8186
    %10526 = vmatpush.bf16.msra.mxu0 %v8170
    %10527 = vmatpush.bf16.msra.mxu0 %v8154
    %10528 = vmatmul.bf16.gmra.mxu0 %v4423
    %v10529 = vpop.f32.mrf.mxu0
    %v10530 = vadd.f32 %v10516, %v10529
    %v10531 = vpop.f32.mrf.mxu0
    %v10532 = vadd.f32 %v10518, %v10531
    %10533 = vdwg.mxu0
    %10534 = vmatpush.bf16.msra.mxu0 %v8394
    %10535 = vmatpush.bf16.msra.mxu0 %v8378
    %10536 = vmatpush.bf16.msra.mxu0 %v8362
    %10537 = vmatpush.bf16.msra.mxu0 %v8346
    %10538 = vmatpush.bf16.msra.mxu0 %v8330
    %10539 = vmatpush.bf16.msra.mxu0 %v8314
    %10540 = vmatpush.bf16.msra.mxu0 %v8298
    %10541 = vmatpush.bf16.msra.mxu0 %v8282
    %10542 = vmatmul.bf16.gmra.mxu0 %v4424
    %v10543 = vpop.f32.mrf.mxu0
    %v10544 = vadd.f32 %v10530, %v10543
    %v10545 = vpop.f32.mrf.mxu0
    %v10546 = vadd.f32 %v10532, %v10545
    %10547 = vdwg.mxu0
    %10548 = vmatpush.bf16.msra.mxu0 %v8522
    %10549 = vmatpush.bf16.msra.mxu0 %v8506
    %10550 = vmatpush.bf16.msra.mxu0 %v8490
    %10551 = vmatpush.bf16.msra.mxu0 %v8474
    %10552 = vmatpush.bf16.msra.mxu0 %v8458
    %10553 = vmatpush.bf16.msra.mxu0 %v8442
    %10554 = vmatpush.bf16.msra.mxu0 %v8426
    %10555 = vmatpush.bf16.msra.mxu0 %v8410
    %10556 = vmatmul.bf16.gmra.mxu0 %v4425
    %v10557 = vpop.f32.mrf.mxu0
    %v10558 = vadd.f32 %v10544, %v10557
    %v10559 = vpop.f32.mrf.mxu0
    %v10560 = vadd.f32 %v10546, %v10559
    %10561 = vdwg.mxu0
    %10562 = vmatpush.bf16.msra.mxu0 %v7627
    %10563 = vmatpush.bf16.msra.mxu0 %v7611
    %10564 = vmatpush.bf16.msra.mxu0 %v7595
    %10565 = vmatpush.bf16.msra.mxu0 %v7579
    %10566 = vmatpush.bf16.msra.mxu0 %v7563
    %10567 = vmatpush.bf16.msra.mxu0 %v7547
    %10568 = vmatpush.bf16.msra.mxu0 %v7531
    %10569 = vmatpush.bf16.msra.mxu0 %v7515
    %10570 = vmatmul.bf16.gmra.mxu0 %v4418
    %v10571 = vpop.f32.mrf.mxu0
    %v10572 = vadd.f32 %v4371, %v10571
    %v10573 = vpop.f32.mrf.mxu0
    %v10574 = vadd.f32 %v4371, %v10573
    %10575 = vdwg.mxu0
    %10576 = vmatpush.bf16.msra.mxu0 %v7755
    %10577 = vmatpush.bf16.msra.mxu0 %v7739
    %10578 = vmatpush.bf16.msra.mxu0 %v7723
    %10579 = vmatpush.bf16.msra.mxu0 %v7707
    %10580 = vmatpush.bf16.msra.mxu0 %v7691
    %10581 = vmatpush.bf16.msra.mxu0 %v7675
    %10582 = vmatpush.bf16.msra.mxu0 %v7659
    %10583 = vmatpush.bf16.msra.mxu0 %v7643
    %10584 = vmatmul.bf16.gmra.mxu0 %v4419
    %v10585 = vpop.f32.mrf.mxu0
    %v10586 = vadd.f32 %v10572, %v10585
    %v10587 = vpop.f32.mrf.mxu0
    %v10588 = vadd.f32 %v10574, %v10587
    %10589 = vdwg.mxu0
    %10590 = vmatpush.bf16.msra.mxu0 %v7883
    %10591 = vmatpush.bf16.msra.mxu0 %v7867
    %10592 = vmatpush.bf16.msra.mxu0 %v7851
    %10593 = vmatpush.bf16.msra.mxu0 %v7835
    %10594 = vmatpush.bf16.msra.mxu0 %v7819
    %10595 = vmatpush.bf16.msra.mxu0 %v7803
    %10596 = vmatpush.bf16.msra.mxu0 %v7787
    %10597 = vmatpush.bf16.msra.mxu0 %v7771
    %10598 = vmatmul.bf16.gmra.mxu0 %v4420
    %v10599 = vpop.f32.mrf.mxu0
    %v10600 = vadd.f32 %v10586, %v10599
    %v10601 = vpop.f32.mrf.mxu0
    %v10602 = vadd.f32 %v10588, %v10601
    %10603 = vdwg.mxu0
    %10604 = vmatpush.bf16.msra.mxu0 %v8011
    %10605 = vmatpush.bf16.msra.mxu0 %v7995
    %10606 = vmatpush.bf16.msra.mxu0 %v7979
    %10607 = vmatpush.bf16.msra.mxu0 %v7963
    %10608 = vmatpush.bf16.msra.mxu0 %v7947
    %10609 = vmatpush.bf16.msra.mxu0 %v7931
    %10610 = vmatpush.bf16.msra.mxu0 %v7915
    %10611 = vmatpush.bf16.msra.mxu0 %v7899
    %10612 = vmatmul.bf16.gmra.mxu0 %v4421
    %v10613 = vpop.f32.mrf.mxu0
    %v10614 = vadd.f32 %v10600, %v10613
    %v10615 = vpop.f32.mrf.mxu0
    %v10616 = vadd.f32 %v10602, %v10615
    %10617 = vdwg.mxu0
    %10618 = vmatpush.bf16.msra.mxu0 %v8139
    %10619 = vmatpush.bf16.msra.mxu0 %v8123
    %10620 = vmatpush.bf16.msra.mxu0 %v8107
    %10621 = vmatpush.bf16.msra.mxu0 %v8091
    %10622 = vmatpush.bf16.msra.mxu0 %v8075
    %10623 = vmatpush.bf16.msra.mxu0 %v8059
    %10624 = vmatpush.bf16.msra.mxu0 %v8043
    %10625 = vmatpush.bf16.msra.mxu0 %v8027
    %10626 = vmatmul.bf16.gmra.mxu0 %v4422
    %v10627 = vpop.f32.mrf.mxu0
    %v10628 = vadd.f32 %v10614, %v10627
    %v10629 = vpop.f32.mrf.mxu0
    %v10630 = vadd.f32 %v10616, %v10629
    %10631 = vdwg.mxu0
    %10632 = vmatpush.bf16.msra.mxu0 %v8267
    %10633 = vmatpush.bf16.msra.mxu0 %v8251
    %10634 = vmatpush.bf16.msra.mxu0 %v8235
    %10635 = vmatpush.bf16.msra.mxu0 %v8219
    %10636 = vmatpush.bf16.msra.mxu0 %v8203
    %10637 = vmatpush.bf16.msra.mxu0 %v8187
    %10638 = vmatpush.bf16.msra.mxu0 %v8171
    %10639 = vmatpush.bf16.msra.mxu0 %v8155
    %10640 = vmatmul.bf16.gmra.mxu0 %v4423
    %v10641 = vpop.f32.mrf.mxu0
    %v10642 = vadd.f32 %v10628, %v10641
    %v10643 = vpop.f32.mrf.mxu0
    %v10644 = vadd.f32 %v10630, %v10643
    %10645 = vdwg.mxu0
    %10646 = vmatpush.bf16.msra.mxu0 %v8395
    %10647 = vmatpush.bf16.msra.mxu0 %v8379
    %10648 = vmatpush.bf16.msra.mxu0 %v8363
    %10649 = vmatpush.bf16.msra.mxu0 %v8347
    %10650 = vmatpush.bf16.msra.mxu0 %v8331
    %10651 = vmatpush.bf16.msra.mxu0 %v8315
    %10652 = vmatpush.bf16.msra.mxu0 %v8299
    %10653 = vmatpush.bf16.msra.mxu0 %v8283
    %10654 = vmatmul.bf16.gmra.mxu0 %v4424
    %v10655 = vpop.f32.mrf.mxu0
    %v10656 = vadd.f32 %v10642, %v10655
    %v10657 = vpop.f32.mrf.mxu0
    %v10658 = vadd.f32 %v10644, %v10657
    %10659 = vdwg.mxu0
    %10660 = vmatpush.bf16.msra.mxu0 %v8523
    %10661 = vmatpush.bf16.msra.mxu0 %v8507
    %10662 = vmatpush.bf16.msra.mxu0 %v8491
    %10663 = vmatpush.bf16.msra.mxu0 %v8475
    %10664 = vmatpush.bf16.msra.mxu0 %v8459
    %10665 = vmatpush.bf16.msra.mxu0 %v8443
    %10666 = vmatpush.bf16.msra.mxu0 %v8427
    %10667 = vmatpush.bf16.msra.mxu0 %v8411
    %10668 = vmatmul.bf16.gmra.mxu0 %v4425
    %v10669 = vpop.f32.mrf.mxu0
    %v10670 = vadd.f32 %v10656, %v10669
    %v10671 = vpop.f32.mrf.mxu0
    %v10672 = vadd.f32 %v10658, %v10671
    %10673 = vdwg.mxu0
    %10674 = vmatpush.bf16.msra.mxu0 %v7628
    %10675 = vmatpush.bf16.msra.mxu0 %v7612
    %10676 = vmatpush.bf16.msra.mxu0 %v7596
    %10677 = vmatpush.bf16.msra.mxu0 %v7580
    %10678 = vmatpush.bf16.msra.mxu0 %v7564
    %10679 = vmatpush.bf16.msra.mxu0 %v7548
    %10680 = vmatpush.bf16.msra.mxu0 %v7532
    %10681 = vmatpush.bf16.msra.mxu0 %v7516
    %10682 = vmatmul.bf16.gmra.mxu0 %v4418
    %v10683 = vpop.f32.mrf.mxu0
    %v10684 = vadd.f32 %v4372, %v10683
    %v10685 = vpop.f32.mrf.mxu0
    %v10686 = vadd.f32 %v4372, %v10685
    %10687 = vdwg.mxu0
    %10688 = vmatpush.bf16.msra.mxu0 %v7756
    %10689 = vmatpush.bf16.msra.mxu0 %v7740
    %10690 = vmatpush.bf16.msra.mxu0 %v7724
    %10691 = vmatpush.bf16.msra.mxu0 %v7708
    %10692 = vmatpush.bf16.msra.mxu0 %v7692
    %10693 = vmatpush.bf16.msra.mxu0 %v7676
    %10694 = vmatpush.bf16.msra.mxu0 %v7660
    %10695 = vmatpush.bf16.msra.mxu0 %v7644
    %10696 = vmatmul.bf16.gmra.mxu0 %v4419
    %v10697 = vpop.f32.mrf.mxu0
    %v10698 = vadd.f32 %v10684, %v10697
    %v10699 = vpop.f32.mrf.mxu0
    %v10700 = vadd.f32 %v10686, %v10699
    %10701 = vdwg.mxu0
    %10702 = vmatpush.bf16.msra.mxu0 %v7884
    %10703 = vmatpush.bf16.msra.mxu0 %v7868
    %10704 = vmatpush.bf16.msra.mxu0 %v7852
    %10705 = vmatpush.bf16.msra.mxu0 %v7836
    %10706 = vmatpush.bf16.msra.mxu0 %v7820
    %10707 = vmatpush.bf16.msra.mxu0 %v7804
    %10708 = vmatpush.bf16.msra.mxu0 %v7788
    %10709 = vmatpush.bf16.msra.mxu0 %v7772
    %10710 = vmatmul.bf16.gmra.mxu0 %v4420
    %v10711 = vpop.f32.mrf.mxu0
    %v10712 = vadd.f32 %v10698, %v10711
    %v10713 = vpop.f32.mrf.mxu0
    %v10714 = vadd.f32 %v10700, %v10713
    %10715 = vdwg.mxu0
    %10716 = vmatpush.bf16.msra.mxu0 %v8012
    %10717 = vmatpush.bf16.msra.mxu0 %v7996
    %10718 = vmatpush.bf16.msra.mxu0 %v7980
    %10719 = vmatpush.bf16.msra.mxu0 %v7964
    %10720 = vmatpush.bf16.msra.mxu0 %v7948
    %10721 = vmatpush.bf16.msra.mxu0 %v7932
    %10722 = vmatpush.bf16.msra.mxu0 %v7916
    %10723 = vmatpush.bf16.msra.mxu0 %v7900
    %10724 = vmatmul.bf16.gmra.mxu0 %v4421
    %v10725 = vpop.f32.mrf.mxu0
    %v10726 = vadd.f32 %v10712, %v10725
    %v10727 = vpop.f32.mrf.mxu0
    %v10728 = vadd.f32 %v10714, %v10727
    %10729 = vdwg.mxu0
    %10730 = vmatpush.bf16.msra.mxu0 %v8140
    %10731 = vmatpush.bf16.msra.mxu0 %v8124
    %10732 = vmatpush.bf16.msra.mxu0 %v8108
    %10733 = vmatpush.bf16.msra.mxu0 %v8092
    %10734 = vmatpush.bf16.msra.mxu0 %v8076
    %10735 = vmatpush.bf16.msra.mxu0 %v8060
    %10736 = vmatpush.bf16.msra.mxu0 %v8044
    %10737 = vmatpush.bf16.msra.mxu0 %v8028
    %10738 = vmatmul.bf16.gmra.mxu0 %v4422
    %v10739 = vpop.f32.mrf.mxu0
    %v10740 = vadd.f32 %v10726, %v10739
    %v10741 = vpop.f32.mrf.mxu0
    %v10742 = vadd.f32 %v10728, %v10741
    %10743 = vdwg.mxu0
    %10744 = vmatpush.bf16.msra.mxu0 %v8268
    %10745 = vmatpush.bf16.msra.mxu0 %v8252
    %10746 = vmatpush.bf16.msra.mxu0 %v8236
    %10747 = vmatpush.bf16.msra.mxu0 %v8220
    %10748 = vmatpush.bf16.msra.mxu0 %v8204
    %10749 = vmatpush.bf16.msra.mxu0 %v8188
    %10750 = vmatpush.bf16.msra.mxu0 %v8172
    %10751 = vmatpush.bf16.msra.mxu0 %v8156
    %10752 = vmatmul.bf16.gmra.mxu0 %v4423
    %v10753 = vpop.f32.mrf.mxu0
    %v10754 = vadd.f32 %v10740, %v10753
    %v10755 = vpop.f32.mrf.mxu0
    %v10756 = vadd.f32 %v10742, %v10755
    %10757 = vdwg.mxu0
    %10758 = vmatpush.bf16.msra.mxu0 %v8396
    %10759 = vmatpush.bf16.msra.mxu0 %v8380
    %10760 = vmatpush.bf16.msra.mxu0 %v8364
    %10761 = vmatpush.bf16.msra.mxu0 %v8348
    %10762 = vmatpush.bf16.msra.mxu0 %v8332
    %10763 = vmatpush.bf16.msra.mxu0 %v8316
    %10764 = vmatpush.bf16.msra.mxu0 %v8300
    %10765 = vmatpush.bf16.msra.mxu0 %v8284
    %10766 = vmatmul.bf16.gmra.mxu0 %v4424
    %v10767 = vpop.f32.mrf.mxu0
    %v10768 = vadd.f32 %v10754, %v10767
    %v10769 = vpop.f32.mrf.mxu0
    %v10770 = vadd.f32 %v10756, %v10769
    %10771 = vdwg.mxu0
    %10772 = vmatpush.bf16.msra.mxu0 %v8524
    %10773 = vmatpush.bf16.msra.mxu0 %v8508
    %10774 = vmatpush.bf16.msra.mxu0 %v8492
    %10775 = vmatpush.bf16.msra.mxu0 %v8476
    %10776 = vmatpush.bf16.msra.mxu0 %v8460
    %10777 = vmatpush.bf16.msra.mxu0 %v8444
    %10778 = vmatpush.bf16.msra.mxu0 %v8428
    %10779 = vmatpush.bf16.msra.mxu0 %v8412
    %10780 = vmatmul.bf16.gmra.mxu0 %v4425
    %v10781 = vpop.f32.mrf.mxu0
    %v10782 = vadd.f32 %v10768, %v10781
    %v10783 = vpop.f32.mrf.mxu0
    %v10784 = vadd.f32 %v10770, %v10783
    %10785 = vdwg.mxu0
    %10786 = vmatpush.bf16.msra.mxu0 %v7629
    %10787 = vmatpush.bf16.msra.mxu0 %v7613
    %10788 = vmatpush.bf16.msra.mxu0 %v7597
    %10789 = vmatpush.bf16.msra.mxu0 %v7581
    %10790 = vmatpush.bf16.msra.mxu0 %v7565
    %10791 = vmatpush.bf16.msra.mxu0 %v7549
    %10792 = vmatpush.bf16.msra.mxu0 %v7533
    %10793 = vmatpush.bf16.msra.mxu0 %v7517
    %10794 = vmatmul.bf16.gmra.mxu0 %v4418
    %v10795 = vpop.f32.mrf.mxu0
    %v10796 = vadd.f32 %v4373, %v10795
    %v10797 = vpop.f32.mrf.mxu0
    %v10798 = vadd.f32 %v4373, %v10797
    %10799 = vdwg.mxu0
    %10800 = vmatpush.bf16.msra.mxu0 %v7757
    %10801 = vmatpush.bf16.msra.mxu0 %v7741
    %10802 = vmatpush.bf16.msra.mxu0 %v7725
    %10803 = vmatpush.bf16.msra.mxu0 %v7709
    %10804 = vmatpush.bf16.msra.mxu0 %v7693
    %10805 = vmatpush.bf16.msra.mxu0 %v7677
    %10806 = vmatpush.bf16.msra.mxu0 %v7661
    %10807 = vmatpush.bf16.msra.mxu0 %v7645
    %10808 = vmatmul.bf16.gmra.mxu0 %v4419
    %v10809 = vpop.f32.mrf.mxu0
    %v10810 = vadd.f32 %v10796, %v10809
    %v10811 = vpop.f32.mrf.mxu0
    %v10812 = vadd.f32 %v10798, %v10811
    %10813 = vdwg.mxu0
    %10814 = vmatpush.bf16.msra.mxu0 %v7885
    %10815 = vmatpush.bf16.msra.mxu0 %v7869
    %10816 = vmatpush.bf16.msra.mxu0 %v7853
    %10817 = vmatpush.bf16.msra.mxu0 %v7837
    %10818 = vmatpush.bf16.msra.mxu0 %v7821
    %10819 = vmatpush.bf16.msra.mxu0 %v7805
    %10820 = vmatpush.bf16.msra.mxu0 %v7789
    %10821 = vmatpush.bf16.msra.mxu0 %v7773
    %10822 = vmatmul.bf16.gmra.mxu0 %v4420
    %v10823 = vpop.f32.mrf.mxu0
    %v10824 = vadd.f32 %v10810, %v10823
    %v10825 = vpop.f32.mrf.mxu0
    %v10826 = vadd.f32 %v10812, %v10825
    %10827 = vdwg.mxu0
    %10828 = vmatpush.bf16.msra.mxu0 %v8013
    %10829 = vmatpush.bf16.msra.mxu0 %v7997
    %10830 = vmatpush.bf16.msra.mxu0 %v7981
    %10831 = vmatpush.bf16.msra.mxu0 %v7965
    %10832 = vmatpush.bf16.msra.mxu0 %v7949
    %10833 = vmatpush.bf16.msra.mxu0 %v7933
    %10834 = vmatpush.bf16.msra.mxu0 %v7917
    %10835 = vmatpush.bf16.msra.mxu0 %v7901
    %10836 = vmatmul.bf16.gmra.mxu0 %v4421
    %v10837 = vpop.f32.mrf.mxu0
    %v10838 = vadd.f32 %v10824, %v10837
    %v10839 = vpop.f32.mrf.mxu0
    %v10840 = vadd.f32 %v10826, %v10839
    %10841 = vdwg.mxu0
    %10842 = vmatpush.bf16.msra.mxu0 %v8141
    %10843 = vmatpush.bf16.msra.mxu0 %v8125
    %10844 = vmatpush.bf16.msra.mxu0 %v8109
    %10845 = vmatpush.bf16.msra.mxu0 %v8093
    %10846 = vmatpush.bf16.msra.mxu0 %v8077
    %10847 = vmatpush.bf16.msra.mxu0 %v8061
    %10848 = vmatpush.bf16.msra.mxu0 %v8045
    %10849 = vmatpush.bf16.msra.mxu0 %v8029
    %10850 = vmatmul.bf16.gmra.mxu0 %v4422
    %v10851 = vpop.f32.mrf.mxu0
    %v10852 = vadd.f32 %v10838, %v10851
    %v10853 = vpop.f32.mrf.mxu0
    %v10854 = vadd.f32 %v10840, %v10853
    %10855 = vdwg.mxu0
    %10856 = vmatpush.bf16.msra.mxu0 %v8269
    %10857 = vmatpush.bf16.msra.mxu0 %v8253
    %10858 = vmatpush.bf16.msra.mxu0 %v8237
    %10859 = vmatpush.bf16.msra.mxu0 %v8221
    %10860 = vmatpush.bf16.msra.mxu0 %v8205
    %10861 = vmatpush.bf16.msra.mxu0 %v8189
    %10862 = vmatpush.bf16.msra.mxu0 %v8173
    %10863 = vmatpush.bf16.msra.mxu0 %v8157
    %10864 = vmatmul.bf16.gmra.mxu0 %v4423
    %v10865 = vpop.f32.mrf.mxu0
    %v10866 = vadd.f32 %v10852, %v10865
    %v10867 = vpop.f32.mrf.mxu0
    %v10868 = vadd.f32 %v10854, %v10867
    %10869 = vdwg.mxu0
    %10870 = vmatpush.bf16.msra.mxu0 %v8397
    %10871 = vmatpush.bf16.msra.mxu0 %v8381
    %10872 = vmatpush.bf16.msra.mxu0 %v8365
    %10873 = vmatpush.bf16.msra.mxu0 %v8349
    %10874 = vmatpush.bf16.msra.mxu0 %v8333
    %10875 = vmatpush.bf16.msra.mxu0 %v8317
    %10876 = vmatpush.bf16.msra.mxu0 %v8301
    %10877 = vmatpush.bf16.msra.mxu0 %v8285
    %10878 = vmatmul.bf16.gmra.mxu0 %v4424
    %v10879 = vpop.f32.mrf.mxu0
    %v10880 = vadd.f32 %v10866, %v10879
    %v10881 = vpop.f32.mrf.mxu0
    %v10882 = vadd.f32 %v10868, %v10881
    %10883 = vdwg.mxu0
    %10884 = vmatpush.bf16.msra.mxu0 %v8525
    %10885 = vmatpush.bf16.msra.mxu0 %v8509
    %10886 = vmatpush.bf16.msra.mxu0 %v8493
    %10887 = vmatpush.bf16.msra.mxu0 %v8477
    %10888 = vmatpush.bf16.msra.mxu0 %v8461
    %10889 = vmatpush.bf16.msra.mxu0 %v8445
    %10890 = vmatpush.bf16.msra.mxu0 %v8429
    %10891 = vmatpush.bf16.msra.mxu0 %v8413
    %10892 = vmatmul.bf16.gmra.mxu0 %v4425
    %v10893 = vpop.f32.mrf.mxu0
    %v10894 = vadd.f32 %v10880, %v10893
    %v10895 = vpop.f32.mrf.mxu0
    %v10896 = vadd.f32 %v10882, %v10895
    %10897 = vdwg.mxu0
    %10898 = vmatpush.bf16.msra.mxu0 %v7630
    %10899 = vmatpush.bf16.msra.mxu0 %v7614
    %10900 = vmatpush.bf16.msra.mxu0 %v7598
    %10901 = vmatpush.bf16.msra.mxu0 %v7582
    %10902 = vmatpush.bf16.msra.mxu0 %v7566
    %10903 = vmatpush.bf16.msra.mxu0 %v7550
    %10904 = vmatpush.bf16.msra.mxu0 %v7534
    %10905 = vmatpush.bf16.msra.mxu0 %v7518
    %10906 = vmatmul.bf16.gmra.mxu0 %v4418
    %v10907 = vpop.f32.mrf.mxu0
    %v10908 = vadd.f32 %v4374, %v10907
    %v10909 = vpop.f32.mrf.mxu0
    %v10910 = vadd.f32 %v4374, %v10909
    %10911 = vdwg.mxu0
    %10912 = vmatpush.bf16.msra.mxu0 %v7758
    %10913 = vmatpush.bf16.msra.mxu0 %v7742
    %10914 = vmatpush.bf16.msra.mxu0 %v7726
    %10915 = vmatpush.bf16.msra.mxu0 %v7710
    %10916 = vmatpush.bf16.msra.mxu0 %v7694
    %10917 = vmatpush.bf16.msra.mxu0 %v7678
    %10918 = vmatpush.bf16.msra.mxu0 %v7662
    %10919 = vmatpush.bf16.msra.mxu0 %v7646
    %10920 = vmatmul.bf16.gmra.mxu0 %v4419
    %v10921 = vpop.f32.mrf.mxu0
    %v10922 = vadd.f32 %v10908, %v10921
    %v10923 = vpop.f32.mrf.mxu0
    %v10924 = vadd.f32 %v10910, %v10923
    %10925 = vdwg.mxu0
    %10926 = vmatpush.bf16.msra.mxu0 %v7886
    %10927 = vmatpush.bf16.msra.mxu0 %v7870
    %10928 = vmatpush.bf16.msra.mxu0 %v7854
    %10929 = vmatpush.bf16.msra.mxu0 %v7838
    %10930 = vmatpush.bf16.msra.mxu0 %v7822
    %10931 = vmatpush.bf16.msra.mxu0 %v7806
    %10932 = vmatpush.bf16.msra.mxu0 %v7790
    %10933 = vmatpush.bf16.msra.mxu0 %v7774
    %10934 = vmatmul.bf16.gmra.mxu0 %v4420
    %v10935 = vpop.f32.mrf.mxu0
    %v10936 = vadd.f32 %v10922, %v10935
    %v10937 = vpop.f32.mrf.mxu0
    %v10938 = vadd.f32 %v10924, %v10937
    %10939 = vdwg.mxu0
    %10940 = vmatpush.bf16.msra.mxu0 %v8014
    %10941 = vmatpush.bf16.msra.mxu0 %v7998
    %10942 = vmatpush.bf16.msra.mxu0 %v7982
    %10943 = vmatpush.bf16.msra.mxu0 %v7966
    %10944 = vmatpush.bf16.msra.mxu0 %v7950
    %10945 = vmatpush.bf16.msra.mxu0 %v7934
    %10946 = vmatpush.bf16.msra.mxu0 %v7918
    %10947 = vmatpush.bf16.msra.mxu0 %v7902
    %10948 = vmatmul.bf16.gmra.mxu0 %v4421
    %v10949 = vpop.f32.mrf.mxu0
    %v10950 = vadd.f32 %v10936, %v10949
    %v10951 = vpop.f32.mrf.mxu0
    %v10952 = vadd.f32 %v10938, %v10951
    %10953 = vdwg.mxu0
    %10954 = vmatpush.bf16.msra.mxu0 %v8142
    %10955 = vmatpush.bf16.msra.mxu0 %v8126
    %10956 = vmatpush.bf16.msra.mxu0 %v8110
    %10957 = vmatpush.bf16.msra.mxu0 %v8094
    %10958 = vmatpush.bf16.msra.mxu0 %v8078
    %10959 = vmatpush.bf16.msra.mxu0 %v8062
    %10960 = vmatpush.bf16.msra.mxu0 %v8046
    %10961 = vmatpush.bf16.msra.mxu0 %v8030
    %10962 = vmatmul.bf16.gmra.mxu0 %v4422
    %v10963 = vpop.f32.mrf.mxu0
    %v10964 = vadd.f32 %v10950, %v10963
    %v10965 = vpop.f32.mrf.mxu0
    %v10966 = vadd.f32 %v10952, %v10965
    %10967 = vdwg.mxu0
    %10968 = vmatpush.bf16.msra.mxu0 %v8270
    %10969 = vmatpush.bf16.msra.mxu0 %v8254
    %10970 = vmatpush.bf16.msra.mxu0 %v8238
    %10971 = vmatpush.bf16.msra.mxu0 %v8222
    %10972 = vmatpush.bf16.msra.mxu0 %v8206
    %10973 = vmatpush.bf16.msra.mxu0 %v8190
    %10974 = vmatpush.bf16.msra.mxu0 %v8174
    %10975 = vmatpush.bf16.msra.mxu0 %v8158
    %10976 = vmatmul.bf16.gmra.mxu0 %v4423
    %v10977 = vpop.f32.mrf.mxu0
    %v10978 = vadd.f32 %v10964, %v10977
    %v10979 = vpop.f32.mrf.mxu0
    %v10980 = vadd.f32 %v10966, %v10979
    %10981 = vdwg.mxu0
    %10982 = vmatpush.bf16.msra.mxu0 %v8398
    %10983 = vmatpush.bf16.msra.mxu0 %v8382
    %10984 = vmatpush.bf16.msra.mxu0 %v8366
    %10985 = vmatpush.bf16.msra.mxu0 %v8350
    %10986 = vmatpush.bf16.msra.mxu0 %v8334
    %10987 = vmatpush.bf16.msra.mxu0 %v8318
    %10988 = vmatpush.bf16.msra.mxu0 %v8302
    %10989 = vmatpush.bf16.msra.mxu0 %v8286
    %10990 = vmatmul.bf16.gmra.mxu0 %v4424
    %v10991 = vpop.f32.mrf.mxu0
    %v10992 = vadd.f32 %v10978, %v10991
    %v10993 = vpop.f32.mrf.mxu0
    %v10994 = vadd.f32 %v10980, %v10993
    %10995 = vdwg.mxu0
    %10996 = vmatpush.bf16.msra.mxu0 %v8526
    %10997 = vmatpush.bf16.msra.mxu0 %v8510
    %10998 = vmatpush.bf16.msra.mxu0 %v8494
    %10999 = vmatpush.bf16.msra.mxu0 %v8478
    %11000 = vmatpush.bf16.msra.mxu0 %v8462
    %11001 = vmatpush.bf16.msra.mxu0 %v8446
    %11002 = vmatpush.bf16.msra.mxu0 %v8430
    %11003 = vmatpush.bf16.msra.mxu0 %v8414
    %11004 = vmatmul.bf16.gmra.mxu0 %v4425
    %v11005 = vpop.f32.mrf.mxu0
    %v11006 = vadd.f32 %v10992, %v11005
    %v11007 = vpop.f32.mrf.mxu0
    %v11008 = vadd.f32 %v10994, %v11007
    %11009 = vdwg.mxu0
    %11010 = vmatpush.bf16.msra.mxu0 %v7631
    %11011 = vmatpush.bf16.msra.mxu0 %v7615
    %11012 = vmatpush.bf16.msra.mxu0 %v7599
    %11013 = vmatpush.bf16.msra.mxu0 %v7583
    %11014 = vmatpush.bf16.msra.mxu0 %v7567
    %11015 = vmatpush.bf16.msra.mxu0 %v7551
    %11016 = vmatpush.bf16.msra.mxu0 %v7535
    %11017 = vmatpush.bf16.msra.mxu0 %v7519
    %11018 = vmatmul.bf16.gmra.mxu0 %v4418
    %v11019 = vpop.f32.mrf.mxu0
    %v11020 = vadd.f32 %v4375, %v11019
    %v11021 = vpop.f32.mrf.mxu0
    %v11022 = vadd.f32 %v4375, %v11021
    %11023 = vdwg.mxu0
    %11024 = vmatpush.bf16.msra.mxu0 %v7759
    %11025 = vmatpush.bf16.msra.mxu0 %v7743
    %11026 = vmatpush.bf16.msra.mxu0 %v7727
    %11027 = vmatpush.bf16.msra.mxu0 %v7711
    %11028 = vmatpush.bf16.msra.mxu0 %v7695
    %11029 = vmatpush.bf16.msra.mxu0 %v7679
    %11030 = vmatpush.bf16.msra.mxu0 %v7663
    %11031 = vmatpush.bf16.msra.mxu0 %v7647
    %11032 = vmatmul.bf16.gmra.mxu0 %v4419
    %v11033 = vpop.f32.mrf.mxu0
    %v11034 = vadd.f32 %v11020, %v11033
    %v11035 = vpop.f32.mrf.mxu0
    %v11036 = vadd.f32 %v11022, %v11035
    %11037 = vdwg.mxu0
    %11038 = vmatpush.bf16.msra.mxu0 %v7887
    %11039 = vmatpush.bf16.msra.mxu0 %v7871
    %11040 = vmatpush.bf16.msra.mxu0 %v7855
    %11041 = vmatpush.bf16.msra.mxu0 %v7839
    %11042 = vmatpush.bf16.msra.mxu0 %v7823
    %11043 = vmatpush.bf16.msra.mxu0 %v7807
    %11044 = vmatpush.bf16.msra.mxu0 %v7791
    %11045 = vmatpush.bf16.msra.mxu0 %v7775
    %11046 = vmatmul.bf16.gmra.mxu0 %v4420
    %v11047 = vpop.f32.mrf.mxu0
    %v11048 = vadd.f32 %v11034, %v11047
    %v11049 = vpop.f32.mrf.mxu0
    %v11050 = vadd.f32 %v11036, %v11049
    %11051 = vdwg.mxu0
    %11052 = vmatpush.bf16.msra.mxu0 %v8015
    %11053 = vmatpush.bf16.msra.mxu0 %v7999
    %11054 = vmatpush.bf16.msra.mxu0 %v7983
    %11055 = vmatpush.bf16.msra.mxu0 %v7967
    %11056 = vmatpush.bf16.msra.mxu0 %v7951
    %11057 = vmatpush.bf16.msra.mxu0 %v7935
    %11058 = vmatpush.bf16.msra.mxu0 %v7919
    %11059 = vmatpush.bf16.msra.mxu0 %v7903
    %11060 = vmatmul.bf16.gmra.mxu0 %v4421
    %v11061 = vpop.f32.mrf.mxu0
    %v11062 = vadd.f32 %v11048, %v11061
    %v11063 = vpop.f32.mrf.mxu0
    %v11064 = vadd.f32 %v11050, %v11063
    %11065 = vdwg.mxu0
    %11066 = vmatpush.bf16.msra.mxu0 %v8143
    %11067 = vmatpush.bf16.msra.mxu0 %v8127
    %11068 = vmatpush.bf16.msra.mxu0 %v8111
    %11069 = vmatpush.bf16.msra.mxu0 %v8095
    %11070 = vmatpush.bf16.msra.mxu0 %v8079
    %11071 = vmatpush.bf16.msra.mxu0 %v8063
    %11072 = vmatpush.bf16.msra.mxu0 %v8047
    %11073 = vmatpush.bf16.msra.mxu0 %v8031
    %11074 = vmatmul.bf16.gmra.mxu0 %v4422
    %v11075 = vpop.f32.mrf.mxu0
    %v11076 = vadd.f32 %v11062, %v11075
    %v11077 = vpop.f32.mrf.mxu0
    %v11078 = vadd.f32 %v11064, %v11077
    %11079 = vdwg.mxu0
    %11080 = vmatpush.bf16.msra.mxu0 %v8271
    %11081 = vmatpush.bf16.msra.mxu0 %v8255
    %11082 = vmatpush.bf16.msra.mxu0 %v8239
    %11083 = vmatpush.bf16.msra.mxu0 %v8223
    %11084 = vmatpush.bf16.msra.mxu0 %v8207
    %11085 = vmatpush.bf16.msra.mxu0 %v8191
    %11086 = vmatpush.bf16.msra.mxu0 %v8175
    %11087 = vmatpush.bf16.msra.mxu0 %v8159
    %11088 = vmatmul.bf16.gmra.mxu0 %v4423
    %v11089 = vpop.f32.mrf.mxu0
    %v11090 = vadd.f32 %v11076, %v11089
    %v11091 = vpop.f32.mrf.mxu0
    %v11092 = vadd.f32 %v11078, %v11091
    %11093 = vdwg.mxu0
    %11094 = vmatpush.bf16.msra.mxu0 %v8399
    %11095 = vmatpush.bf16.msra.mxu0 %v8383
    %11096 = vmatpush.bf16.msra.mxu0 %v8367
    %11097 = vmatpush.bf16.msra.mxu0 %v8351
    %11098 = vmatpush.bf16.msra.mxu0 %v8335
    %11099 = vmatpush.bf16.msra.mxu0 %v8319
    %11100 = vmatpush.bf16.msra.mxu0 %v8303
    %11101 = vmatpush.bf16.msra.mxu0 %v8287
    %11102 = vmatmul.bf16.gmra.mxu0 %v4424
    %v11103 = vpop.f32.mrf.mxu0
    %v11104 = vadd.f32 %v11090, %v11103
    %v11105 = vpop.f32.mrf.mxu0
    %v11106 = vadd.f32 %v11092, %v11105
    %11107 = vdwg.mxu0
    %11108 = vmatpush.bf16.msra.mxu0 %v8527
    %11109 = vmatpush.bf16.msra.mxu0 %v8511
    %11110 = vmatpush.bf16.msra.mxu0 %v8495
    %11111 = vmatpush.bf16.msra.mxu0 %v8479
    %11112 = vmatpush.bf16.msra.mxu0 %v8463
    %11113 = vmatpush.bf16.msra.mxu0 %v8447
    %11114 = vmatpush.bf16.msra.mxu0 %v8431
    %11115 = vmatpush.bf16.msra.mxu0 %v8415
    %11116 = vmatmul.bf16.gmra.mxu0 %v4425
    %v11117 = vpop.f32.mrf.mxu0
    %v11118 = vadd.f32 %v11104, %v11117
    %v11119 = vpop.f32.mrf.mxu0
    %v11120 = vadd.f32 %v11106, %v11119
    %11121 = vdwg.mxu0
    %11122 = vmatpush.bf16.msra.mxu0 %v7632
    %11123 = vmatpush.bf16.msra.mxu0 %v7616
    %11124 = vmatpush.bf16.msra.mxu0 %v7600
    %11125 = vmatpush.bf16.msra.mxu0 %v7584
    %11126 = vmatpush.bf16.msra.mxu0 %v7568
    %11127 = vmatpush.bf16.msra.mxu0 %v7552
    %11128 = vmatpush.bf16.msra.mxu0 %v7536
    %11129 = vmatpush.bf16.msra.mxu0 %v7520
    %11130 = vmatmul.bf16.gmra.mxu0 %v4418
    %v11131 = vpop.f32.mrf.mxu0
    %v11132 = vadd.f32 %v4376, %v11131
    %v11133 = vpop.f32.mrf.mxu0
    %v11134 = vadd.f32 %v4376, %v11133
    %11135 = vdwg.mxu0
    %11136 = vmatpush.bf16.msra.mxu0 %v7760
    %11137 = vmatpush.bf16.msra.mxu0 %v7744
    %11138 = vmatpush.bf16.msra.mxu0 %v7728
    %11139 = vmatpush.bf16.msra.mxu0 %v7712
    %11140 = vmatpush.bf16.msra.mxu0 %v7696
    %11141 = vmatpush.bf16.msra.mxu0 %v7680
    %11142 = vmatpush.bf16.msra.mxu0 %v7664
    %11143 = vmatpush.bf16.msra.mxu0 %v7648
    %11144 = vmatmul.bf16.gmra.mxu0 %v4419
    %v11145 = vpop.f32.mrf.mxu0
    %v11146 = vadd.f32 %v11132, %v11145
    %v11147 = vpop.f32.mrf.mxu0
    %v11148 = vadd.f32 %v11134, %v11147
    %11149 = vdwg.mxu0
    %11150 = vmatpush.bf16.msra.mxu0 %v7888
    %11151 = vmatpush.bf16.msra.mxu0 %v7872
    %11152 = vmatpush.bf16.msra.mxu0 %v7856
    %11153 = vmatpush.bf16.msra.mxu0 %v7840
    %11154 = vmatpush.bf16.msra.mxu0 %v7824
    %11155 = vmatpush.bf16.msra.mxu0 %v7808
    %11156 = vmatpush.bf16.msra.mxu0 %v7792
    %11157 = vmatpush.bf16.msra.mxu0 %v7776
    %11158 = vmatmul.bf16.gmra.mxu0 %v4420
    %v11159 = vpop.f32.mrf.mxu0
    %v11160 = vadd.f32 %v11146, %v11159
    %v11161 = vpop.f32.mrf.mxu0
    %v11162 = vadd.f32 %v11148, %v11161
    %11163 = vdwg.mxu0
    %11164 = vmatpush.bf16.msra.mxu0 %v8016
    %11165 = vmatpush.bf16.msra.mxu0 %v8000
    %11166 = vmatpush.bf16.msra.mxu0 %v7984
    %11167 = vmatpush.bf16.msra.mxu0 %v7968
    %11168 = vmatpush.bf16.msra.mxu0 %v7952
    %11169 = vmatpush.bf16.msra.mxu0 %v7936
    %11170 = vmatpush.bf16.msra.mxu0 %v7920
    %11171 = vmatpush.bf16.msra.mxu0 %v7904
    %11172 = vmatmul.bf16.gmra.mxu0 %v4421
    %v11173 = vpop.f32.mrf.mxu0
    %v11174 = vadd.f32 %v11160, %v11173
    %v11175 = vpop.f32.mrf.mxu0
    %v11176 = vadd.f32 %v11162, %v11175
    %11177 = vdwg.mxu0
    %11178 = vmatpush.bf16.msra.mxu0 %v8144
    %11179 = vmatpush.bf16.msra.mxu0 %v8128
    %11180 = vmatpush.bf16.msra.mxu0 %v8112
    %11181 = vmatpush.bf16.msra.mxu0 %v8096
    %11182 = vmatpush.bf16.msra.mxu0 %v8080
    %11183 = vmatpush.bf16.msra.mxu0 %v8064
    %11184 = vmatpush.bf16.msra.mxu0 %v8048
    %11185 = vmatpush.bf16.msra.mxu0 %v8032
    %11186 = vmatmul.bf16.gmra.mxu0 %v4422
    %v11187 = vpop.f32.mrf.mxu0
    %v11188 = vadd.f32 %v11174, %v11187
    %v11189 = vpop.f32.mrf.mxu0
    %v11190 = vadd.f32 %v11176, %v11189
    %11191 = vdwg.mxu0
    %11192 = vmatpush.bf16.msra.mxu0 %v8272
    %11193 = vmatpush.bf16.msra.mxu0 %v8256
    %11194 = vmatpush.bf16.msra.mxu0 %v8240
    %11195 = vmatpush.bf16.msra.mxu0 %v8224
    %11196 = vmatpush.bf16.msra.mxu0 %v8208
    %11197 = vmatpush.bf16.msra.mxu0 %v8192
    %11198 = vmatpush.bf16.msra.mxu0 %v8176
    %11199 = vmatpush.bf16.msra.mxu0 %v8160
    %11200 = vmatmul.bf16.gmra.mxu0 %v4423
    %v11201 = vpop.f32.mrf.mxu0
    %v11202 = vadd.f32 %v11188, %v11201
    %v11203 = vpop.f32.mrf.mxu0
    %v11204 = vadd.f32 %v11190, %v11203
    %11205 = vdwg.mxu0
    %11206 = vmatpush.bf16.msra.mxu0 %v8400
    %11207 = vmatpush.bf16.msra.mxu0 %v8384
    %11208 = vmatpush.bf16.msra.mxu0 %v8368
    %11209 = vmatpush.bf16.msra.mxu0 %v8352
    %11210 = vmatpush.bf16.msra.mxu0 %v8336
    %11211 = vmatpush.bf16.msra.mxu0 %v8320
    %11212 = vmatpush.bf16.msra.mxu0 %v8304
    %11213 = vmatpush.bf16.msra.mxu0 %v8288
    %11214 = vmatmul.bf16.gmra.mxu0 %v4424
    %v11215 = vpop.f32.mrf.mxu0
    %v11216 = vadd.f32 %v11202, %v11215
    %v11217 = vpop.f32.mrf.mxu0
    %v11218 = vadd.f32 %v11204, %v11217
    %11219 = vdwg.mxu0
    %11220 = vmatpush.bf16.msra.mxu0 %v8528
    %11221 = vmatpush.bf16.msra.mxu0 %v8512
    %11222 = vmatpush.bf16.msra.mxu0 %v8496
    %11223 = vmatpush.bf16.msra.mxu0 %v8480
    %11224 = vmatpush.bf16.msra.mxu0 %v8464
    %11225 = vmatpush.bf16.msra.mxu0 %v8448
    %11226 = vmatpush.bf16.msra.mxu0 %v8432
    %11227 = vmatpush.bf16.msra.mxu0 %v8416
    %11228 = vmatmul.bf16.gmra.mxu0 %v4425
    %v11229 = vpop.f32.mrf.mxu0
    %v11230 = vadd.f32 %v11216, %v11229
    %v11231 = vpop.f32.mrf.mxu0
    %v11232 = vadd.f32 %v11218, %v11231
    %11233 = vdwg.mxu0
    %11234 = vmatpush.bf16.msra.mxu0 %v7633
    %11235 = vmatpush.bf16.msra.mxu0 %v7617
    %11236 = vmatpush.bf16.msra.mxu0 %v7601
    %11237 = vmatpush.bf16.msra.mxu0 %v7585
    %11238 = vmatpush.bf16.msra.mxu0 %v7569
    %11239 = vmatpush.bf16.msra.mxu0 %v7553
    %11240 = vmatpush.bf16.msra.mxu0 %v7537
    %11241 = vmatpush.bf16.msra.mxu0 %v7521
    %11242 = vmatmul.bf16.gmra.mxu0 %v4418
    %v11243 = vpop.f32.mrf.mxu0
    %v11244 = vadd.f32 %v4377, %v11243
    %v11245 = vpop.f32.mrf.mxu0
    %v11246 = vadd.f32 %v4377, %v11245
    %11247 = vdwg.mxu0
    %11248 = vmatpush.bf16.msra.mxu0 %v7761
    %11249 = vmatpush.bf16.msra.mxu0 %v7745
    %11250 = vmatpush.bf16.msra.mxu0 %v7729
    %11251 = vmatpush.bf16.msra.mxu0 %v7713
    %11252 = vmatpush.bf16.msra.mxu0 %v7697
    %11253 = vmatpush.bf16.msra.mxu0 %v7681
    %11254 = vmatpush.bf16.msra.mxu0 %v7665
    %11255 = vmatpush.bf16.msra.mxu0 %v7649
    %11256 = vmatmul.bf16.gmra.mxu0 %v4419
    %v11257 = vpop.f32.mrf.mxu0
    %v11258 = vadd.f32 %v11244, %v11257
    %v11259 = vpop.f32.mrf.mxu0
    %v11260 = vadd.f32 %v11246, %v11259
    %11261 = vdwg.mxu0
    %11262 = vmatpush.bf16.msra.mxu0 %v7889
    %11263 = vmatpush.bf16.msra.mxu0 %v7873
    %11264 = vmatpush.bf16.msra.mxu0 %v7857
    %11265 = vmatpush.bf16.msra.mxu0 %v7841
    %11266 = vmatpush.bf16.msra.mxu0 %v7825
    %11267 = vmatpush.bf16.msra.mxu0 %v7809
    %11268 = vmatpush.bf16.msra.mxu0 %v7793
    %11269 = vmatpush.bf16.msra.mxu0 %v7777
    %11270 = vmatmul.bf16.gmra.mxu0 %v4420
    %v11271 = vpop.f32.mrf.mxu0
    %v11272 = vadd.f32 %v11258, %v11271
    %v11273 = vpop.f32.mrf.mxu0
    %v11274 = vadd.f32 %v11260, %v11273
    %11275 = vdwg.mxu0
    %11276 = vmatpush.bf16.msra.mxu0 %v8017
    %11277 = vmatpush.bf16.msra.mxu0 %v8001
    %11278 = vmatpush.bf16.msra.mxu0 %v7985
    %11279 = vmatpush.bf16.msra.mxu0 %v7969
    %11280 = vmatpush.bf16.msra.mxu0 %v7953
    %11281 = vmatpush.bf16.msra.mxu0 %v7937
    %11282 = vmatpush.bf16.msra.mxu0 %v7921
    %11283 = vmatpush.bf16.msra.mxu0 %v7905
    %11284 = vmatmul.bf16.gmra.mxu0 %v4421
    %v11285 = vpop.f32.mrf.mxu0
    %v11286 = vadd.f32 %v11272, %v11285
    %v11287 = vpop.f32.mrf.mxu0
    %v11288 = vadd.f32 %v11274, %v11287
    %11289 = vdwg.mxu0
    %11290 = vmatpush.bf16.msra.mxu0 %v8145
    %11291 = vmatpush.bf16.msra.mxu0 %v8129
    %11292 = vmatpush.bf16.msra.mxu0 %v8113
    %11293 = vmatpush.bf16.msra.mxu0 %v8097
    %11294 = vmatpush.bf16.msra.mxu0 %v8081
    %11295 = vmatpush.bf16.msra.mxu0 %v8065
    %11296 = vmatpush.bf16.msra.mxu0 %v8049
    %11297 = vmatpush.bf16.msra.mxu0 %v8033
    %11298 = vmatmul.bf16.gmra.mxu0 %v4422
    %v11299 = vpop.f32.mrf.mxu0
    %v11300 = vadd.f32 %v11286, %v11299
    %v11301 = vpop.f32.mrf.mxu0
    %v11302 = vadd.f32 %v11288, %v11301
    %11303 = vdwg.mxu0
    %11304 = vmatpush.bf16.msra.mxu0 %v8273
    %11305 = vmatpush.bf16.msra.mxu0 %v8257
    %11306 = vmatpush.bf16.msra.mxu0 %v8241
    %11307 = vmatpush.bf16.msra.mxu0 %v8225
    %11308 = vmatpush.bf16.msra.mxu0 %v8209
    %11309 = vmatpush.bf16.msra.mxu0 %v8193
    %11310 = vmatpush.bf16.msra.mxu0 %v8177
    %11311 = vmatpush.bf16.msra.mxu0 %v8161
    %11312 = vmatmul.bf16.gmra.mxu0 %v4423
    %v11313 = vpop.f32.mrf.mxu0
    %v11314 = vadd.f32 %v11300, %v11313
    %v11315 = vpop.f32.mrf.mxu0
    %v11316 = vadd.f32 %v11302, %v11315
    %11317 = vdwg.mxu0
    %11318 = vmatpush.bf16.msra.mxu0 %v8401
    %11319 = vmatpush.bf16.msra.mxu0 %v8385
    %11320 = vmatpush.bf16.msra.mxu0 %v8369
    %11321 = vmatpush.bf16.msra.mxu0 %v8353
    %11322 = vmatpush.bf16.msra.mxu0 %v8337
    %11323 = vmatpush.bf16.msra.mxu0 %v8321
    %11324 = vmatpush.bf16.msra.mxu0 %v8305
    %11325 = vmatpush.bf16.msra.mxu0 %v8289
    %11326 = vmatmul.bf16.gmra.mxu0 %v4424
    %v11327 = vpop.f32.mrf.mxu0
    %v11328 = vadd.f32 %v11314, %v11327
    %v11329 = vpop.f32.mrf.mxu0
    %v11330 = vadd.f32 %v11316, %v11329
    %11331 = vdwg.mxu0
    %11332 = vmatpush.bf16.msra.mxu0 %v8529
    %11333 = vmatpush.bf16.msra.mxu0 %v8513
    %11334 = vmatpush.bf16.msra.mxu0 %v8497
    %11335 = vmatpush.bf16.msra.mxu0 %v8481
    %11336 = vmatpush.bf16.msra.mxu0 %v8465
    %11337 = vmatpush.bf16.msra.mxu0 %v8449
    %11338 = vmatpush.bf16.msra.mxu0 %v8433
    %11339 = vmatpush.bf16.msra.mxu0 %v8417
    %11340 = vmatmul.bf16.gmra.mxu0 %v4425
    %v11341 = vpop.f32.mrf.mxu0
    %v11342 = vadd.f32 %v11328, %v11341
    %v11343 = vpop.f32.mrf.mxu0
    %v11344 = vadd.f32 %v11330, %v11343
    %11345 = vdwg.mxu0
    %v11346 = vmax.f32 %v9662, 0.0
    %v11347 = vmax.f32 %v9774, 0.0
    %v11348 = vmax.f32 %v9886, 0.0
    %v11349 = vmax.f32 %v9998, 0.0
    %v11350 = vmax.f32 %v10110, 0.0
    %v11351 = vmax.f32 %v10222, 0.0
    %v11352 = vmax.f32 %v10334, 0.0
    %v11353 = vmax.f32 %v10446, 0.0
    %v11354 = vmax.f32 %v10558, 0.0
    %v11355 = vmax.f32 %v10670, 0.0
    %v11356 = vmax.f32 %v10782, 0.0
    %v11357 = vmax.f32 %v10894, 0.0
    %v11358 = vmax.f32 %v11006, 0.0
    %v11359 = vmax.f32 %v11118, 0.0
    %v11360 = vmax.f32 %v11230, 0.0
    %v11361 = vmax.f32 %v11342, 0.0
    %v11362 = vmax.f32 %v9664, 0.0
    %v11363 = vmax.f32 %v9776, 0.0
    %v11364 = vmax.f32 %v9888, 0.0
    %v11365 = vmax.f32 %v10000, 0.0
    %v11366 = vmax.f32 %v10112, 0.0
    %v11367 = vmax.f32 %v10224, 0.0
    %v11368 = vmax.f32 %v10336, 0.0
    %v11369 = vmax.f32 %v10448, 0.0
    %v11370 = vmax.f32 %v10560, 0.0
    %v11371 = vmax.f32 %v10672, 0.0
    %v11372 = vmax.f32 %v10784, 0.0
    %v11373 = vmax.f32 %v10896, 0.0
    %v11374 = vmax.f32 %v11008, 0.0
    %v11375 = vmax.f32 %v11120, 0.0
    %v11376 = vmax.f32 %v11232, 0.0
    %v11377 = vmax.f32 %v11344, 0.0
    %v11378 = vpack.c.bf16 %v11347, %v11346
    %v11379 = vpack.c.bf16 %v11349, %v11348
    %v11380 = vpack.c.bf16 %v11351, %v11350
    %v11381 = vpack.c.bf16 %v11353, %v11352
    %v11382 = vpack.c.bf16 %v11355, %v11354
    %v11383 = vpack.c.bf16 %v11357, %v11356
    %v11384 = vpack.c.bf16 %v11359, %v11358
    %v11385 = vpack.c.bf16 %v11361, %v11360
    %v11386 = vpack.c.bf16 %v11363, %v11362
    %v11387 = vpack.c.bf16 %v11365, %v11364
    %v11388 = vpack.c.bf16 %v11367, %v11366
    %v11389 = vpack.c.bf16 %v11369, %v11368
    %v11390 = vpack.c.bf16 %v11371, %v11370
    %v11391 = vpack.c.bf16 %v11373, %v11372
    %v11392 = vpack.c.bf16 %v11375, %v11374
    %v11393 = vpack.c.bf16 %v11377, %v11376
    %11394 = vst [vmem:[#allocation3] sm:$0xff] %v11378
    %11395 = vst [vmem:[#allocation3 + $0x8] sm:$0xff] %v11379
    %11396 = vst [vmem:[#allocation3 + $0x10] sm:$0xff] %v11380
    %11397 = vst [vmem:[#allocation3 + $0x18] sm:$0xff] %v11381
    %11398 = vst [vmem:[#allocation3 + $0x20] sm:$0xff] %v11382
    %11399 = vst [vmem:[#allocation3 + $0x28] sm:$0xff] %v11383
    %11400 = vst [vmem:[#allocation3 + $0x30] sm:$0xff] %v11384
    %11401 = vst [vmem:[#allocation3 + $0x38] sm:$0xff] %v11385
    %11402 = vst [vmem:[#allocation3 + $0x40] sm:$0xff] %v11386
    %11403 = vst [vmem:[#allocation3 + $0x48] sm:$0xff] %v11387
    %11404 = vst [vmem:[#allocation3 + $0x50] sm:$0xff] %v11388
    %11405 = vst [vmem:[#allocation3 + $0x58] sm:$0xff] %v11389
    %11406 = vst [vmem:[#allocation3 + $0x60] sm:$0xff] %v11390
    %11407 = vst [vmem:[#allocation3 + $0x68] sm:$0xff] %v11391
    %11408 = vst [vmem:[#allocation3 + $0x70] sm:$0xff] %v11392
    %11409 = vst [vmem:[#allocation3 + $0x78] sm:$0xff] %v11393
    %v11410 = vld [vmem:[#allocation3] sm:$0xff]
    %v11411 = vld [vmem:[#allocation3 + $0x8] sm:$0xff]
    %v11412 = vld [vmem:[#allocation3 + $0x10] sm:$0xff]
    %v11413 = vld [vmem:[#allocation3 + $0x18] sm:$0xff]
    %v11414 = vld [vmem:[#allocation3 + $0x20] sm:$0xff]
    %v11415 = vld [vmem:[#allocation3 + $0x28] sm:$0xff]
    %v11416 = vld [vmem:[#allocation3 + $0x30] sm:$0xff]
    %v11417 = vld [vmem:[#allocation3 + $0x38] sm:$0xff]
    %v11418 = vld [vmem:[#allocation3 + $0x40] sm:$0xff]
    %v11419 = vld [vmem:[#allocation3 + $0x48] sm:$0xff]
    %v11420 = vld [vmem:[#allocation3 + $0x50] sm:$0xff]
    %v11421 = vld [vmem:[#allocation3 + $0x58] sm:$0xff]
    %v11422 = vld [vmem:[#allocation3 + $0x60] sm:$0xff]
    %v11423 = vld [vmem:[#allocation3 + $0x68] sm:$0xff]
    %v11424 = vld [vmem:[#allocation3 + $0x70] sm:$0xff]
    %v11425 = vld [vmem:[#allocation3 + $0x78] sm:$0xff]
    %v11426 = vld [vmem:[#allocation11] sm:$0xf]
    %v11427 = vld [vmem:[#allocation11 + $0x4] sm:$0xf]
    %v11428 = vld [vmem:[#allocation11 + $0x8] sm:$0xf]
    %v11429 = vld [vmem:[#allocation11 + $0xc] sm:$0xf]
    %v11430 = vld [vmem:[#allocation11 + $0x10] sm:$0xf]
    %v11431 = vld [vmem:[#allocation11 + $0x14] sm:$0xf]
    %v11432 = vld [vmem:[#allocation11 + $0x18] sm:$0xf]
    %v11433 = vld [vmem:[#allocation11 + $0x1c] sm:$0xf]
    %v11434 = vld [vmem:[#allocation11 + $0x20] sm:$0xf]
    %v11435 = vld [vmem:[#allocation11 + $0x24] sm:$0xf]
    %v11436 = vld [vmem:[#allocation11 + $0x28] sm:$0xf]
    %v11437 = vld [vmem:[#allocation11 + $0x2c] sm:$0xf]
    %v11438 = vld [vmem:[#allocation11 + $0x30] sm:$0xf]
    %v11439 = vld [vmem:[#allocation11 + $0x34] sm:$0xf]
    %v11440 = vld [vmem:[#allocation11 + $0x38] sm:$0xf]
    %v11441 = vld [vmem:[#allocation11 + $0x3c] sm:$0xf]
    %v11442 = vld [vmem:[#allocation11 + $0x40] sm:$0xf]
    %v11443 = vld [vmem:[#allocation11 + $0x44] sm:$0xf]
    %v11444 = vld [vmem:[#allocation11 + $0x48] sm:$0xf]
    %v11445 = vld [vmem:[#allocation11 + $0x4c] sm:$0xf]
    %v11446 = vld [vmem:[#allocation11 + $0x50] sm:$0xf]
    %v11447 = vld [vmem:[#allocation11 + $0x54] sm:$0xf]
    %v11448 = vld [vmem:[#allocation11 + $0x58] sm:$0xf]
    %v11449 = vld [vmem:[#allocation11 + $0x5c] sm:$0xf]
    %v11450 = vld [vmem:[#allocation11 + $0x60] sm:$0xf]
    %v11451 = vld [vmem:[#allocation11 + $0x64] sm:$0xf]
    %v11452 = vld [vmem:[#allocation11 + $0x68] sm:$0xf]
    %v11453 = vld [vmem:[#allocation11 + $0x6c] sm:$0xf]
    %v11454 = vld [vmem:[#allocation11 + $0x70] sm:$0xf]
    %v11455 = vld [vmem:[#allocation11 + $0x74] sm:$0xf]
    %v11456 = vld [vmem:[#allocation11 + $0x78] sm:$0xf]
    %v11457 = vld [vmem:[#allocation11 + $0x7c] sm:$0xf]
    %v11458 = vld [vmem:[#allocation11 + $0x80] sm:$0xf]
    %v11459 = vld [vmem:[#allocation11 + $0x84] sm:$0xf]
    %v11460 = vld [vmem:[#allocation11 + $0x88] sm:$0xf]
    %v11461 = vld [vmem:[#allocation11 + $0x8c] sm:$0xf]
    %v11462 = vld [vmem:[#allocation11 + $0x90] sm:$0xf]
    %v11463 = vld [vmem:[#allocation11 + $0x94] sm:$0xf]
    %v11464 = vld [vmem:[#allocation11 + $0x98] sm:$0xf]
    %v11465 = vld [vmem:[#allocation11 + $0x9c] sm:$0xf]
    %v11466 = vld [vmem:[#allocation11 + $0xa0] sm:$0xf]
    %v11467 = vld [vmem:[#allocation11 + $0xa4] sm:$0xf]
    %v11468 = vld [vmem:[#allocation11 + $0xa8] sm:$0xf]
    %v11469 = vld [vmem:[#allocation11 + $0xac] sm:$0xf]
    %v11470 = vld [vmem:[#allocation11 + $0xb0] sm:$0xf]
    %v11471 = vld [vmem:[#allocation11 + $0xb4] sm:$0xf]
    %v11472 = vld [vmem:[#allocation11 + $0xb8] sm:$0xf]
    %v11473 = vld [vmem:[#allocation11 + $0xbc] sm:$0xf]
    %v11474 = vld [vmem:[#allocation11 + $0xc0] sm:$0xf]
    %v11475 = vld [vmem:[#allocation11 + $0xc4] sm:$0xf]
    %v11476 = vld [vmem:[#allocation11 + $0xc8] sm:$0xf]
    %v11477 = vld [vmem:[#allocation11 + $0xcc] sm:$0xf]
    %v11478 = vld [vmem:[#allocation11 + $0xd0] sm:$0xf]
    %v11479 = vld [vmem:[#allocation11 + $0xd4] sm:$0xf]
    %v11480 = vld [vmem:[#allocation11 + $0xd8] sm:$0xf]
    %v11481 = vld [vmem:[#allocation11 + $0xdc] sm:$0xf]
    %v11482 = vld [vmem:[#allocation11 + $0xe0] sm:$0xf]
    %v11483 = vld [vmem:[#allocation11 + $0xe4] sm:$0xf]
    %v11484 = vld [vmem:[#allocation11 + $0xe8] sm:$0xf]
    %v11485 = vld [vmem:[#allocation11 + $0xec] sm:$0xf]
    %v11486 = vld [vmem:[#allocation11 + $0xf0] sm:$0xf]
    %v11487 = vld [vmem:[#allocation11 + $0xf4] sm:$0xf]
    %v11488 = vld [vmem:[#allocation11 + $0xf8] sm:$0xf]
    %v11489 = vld [vmem:[#allocation11 + $0xfc] sm:$0xf]
    %v11490 = vld [vmem:[#allocation11 + $0x100] sm:$0xf]
    %v11491 = vld [vmem:[#allocation11 + $0x104] sm:$0xf]
    %v11492 = vld [vmem:[#allocation11 + $0x108] sm:$0xf]
    %v11493 = vld [vmem:[#allocation11 + $0x10c] sm:$0xf]
    %v11494 = vld [vmem:[#allocation11 + $0x110] sm:$0xf]
    %v11495 = vld [vmem:[#allocation11 + $0x114] sm:$0xf]
    %v11496 = vld [vmem:[#allocation11 + $0x118] sm:$0xf]
    %v11497 = vld [vmem:[#allocation11 + $0x11c] sm:$0xf]
    %v11498 = vld [vmem:[#allocation11 + $0x120] sm:$0xf]
    %v11499 = vld [vmem:[#allocation11 + $0x124] sm:$0xf]
    %v11500 = vld [vmem:[#allocation11 + $0x128] sm:$0xf]
    %v11501 = vld [vmem:[#allocation11 + $0x12c] sm:$0xf]
    %v11502 = vld [vmem:[#allocation11 + $0x130] sm:$0xf]
    %v11503 = vld [vmem:[#allocation11 + $0x134] sm:$0xf]
    %v11504 = vld [vmem:[#allocation11 + $0x138] sm:$0xf]
    %v11505 = vld [vmem:[#allocation11 + $0x13c] sm:$0xf]
    %v11506 = vld [vmem:[#allocation11 + $0x140] sm:$0xf]
    %v11507 = vld [vmem:[#allocation11 + $0x144] sm:$0xf]
    %v11508 = vld [vmem:[#allocation11 + $0x148] sm:$0xf]
    %v11509 = vld [vmem:[#allocation11 + $0x14c] sm:$0xf]
    %v11510 = vld [vmem:[#allocation11 + $0x150] sm:$0xf]
    %v11511 = vld [vmem:[#allocation11 + $0x154] sm:$0xf]
    %v11512 = vld [vmem:[#allocation11 + $0x158] sm:$0xf]
    %v11513 = vld [vmem:[#allocation11 + $0x15c] sm:$0xf]
    %v11514 = vld [vmem:[#allocation11 + $0x160] sm:$0xf]
    %v11515 = vld [vmem:[#allocation11 + $0x164] sm:$0xf]
    %v11516 = vld [vmem:[#allocation11 + $0x168] sm:$0xf]
    %v11517 = vld [vmem:[#allocation11 + $0x16c] sm:$0xf]
    %v11518 = vld [vmem:[#allocation11 + $0x170] sm:$0xf]
    %v11519 = vld [vmem:[#allocation11 + $0x174] sm:$0xf]
    %v11520 = vld [vmem:[#allocation11 + $0x178] sm:$0xf]
    %v11521 = vld [vmem:[#allocation11 + $0x17c] sm:$0xf]
    %v11522 = vld [vmem:[#allocation11 + $0x180] sm:$0xf]
    %v11523 = vld [vmem:[#allocation11 + $0x184] sm:$0xf]
    %v11524 = vld [vmem:[#allocation11 + $0x188] sm:$0xf]
    %v11525 = vld [vmem:[#allocation11 + $0x18c] sm:$0xf]
    %v11526 = vld [vmem:[#allocation11 + $0x190] sm:$0xf]
    %v11527 = vld [vmem:[#allocation11 + $0x194] sm:$0xf]
    %v11528 = vld [vmem:[#allocation11 + $0x198] sm:$0xf]
    %v11529 = vld [vmem:[#allocation11 + $0x19c] sm:$0xf]
    %v11530 = vld [vmem:[#allocation11 + $0x1a0] sm:$0xf]
    %v11531 = vld [vmem:[#allocation11 + $0x1a4] sm:$0xf]
    %v11532 = vld [vmem:[#allocation11 + $0x1a8] sm:$0xf]
    %v11533 = vld [vmem:[#allocation11 + $0x1ac] sm:$0xf]
    %v11534 = vld [vmem:[#allocation11 + $0x1b0] sm:$0xf]
    %v11535 = vld [vmem:[#allocation11 + $0x1b4] sm:$0xf]
    %v11536 = vld [vmem:[#allocation11 + $0x1b8] sm:$0xf]
    %v11537 = vld [vmem:[#allocation11 + $0x1bc] sm:$0xf]
    %v11538 = vld [vmem:[#allocation11 + $0x1c0] sm:$0xf]
    %v11539 = vld [vmem:[#allocation11 + $0x1c4] sm:$0xf]
    %v11540 = vld [vmem:[#allocation11 + $0x1c8] sm:$0xf]
    %v11541 = vld [vmem:[#allocation11 + $0x1cc] sm:$0xf]
    %v11542 = vld [vmem:[#allocation11 + $0x1d0] sm:$0xf]
    %v11543 = vld [vmem:[#allocation11 + $0x1d4] sm:$0xf]
    %v11544 = vld [vmem:[#allocation11 + $0x1d8] sm:$0xf]
    %v11545 = vld [vmem:[#allocation11 + $0x1dc] sm:$0xf]
    %v11546 = vld [vmem:[#allocation11 + $0x1e0] sm:$0xf]
    %v11547 = vld [vmem:[#allocation11 + $0x1e4] sm:$0xf]
    %v11548 = vld [vmem:[#allocation11 + $0x1e8] sm:$0xf]
    %v11549 = vld [vmem:[#allocation11 + $0x1ec] sm:$0xf]
    %v11550 = vld [vmem:[#allocation11 + $0x1f0] sm:$0xf]
    %v11551 = vld [vmem:[#allocation11 + $0x1f4] sm:$0xf]
    %v11552 = vld [vmem:[#allocation11 + $0x1f8] sm:$0xf]
    %v11553 = vld [vmem:[#allocation11 + $0x1fc] sm:$0xf]
    %v11554 = vld [vmem:[#allocation11 + $0x200] sm:$0xf]
    %v11555 = vld [vmem:[#allocation11 + $0x204] sm:$0xf]
    %v11556 = vld [vmem:[#allocation11 + $0x208] sm:$0xf]
    %v11557 = vld [vmem:[#allocation11 + $0x20c] sm:$0xf]
    %v11558 = vld [vmem:[#allocation11 + $0x210] sm:$0xf]
    %v11559 = vld [vmem:[#allocation11 + $0x214] sm:$0xf]
    %v11560 = vld [vmem:[#allocation11 + $0x218] sm:$0xf]
    %v11561 = vld [vmem:[#allocation11 + $0x21c] sm:$0xf]
    %v11562 = vld [vmem:[#allocation11 + $0x220] sm:$0xf]
    %v11563 = vld [vmem:[#allocation11 + $0x224] sm:$0xf]
    %v11564 = vld [vmem:[#allocation11 + $0x228] sm:$0xf]
    %v11565 = vld [vmem:[#allocation11 + $0x22c] sm:$0xf]
    %v11566 = vld [vmem:[#allocation11 + $0x230] sm:$0xf]
    %v11567 = vld [vmem:[#allocation11 + $0x234] sm:$0xf]
    %v11568 = vld [vmem:[#allocation11 + $0x238] sm:$0xf]
    %v11569 = vld [vmem:[#allocation11 + $0x23c] sm:$0xf]
    %v11570 = vld [vmem:[#allocation11 + $0x240] sm:$0xf]
    %v11571 = vld [vmem:[#allocation11 + $0x244] sm:$0xf]
    %v11572 = vld [vmem:[#allocation11 + $0x248] sm:$0xf]
    %v11573 = vld [vmem:[#allocation11 + $0x24c] sm:$0xf]
    %v11574 = vld [vmem:[#allocation11 + $0x250] sm:$0xf]
    %v11575 = vld [vmem:[#allocation11 + $0x254] sm:$0xf]
    %v11576 = vld [vmem:[#allocation11 + $0x258] sm:$0xf]
    %v11577 = vld [vmem:[#allocation11 + $0x25c] sm:$0xf]
    %v11578 = vld [vmem:[#allocation11 + $0x260] sm:$0xf]
    %v11579 = vld [vmem:[#allocation11 + $0x264] sm:$0xf]
    %v11580 = vld [vmem:[#allocation11 + $0x268] sm:$0xf]
    %v11581 = vld [vmem:[#allocation11 + $0x26c] sm:$0xf]
    %v11582 = vld [vmem:[#allocation11 + $0x270] sm:$0xf]
    %v11583 = vld [vmem:[#allocation11 + $0x274] sm:$0xf]
    %v11584 = vld [vmem:[#allocation11 + $0x278] sm:$0xf]
    %v11585 = vld [vmem:[#allocation11 + $0x27c] sm:$0xf]
    %v11586 = vld [vmem:[#allocation11 + $0x280] sm:$0xf]
    %v11587 = vld [vmem:[#allocation11 + $0x284] sm:$0xf]
    %v11588 = vld [vmem:[#allocation11 + $0x288] sm:$0xf]
    %v11589 = vld [vmem:[#allocation11 + $0x28c] sm:$0xf]
    %v11590 = vld [vmem:[#allocation11 + $0x290] sm:$0xf]
    %v11591 = vld [vmem:[#allocation11 + $0x294] sm:$0xf]
    %v11592 = vld [vmem:[#allocation11 + $0x298] sm:$0xf]
    %v11593 = vld [vmem:[#allocation11 + $0x29c] sm:$0xf]
    %v11594 = vld [vmem:[#allocation11 + $0x2a0] sm:$0xf]
    %v11595 = vld [vmem:[#allocation11 + $0x2a4] sm:$0xf]
    %v11596 = vld [vmem:[#allocation11 + $0x2a8] sm:$0xf]
    %v11597 = vld [vmem:[#allocation11 + $0x2ac] sm:$0xf]
    %v11598 = vld [vmem:[#allocation11 + $0x2b0] sm:$0xf]
    %v11599 = vld [vmem:[#allocation11 + $0x2b4] sm:$0xf]
    %v11600 = vld [vmem:[#allocation11 + $0x2b8] sm:$0xf]
    %v11601 = vld [vmem:[#allocation11 + $0x2bc] sm:$0xf]
    %v11602 = vld [vmem:[#allocation11 + $0x2c0] sm:$0xf]
    %v11603 = vld [vmem:[#allocation11 + $0x2c4] sm:$0xf]
    %v11604 = vld [vmem:[#allocation11 + $0x2c8] sm:$0xf]
    %v11605 = vld [vmem:[#allocation11 + $0x2cc] sm:$0xf]
    %v11606 = vld [vmem:[#allocation11 + $0x2d0] sm:$0xf]
    %v11607 = vld [vmem:[#allocation11 + $0x2d4] sm:$0xf]
    %v11608 = vld [vmem:[#allocation11 + $0x2d8] sm:$0xf]
    %v11609 = vld [vmem:[#allocation11 + $0x2dc] sm:$0xf]
    %v11610 = vld [vmem:[#allocation11 + $0x2e0] sm:$0xf]
    %v11611 = vld [vmem:[#allocation11 + $0x2e4] sm:$0xf]
    %v11612 = vld [vmem:[#allocation11 + $0x2e8] sm:$0xf]
    %v11613 = vld [vmem:[#allocation11 + $0x2ec] sm:$0xf]
    %v11614 = vld [vmem:[#allocation11 + $0x2f0] sm:$0xf]
    %v11615 = vld [vmem:[#allocation11 + $0x2f4] sm:$0xf]
    %v11616 = vld [vmem:[#allocation11 + $0x2f8] sm:$0xf]
    %v11617 = vld [vmem:[#allocation11 + $0x2fc] sm:$0xf]
    %v11618 = vld [vmem:[#allocation11 + $0x300] sm:$0xf]
    %v11619 = vld [vmem:[#allocation11 + $0x304] sm:$0xf]
    %v11620 = vld [vmem:[#allocation11 + $0x308] sm:$0xf]
    %v11621 = vld [vmem:[#allocation11 + $0x30c] sm:$0xf]
    %v11622 = vld [vmem:[#allocation11 + $0x310] sm:$0xf]
    %v11623 = vld [vmem:[#allocation11 + $0x314] sm:$0xf]
    %v11624 = vld [vmem:[#allocation11 + $0x318] sm:$0xf]
    %v11625 = vld [vmem:[#allocation11 + $0x31c] sm:$0xf]
    %v11626 = vld [vmem:[#allocation11 + $0x320] sm:$0xf]
    %v11627 = vld [vmem:[#allocation11 + $0x324] sm:$0xf]
    %v11628 = vld [vmem:[#allocation11 + $0x328] sm:$0xf]
    %v11629 = vld [vmem:[#allocation11 + $0x32c] sm:$0xf]
    %v11630 = vld [vmem:[#allocation11 + $0x330] sm:$0xf]
    %v11631 = vld [vmem:[#allocation11 + $0x334] sm:$0xf]
    %v11632 = vld [vmem:[#allocation11 + $0x338] sm:$0xf]
    %v11633 = vld [vmem:[#allocation11 + $0x33c] sm:$0xf]
    %v11634 = vld [vmem:[#allocation11 + $0x340] sm:$0xf]
    %v11635 = vld [vmem:[#allocation11 + $0x344] sm:$0xf]
    %v11636 = vld [vmem:[#allocation11 + $0x348] sm:$0xf]
    %v11637 = vld [vmem:[#allocation11 + $0x34c] sm:$0xf]
    %v11638 = vld [vmem:[#allocation11 + $0x350] sm:$0xf]
    %v11639 = vld [vmem:[#allocation11 + $0x354] sm:$0xf]
    %v11640 = vld [vmem:[#allocation11 + $0x358] sm:$0xf]
    %v11641 = vld [vmem:[#allocation11 + $0x35c] sm:$0xf]
    %v11642 = vld [vmem:[#allocation11 + $0x360] sm:$0xf]
    %v11643 = vld [vmem:[#allocation11 + $0x364] sm:$0xf]
    %v11644 = vld [vmem:[#allocation11 + $0x368] sm:$0xf]
    %v11645 = vld [vmem:[#allocation11 + $0x36c] sm:$0xf]
    %v11646 = vld [vmem:[#allocation11 + $0x370] sm:$0xf]
    %v11647 = vld [vmem:[#allocation11 + $0x374] sm:$0xf]
    %v11648 = vld [vmem:[#allocation11 + $0x378] sm:$0xf]
    %v11649 = vld [vmem:[#allocation11 + $0x37c] sm:$0xf]
    %v11650 = vld [vmem:[#allocation11 + $0x380] sm:$0xf]
    %v11651 = vld [vmem:[#allocation11 + $0x384] sm:$0xf]
    %v11652 = vld [vmem:[#allocation11 + $0x388] sm:$0xf]
    %v11653 = vld [vmem:[#allocation11 + $0x38c] sm:$0xf]
    %v11654 = vld [vmem:[#allocation11 + $0x390] sm:$0xf]
    %v11655 = vld [vmem:[#allocation11 + $0x394] sm:$0xf]
    %v11656 = vld [vmem:[#allocation11 + $0x398] sm:$0xf]
    %v11657 = vld [vmem:[#allocation11 + $0x39c] sm:$0xf]
    %v11658 = vld [vmem:[#allocation11 + $0x3a0] sm:$0xf]
    %v11659 = vld [vmem:[#allocation11 + $0x3a4] sm:$0xf]
    %v11660 = vld [vmem:[#allocation11 + $0x3a8] sm:$0xf]
    %v11661 = vld [vmem:[#allocation11 + $0x3ac] sm:$0xf]
    %v11662 = vld [vmem:[#allocation11 + $0x3b0] sm:$0xf]
    %v11663 = vld [vmem:[#allocation11 + $0x3b4] sm:$0xf]
    %v11664 = vld [vmem:[#allocation11 + $0x3b8] sm:$0xf]
    %v11665 = vld [vmem:[#allocation11 + $0x3bc] sm:$0xf]
    %v11666 = vld [vmem:[#allocation11 + $0x3c0] sm:$0xf]
    %v11667 = vld [vmem:[#allocation11 + $0x3c4] sm:$0xf]
    %v11668 = vld [vmem:[#allocation11 + $0x3c8] sm:$0xf]
    %v11669 = vld [vmem:[#allocation11 + $0x3cc] sm:$0xf]
    %v11670 = vld [vmem:[#allocation11 + $0x3d0] sm:$0xf]
    %v11671 = vld [vmem:[#allocation11 + $0x3d4] sm:$0xf]
    %v11672 = vld [vmem:[#allocation11 + $0x3d8] sm:$0xf]
    %v11673 = vld [vmem:[#allocation11 + $0x3dc] sm:$0xf]
    %v11674 = vld [vmem:[#allocation11 + $0x3e0] sm:$0xf]
    %v11675 = vld [vmem:[#allocation11 + $0x3e4] sm:$0xf]
    %v11676 = vld [vmem:[#allocation11 + $0x3e8] sm:$0xf]
    %v11677 = vld [vmem:[#allocation11 + $0x3ec] sm:$0xf]
    %v11678 = vld [vmem:[#allocation11 + $0x3f0] sm:$0xf]
    %v11679 = vld [vmem:[#allocation11 + $0x3f4] sm:$0xf]
    %v11680 = vld [vmem:[#allocation11 + $0x3f8] sm:$0xf]
    %v11681 = vld [vmem:[#allocation11 + $0x3fc] sm:$0xf]
    %v11682 = vld [vmem:[#allocation12] sm:$0x1]
    %v11684 = vperm.slane %v11682, 0
    %v11702 = vunpack.c.l.b16 %v11410
    %v11703 = vunpack.c.h.b16 %v11410
    %v11704 = vunpack.c.l.b16 %v11411
    %v11705 = vunpack.c.h.b16 %v11411
    %v11706 = vunpack.c.l.b16 %v11412
    %v11707 = vunpack.c.h.b16 %v11412
    %v11708 = vunpack.c.l.b16 %v11413
    %v11709 = vunpack.c.h.b16 %v11413
    %v11710 = vunpack.c.l.b16 %v11414
    %v11711 = vunpack.c.h.b16 %v11414
    %v11712 = vunpack.c.l.b16 %v11415
    %v11713 = vunpack.c.h.b16 %v11415
    %v11714 = vunpack.c.l.b16 %v11416
    %v11715 = vunpack.c.h.b16 %v11416
    %v11716 = vunpack.c.l.b16 %v11417
    %v11717 = vunpack.c.h.b16 %v11417
    %v11718 = vunpack.c.l.b16 %v11418
    %v11719 = vunpack.c.h.b16 %v11418
    %v11720 = vunpack.c.l.b16 %v11419
    %v11721 = vunpack.c.h.b16 %v11419
    %v11722 = vunpack.c.l.b16 %v11420
    %v11723 = vunpack.c.h.b16 %v11420
    %v11724 = vunpack.c.l.b16 %v11421
    %v11725 = vunpack.c.h.b16 %v11421
    %v11726 = vunpack.c.l.b16 %v11422
    %v11727 = vunpack.c.h.b16 %v11422
    %v11728 = vunpack.c.l.b16 %v11423
    %v11729 = vunpack.c.h.b16 %v11423
    %v11730 = vunpack.c.l.b16 %v11424
    %v11731 = vunpack.c.h.b16 %v11424
    %v11732 = vunpack.c.l.b16 %v11425
    %v11733 = vunpack.c.h.b16 %v11425
    %v11734 = vpack.c.b16 %v11718, %v11702
    %v11735 = vpack.c.b16 %v11719, %v11703
    %v11736 = vpack.c.b16 %v11720, %v11704
    %v11737 = vpack.c.b16 %v11721, %v11705
    %v11738 = vpack.c.b16 %v11722, %v11706
    %v11739 = vpack.c.b16 %v11723, %v11707
    %v11740 = vpack.c.b16 %v11724, %v11708
    %v11741 = vpack.c.b16 %v11725, %v11709
    %v11742 = vpack.c.b16 %v11726, %v11710
    %v11743 = vpack.c.b16 %v11727, %v11711
    %v11744 = vpack.c.b16 %v11728, %v11712
    %v11745 = vpack.c.b16 %v11729, %v11713
    %v11746 = vpack.c.b16 %v11730, %v11714
    %v11747 = vpack.c.b16 %v11731, %v11715
    %v11748 = vpack.c.b16 %v11732, %v11716
    %v11749 = vpack.c.b16 %v11733, %v11717
    %v12022 = vunpack.c.l.b16 %v11426
    %v12023 = vunpack.c.l.b16 %v11427
    %v12024 = vunpack.c.l.b16 %v11428
    %v12025 = vunpack.c.l.b16 %v11429
    %v12026 = vunpack.c.l.b16 %v11430
    %v12027 = vunpack.c.l.b16 %v11431
    %v12028 = vunpack.c.l.b16 %v11432
    %v12029 = vunpack.c.l.b16 %v11433
    %v12030 = vunpack.c.l.b16 %v11434
    %v12031 = vunpack.c.l.b16 %v11435
    %v12032 = vunpack.c.l.b16 %v11436
    %v12033 = vunpack.c.l.b16 %v11437
    %v12034 = vunpack.c.l.b16 %v11438
    %v12035 = vunpack.c.l.b16 %v11439
    %v12036 = vunpack.c.l.b16 %v11440
    %v12037 = vunpack.c.l.b16 %v11441
    %v12038 = vunpack.c.l.b16 %v11442
    %v12039 = vunpack.c.l.b16 %v11443
    %v12040 = vunpack.c.l.b16 %v11444
    %v12041 = vunpack.c.l.b16 %v11445
    %v12042 = vunpack.c.l.b16 %v11446
    %v12043 = vunpack.c.l.b16 %v11447
    %v12044 = vunpack.c.l.b16 %v11448
    %v12045 = vunpack.c.l.b16 %v11449
    %v12046 = vunpack.c.l.b16 %v11450
    %v12047 = vunpack.c.l.b16 %v11451
    %v12048 = vunpack.c.l.b16 %v11452
    %v12049 = vunpack.c.l.b16 %v11453
    %v12050 = vunpack.c.l.b16 %v11454
    %v12051 = vunpack.c.l.b16 %v11455
    %v12052 = vunpack.c.l.b16 %v11456
    %v12053 = vunpack.c.l.b16 %v11457
    %v12054 = vunpack.c.l.b16 %v11458
    %v12055 = vunpack.c.l.b16 %v11459
    %v12056 = vunpack.c.l.b16 %v11460
    %v12057 = vunpack.c.l.b16 %v11461
    %v12058 = vunpack.c.l.b16 %v11462
    %v12059 = vunpack.c.l.b16 %v11463
    %v12060 = vunpack.c.l.b16 %v11464
    %v12061 = vunpack.c.l.b16 %v11465
    %v12062 = vunpack.c.l.b16 %v11466
    %v12063 = vunpack.c.l.b16 %v11467
    %v12064 = vunpack.c.l.b16 %v11468
    %v12065 = vunpack.c.l.b16 %v11469
    %v12066 = vunpack.c.l.b16 %v11470
    %v12067 = vunpack.c.l.b16 %v11471
    %v12068 = vunpack.c.l.b16 %v11472
    %v12069 = vunpack.c.l.b16 %v11473
    %v12070 = vunpack.c.l.b16 %v11474
    %v12071 = vunpack.c.l.b16 %v11475
    %v12072 = vunpack.c.l.b16 %v11476
    %v12073 = vunpack.c.l.b16 %v11477
    %v12074 = vunpack.c.l.b16 %v11478
    %v12075 = vunpack.c.l.b16 %v11479
    %v12076 = vunpack.c.l.b16 %v11480
    %v12077 = vunpack.c.l.b16 %v11481
    %v12078 = vunpack.c.l.b16 %v11482
    %v12079 = vunpack.c.l.b16 %v11483
    %v12080 = vunpack.c.l.b16 %v11484
    %v12081 = vunpack.c.l.b16 %v11485
    %v12082 = vunpack.c.l.b16 %v11486
    %v12083 = vunpack.c.l.b16 %v11487
    %v12084 = vunpack.c.l.b16 %v11488
    %v12085 = vunpack.c.l.b16 %v11489
    %v12086 = vunpack.c.l.b16 %v11490
    %v12087 = vunpack.c.l.b16 %v11491
    %v12088 = vunpack.c.l.b16 %v11492
    %v12089 = vunpack.c.l.b16 %v11493
    %v12090 = vunpack.c.l.b16 %v11494
    %v12091 = vunpack.c.l.b16 %v11495
    %v12092 = vunpack.c.l.b16 %v11496
    %v12093 = vunpack.c.l.b16 %v11497
    %v12094 = vunpack.c.l.b16 %v11498
    %v12095 = vunpack.c.l.b16 %v11499
    %v12096 = vunpack.c.l.b16 %v11500
    %v12097 = vunpack.c.l.b16 %v11501
    %v12098 = vunpack.c.l.b16 %v11502
    %v12099 = vunpack.c.l.b16 %v11503
    %v12100 = vunpack.c.l.b16 %v11504
    %v12101 = vunpack.c.l.b16 %v11505
    %v12102 = vunpack.c.l.b16 %v11506
    %v12103 = vunpack.c.l.b16 %v11507
    %v12104 = vunpack.c.l.b16 %v11508
    %v12105 = vunpack.c.l.b16 %v11509
    %v12106 = vunpack.c.l.b16 %v11510
    %v12107 = vunpack.c.l.b16 %v11511
    %v12108 = vunpack.c.l.b16 %v11512
    %v12109 = vunpack.c.l.b16 %v11513
    %v12110 = vunpack.c.l.b16 %v11514
    %v12111 = vunpack.c.l.b16 %v11515
    %v12112 = vunpack.c.l.b16 %v11516
    %v12113 = vunpack.c.l.b16 %v11517
    %v12114 = vunpack.c.l.b16 %v11518
    %v12115 = vunpack.c.l.b16 %v11519
    %v12116 = vunpack.c.l.b16 %v11520
    %v12117 = vunpack.c.l.b16 %v11521
    %v12118 = vunpack.c.l.b16 %v11522
    %v12119 = vunpack.c.l.b16 %v11523
    %v12120 = vunpack.c.l.b16 %v11524
    %v12121 = vunpack.c.l.b16 %v11525
    %v12122 = vunpack.c.l.b16 %v11526
    %v12123 = vunpack.c.l.b16 %v11527
    %v12124 = vunpack.c.l.b16 %v11528
    %v12125 = vunpack.c.l.b16 %v11529
    %v12126 = vunpack.c.l.b16 %v11530
    %v12127 = vunpack.c.l.b16 %v11531
    %v12128 = vunpack.c.l.b16 %v11532
    %v12129 = vunpack.c.l.b16 %v11533
    %v12130 = vunpack.c.l.b16 %v11534
    %v12131 = vunpack.c.l.b16 %v11535
    %v12132 = vunpack.c.l.b16 %v11536
    %v12133 = vunpack.c.l.b16 %v11537
    %v12134 = vunpack.c.l.b16 %v11538
    %v12135 = vunpack.c.l.b16 %v11539
    %v12136 = vunpack.c.l.b16 %v11540
    %v12137 = vunpack.c.l.b16 %v11541
    %v12138 = vunpack.c.l.b16 %v11542
    %v12139 = vunpack.c.l.b16 %v11543
    %v12140 = vunpack.c.l.b16 %v11544
    %v12141 = vunpack.c.l.b16 %v11545
    %v12142 = vunpack.c.l.b16 %v11546
    %v12143 = vunpack.c.l.b16 %v11547
    %v12144 = vunpack.c.l.b16 %v11548
    %v12145 = vunpack.c.l.b16 %v11549
    %v12146 = vunpack.c.l.b16 %v11550
    %v12147 = vunpack.c.l.b16 %v11551
    %v12148 = vunpack.c.l.b16 %v11552
    %v12149 = vunpack.c.l.b16 %v11553
    %v12150 = vunpack.c.l.b16 %v11554
    %v12151 = vunpack.c.l.b16 %v11555
    %v12152 = vunpack.c.l.b16 %v11556
    %v12153 = vunpack.c.l.b16 %v11557
    %v12154 = vunpack.c.l.b16 %v11558
    %v12155 = vunpack.c.l.b16 %v11559
    %v12156 = vunpack.c.l.b16 %v11560
    %v12157 = vunpack.c.l.b16 %v11561
    %v12158 = vunpack.c.l.b16 %v11562
    %v12159 = vunpack.c.l.b16 %v11563
    %v12160 = vunpack.c.l.b16 %v11564
    %v12161 = vunpack.c.l.b16 %v11565
    %v12162 = vunpack.c.l.b16 %v11566
    %v12163 = vunpack.c.l.b16 %v11567
    %v12164 = vunpack.c.l.b16 %v11568
    %v12165 = vunpack.c.l.b16 %v11569
    %v12166 = vunpack.c.l.b16 %v11570
    %v12167 = vunpack.c.l.b16 %v11571
    %v12168 = vunpack.c.l.b16 %v11572
    %v12169 = vunpack.c.l.b16 %v11573
    %v12170 = vunpack.c.l.b16 %v11574
    %v12171 = vunpack.c.l.b16 %v11575
    %v12172 = vunpack.c.l.b16 %v11576
    %v12173 = vunpack.c.l.b16 %v11577
    %v12174 = vunpack.c.l.b16 %v11578
    %v12175 = vunpack.c.l.b16 %v11579
    %v12176 = vunpack.c.l.b16 %v11580
    %v12177 = vunpack.c.l.b16 %v11581
    %v12178 = vunpack.c.l.b16 %v11582
    %v12179 = vunpack.c.l.b16 %v11583
    %v12180 = vunpack.c.l.b16 %v11584
    %v12181 = vunpack.c.l.b16 %v11585
    %v12182 = vunpack.c.l.b16 %v11586
    %v12183 = vunpack.c.l.b16 %v11587
    %v12184 = vunpack.c.l.b16 %v11588
    %v12185 = vunpack.c.l.b16 %v11589
    %v12186 = vunpack.c.l.b16 %v11590
    %v12187 = vunpack.c.l.b16 %v11591
    %v12188 = vunpack.c.l.b16 %v11592
    %v12189 = vunpack.c.l.b16 %v11593
    %v12190 = vunpack.c.l.b16 %v11594
    %v12191 = vunpack.c.l.b16 %v11595
    %v12192 = vunpack.c.l.b16 %v11596
    %v12193 = vunpack.c.l.b16 %v11597
    %v12194 = vunpack.c.l.b16 %v11598
    %v12195 = vunpack.c.l.b16 %v11599
    %v12196 = vunpack.c.l.b16 %v11600
    %v12197 = vunpack.c.l.b16 %v11601
    %v12198 = vunpack.c.l.b16 %v11602
    %v12199 = vunpack.c.l.b16 %v11603
    %v12200 = vunpack.c.l.b16 %v11604
    %v12201 = vunpack.c.l.b16 %v11605
    %v12202 = vunpack.c.l.b16 %v11606
    %v12203 = vunpack.c.l.b16 %v11607
    %v12204 = vunpack.c.l.b16 %v11608
    %v12205 = vunpack.c.l.b16 %v11609
    %v12206 = vunpack.c.l.b16 %v11610
    %v12207 = vunpack.c.l.b16 %v11611
    %v12208 = vunpack.c.l.b16 %v11612
    %v12209 = vunpack.c.l.b16 %v11613
    %v12210 = vunpack.c.l.b16 %v11614
    %v12211 = vunpack.c.l.b16 %v11615
    %v12212 = vunpack.c.l.b16 %v11616
    %v12213 = vunpack.c.l.b16 %v11617
    %v12214 = vunpack.c.l.b16 %v11618
    %v12215 = vunpack.c.l.b16 %v11619
    %v12216 = vunpack.c.l.b16 %v11620
    %v12217 = vunpack.c.l.b16 %v11621
    %v12218 = vunpack.c.l.b16 %v11622
    %v12219 = vunpack.c.l.b16 %v11623
    %v12220 = vunpack.c.l.b16 %v11624
    %v12221 = vunpack.c.l.b16 %v11625
    %v12222 = vunpack.c.l.b16 %v11626
    %v12223 = vunpack.c.l.b16 %v11627
    %v12224 = vunpack.c.l.b16 %v11628
    %v12225 = vunpack.c.l.b16 %v11629
    %v12226 = vunpack.c.l.b16 %v11630
    %v12227 = vunpack.c.l.b16 %v11631
    %v12228 = vunpack.c.l.b16 %v11632
    %v12229 = vunpack.c.l.b16 %v11633
    %v12230 = vunpack.c.l.b16 %v11634
    %v12231 = vunpack.c.l.b16 %v11635
    %v12232 = vunpack.c.l.b16 %v11636
    %v12233 = vunpack.c.l.b16 %v11637
    %v12234 = vunpack.c.l.b16 %v11638
    %v12235 = vunpack.c.l.b16 %v11639
    %v12236 = vunpack.c.l.b16 %v11640
    %v12237 = vunpack.c.l.b16 %v11641
    %v12238 = vunpack.c.l.b16 %v11642
    %v12239 = vunpack.c.l.b16 %v11643
    %v12240 = vunpack.c.l.b16 %v11644
    %v12241 = vunpack.c.l.b16 %v11645
    %v12242 = vunpack.c.l.b16 %v11646
    %v12243 = vunpack.c.l.b16 %v11647
    %v12244 = vunpack.c.l.b16 %v11648
    %v12245 = vunpack.c.l.b16 %v11649
    %v12246 = vunpack.c.l.b16 %v11650
    %v12247 = vunpack.c.l.b16 %v11651
    %v12248 = vunpack.c.l.b16 %v11652
    %v12249 = vunpack.c.l.b16 %v11653
    %v12250 = vunpack.c.l.b16 %v11654
    %v12251 = vunpack.c.l.b16 %v11655
    %v12252 = vunpack.c.l.b16 %v11656
    %v12253 = vunpack.c.l.b16 %v11657
    %v12254 = vunpack.c.l.b16 %v11658
    %v12255 = vunpack.c.l.b16 %v11659
    %v12256 = vunpack.c.l.b16 %v11660
    %v12257 = vunpack.c.l.b16 %v11661
    %v12258 = vunpack.c.l.b16 %v11662
    %v12259 = vunpack.c.l.b16 %v11663
    %v12260 = vunpack.c.l.b16 %v11664
    %v12261 = vunpack.c.l.b16 %v11665
    %v12262 = vunpack.c.l.b16 %v11666
    %v12263 = vunpack.c.l.b16 %v11667
    %v12264 = vunpack.c.l.b16 %v11668
    %v12265 = vunpack.c.l.b16 %v11669
    %v12266 = vunpack.c.l.b16 %v11670
    %v12267 = vunpack.c.l.b16 %v11671
    %v12268 = vunpack.c.l.b16 %v11672
    %v12269 = vunpack.c.l.b16 %v11673
    %v12270 = vunpack.c.l.b16 %v11674
    %v12271 = vunpack.c.l.b16 %v11675
    %v12272 = vunpack.c.l.b16 %v11676
    %v12273 = vunpack.c.l.b16 %v11677
    %v12274 = vunpack.c.l.b16 %v11678
    %v12275 = vunpack.c.l.b16 %v11679
    %v12276 = vunpack.c.l.b16 %v11680
    %v12277 = vunpack.c.l.b16 %v11681
    %v12278 = vpack.c.b16 %v12023, %v12022
    %v12279 = vpack.c.b16 %v12025, %v12024
    %v12280 = vpack.c.b16 %v12027, %v12026
    %v12281 = vpack.c.b16 %v12029, %v12028
    %v12282 = vpack.c.b16 %v12031, %v12030
    %v12283 = vpack.c.b16 %v12033, %v12032
    %v12284 = vpack.c.b16 %v12035, %v12034
    %v12285 = vpack.c.b16 %v12037, %v12036
    %v12286 = vpack.c.b16 %v12039, %v12038
    %v12287 = vpack.c.b16 %v12041, %v12040
    %v12288 = vpack.c.b16 %v12043, %v12042
    %v12289 = vpack.c.b16 %v12045, %v12044
    %v12290 = vpack.c.b16 %v12047, %v12046
    %v12291 = vpack.c.b16 %v12049, %v12048
    %v12292 = vpack.c.b16 %v12051, %v12050
    %v12293 = vpack.c.b16 %v12053, %v12052
    %v12294 = vpack.c.b16 %v12055, %v12054
    %v12295 = vpack.c.b16 %v12057, %v12056
    %v12296 = vpack.c.b16 %v12059, %v12058
    %v12297 = vpack.c.b16 %v12061, %v12060
    %v12298 = vpack.c.b16 %v12063, %v12062
    %v12299 = vpack.c.b16 %v12065, %v12064
    %v12300 = vpack.c.b16 %v12067, %v12066
    %v12301 = vpack.c.b16 %v12069, %v12068
    %v12302 = vpack.c.b16 %v12071, %v12070
    %v12303 = vpack.c.b16 %v12073, %v12072
    %v12304 = vpack.c.b16 %v12075, %v12074
    %v12305 = vpack.c.b16 %v12077, %v12076
    %v12306 = vpack.c.b16 %v12079, %v12078
    %v12307 = vpack.c.b16 %v12081, %v12080
    %v12308 = vpack.c.b16 %v12083, %v12082
    %v12309 = vpack.c.b16 %v12085, %v12084
    %v12310 = vpack.c.b16 %v12087, %v12086
    %v12311 = vpack.c.b16 %v12089, %v12088
    %v12312 = vpack.c.b16 %v12091, %v12090
    %v12313 = vpack.c.b16 %v12093, %v12092
    %v12314 = vpack.c.b16 %v12095, %v12094
    %v12315 = vpack.c.b16 %v12097, %v12096
    %v12316 = vpack.c.b16 %v12099, %v12098
    %v12317 = vpack.c.b16 %v12101, %v12100
    %v12318 = vpack.c.b16 %v12103, %v12102
    %v12319 = vpack.c.b16 %v12105, %v12104
    %v12320 = vpack.c.b16 %v12107, %v12106
    %v12321 = vpack.c.b16 %v12109, %v12108
    %v12322 = vpack.c.b16 %v12111, %v12110
    %v12323 = vpack.c.b16 %v12113, %v12112
    %v12324 = vpack.c.b16 %v12115, %v12114
    %v12325 = vpack.c.b16 %v12117, %v12116
    %v12326 = vpack.c.b16 %v12119, %v12118
    %v12327 = vpack.c.b16 %v12121, %v12120
    %v12328 = vpack.c.b16 %v12123, %v12122
    %v12329 = vpack.c.b16 %v12125, %v12124
    %v12330 = vpack.c.b16 %v12127, %v12126
    %v12331 = vpack.c.b16 %v12129, %v12128
    %v12332 = vpack.c.b16 %v12131, %v12130
    %v12333 = vpack.c.b16 %v12133, %v12132
    %v12334 = vpack.c.b16 %v12135, %v12134
    %v12335 = vpack.c.b16 %v12137, %v12136
    %v12336 = vpack.c.b16 %v12139, %v12138
    %v12337 = vpack.c.b16 %v12141, %v12140
    %v12338 = vpack.c.b16 %v12143, %v12142
    %v12339 = vpack.c.b16 %v12145, %v12144
    %v12340 = vpack.c.b16 %v12147, %v12146
    %v12341 = vpack.c.b16 %v12149, %v12148
    %v12342 = vpack.c.b16 %v12151, %v12150
    %v12343 = vpack.c.b16 %v12153, %v12152
    %v12344 = vpack.c.b16 %v12155, %v12154
    %v12345 = vpack.c.b16 %v12157, %v12156
    %v12346 = vpack.c.b16 %v12159, %v12158
    %v12347 = vpack.c.b16 %v12161, %v12160
    %v12348 = vpack.c.b16 %v12163, %v12162
    %v12349 = vpack.c.b16 %v12165, %v12164
    %v12350 = vpack.c.b16 %v12167, %v12166
    %v12351 = vpack.c.b16 %v12169, %v12168
    %v12352 = vpack.c.b16 %v12171, %v12170
    %v12353 = vpack.c.b16 %v12173, %v12172
    %v12354 = vpack.c.b16 %v12175, %v12174
    %v12355 = vpack.c.b16 %v12177, %v12176
    %v12356 = vpack.c.b16 %v12179, %v12178
    %v12357 = vpack.c.b16 %v12181, %v12180
    %v12358 = vpack.c.b16 %v12183, %v12182
    %v12359 = vpack.c.b16 %v12185, %v12184
    %v12360 = vpack.c.b16 %v12187, %v12186
    %v12361 = vpack.c.b16 %v12189, %v12188
    %v12362 = vpack.c.b16 %v12191, %v12190
    %v12363 = vpack.c.b16 %v12193, %v12192
    %v12364 = vpack.c.b16 %v12195, %v12194
    %v12365 = vpack.c.b16 %v12197, %v12196
    %v12366 = vpack.c.b16 %v12199, %v12198
    %v12367 = vpack.c.b16 %v12201, %v12200
    %v12368 = vpack.c.b16 %v12203, %v12202
    %v12369 = vpack.c.b16 %v12205, %v12204
    %v12370 = vpack.c.b16 %v12207, %v12206
    %v12371 = vpack.c.b16 %v12209, %v12208
    %v12372 = vpack.c.b16 %v12211, %v12210
    %v12373 = vpack.c.b16 %v12213, %v12212
    %v12374 = vpack.c.b16 %v12215, %v12214
    %v12375 = vpack.c.b16 %v12217, %v12216
    %v12376 = vpack.c.b16 %v12219, %v12218
    %v12377 = vpack.c.b16 %v12221, %v12220
    %v12378 = vpack.c.b16 %v12223, %v12222
    %v12379 = vpack.c.b16 %v12225, %v12224
    %v12380 = vpack.c.b16 %v12227, %v12226
    %v12381 = vpack.c.b16 %v12229, %v12228
    %v12382 = vpack.c.b16 %v12231, %v12230
    %v12383 = vpack.c.b16 %v12233, %v12232
    %v12384 = vpack.c.b16 %v12235, %v12234
    %v12385 = vpack.c.b16 %v12237, %v12236
    %v12386 = vpack.c.b16 %v12239, %v12238
    %v12387 = vpack.c.b16 %v12241, %v12240
    %v12388 = vpack.c.b16 %v12243, %v12242
    %v12389 = vpack.c.b16 %v12245, %v12244
    %v12390 = vpack.c.b16 %v12247, %v12246
    %v12391 = vpack.c.b16 %v12249, %v12248
    %v12392 = vpack.c.b16 %v12251, %v12250
    %v12393 = vpack.c.b16 %v12253, %v12252
    %v12394 = vpack.c.b16 %v12255, %v12254
    %v12395 = vpack.c.b16 %v12257, %v12256
    %v12396 = vpack.c.b16 %v12259, %v12258
    %v12397 = vpack.c.b16 %v12261, %v12260
    %v12398 = vpack.c.b16 %v12263, %v12262
    %v12399 = vpack.c.b16 %v12265, %v12264
    %v12400 = vpack.c.b16 %v12267, %v12266
    %v12401 = vpack.c.b16 %v12269, %v12268
    %v12402 = vpack.c.b16 %v12271, %v12270
    %v12403 = vpack.c.b16 %v12273, %v12272
    %v12404 = vpack.c.b16 %v12275, %v12274
    %v12405 = vpack.c.b16 %v12277, %v12276
    %12534 = vmatpush.bf16.msra.mxu0 %v12285
    %12535 = vmatpush.bf16.msra.mxu0 %v12284
    %12536 = vmatpush.bf16.msra.mxu0 %v12283
    %12537 = vmatpush.bf16.msra.mxu0 %v12282
    %12538 = vmatpush.bf16.msra.mxu0 %v12281
    %12539 = vmatpush.bf16.msra.mxu0 %v12280
    %12540 = vmatpush.bf16.msra.mxu0 %v12279
    %12541 = vmatpush.bf16.msra.mxu0 %v12278
    %12542 = vmatmul.bf16.gmra.mxu0 %v11734
    %v12543 = vpop.f32.mrf.mxu0
    %v12544 = vadd.f32 %v11684, %v12543
    %v12545 = vpop.f32.mrf.mxu0
    %v12546 = vadd.f32 %v11684, %v12545
    %12547 = vdwg.mxu0
    %12548 = vmatpush.bf16.msra.mxu0 %v12293
    %12549 = vmatpush.bf16.msra.mxu0 %v12292
    %12550 = vmatpush.bf16.msra.mxu0 %v12291
    %12551 = vmatpush.bf16.msra.mxu0 %v12290
    %12552 = vmatpush.bf16.msra.mxu0 %v12289
    %12553 = vmatpush.bf16.msra.mxu0 %v12288
    %12554 = vmatpush.bf16.msra.mxu0 %v12287
    %12555 = vmatpush.bf16.msra.mxu0 %v12286
    %12556 = vmatmul.bf16.gmra.mxu0 %v11735
    %v12557 = vpop.f32.mrf.mxu0
    %v12558 = vadd.f32 %v12544, %v12557
    %v12559 = vpop.f32.mrf.mxu0
    %v12560 = vadd.f32 %v12546, %v12559
    %12561 = vdwg.mxu0
    %12562 = vmatpush.bf16.msra.mxu0 %v12301
    %12563 = vmatpush.bf16.msra.mxu0 %v12300
    %12564 = vmatpush.bf16.msra.mxu0 %v12299
    %12565 = vmatpush.bf16.msra.mxu0 %v12298
    %12566 = vmatpush.bf16.msra.mxu0 %v12297
    %12567 = vmatpush.bf16.msra.mxu0 %v12296
    %12568 = vmatpush.bf16.msra.mxu0 %v12295
    %12569 = vmatpush.bf16.msra.mxu0 %v12294
    %12570 = vmatmul.bf16.gmra.mxu0 %v11736
    %v12571 = vpop.f32.mrf.mxu0
    %v12572 = vadd.f32 %v12558, %v12571
    %v12573 = vpop.f32.mrf.mxu0
    %v12574 = vadd.f32 %v12560, %v12573
    %12575 = vdwg.mxu0
    %12576 = vmatpush.bf16.msra.mxu0 %v12309
    %12577 = vmatpush.bf16.msra.mxu0 %v12308
    %12578 = vmatpush.bf16.msra.mxu0 %v12307
    %12579 = vmatpush.bf16.msra.mxu0 %v12306
    %12580 = vmatpush.bf16.msra.mxu0 %v12305
    %12581 = vmatpush.bf16.msra.mxu0 %v12304
    %12582 = vmatpush.bf16.msra.mxu0 %v12303
    %12583 = vmatpush.bf16.msra.mxu0 %v12302
    %12584 = vmatmul.bf16.gmra.mxu0 %v11737
    %v12585 = vpop.f32.mrf.mxu0
    %v12586 = vadd.f32 %v12572, %v12585
    %v12587 = vpop.f32.mrf.mxu0
    %v12588 = vadd.f32 %v12574, %v12587
    %12589 = vdwg.mxu0
    %12590 = vmatpush.bf16.msra.mxu0 %v12317
    %12591 = vmatpush.bf16.msra.mxu0 %v12316
    %12592 = vmatpush.bf16.msra.mxu0 %v12315
    %12593 = vmatpush.bf16.msra.mxu0 %v12314
    %12594 = vmatpush.bf16.msra.mxu0 %v12313
    %12595 = vmatpush.bf16.msra.mxu0 %v12312
    %12596 = vmatpush.bf16.msra.mxu0 %v12311
    %12597 = vmatpush.bf16.msra.mxu0 %v12310
    %12598 = vmatmul.bf16.gmra.mxu0 %v11738
    %v12599 = vpop.f32.mrf.mxu0
    %v12600 = vadd.f32 %v12586, %v12599
    %v12601 = vpop.f32.mrf.mxu0
    %v12602 = vadd.f32 %v12588, %v12601
    %12603 = vdwg.mxu0
    %12604 = vmatpush.bf16.msra.mxu0 %v12325
    %12605 = vmatpush.bf16.msra.mxu0 %v12324
    %12606 = vmatpush.bf16.msra.mxu0 %v12323
    %12607 = vmatpush.bf16.msra.mxu0 %v12322
    %12608 = vmatpush.bf16.msra.mxu0 %v12321
    %12609 = vmatpush.bf16.msra.mxu0 %v12320
    %12610 = vmatpush.bf16.msra.mxu0 %v12319
    %12611 = vmatpush.bf16.msra.mxu0 %v12318
    %12612 = vmatmul.bf16.gmra.mxu0 %v11739
    %v12613 = vpop.f32.mrf.mxu0
    %v12614 = vadd.f32 %v12600, %v12613
    %v12615 = vpop.f32.mrf.mxu0
    %v12616 = vadd.f32 %v12602, %v12615
    %12617 = vdwg.mxu0
    %12618 = vmatpush.bf16.msra.mxu0 %v12333
    %12619 = vmatpush.bf16.msra.mxu0 %v12332
    %12620 = vmatpush.bf16.msra.mxu0 %v12331
    %12621 = vmatpush.bf16.msra.mxu0 %v12330
    %12622 = vmatpush.bf16.msra.mxu0 %v12329
    %12623 = vmatpush.bf16.msra.mxu0 %v12328
    %12624 = vmatpush.bf16.msra.mxu0 %v12327
    %12625 = vmatpush.bf16.msra.mxu0 %v12326
    %12626 = vmatmul.bf16.gmra.mxu0 %v11740
    %v12627 = vpop.f32.mrf.mxu0
    %v12628 = vadd.f32 %v12614, %v12627
    %v12629 = vpop.f32.mrf.mxu0
    %v12630 = vadd.f32 %v12616, %v12629
    %12631 = vdwg.mxu0
    %12632 = vmatpush.bf16.msra.mxu0 %v12341
    %12633 = vmatpush.bf16.msra.mxu0 %v12340
    %12634 = vmatpush.bf16.msra.mxu0 %v12339
    %12635 = vmatpush.bf16.msra.mxu0 %v12338
    %12636 = vmatpush.bf16.msra.mxu0 %v12337
    %12637 = vmatpush.bf16.msra.mxu0 %v12336
    %12638 = vmatpush.bf16.msra.mxu0 %v12335
    %12639 = vmatpush.bf16.msra.mxu0 %v12334
    %12640 = vmatmul.bf16.gmra.mxu0 %v11741
    %v12641 = vpop.f32.mrf.mxu0
    %v12642 = vadd.f32 %v12628, %v12641
    %v12643 = vpop.f32.mrf.mxu0
    %v12644 = vadd.f32 %v12630, %v12643
    %12645 = vdwg.mxu0
    %12646 = vmatpush.bf16.msra.mxu0 %v12349
    %12647 = vmatpush.bf16.msra.mxu0 %v12348
    %12648 = vmatpush.bf16.msra.mxu0 %v12347
    %12649 = vmatpush.bf16.msra.mxu0 %v12346
    %12650 = vmatpush.bf16.msra.mxu0 %v12345
    %12651 = vmatpush.bf16.msra.mxu0 %v12344
    %12652 = vmatpush.bf16.msra.mxu0 %v12343
    %12653 = vmatpush.bf16.msra.mxu0 %v12342
    %12654 = vmatmul.bf16.gmra.mxu0 %v11742
    %v12655 = vpop.f32.mrf.mxu0
    %v12656 = vadd.f32 %v12642, %v12655
    %v12657 = vpop.f32.mrf.mxu0
    %v12658 = vadd.f32 %v12644, %v12657
    %12659 = vdwg.mxu0
    %12660 = vmatpush.bf16.msra.mxu0 %v12357
    %12661 = vmatpush.bf16.msra.mxu0 %v12356
    %12662 = vmatpush.bf16.msra.mxu0 %v12355
    %12663 = vmatpush.bf16.msra.mxu0 %v12354
    %12664 = vmatpush.bf16.msra.mxu0 %v12353
    %12665 = vmatpush.bf16.msra.mxu0 %v12352
    %12666 = vmatpush.bf16.msra.mxu0 %v12351
    %12667 = vmatpush.bf16.msra.mxu0 %v12350
    %12668 = vmatmul.bf16.gmra.mxu0 %v11743
    %v12669 = vpop.f32.mrf.mxu0
    %v12670 = vadd.f32 %v12656, %v12669
    %v12671 = vpop.f32.mrf.mxu0
    %v12672 = vadd.f32 %v12658, %v12671
    %12673 = vdwg.mxu0
    %12674 = vmatpush.bf16.msra.mxu0 %v12365
    %12675 = vmatpush.bf16.msra.mxu0 %v12364
    %12676 = vmatpush.bf16.msra.mxu0 %v12363
    %12677 = vmatpush.bf16.msra.mxu0 %v12362
    %12678 = vmatpush.bf16.msra.mxu0 %v12361
    %12679 = vmatpush.bf16.msra.mxu0 %v12360
    %12680 = vmatpush.bf16.msra.mxu0 %v12359
    %12681 = vmatpush.bf16.msra.mxu0 %v12358
    %12682 = vmatmul.bf16.gmra.mxu0 %v11744
    %v12683 = vpop.f32.mrf.mxu0
    %v12684 = vadd.f32 %v12670, %v12683
    %v12685 = vpop.f32.mrf.mxu0
    %v12686 = vadd.f32 %v12672, %v12685
    %12687 = vdwg.mxu0
    %12688 = vmatpush.bf16.msra.mxu0 %v12373
    %12689 = vmatpush.bf16.msra.mxu0 %v12372
    %12690 = vmatpush.bf16.msra.mxu0 %v12371
    %12691 = vmatpush.bf16.msra.mxu0 %v12370
    %12692 = vmatpush.bf16.msra.mxu0 %v12369
    %12693 = vmatpush.bf16.msra.mxu0 %v12368
    %12694 = vmatpush.bf16.msra.mxu0 %v12367
    %12695 = vmatpush.bf16.msra.mxu0 %v12366
    %12696 = vmatmul.bf16.gmra.mxu0 %v11745
    %v12697 = vpop.f32.mrf.mxu0
    %v12698 = vadd.f32 %v12684, %v12697
    %v12699 = vpop.f32.mrf.mxu0
    %v12700 = vadd.f32 %v12686, %v12699
    %12701 = vdwg.mxu0
    %12702 = vmatpush.bf16.msra.mxu0 %v12381
    %12703 = vmatpush.bf16.msra.mxu0 %v12380
    %12704 = vmatpush.bf16.msra.mxu0 %v12379
    %12705 = vmatpush.bf16.msra.mxu0 %v12378
    %12706 = vmatpush.bf16.msra.mxu0 %v12377
    %12707 = vmatpush.bf16.msra.mxu0 %v12376
    %12708 = vmatpush.bf16.msra.mxu0 %v12375
    %12709 = vmatpush.bf16.msra.mxu0 %v12374
    %12710 = vmatmul.bf16.gmra.mxu0 %v11746
    %v12711 = vpop.f32.mrf.mxu0
    %v12712 = vadd.f32 %v12698, %v12711
    %v12713 = vpop.f32.mrf.mxu0
    %v12714 = vadd.f32 %v12700, %v12713
    %12715 = vdwg.mxu0
    %12716 = vmatpush.bf16.msra.mxu0 %v12389
    %12717 = vmatpush.bf16.msra.mxu0 %v12388
    %12718 = vmatpush.bf16.msra.mxu0 %v12387
    %12719 = vmatpush.bf16.msra.mxu0 %v12386
    %12720 = vmatpush.bf16.msra.mxu0 %v12385
    %12721 = vmatpush.bf16.msra.mxu0 %v12384
    %12722 = vmatpush.bf16.msra.mxu0 %v12383
    %12723 = vmatpush.bf16.msra.mxu0 %v12382
    %12724 = vmatmul.bf16.gmra.mxu0 %v11747
    %v12725 = vpop.f32.mrf.mxu0
    %v12726 = vadd.f32 %v12712, %v12725
    %v12727 = vpop.f32.mrf.mxu0
    %v12728 = vadd.f32 %v12714, %v12727
    %12729 = vdwg.mxu0
    %12730 = vmatpush.bf16.msra.mxu0 %v12397
    %12731 = vmatpush.bf16.msra.mxu0 %v12396
    %12732 = vmatpush.bf16.msra.mxu0 %v12395
    %12733 = vmatpush.bf16.msra.mxu0 %v12394
    %12734 = vmatpush.bf16.msra.mxu0 %v12393
    %12735 = vmatpush.bf16.msra.mxu0 %v12392
    %12736 = vmatpush.bf16.msra.mxu0 %v12391
    %12737 = vmatpush.bf16.msra.mxu0 %v12390
    %12738 = vmatmul.bf16.gmra.mxu0 %v11748
    %v12739 = vpop.f32.mrf.mxu0
    %v12740 = vadd.f32 %v12726, %v12739
    %v12741 = vpop.f32.mrf.mxu0
    %v12742 = vadd.f32 %v12728, %v12741
    %12743 = vdwg.mxu0
    %12744 = vmatpush.bf16.msra.mxu0 %v12405
    %12745 = vmatpush.bf16.msra.mxu0 %v12404
    %12746 = vmatpush.bf16.msra.mxu0 %v12403
    %12747 = vmatpush.bf16.msra.mxu0 %v12402
    %12748 = vmatpush.bf16.msra.mxu0 %v12401
    %12749 = vmatpush.bf16.msra.mxu0 %v12400
    %12750 = vmatpush.bf16.msra.mxu0 %v12399
    %12751 = vmatpush.bf16.msra.mxu0 %v12398
    %12752 = vmatmul.bf16.gmra.mxu0 %v11749
    %v12753 = vpop.f32.mrf.mxu0
    %v12754 = vadd.f32 %v12740, %v12753
    %v12755 = vpop.f32.mrf.mxu0
    %v12756 = vadd.f32 %v12742, %v12755
    %12757 = vdwg.mxu0
    %12758 = vst [vmem:[%s7] sm:$0xff] %v12754
    %12759 = vst [vmem:[%s7 + $0x8] sm:$0xff] %v12756
    // Predicated region
    $region54: #{mnist_classifier_forward.1} parent=1 // pred_check
      _
    $region55: #{mnist_classifier_forward.1} parent=1 // pred_check_branch
      %12761 = sbr.rel (0) target = $region57
    $region56: #{mnist_classifier_forward.1} parent=1 // pred_region
      _
    $region57: #{mnist_classifier_forward.1} parent=1 // pred_fallthru
      _
    // Predicated region
    $region58: #{mnist_classifier_forward.1} parent=1 // pred_check
      _
    $region59: #{mnist_classifier_forward.1} parent=1 // pred_check_branch
      %12763 = sbr.rel (0) target = $region61
    $region60: #{mnist_classifier_forward.1} parent=1 // pred_region
      _
    $region61: #{mnist_classifier_forward.1} parent=1 // pred_fallthru
      _
    %12764 = vsyncpa [#allocation5], 1
    %12765 = vsyncpa [#allocation7], 1
    %12766 = vsyncpa [#allocation10], 1
    %12767 = vsyncpa [#allocation13], 1

</llo_original>
